<compile_context>
chip_gen: v5e
topology: v5e:2x2
jax: 0.10.0
libtpu: 0.0.40
codegen_flags: <defaults>
</compile_context>

<pallas_src>
import jax
import jax.numpy as jnp
from jax import lax
from jax.experimental import pallas as pl
from jax.experimental.pallas import tpu as pltpu

MM_DTYPE = jnp.bfloat16   # MXU operand dtype (accumulation is f32)
B_BLK = 8                 # batch rows per grid step (f32 sublane tile)


# ----------------------------------------------------------------------------
# Fused bidirectional LSTM layer (forward + reverse in one kernel)
# ----------------------------------------------------------------------------
def bilstm_kernel(x_ref, mask_ref, wih_ref, whh_ref, bias_ref, out_ref,
                  pre_sc, h_sc, c_sc, hf_sc, hr_sc):
    """One BiLSTM layer over a [T, B_blk, D] time-major tile.

    x_ref   : [T, B, D]   f32   time-major activations
    mask_ref: [T, B, 1]   f32   1.0 where t < sent_len[b] else 0.0
    wih_ref : [D, 8H]     bf16  concat(W_ih_fwd, W_ih_rev) along the gate axis
    whh_ref : [2H, 8H]    bf16  block_diag(W_hh_fwd, W_hh_rev)
    bias_ref: [1, 8H]     f32   concat(b_fwd, b_rev)   (b_ih + b_hh)
    out_ref : [T, B, 2H]  f32   [..., :H]=forward, [..., H:]=reverse
    """
    T, B, D = x_ref.shape
    H2 = h_sc.shape[1]          # 2H
    H = H2 // 2
    G = 4 * H                   # per-direction gate width (= 128 for H=32)

    # --- hoisted input projection: one large MXU matmul for both directions ---
    x2 = x_ref[...].reshape(T * B, D).astype(MM_DTYPE)
    pre = jnp.dot(x2, wih_ref[...], preferred_element_type=jnp.float32)
    pre = pre + bias_ref[...]
    pre_sc[...] = pre.reshape(T, B, 2 * G)

    h_sc[...] = jnp.zeros_like(h_sc)
    c_sc[...] = jnp.zeros_like(c_sc)

    def cell(gates, c_prev):
        i_g = jax.nn.sigmoid(gates[:, 0 * H:1 * H])
        f_g = jax.nn.sigmoid(gates[:, 1 * H:2 * H])
        g_g = jnp.tanh(gates[:, 2 * H:3 * H])
        o_g = jax.nn.sigmoid(gates[:, 3 * H:4 * H])
        c_new = f_g * c_prev + i_g * g_g
        h_new = o_g * jnp.tanh(c_new)
        return h_new, c_new

    def step(t, carry):
        s = T - 1 - t                                   # reverse-direction index
        # single recurrent matmul for both directions (block-diagonal W_hh)
        hh = jnp.dot(h_sc[...].astype(MM_DTYPE), whh_ref[...],
                     preferred_element_type=jnp.float32)          # [B, 8H]
        gates_f = hh[:, 0:G] + pre_sc[t][:, 0:G]
        gates_r = hh[:, G:2 * G] + pre_sc[s][:, G:2 * G]

        c_all = c_sc[...]
        h_f, c_f = cell(gates_f, c_all[:, 0:H])
        h_r, c_r = cell(gates_r, c_all[:, H:H2])

        # pack_padded semantics: zero state/output outside the valid length.
        # For the reverse direction this also resets the state so it effectively
        # starts fresh at position sent_len-1.
        m_f = mask_ref[t]                                # [B, 1]
        m_r = mask_ref[s]                                # [B, 1]
        h_f = h_f * m_f
        c_f = c_f * m_f
        h_r = h_r * m_r
        c_r = c_r * m_r

        h_sc[...] = jnp.concatenate([h_f, h_r], axis=-1)
        c_sc[...] = jnp.concatenate([c_f, c_r], axis=-1)
        hf_sc[t] = h_f
        hr_sc[s] = h_r
        return carry

    lax.fori_loop(0, T, step, 0, unroll=True)

    out_ref[...] = jnp.concatenate([hf_sc[...], hr_sc[...]], axis=-1)


def bilstm_layer(x_tbd, mask_tb1, p):
    T, B, D = x_tbd.shape
    H2, G8 = p["w_hh"].shape                 # (2H, 8H)
    H = H2 // 2
    return pl.pallas_call(
        bilstm_kernel,
        out_shape=jax.ShapeDtypeStruct((T, B, 2 * H), jnp.float32),
        grid_spec=pltpu.PrefetchScalarGridSpec(
            num_scalar_prefetch=0,
            grid=(B // B_BLK,),
            in_specs=[
                pl.BlockSpec((T, B_BLK, D), lambda b: (0, b, 0)),
                pl.BlockSpec((T, B_BLK, 1), lambda b: (0, b, 0)),
                pl.BlockSpec((D, G8), lambda b: (0, 0)),
                pl.BlockSpec((H2, G8), lambda b: (0, 0)),
                pl.BlockSpec((1, G8), lambda b: (0, 0)),
            ],
            out_specs=pl.BlockSpec((T, B_BLK, 2 * H), lambda b: (0, b, 0)),
            scratch_shapes=[
                pltpu.VMEM((T, B_BLK, G8), jnp.float32),   # pre-gates (both dirs)
                pltpu.VMEM((B_BLK, H2), jnp.float32),      # h state (fwd|rev)
                pltpu.VMEM((B_BLK, H2), jnp.float32),      # c state (fwd|rev)
                pltpu.VMEM((T, B_BLK, H), jnp.float32),    # fwd outputs
                pltpu.VMEM((T, B_BLK, H), jnp.float32),    # rev outputs
            ],
        ),
        compiler_params=pltpu.CompilerParams(
            dimension_semantics=("parallel",)),
    )(x_tbd, mask_tb1, p["w_ih"], p["w_hh"], p["bias"])


# ----------------------------------------------------------------------------
# Fused FeedForward(2H, [H], 2) + masked CrossEntropy + argmax
# ----------------------------------------------------------------------------
def ff_loss_kernel(x_ref, gold_ref, wgt_ref, w1_ref, b1_ref, w2_ref, b2_ref,
                   loss_ref, pred_ref):
    """x_ref: [T, B, 2H] f32; gold/wgt/pred: [T*B, 1]; loss: [1, 1].

    wgt holds 1{t<len}/(len * n_sentences): a single weighted sum reproduces
    per-sentence-mean CE followed by the batch mean.
    """
    T, B, D2 = x_ref.shape
    x2 = x_ref[...].reshape(T * B, D2).astype(MM_DTYPE)
    h = jnp.dot(x2, w1_ref[...], preferred_element_type=jnp.float32) + b1_ref[...]
    h = jnp.maximum(h, 0.0)
    logits = jnp.dot(h.astype(MM_DTYPE), w2_ref[...],
                     preferred_element_type=jnp.float32) + b2_ref[...]    # [T*B, 2]
    l0 = logits[:, 0:1]
    l1 = logits[:, 1:2]
    m = jnp.maximum(l0, l1)
    lse = m + jnp.log(jnp.exp(l0 - m) + jnp.exp(l1 - m))
    gold = gold_ref[...]
    gold_logit = jnp.where(gold == 1, l1, l0)
    ce = lse - gold_logit                                                 # [T*B, 1]
    loss_ref[...] = jnp.sum(ce * wgt_ref[...], axis=0, keepdims=True)
    pred_ref[...] = (l1 > l0).astype(jnp.int32)


def ff_and_loss(x_tbd, gold_flat, wgt_flat, w1, b1, w2, b2):
    T, B, _ = x_tbd.shape
    vmem = pl.BlockSpec(memory_space=pltpu.MemorySpace.VMEM)
    return pl.pallas_call(
        ff_loss_kernel,
        out_shape=(jax.ShapeDtypeStruct((1, 1), jnp.float32),
                   jax.ShapeDtypeStruct((T * B, 1), jnp.int32)),
        in_specs=[vmem] * 7,
        out_specs=(vmem, vmem),
    )(x_tbd, gold_flat, wgt_flat, w1, b1, w2, b2)


# ----------------------------------------------------------------------------
# Parameters
# ----------------------------------------------------------------------------
def init_bilstm_params(key, in_size, hidden):
    bound = float(hidden) ** -0.5
    ks = jax.random.split(key, 6)

    def u(kk, shape):
        return jax.random.uniform(kk, shape, jnp.float32, -bound, bound)

    w_ih_f = u(ks[0], (in_size, 4 * hidden))
    w_hh_f = u(ks[1], (hidden, 4 * hidden))
    b_f = u(ks[2], (1, 4 * hidden))
    w_ih_r = u(ks[3], (in_size, 4 * hidden))
    w_hh_r = u(ks[4], (hidden, 4 * hidden))
    b_r = u(ks[5], (1, 4 * hidden))

    w_hh = jnp.zeros((2 * hidden, 8 * hidden), jnp.float32)
    w_hh = w_hh.at[:hidden, :4 * hidden].set(w_hh_f)
    w_hh = w_hh.at[hidden:, 4 * hidden:].set(w_hh_r)
    return {
        "w_ih": jnp.concatenate([w_ih_f, w_ih_r], axis=1).astype(MM_DTYPE),
        "w_hh": w_hh.astype(MM_DTYPE),
        "bias": jnp.concatenate([b_f, b_r], axis=1),          # f32
    }


def init_segmenter_params(key, vocab, embed, hidden):
    k_emb, k_l1, k_l2, k_f1, k_f2, k_f3, k_f4 = jax.random.split(key, 7)
    return {
        "embed": jax.random.normal(k_emb, (vocab, embed), jnp.float32) * 0.1,
        "lstm_embd": init_bilstm_params(k_l1, embed, hidden),
        "lstm_out": init_bilstm_params(k_l2, 2 * hidden, hidden),
        "ff_w1": (jax.random.normal(k_f1, (2 * hidden, hidden), jnp.float32) * 0.1
                  ).astype(MM_DTYPE),
        "ff_b1": jax.random.normal(k_f2, (1, hidden), jnp.float32) * 0.1,
        "ff_w2": (jax.random.normal(k_f3, (hidden, 2), jnp.float32) * 0.1
                  ).astype(MM_DTYPE),
        "ff_b2": jax.random.normal(k_f4, (1, 2), jnp.float32) * 0.1,
    }


# ----------------------------------------------------------------------------
# Forward pass (time-major end-to-end)
# ----------------------------------------------------------------------------
@jax.jit
def segmenter_forward(params, tokens, sents_len, starts_edu):
    """Returns (loss scalar, padded argmax predictions [B, T])."""
    B_real, T = tokens.shape
    pad = (-B_real) % B_BLK
    B = B_real + pad

    tokens_p = jnp.pad(tokens, ((0, pad), (0, 0)))
    lens_p = jnp.pad(sents_len.astype(jnp.int32), (0, pad))
    gold_p = jnp.pad(starts_edu.astype(jnp.int32), ((0, pad), (0, 0)))

    # TODO(synk): TextEmbedder (word/char/BERT embedder stack) simplified to a
    # deterministic word-embedding lookup of the same output width.
    x_tbe = params["embed"][tokens_p.T]                        # [T, B, E] time-major

    t_idx = jnp.arange(T, dtype=jnp.int32)[None, :]            # [1, T]
    mask_bt = (t_idx < lens_p[:, None]).astype(jnp.float32)    # [B, T]
    mask_tb1 = mask_bt.T[:, :, None]                           # [T, B, 1]

    rnn1 = bilstm_layer(x_tbe, mask_tb1, params["lstm_embd"])  # [T, B, 2H]
    rnn2 = bilstm_layer(rnn1, mask_tb1, params["lstm_out"])    # [T, B, 2H]

    # per-token CE weight = 1{t<len} / (len * n_real_sentences); pad rows = 0.
    lens_c = jnp.maximum(lens_p, 1).astype(jnp.float32)        # guard len==0
    wgt_bt = mask_bt / (lens_c[:, None] * float(B_real))
    wgt_flat = wgt_bt.T.reshape(T * B, 1)
    gold_flat = gold_p.T.reshape(T * B, 1)

    loss, preds_flat = ff_and_loss(
        rnn2, gold_flat, wgt_flat,
        params["ff_w1"], params["ff_b1"], params["ff_w2"], params["ff_b2"])

    preds = preds_flat.reshape(T, B).T[:B_real]                # [B_real, T]
    return loss[0, 0], preds


if __name__ == "__main__":
    B, T = 2, 8
    VOCAB, EMBED, HIDDEN = 50, 32, 32     # 4H = 128 (lane-aligned gate blocks)

    key = jax.random.PRNGKey(0)
    k_par, k_tok, k_gold = jax.random.split(key, 3)

    params = init_segmenter_params(k_par, VOCAB, EMBED, HIDDEN)

    tokens = jax.random.randint(k_tok, (B, T), 0, VOCAB, dtype=jnp.int32)
    sents_len = jnp.array([8, 5], dtype=jnp.int32)
    starts_edu = jax.random.randint(k_gold, (B, T), 0, 2, dtype=jnp.int32)

    loss, preds = segmenter_forward(params, tokens, sents_len, starts_edu)
    jax.block_until_ready((loss, preds))

    # per-sentence variable-length edu_splits (host-side glue, like the torch list)
    edu_splits = [preds[b, : int(sents_len[b])] for b in range(B)]
    _ = edu_splits

    assert jnp.isfinite(loss)
    print("KERNEL_OK")
</pallas_src>

<mosaic_0001>
module attributes {stable_mosaic.version = 11 : i64} {
  func.func @bilstm_kernel(%arg0: i32, %arg1: memref<8x8x32xf32, #tpu.memory_space<vmem>>, %arg2: memref<8x8x1xf32, #tpu.memory_space<vmem>>, %arg3: memref<32x256xbf16, #tpu.memory_space<vmem>>, %arg4: memref<64x256xbf16, #tpu.memory_space<vmem>>, %arg5: memref<1x256xf32, #tpu.memory_space<vmem>>, %arg6: memref<8x8x64xf32, #tpu.memory_space<vmem>>, %arg7: memref<8x8x256xf32, #tpu.memory_space<vmem>>, %arg8: memref<8x64xf32, #tpu.memory_space<vmem>>, %arg9: memref<8x64xf32, #tpu.memory_space<vmem>>, %arg10: memref<8x8x32xf32, #tpu.memory_space<vmem>>, %arg11: memref<8x8x32xf32, #tpu.memory_space<vmem>>) attributes {dimension_semantics = [#tpu.dimension_semantics<parallel>], iteration_bounds = array<i64: 1>, scalar_prefetch = 0 : i64, scratch_operands = 5 : i64, tpu.core_type = #tpu.core_type<tc>, window_params = [{transform_indices = @transform_0, window_bounds = array<i64: 8, 8, 32>}, {transform_indices = @transform_1, window_bounds = array<i64: 8, 8, 1>}, {pipeline_mode = #tpu.pipeline_mode<synchronous>, transform_indices = @transform_2, window_bounds = array<i64: 32, 256>}, {pipeline_mode = #tpu.pipeline_mode<synchronous>, transform_indices = @transform_3, window_bounds = array<i64: 64, 256>}, {pipeline_mode = #tpu.pipeline_mode<synchronous>, transform_indices = @transform_4, window_bounds = array<i64: 1, 256>}, {transform_indices = @transform_5, window_bounds = array<i64: 8, 8, 64>}]} {
    %c0 = arith.constant 0 : index
    %c0_0 = arith.constant 0 : index
    %c0_1 = arith.constant 0 : index
    %0 = vector.load %arg1[%c0, %c0_0, %c0_1] : memref<8x8x32xf32, #tpu.memory_space<vmem>>, vector<8x8x32xf32>
    %1 = vector.shape_cast %0 : vector<8x8x32xf32> to vector<64x32xf32>
    %2 = arith.truncf %1 : vector<64x32xf32> to vector<64x32xbf16>
    %c0_2 = arith.constant 0 : index
    %c0_3 = arith.constant 0 : index
    %3 = vector.load %arg3[%c0_2, %c0_3] : memref<32x256xbf16, #tpu.memory_space<vmem>>, vector<32x256xbf16>
    %cst = arith.constant dense<0.000000e+00> : vector<64x256xf32>
    %4 = tpu.matmul %2, %3, %cst {dimension_numbers = #tpu.dot_dimension_numbers<[1], [0], [0], [1], [0, 0, 1, 1], [], []>} : vector<64x32xbf16>, vector<32x256xbf16>, vector<64x256xf32> -> vector<64x256xf32>
    %c0_4 = arith.constant 0 : index
    %c0_5 = arith.constant 0 : index
    %5 = vector.load %arg5[%c0_4, %c0_5] : memref<1x256xf32, #tpu.memory_space<vmem>>, vector<1x256xf32>
    %6 = vector.broadcast %5 : vector<1x256xf32> to vector<64x256xf32>
    %7 = arith.addf %4, %6 : vector<64x256xf32>
    %8 = vector.shape_cast %7 : vector<64x256xf32> to vector<8x8x256xf32>
    %c0_6 = arith.constant 0 : index
    %c0_7 = arith.constant 0 : index
    %c0_8 = arith.constant 0 : index
    %9 = vector.load %arg7[%c0_6, %c0_7, %c0_8] : memref<8x8x256xf32, #tpu.memory_space<vmem>>, vector<8x8x256xf32>
    tpu.vector_store %arg7[%c0_6, %c0_7, %c0_8], %8 {strides = array<i32>} : memref<8x8x256xf32, #tpu.memory_space<vmem>>, vector<8x8x256xf32>,
    %cst_9 = arith.constant 0.000000e+00 : f32
    %10 = vector.broadcast %cst_9 : f32 to vector<8x64xf32>
    %c0_10 = arith.constant 0 : index
    %c0_11 = arith.constant 0 : index
    %11 = vector.load %arg8[%c0_10, %c0_11] : memref<8x64xf32, #tpu.memory_space<vmem>>, vector<8x64xf32>
    tpu.vector_store %arg8[%c0_10, %c0_11], %10 {strides = array<i32>} : memref<8x64xf32, #tpu.memory_space<vmem>>, vector<8x64xf32>,
    %cst_12 = arith.constant 0.000000e+00 : f32
    %12 = vector.broadcast %cst_12 : f32 to vector<8x64xf32>
    %c0_13 = arith.constant 0 : index
    %c0_14 = arith.constant 0 : index
    %13 = vector.load %arg9[%c0_13, %c0_14] : memref<8x64xf32, #tpu.memory_space<vmem>>, vector<8x64xf32>
    tpu.vector_store %arg9[%c0_13, %c0_14], %12 {strides = array<i32>} : memref<8x64xf32, #tpu.memory_space<vmem>>, vector<8x64xf32>,
    %c0_i32 = arith.constant 0 : i32
    %c7_i32 = arith.constant 7 : i32
    %14 = arith.subi %c7_i32, %c0_i32 : i32
    %c0_15 = arith.constant 0 : index
    %c0_16 = arith.constant 0 : index
    %15 = vector.load %arg8[%c0_15, %c0_16] : memref<8x64xf32, #tpu.memory_space<vmem>>, vector<8x64xf32>
    %16 = arith.truncf %15 : vector<8x64xf32> to vector<8x64xbf16>
    %c0_17 = arith.constant 0 : index
    %c0_18 = arith.constant 0 : index
    %17 = vector.load %arg4[%c0_17, %c0_18] : memref<64x256xbf16, #tpu.memory_space<vmem>>, vector<64x256xbf16>
    %cst_19 = arith.constant dense<0.000000e+00> : vector<8x256xf32>
    %18 = tpu.matmul %16, %17, %cst_19 {dimension_numbers = #tpu.dot_dimension_numbers<[1], [0], [0], [1], [0, 0, 1, 1], [], []>} : vector<8x64xbf16>, vector<64x256xbf16>, vector<8x256xf32> -> vector<8x256xf32>
    %19 = vector.extract_strided_slice %18 {offsets = [0, 0], sizes = [8, 128], strides = [1, 1]} : vector<8x256xf32> to vector<8x128xf32>
    %20 = arith.index_cast %c0_i32 : i32 to index
    %c0_20 = arith.constant 0 : index
    %c0_21 = arith.constant 0 : index
    %21 = vector.load %arg7[%20, %c0_20, %c0_21] : memref<8x8x256xf32, #tpu.memory_space<vmem>>, vector<1x8x256xf32>
    %22 = vector.shape_cast %21 : vector<1x8x256xf32> to vector<8x256xf32>
    %23 = vector.extract_strided_slice %22 {offsets = [0, 0], sizes = [8, 128], strides = [1, 1]} : vector<8x256xf32> to vector<8x128xf32>
    %24 = arith.addf %19, %23 : vector<8x128xf32>
    %25 = vector.extract_strided_slice %18 {offsets = [0, 128], sizes = [8, 128], strides = [1, 1]} : vector<8x256xf32> to vector<8x128xf32>
    %26 = arith.index_cast %14 : i32 to index
    %c0_22 = arith.constant 0 : index
    %c0_23 = arith.constant 0 : index
    %27 = vector.load %arg7[%26, %c0_22, %c0_23] : memref<8x8x256xf32, #tpu.memory_space<vmem>>, vector<1x8x256xf32>
    %28 = vector.shape_cast %27 : vector<1x8x256xf32> to vector<8x256xf32>
    %29 = vector.extract_strided_slice %28 {offsets = [0, 128], sizes = [8, 128], strides = [1, 1]} : vector<8x256xf32> to vector<8x128xf32>
    %30 = arith.addf %25, %29 : vector<8x128xf32>
    %c0_24 = arith.constant 0 : index
    %c0_25 = arith.constant 0 : index
    %31 = vector.load %arg9[%c0_24, %c0_25] : memref<8x64xf32, #tpu.memory_space<vmem>>, vector<8x64xf32>
    %32 = vector.extract_strided_slice %31 {offsets = [0, 0], sizes = [8, 32], strides = [1, 1]} : vector<8x64xf32> to vector<8x32xf32>
    %33 = vector.extract_strided_slice %24 {offsets = [0, 0], sizes = [8, 32], strides = [1, 1]} : vector<8x128xf32> to vector<8x32xf32>
    %34 = arith.negf %33 : vector<8x32xf32>
    %35 = math.exp %34 : vector<8x32xf32>
    %cst_26 = arith.constant 1.000000e+00 : f32
    %36 = vector.broadcast %cst_26 : f32 to vector<8x32xf32>
    %37 = arith.addf %36, %35 : vector<8x32xf32>
    %38 = arith.divf %36, %37 : vector<8x32xf32>
    %39 = vector.extract_strided_slice %24 {offsets = [0, 32], sizes = [8, 32], strides = [1, 1]} : vector<8x128xf32> to vector<8x32xf32>
    %40 = arith.negf %39 : vector<8x32xf32>
    %41 = math.exp %40 : vector<8x32xf32>
    %cst_27 = arith.constant 1.000000e+00 : f32
    %42 = vector.broadcast %cst_27 : f32 to vector<8x32xf32>
    %43 = arith.addf %42, %41 : vector<8x32xf32>
    %44 = arith.divf %42, %43 : vector<8x32xf32>
    %45 = vector.extract_strided_slice %24 {offsets = [0, 64], sizes = [8, 32], strides = [1, 1]} : vector<8x128xf32> to vector<8x32xf32>
    %46 = math.tanh %45 : vector<8x32xf32>
    %47 = vector.extract_strided_slice %24 {offsets = [0, 96], sizes = [8, 32], strides = [1, 1]} : vector<8x128xf32> to vector<8x32xf32>
    %48 = arith.negf %47 : vector<8x32xf32>
    %49 = math.exp %48 : vector<8x32xf32>
    %cst_28 = arith.constant 1.000000e+00 : f32
    %50 = vector.broadcast %cst_28 : f32 to vector<8x32xf32>
    %51 = arith.addf %50, %49 : vector<8x32xf32>
    %52 = arith.divf %50, %51 : vector<8x32xf32>
    %53 = arith.mulf %44, %32 : vector<8x32xf32>
    %54 = arith.mulf %38, %46 : vector<8x32xf32>
    %55 = arith.addf %53, %54 : vector<8x32xf32>
    %56 = math.tanh %55 : vector<8x32xf32>
    %57 = arith.mulf %52, %56 : vector<8x32xf32>
    %58 = vector.extract_strided_slice %31 {offsets = [0, 32], sizes = [8, 32], strides = [1, 1]} : vector<8x64xf32> to vector<8x32xf32>
    %59 = vector.extract_strided_slice %30 {offsets = [0, 0], sizes = [8, 32], strides = [1, 1]} : vector<8x128xf32> to vector<8x32xf32>
    %60 = arith.negf %59 : vector<8x32xf32>
    %61 = math.exp %60 : vector<8x32xf32>
    %cst_29 = arith.constant 1.000000e+00 : f32
    %62 = vector.broadcast %cst_29 : f32 to vector<8x32xf32>
    %63 = arith.addf %62, %61 : vector<8x32xf32>
    %64 = arith.divf %62, %63 : vector<8x32xf32>
    %65 = vector.extract_strided_slice %30 {offsets = [0, 32], sizes = [8, 32], strides = [1, 1]} : vector<8x128xf32> to vector<8x32xf32>
    %66 = arith.negf %65 : vector<8x32xf32>
    %67 = math.exp %66 : vector<8x32xf32>
    %cst_30 = arith.constant 1.000000e+00 : f32
    %68 = vector.broadcast %cst_30 : f32 to vector<8x32xf32>
    %69 = arith.addf %68, %67 : vector<8x32xf32>
    %70 = arith.divf %68, %69 : vector<8x32xf32>
    %71 = vector.extract_strided_slice %30 {offsets = [0, 64], sizes = [8, 32], strides = [1, 1]} : vector<8x128xf32> to vector<8x32xf32>
    %72 = math.tanh %71 : vector<8x32xf32>
    %73 = vector.extract_strided_slice %30 {offsets = [0, 96], sizes = [8, 32], strides = [1, 1]} : vector<8x128xf32> to vector<8x32xf32>
    %74 = arith.negf %73 : vector<8x32xf32>
    %75 = math.exp %74 : vector<8x32xf32>
    %cst_31 = arith.constant 1.000000e+00 : f32
    %76 = vector.broadcast %cst_31 : f32 to vector<8x32xf32>
    %77 = arith.addf %76, %75 : vector<8x32xf32>
    %78 = arith.divf %76, %77 : vector<8x32xf32>
    %79 = arith.mulf %70, %58 : vector<8x32xf32>
    %80 = arith.mulf %64, %72 : vector<8x32xf32>
    %81 = arith.addf %79, %80 : vector<8x32xf32>
    %82 = math.tanh %81 : vector<8x32xf32>
    %83 = arith.mulf %78, %82 : vector<8x32xf32>
    %84 = arith.index_cast %c0_i32 : i32 to index
    %c0_32 = arith.constant 0 : index
    %c0_33 = arith.constant 0 : index
    %85 = vector.load %arg2[%84, %c0_32, %c0_33] : memref<8x8x1xf32, #tpu.memory_space<vmem>>, vector<1x8x1xf32>
    %86 = vector.shape_cast %85 : vector<1x8x1xf32> to vector<8x1xf32>
    %87 = arith.index_cast %14 : i32 to index
    %c0_34 = arith.constant 0 : index
    %c0_35 = arith.constant 0 : index
    %88 = vector.load %arg2[%87, %c0_34, %c0_35] : memref<8x8x1xf32, #tpu.memory_space<vmem>>, vector<1x8x1xf32>
    %89 = vector.shape_cast %88 : vector<1x8x1xf32> to vector<8x1xf32>
    %90 = vector.broadcast %86 : vector<8x1xf32> to vector<8x32xf32>
    %91 = arith.mulf %57, %90 : vector<8x32xf32>
    %92 = vector.broadcast %86 : vector<8x1xf32> to vector<8x32xf32>
    %93 = arith.mulf %55, %92 : vector<8x32xf32>
    %94 = vector.broadcast %89 : vector<8x1xf32> to vector<8x32xf32>
    %95 = arith.mulf %83, %94 : vector<8x32xf32>
    %96 = vector.broadcast %89 : vector<8x1xf32> to vector<8x32xf32>
    %97 = arith.mulf %81, %96 : vector<8x32xf32>
    %98 = tpu.concatenate %91, %95 in 1 : vector<8x32xf32>, vector<8x32xf32> -> vector<8x64xf32>
    %c0_36 = arith.constant 0 : index
    %c0_37 = arith.constant 0 : index
    %99 = vector.load %arg8[%c0_36, %c0_37] : memref<8x64xf32, #tpu.memory_space<vmem>>, vector<8x64xf32>
    tpu.vector_store %arg8[%c0_36, %c0_37], %98 {strides = array<i32>} : memref<8x64xf32, #tpu.memory_space<vmem>>, vector<8x64xf32>,
    %100 = tpu.concatenate %93, %97 in 1 : vector<8x32xf32>, vector<8x32xf32> -> vector<8x64xf32>
    %c0_38 = arith.constant 0 : index
    %c0_39 = arith.constant 0 : index
    %101 = vector.load %arg9[%c0_38, %c0_39] : memref<8x64xf32, #tpu.memory_space<vmem>>, vector<8x64xf32>
    tpu.vector_store %arg9[%c0_38, %c0_39], %100 {strides = array<i32>} : memref<8x64xf32, #tpu.memory_space<vmem>>, vector<8x64xf32>,
    %102 = arith.index_cast %c0_i32 : i32 to index
    %c0_40 = arith.constant 0 : index
    %c0_41 = arith.constant 0 : index
    %103 = vector.load %arg10[%102, %c0_40, %c0_41] : memref<8x8x32xf32, #tpu.memory_space<vmem>>, vector<1x8x32xf32>
    %104 = vector.shape_cast %103 : vector<1x8x32xf32> to vector<8x32xf32>
    %105 = vector.shape_cast %91 : vector<8x32xf32> to vector<1x8x32xf32>
    tpu.vector_store %arg10[%102, %c0_40, %c0_41], %105 {strides = array<i32>} : memref<8x8x32xf32, #tpu.memory_space<vmem>>, vector<1x8x32xf32>,
    %106 = arith.index_cast %14 : i32 to index
    %c0_42 = arith.constant 0 : index
    %c0_43 = arith.constant 0 : index
    %107 = vector.load %arg11[%106, %c0_42, %c0_43] : memref<8x8x32xf32, #tpu.memory_space<vmem>>, vector<1x8x32xf32>
    %108 = vector.shape_cast %107 : vector<1x8x32xf32> to vector<8x32xf32>
    %109 = vector.shape_cast %95 : vector<8x32xf32> to vector<1x8x32xf32>
    tpu.vector_store %arg11[%106, %c0_42, %c0_43], %109 {strides = array<i32>} : memref<8x8x32xf32, #tpu.memory_space<vmem>>, vector<1x8x32xf32>,
    %c1_i32 = arith.constant 1 : i32
    %c7_i32_44 = arith.constant 7 : i32
    %110 = arith.subi %c7_i32_44, %c1_i32 : i32
    %c0_45 = arith.constant 0 : index
    %c0_46 = arith.constant 0 : index
    %111 = vector.load %arg8[%c0_45, %c0_46] : memref<8x64xf32, #tpu.memory_space<vmem>>, vector<8x64xf32>
    %112 = arith.truncf %111 : vector<8x64xf32> to vector<8x64xbf16>
    %c0_47 = arith.constant 0 : index
    %c0_48 = arith.constant 0 : index
    %113 = vector.load %arg4[%c0_47, %c0_48] : memref<64x256xbf16, #tpu.memory_space<vmem>>, vector<64x256xbf16>
    %cst_49 = arith.constant dense<0.000000e+00> : vector<8x256xf32>
    %114 = tpu.matmul %112, %113, %cst_49 {dimension_numbers = #tpu.dot_dimension_numbers<[1], [0], [0], [1], [0, 0, 1, 1], [], []>} : vector<8x64xbf16>, vector<64x256xbf16>, vector<8x256xf32> -> vector<8x256xf32>
    %115 = vector.extract_strided_slice %114 {offsets = [0, 0], sizes = [8, 128], strides = [1, 1]} : vector<8x256xf32> to vector<8x128xf32>
    %116 = arith.index_cast %c1_i32 : i32 to index
    %c0_50 = arith.constant 0 : index
    %c0_51 = arith.constant 0 : index
    %117 = vector.load %arg7[%116, %c0_50, %c0_51] : memref<8x8x256xf32, #tpu.memory_space<vmem>>, vector<1x8x256xf32>
    %118 = vector.shape_cast %117 : vector<1x8x256xf32> to vector<8x256xf32>
    %119 = vector.extract_strided_slice %118 {offsets = [0, 0], sizes = [8, 128], strides = [1, 1]} : vector<8x256xf32> to vector<8x128xf32>
    %120 = arith.addf %115, %119 : vector<8x128xf32>
    %121 = vector.extract_strided_slice %114 {offsets = [0, 128], sizes = [8, 128], strides = [1, 1]} : vector<8x256xf32> to vector<8x128xf32>
    %122 = arith.index_cast %110 : i32 to index
    %c0_52 = arith.constant 0 : index
    %c0_53 = arith.constant 0 : index
    %123 = vector.load %arg7[%122, %c0_52, %c0_53] : memref<8x8x256xf32, #tpu.memory_space<vmem>>, vector<1x8x256xf32>
    %124 = vector.shape_cast %123 : vector<1x8x256xf32> to vector<8x256xf32>
    %125 = vector.extract_strided_slice %124 {offsets = [0, 128], sizes = [8, 128], strides = [1, 1]} : vector<8x256xf32> to vector<8x128xf32>
    %126 = arith.addf %121, %125 : vector<8x128xf32>
    %c0_54 = arith.constant 0 : index
    %c0_55 = arith.constant 0 : index
    %127 = vector.load %arg9[%c0_54, %c0_55] : memref<8x64xf32, #tpu.memory_space<vmem>>, vector<8x64xf32>
    %128 = vector.extract_strided_slice %127 {offsets = [0, 0], sizes = [8, 32], strides = [1, 1]} : vector<8x64xf32> to vector<8x32xf32>
    %129 = vector.extract_strided_slice %120 {offsets = [0, 0], sizes = [8, 32], strides = [1, 1]} : vector<8x128xf32> to vector<8x32xf32>
    %130 = arith.negf %129 : vector<8x32xf32>
    %131 = math.exp %130 : vector<8x32xf32>
    %cst_56 = arith.constant 1.000000e+00 : f32
    %132 = vector.broadcast %cst_56 : f32 to vector<8x32xf32>
    %133 = arith.addf %132, %131 : vector<8x32xf32>
    %134 = arith.divf %132, %133 : vector<8x32xf32>
    %135 = vector.extract_strided_slice %120 {offsets = [0, 32], sizes = [8, 32], strides = [1, 1]} : vector<8x128xf32> to vector<8x32xf32>
    %136 = arith.negf %135 : vector<8x32xf32>
    %137 = math.exp %136 : vector<8x32xf32>
    %cst_57 = arith.constant 1.000000e+00 : f32
    %138 = vector.broadcast %cst_57 : f32 to vector<8x32xf32>
    %139 = arith.addf %138, %137 : vector<8x32xf32>
    %140 = arith.divf %138, %139 : vector<8x32xf32>
    %141 = vector.extract_strided_slice %120 {offsets = [0, 64], sizes = [8, 32], strides = [1, 1]} : vector<8x128xf32> to vector<8x32xf32>
    %142 = math.tanh %141 : vector<8x32xf32>
    %143 = vector.extract_strided_slice %120 {offsets = [0, 96], sizes = [8, 32], strides = [1, 1]} : vector<8x128xf32> to vector<8x32xf32>
    %144 = arith.negf %143 : vector<8x32xf32>
    %145 = math.exp %144 : vector<8x32xf32>
    %cst_58 = arith.constant 1.000000e+00 : f32
    %146 = vector.broadcast %cst_58 : f32 to vector<8x32xf32>
    %147 = arith.addf %146, %145 : vector<8x32xf32>
    %148 = arith.divf %146, %147 : vector<8x32xf32>
    %149 = arith.mulf %140, %128 : vector<8x32xf32>
    %150 = arith.mulf %134, %142 : vector<8x32xf32>
    %151 = arith.addf %149, %150 : vector<8x32xf32>
    %152 = math.tanh %151 : vector<8x32xf32>
    %153 = arith.mulf %148, %152 : vector<8x32xf32>
    %154 = vector.extract_strided_slice %127 {offsets = [0, 32], sizes = [8, 32], strides = [1, 1]} : vector<8x64xf32> to vector<8x32xf32>
    %155 = vector.extract_strided_slice %126 {offsets = [0, 0], sizes = [8, 32], strides = [1, 1]} : vector<8x128xf32> to vector<8x32xf32>
    %156 = arith.negf %155 : vector<8x32xf32>
    %157 = math.exp %156 : vector<8x32xf32>
    %cst_59 = arith.constant 1.000000e+00 : f32
    %158 = vector.broadcast %cst_59 : f32 to vector<8x32xf32>
    %159 = arith.addf %158, %157 : vector<8x32xf32>
    %160 = arith.divf %158, %159 : vector<8x32xf32>
    %161 = vector.extract_strided_slice %126 {offsets = [0, 32], sizes = [8, 32], strides = [1, 1]} : vector<8x128xf32> to vector<8x32xf32>
    %162 = arith.negf %161 : vector<8x32xf32>
    %163 = math.exp %162 : vector<8x32xf32>
    %cst_60 = arith.constant 1.000000e+00 : f32
    %164 = vector.broadcast %cst_60 : f32 to vector<8x32xf32>
    %165 = arith.addf %164, %163 : vector<8x32xf32>
    %166 = arith.divf %164, %165 : vector<8x32xf32>
    %167 = vector.extract_strided_slice %126 {offsets = [0, 64], sizes = [8, 32], strides = [1, 1]} : vector<8x128xf32> to vector<8x32xf32>
    %168 = math.tanh %167 : vector<8x32xf32>
    %169 = vector.extract_strided_slice %126 {offsets = [0, 96], sizes = [8, 32], strides = [1, 1]} : vector<8x128xf32> to vector<8x32xf32>
    %170 = arith.negf %169 : vector<8x32xf32>
    %171 = math.exp %170 : vector<8x32xf32>
    %cst_61 = arith.constant 1.000000e+00 : f32
    %172 = vector.broadcast %cst_61 : f32 to vector<8x32xf32>
    %173 = arith.addf %172, %171 : vector<8x32xf32>
    %174 = arith.divf %172, %173 : vector<8x32xf32>
    %175 = arith.mulf %166, %154 : vector<8x32xf32>
    %176 = arith.mulf %160, %168 : vector<8x32xf32>
    %177 = arith.addf %175, %176 : vector<8x32xf32>
    %178 = math.tanh %177 : vector<8x32xf32>
    %179 = arith.mulf %174, %178 : vector<8x32xf32>
    %180 = arith.index_cast %c1_i32 : i32 to index
    %c0_62 = arith.constant 0 : index
    %c0_63 = arith.constant 0 : index
    %181 = vector.load %arg2[%180, %c0_62, %c0_63] : memref<8x8x1xf32, #tpu.memory_space<vmem>>, vector<1x8x1xf32>
    %182 = vector.shape_cast %181 : vector<1x8x1xf32> to vector<8x1xf32>
    %183 = arith.index_cast %110 : i32 to index
    %c0_64 = arith.constant 0 : index
    %c0_65 = arith.constant 0 : index
    %184 = vector.load %arg2[%183, %c0_64, %c0_65] : memref<8x8x1xf32, #tpu.memory_space<vmem>>, vector<1x8x1xf32>
    %185 = vector.shape_cast %184 : vector<1x8x1xf32> to vector<8x1xf32>
    %186 = vector.broadcast %182 : vector<8x1xf32> to vector<8x32xf32>
    %187 = arith.mulf %153, %186 : vector<8x32xf32>
    %188 = vector.broadcast %182 : vector<8x1xf32> to vector<8x32xf32>
    %189 = arith.mulf %151, %188 : vector<8x32xf32>
    %190 = vector.broadcast %185 : vector<8x1xf32> to vector<8x32xf32>
    %191 = arith.mulf %179, %190 : vector<8x32xf32>
    %192 = vector.broadcast %185 : vector<8x1xf32> to vector<8x32xf32>
    %193 = arith.mulf %177, %192 : vector<8x32xf32>
    %194 = tpu.concatenate %187, %191 in 1 : vector<8x32xf32>, vector<8x32xf32> -> vector<8x64xf32>
    %c0_66 = arith.constant 0 : index
    %c0_67 = arith.constant 0 : index
    %195 = vector.load %arg8[%c0_66, %c0_67] : memref<8x64xf32, #tpu.memory_space<vmem>>, vector<8x64xf32>
    tpu.vector_store %arg8[%c0_66, %c0_67], %194 {strides = array<i32>} : memref<8x64xf32, #tpu.memory_space<vmem>>, vector<8x64xf32>,
    %196 = tpu.concatenate %189, %193 in 1 : vector<8x32xf32>, vector<8x32xf32> -> vector<8x64xf32>
    %c0_68 = arith.constant 0 : index
    %c0_69 = arith.constant 0 : index
    %197 = vector.load %arg9[%c0_68, %c0_69] : memref<8x64xf32, #tpu.memory_space<vmem>>, vector<8x64xf32>
    tpu.vector_store %arg9[%c0_68, %c0_69], %196 {strides = array<i32>} : memref<8x64xf32, #tpu.memory_space<vmem>>, vector<8x64xf32>,
    %198 = arith.index_cast %c1_i32 : i32 to index
    %c0_70 = arith.constant 0 : index
    %c0_71 = arith.constant 0 : index
    %199 = vector.load %arg10[%198, %c0_70, %c0_71] : memref<8x8x32xf32, #tpu.memory_space<vmem>>, vector<1x8x32xf32>
    %200 = vector.shape_cast %199 : vector<1x8x32xf32> to vector<8x32xf32>
    %201 = vector.shape_cast %187 : vector<8x32xf32> to vector<1x8x32xf32>
    tpu.vector_store %arg10[%198, %c0_70, %c0_71], %201 {strides = array<i32>} : memref<8x8x32xf32, #tpu.memory_space<vmem>>, vector<1x8x32xf32>,
    %202 = arith.index_cast %110 : i32 to index
    %c0_72 = arith.constant 0 : index
    %c0_73 = arith.constant 0 : index
    %203 = vector.load %arg11[%202, %c0_72, %c0_73] : memref<8x8x32xf32, #tpu.memory_space<vmem>>, vector<1x8x32xf32>
    %204 = vector.shape_cast %203 : vector<1x8x32xf32> to vector<8x32xf32>
    %205 = vector.shape_cast %191 : vector<8x32xf32> to vector<1x8x32xf32>
    tpu.vector_store %arg11[%202, %c0_72, %c0_73], %205 {strides = array<i32>} : memref<8x8x32xf32, #tpu.memory_space<vmem>>, vector<1x8x32xf32>,
    %c2_i32 = arith.constant 2 : i32
    %c7_i32_74 = arith.constant 7 : i32
    %206 = arith.subi %c7_i32_74, %c2_i32 : i32
    %c0_75 = arith.constant 0 : index
    %c0_76 = arith.constant 0 : index
    %207 = vector.load %arg8[%c0_75, %c0_76] : memref<8x64xf32, #tpu.memory_space<vmem>>, vector<8x64xf32>
    %208 = arith.truncf %207 : vector<8x64xf32> to vector<8x64xbf16>
    %c0_77 = arith.constant 0 : index
    %c0_78 = arith.constant 0 : index
    %209 = vector.load %arg4[%c0_77, %c0_78] : memref<64x256xbf16, #tpu.memory_space<vmem>>, vector<64x256xbf16>
    %cst_79 = arith.constant dense<0.000000e+00> : vector<8x256xf32>
    %210 = tpu.matmul %208, %209, %cst_79 {dimension_numbers = #tpu.dot_dimension_numbers<[1], [0], [0], [1], [0, 0, 1, 1], [], []>} : vector<8x64xbf16>, vector<64x256xbf16>, vector<8x256xf32> -> vector<8x256xf32>
    %211 = vector.extract_strided_slice %210 {offsets = [0, 0], sizes = [8, 128], strides = [1, 1]} : vector<8x256xf32> to vector<8x128xf32>
    %212 = arith.index_cast %c2_i32 : i32 to index
    %c0_80 = arith.constant 0 : index
    %c0_81 = arith.constant 0 : index
    %213 = vector.load %arg7[%212, %c0_80, %c0_81] : memref<8x8x256xf32, #tpu.memory_space<vmem>>, vector<1x8x256xf32>
    %214 = vector.shape_cast %213 : vector<1x8x256xf32> to vector<8x256xf32>
    %215 = vector.extract_strided_slice %214 {offsets = [0, 0], sizes = [8, 128], strides = [1, 1]} : vector<8x256xf32> to vector<8x128xf32>
    %216 = arith.addf %211, %215 : vector<8x128xf32>
    %217 = vector.extract_strided_slice %210 {offsets = [0, 128], sizes = [8, 128], strides = [1, 1]} : vector<8x256xf32> to vector<8x128xf32>
    %218 = arith.index_cast %206 : i32 to index
    %c0_82 = arith.constant 0 : index
    %c0_83 = arith.constant 0 : index
    %219 = vector.load %arg7[%218, %c0_82, %c0_83] : memref<8x8x256xf32, #tpu.memory_space<vmem>>, vector<1x8x256xf32>
    %220 = vector.shape_cast %219 : vector<1x8x256xf32> to vector<8x256xf32>
    %221 = vector.extract_strided_slice %220 {offsets = [0, 128], sizes = [8, 128], strides = [1, 1]} : vector<8x256xf32> to vector<8x128xf32>
    %222 = arith.addf %217, %221 : vector<8x128xf32>
    %c0_84 = arith.constant 0 : index
    %c0_85 = arith.constant 0 : index
    %223 = vector.load %arg9[%c0_84, %c0_85] : memref<8x64xf32, #tpu.memory_space<vmem>>, vector<8x64xf32>
    %224 = vector.extract_strided_slice %223 {offsets = [0, 0], sizes = [8, 32], strides = [1, 1]} : vector<8x64xf32> to vector<8x32xf32>
    %225 = vector.extract_strided_slice %216 {offsets = [0, 0], sizes = [8, 32], strides = [1, 1]} : vector<8x128xf32> to vector<8x32xf32>
    %226 = arith.negf %225 : vector<8x32xf32>
    %227 = math.exp %226 : vector<8x32xf32>
    %cst_86 = arith.constant 1.000000e+00 : f32
    %228 = vector.broadcast %cst_86 : f32 to vector<8x32xf32>
    %229 = arith.addf %228, %227 : vector<8x32xf32>
    %230 = arith.divf %228, %229 : vector<8x32xf32>
    %231 = vector.extract_strided_slice %216 {offsets = [0, 32], sizes = [8, 32], strides = [1, 1]} : vector<8x128xf32> to vector<8x32xf32>
    %232 = arith.negf %231 : vector<8x32xf32>
    %233 = math.exp %232 : vector<8x32xf32>
    %cst_87 = arith.constant 1.000000e+00 : f32
    %234 = vector.broadcast %cst_87 : f32 to vector<8x32xf32>
    %235 = arith.addf %234, %233 : vector<8x32xf32>
    %236 = arith.divf %234, %235 : vector<8x32xf32>
    %237 = vector.extract_strided_slice %216 {offsets = [0, 64], sizes = [8, 32], strides = [1, 1]} : vector<8x128xf32> to vector<8x32xf32>
    %238 = math.tanh %237 : vector<8x32xf32>
    %239 = vector.extract_strided_slice %216 {offsets = [0, 96], sizes = [8, 32], strides = [1, 1]} : vector<8x128xf32> to vector<8x32xf32>
    %240 = arith.negf %239 : vector<8x32xf32>
    %241 = math.exp %240 : vector<8x32xf32>
    %cst_88 = arith.constant 1.000000e+00 : f32
    %242 = vector.broadcast %cst_88 : f32 to vector<8x32xf32>
    %243 = arith.addf %242, %241 : vector<8x32xf32>
    %244 = arith.divf %242, %243 : vector<8x32xf32>
    %245 = arith.mulf %236, %224 : vector<8x32xf32>
    %246 = arith.mulf %230, %238 : vector<8x32xf32>
    %247 = arith.addf %245, %246 : vector<8x32xf32>
    %248 = math.tanh %247 : vector<8x32xf32>
    %249 = arith.mulf %244, %248 : vector<8x32xf32>
    %250 = vector.extract_strided_slice %223 {offsets = [0, 32], sizes = [8, 32], strides = [1, 1]} : vector<8x64xf32> to vector<8x32xf32>
    %251 = vector.extract_strided_slice %222 {offsets = [0, 0], sizes = [8, 32], strides = [1, 1]} : vector<8x128xf32> to vector<8x32xf32>
    %252 = arith.negf %251 : vector<8x32xf32>
    %253 = math.exp %252 : vector<8x32xf32>
    %cst_89 = arith.constant 1.000000e+00 : f32
    %254 = vector.broadcast %cst_89 : f32 to vector<8x32xf32>
    %255 = arith.addf %254, %253 : vector<8x32xf32>
    %256 = arith.divf %254, %255 : vector<8x32xf32>
    %257 = vector.extract_strided_slice %222 {offsets = [0, 32], sizes = [8, 32], strides = [1, 1]} : vector<8x128xf32> to vector<8x32xf32>
    %258 = arith.negf %257 : vector<8x32xf32>
    %259 = math.exp %258 : vector<8x32xf32>
    %cst_90 = arith.constant 1.000000e+00 : f32
    %260 = vector.broadcast %cst_90 : f32 to vector<8x32xf32>
    %261 = arith.addf %260, %259 : vector<8x32xf32>
    %262 = arith.divf %260, %261 : vector<8x32xf32>
    %263 = vector.extract_strided_slice %222 {offsets = [0, 64], sizes = [8, 32], strides = [1, 1]} : vector<8x128xf32> to vector<8x32xf32>
    %264 = math.tanh %263 : vector<8x32xf32>
    %265 = vector.extract_strided_slice %222 {offsets = [0, 96], sizes = [8, 32], strides = [1, 1]} : vector<8x128xf32> to vector<8x32xf32>
    %266 = arith.negf %265 : vector<8x32xf32>
    %267 = math.exp %266 : vector<8x32xf32>
    %cst_91 = arith.constant 1.000000e+00 : f32
    %268 = vector.broadcast %cst_91 : f32 to vector<8x32xf32>
    %269 = arith.addf %268, %267 : vector<8x32xf32>
    %270 = arith.divf %268, %269 : vector<8x32xf32>
    %271 = arith.mulf %262, %250 : vector<8x32xf32>
    %272 = arith.mulf %256, %264 : vector<8x32xf32>
    %273 = arith.addf %271, %272 : vector<8x32xf32>
    %274 = math.tanh %273 : vector<8x32xf32>
    %275 = arith.mulf %270, %274 : vector<8x32xf32>
    %276 = arith.index_cast %c2_i32 : i32 to index
    %c0_92 = arith.constant 0 : index
    %c0_93 = arith.constant 0 : index
    %277 = vector.load %arg2[%276, %c0_92, %c0_93] : memref<8x8x1xf32, #tpu.memory_space<vmem>>, vector<1x8x1xf32>
    %278 = vector.shape_cast %277 : vector<1x8x1xf32> to vector<8x1xf32>
    %279 = arith.index_cast %206 : i32 to index
    %c0_94 = arith.constant 0 : index
    %c0_95 = arith.constant 0 : index
    %280 = vector.load %arg2[%279, %c0_94, %c0_95] : memref<8x8x1xf32, #tpu.memory_space<vmem>>, vector<1x8x1xf32>
    %281 = vector.shape_cast %280 : vector<1x8x1xf32> to vector<8x1xf32>
    %282 = vector.broadcast %278 : vector<8x1xf32> to vector<8x32xf32>
    %283 = arith.mulf %249, %282 : vector<8x32xf32>
    %284 = vector.broadcast %278 : vector<8x1xf32> to vector<8x32xf32>
    %285 = arith.mulf %247, %284 : vector<8x32xf32>
    %286 = vector.broadcast %281 : vector<8x1xf32> to vector<8x32xf32>
    %287 = arith.mulf %275, %286 : vector<8x32xf32>
    %288 = vector.broadcast %281 : vector<8x1xf32> to vector<8x32xf32>
    %289 = arith.mulf %273, %288 : vector<8x32xf32>
    %290 = tpu.concatenate %283, %287 in 1 : vector<8x32xf32>, vector<8x32xf32> -> vector<8x64xf32>
    %c0_96 = arith.constant 0 : index
    %c0_97 = arith.constant 0 : index
    %291 = vector.load %arg8[%c0_96, %c0_97] : memref<8x64xf32, #tpu.memory_space<vmem>>, vector<8x64xf32>
    tpu.vector_store %arg8[%c0_96, %c0_97], %290 {strides = array<i32>} : memref<8x64xf32, #tpu.memory_space<vmem>>, vector<8x64xf32>,
    %292 = tpu.concatenate %285, %289 in 1 : vector<8x32xf32>, vector<8x32xf32> -> vector<8x64xf32>
    %c0_98 = arith.constant 0 : index
    %c0_99 = arith.constant 0 : index
    %293 = vector.load %arg9[%c0_98, %c0_99] : memref<8x64xf32, #tpu.memory_space<vmem>>, vector<8x64xf32>
    tpu.vector_store %arg9[%c0_98, %c0_99], %292 {strides = array<i32>} : memref<8x64xf32, #tpu.memory_space<vmem>>, vector<8x64xf32>,
    %294 = arith.index_cast %c2_i32 : i32 to index
    %c0_100 = arith.constant 0 : index
    %c0_101 = arith.constant 0 : index
    %295 = vector.load %arg10[%294, %c0_100, %c0_101] : memref<8x8x32xf32, #tpu.memory_space<vmem>>, vector<1x8x32xf32>
    %296 = vector.shape_cast %295 : vector<1x8x32xf32> to vector<8x32xf32>
    %297 = vector.shape_cast %283 : vector<8x32xf32> to vector<1x8x32xf32>
    tpu.vector_store %arg10[%294, %c0_100, %c0_101], %297 {strides = array<i32>} : memref<8x8x32xf32, #tpu.memory_space<vmem>>, vector<1x8x32xf32>,
    %298 = arith.index_cast %206 : i32 to index
    %c0_102 = arith.constant 0 : index
    %c0_103 = arith.constant 0 : index
    %299 = vector.load %arg11[%298, %c0_102, %c0_103] : memref<8x8x32xf32, #tpu.memory_space<vmem>>, vector<1x8x32xf32>
    %300 = vector.shape_cast %299 : vector<1x8x32xf32> to vector<8x32xf32>
    %301 = vector.shape_cast %287 : vector<8x32xf32> to vector<1x8x32xf32>
    tpu.vector_store %arg11[%298, %c0_102, %c0_103], %301 {strides = array<i32>} : memref<8x8x32xf32, #tpu.memory_space<vmem>>, vector<1x8x32xf32>,
    %c3_i32 = arith.constant 3 : i32
    %c7_i32_104 = arith.constant 7 : i32
    %302 = arith.subi %c7_i32_104, %c3_i32 : i32
    %c0_105 = arith.constant 0 : index
    %c0_106 = arith.constant 0 : index
    %303 = vector.load %arg8[%c0_105, %c0_106] : memref<8x64xf32, #tpu.memory_space<vmem>>, vector<8x64xf32>
    %304 = arith.truncf %303 : vector<8x64xf32> to vector<8x64xbf16>
    %c0_107 = arith.constant 0 : index
    %c0_108 = arith.constant 0 : index
    %305 = vector.load %arg4[%c0_107, %c0_108] : memref<64x256xbf16, #tpu.memory_space<vmem>>, vector<64x256xbf16>
    %cst_109 = arith.constant dense<0.000000e+00> : vector<8x256xf32>
    %306 = tpu.matmul %304, %305, %cst_109 {dimension_numbers = #tpu.dot_dimension_numbers<[1], [0], [0], [1], [0, 0, 1, 1], [], []>} : vector<8x64xbf16>, vector<64x256xbf16>, vector<8x256xf32> -> vector<8x256xf32>
    %307 = vector.extract_strided_slice %306 {offsets = [0, 0], sizes = [8, 128], strides = [1, 1]} : vector<8x256xf32> to vector<8x128xf32>
    %308 = arith.index_cast %c3_i32 : i32 to index
    %c0_110 = arith.constant 0 : index
    %c0_111 = arith.constant 0 : index
    %309 = vector.load %arg7[%308, %c0_110, %c0_111] : memref<8x8x256xf32, #tpu.memory_space<vmem>>, vector<1x8x256xf32>
    %310 = vector.shape_cast %309 : vector<1x8x256xf32> to vector<8x256xf32>
    %311 = vector.extract_strided_slice %310 {offsets = [0, 0], sizes = [8, 128], strides = [1, 1]} : vector<8x256xf32> to vector<8x128xf32>
    %312 = arith.addf %307, %311 : vector<8x128xf32>
    %313 = vector.extract_strided_slice %306 {offsets = [0, 128], sizes = [8, 128], strides = [1, 1]} : vector<8x256xf32> to vector<8x128xf32>
    %314 = arith.index_cast %302 : i32 to index
    %c0_112 = arith.constant 0 : index
    %c0_113 = arith.constant 0 : index
    %315 = vector.load %arg7[%314, %c0_112, %c0_113] : memref<8x8x256xf32, #tpu.memory_space<vmem>>, vector<1x8x256xf32>
    %316 = vector.shape_cast %315 : vector<1x8x256xf32> to vector<8x256xf32>
    %317 = vector.extract_strided_slice %316 {offsets = [0, 128], sizes = [8, 128], strides = [1, 1]} : vector<8x256xf32> to vector<8x128xf32>
    %318 = arith.addf %313, %317 : vector<8x128xf32>
    %c0_114 = arith.constant 0 : index
    %c0_115 = arith.constant 0 : index
    %319 = vector.load %arg9[%c0_114, %c0_115] : memref<8x64xf32, #tpu.memory_space<vmem>>, vector<8x64xf32>
    %320 = vector.extract_strided_slice %319 {offsets = [0, 0], sizes = [8, 32], strides = [1, 1]} : vector<8x64xf32> to vector<8x32xf32>
    %321 = vector.extract_strided_slice %312 {offsets = [0, 0], sizes = [8, 32], strides = [1, 1]} : vector<8x128xf32> to vector<8x32xf32>
    %322 = arith.negf %321 : vector<8x32xf32>
    %323 = math.exp %322 : vector<8x32xf32>
    %cst_116 = arith.constant 1.000000e+00 : f32
    %324 = vector.broadcast %cst_116 : f32 to vector<8x32xf32>
    %325 = arith.addf %324, %323 : vector<8x32xf32>
    %326 = arith.divf %324, %325 : vector<8x32xf32>
    %327 = vector.extract_strided_slice %312 {offsets = [0, 32], sizes = [8, 32], strides = [1, 1]} : vector<8x128xf32> to vector<8x32xf32>
    %328 = arith.negf %327 : vector<8x32xf32>
    %329 = math.exp %328 : vector<8x32xf32>
    %cst_117 = arith.constant 1.000000e+00 : f32
    %330 = vector.broadcast %cst_117 : f32 to vector<8x32xf32>
    %331 = arith.addf %330, %329 : vector<8x32xf32>
    %332 = arith.divf %330, %331 : vector<8x32xf32>
    %333 = vector.extract_strided_slice %312 {offsets = [0, 64], sizes = [8, 32], strides = [1, 1]} : vector<8x128xf32> to vector<8x32xf32>
    %334 = math.tanh %333 : vector<8x32xf32>
    %335 = vector.extract_strided_slice %312 {offsets = [0, 96], sizes = [8, 32], strides = [1, 1]} : vector<8x128xf32> to vector<8x32xf32>
    %336 = arith.negf %335 : vector<8x32xf32>
    %337 = math.exp %336 : vector<8x32xf32>
    %cst_118 = arith.constant 1.000000e+00 : f32
    %338 = vector.broadcast %cst_118 : f32 to vector<8x32xf32>
    %339 = arith.addf %338, %337 : vector<8x32xf32>
    %340 = arith.divf %338, %339 : vector<8x32xf32>
    %341 = arith.mulf %332, %320 : vector<8x32xf32>
    %342 = arith.mulf %326, %334 : vector<8x32xf32>
    %343 = arith.addf %341, %342 : vector<8x32xf32>
    %344 = math.tanh %343 : vector<8x32xf32>
    %345 = arith.mulf %340, %344 : vector<8x32xf32>
    %346 = vector.extract_strided_slice %319 {offsets = [0, 32], sizes = [8, 32], strides = [1, 1]} : vector<8x64xf32> to vector<8x32xf32>
    %347 = vector.extract_strided_slice %318 {offsets = [0, 0], sizes = [8, 32], strides = [1, 1]} : vector<8x128xf32> to vector<8x32xf32>
    %348 = arith.negf %347 : vector<8x32xf32>
    %349 = math.exp %348 : vector<8x32xf32>
    %cst_119 = arith.constant 1.000000e+00 : f32
    %350 = vector.broadcast %cst_119 : f32 to vector<8x32xf32>
    %351 = arith.addf %350, %349 : vector<8x32xf32>
    %352 = arith.divf %350, %351 : vector<8x32xf32>
    %353 = vector.extract_strided_slice %318 {offsets = [0, 32], sizes = [8, 32], strides = [1, 1]} : vector<8x128xf32> to vector<8x32xf32>
    %354 = arith.negf %353 : vector<8x32xf32>
    %355 = math.exp %354 : vector<8x32xf32>
    %cst_120 = arith.constant 1.000000e+00 : f32
    %356 = vector.broadcast %cst_120 : f32 to vector<8x32xf32>
    %357 = arith.addf %356, %355 : vector<8x32xf32>
    %358 = arith.divf %356, %357 : vector<8x32xf32>
    %359 = vector.extract_strided_slice %318 {offsets = [0, 64], sizes = [8, 32], strides = [1, 1]} : vector<8x128xf32> to vector<8x32xf32>
    %360 = math.tanh %359 : vector<8x32xf32>
    %361 = vector.extract_strided_slice %318 {offsets = [0, 96], sizes = [8, 32], strides = [1, 1]} : vector<8x128xf32> to vector<8x32xf32>
    %362 = arith.negf %361 : vector<8x32xf32>
    %363 = math.exp %362 : vector<8x32xf32>
    %cst_121 = arith.constant 1.000000e+00 : f32
    %364 = vector.broadcast %cst_121 : f32 to vector<8x32xf32>
    %365 = arith.addf %364, %363 : vector<8x32xf32>
    %366 = arith.divf %364, %365 : vector<8x32xf32>
    %367 = arith.mulf %358, %346 : vector<8x32xf32>
    %368 = arith.mulf %352, %360 : vector<8x32xf32>
    %369 = arith.addf %367, %368 : vector<8x32xf32>
    %370 = math.tanh %369 : vector<8x32xf32>
    %371 = arith.mulf %366, %370 : vector<8x32xf32>
    %372 = arith.index_cast %c3_i32 : i32 to index
    %c0_122 = arith.constant 0 : index
    %c0_123 = arith.constant 0 : index
    %373 = vector.load %arg2[%372, %c0_122, %c0_123] : memref<8x8x1xf32, #tpu.memory_space<vmem>>, vector<1x8x1xf32>
    %374 = vector.shape_cast %373 : vector<1x8x1xf32> to vector<8x1xf32>
    %375 = arith.index_cast %302 : i32 to index
    %c0_124 = arith.constant 0 : index
    %c0_125 = arith.constant 0 : index
    %376 = vector.load %arg2[%375, %c0_124, %c0_125] : memref<8x8x1xf32, #tpu.memory_space<vmem>>, vector<1x8x1xf32>
    %377 = vector.shape_cast %376 : vector<1x8x1xf32> to vector<8x1xf32>
    %378 = vector.broadcast %374 : vector<8x1xf32> to vector<8x32xf32>
    %379 = arith.mulf %345, %378 : vector<8x32xf32>
    %380 = vector.broadcast %374 : vector<8x1xf32> to vector<8x32xf32>
    %381 = arith.mulf %343, %380 : vector<8x32xf32>
    %382 = vector.broadcast %377 : vector<8x1xf32> to vector<8x32xf32>
    %383 = arith.mulf %371, %382 : vector<8x32xf32>
    %384 = vector.broadcast %377 : vector<8x1xf32> to vector<8x32xf32>
    %385 = arith.mulf %369, %384 : vector<8x32xf32>
    %386 = tpu.concatenate %379, %383 in 1 : vector<8x32xf32>, vector<8x32xf32> -> vector<8x64xf32>
    %c0_126 = arith.constant 0 : index
    %c0_127 = arith.constant 0 : index
    %387 = vector.load %arg8[%c0_126, %c0_127] : memref<8x64xf32, #tpu.memory_space<vmem>>, vector<8x64xf32>
    tpu.vector_store %arg8[%c0_126, %c0_127], %386 {strides = array<i32>} : memref<8x64xf32, #tpu.memory_space<vmem>>, vector<8x64xf32>,
    %388 = tpu.concatenate %381, %385 in 1 : vector<8x32xf32>, vector<8x32xf32> -> vector<8x64xf32>
    %c0_128 = arith.constant 0 : index
    %c0_129 = arith.constant 0 : index
    %389 = vector.load %arg9[%c0_128, %c0_129] : memref<8x64xf32, #tpu.memory_space<vmem>>, vector<8x64xf32>
    tpu.vector_store %arg9[%c0_128, %c0_129], %388 {strides = array<i32>} : memref<8x64xf32, #tpu.memory_space<vmem>>, vector<8x64xf32>,
    %390 = arith.index_cast %c3_i32 : i32 to index
    %c0_130 = arith.constant 0 : index
    %c0_131 = arith.constant 0 : index
    %391 = vector.load %arg10[%390, %c0_130, %c0_131] : memref<8x8x32xf32, #tpu.memory_space<vmem>>, vector<1x8x32xf32>
    %392 = vector.shape_cast %391 : vector<1x8x32xf32> to vector<8x32xf32>
    %393 = vector.shape_cast %379 : vector<8x32xf32> to vector<1x8x32xf32>
    tpu.vector_store %arg10[%390, %c0_130, %c0_131], %393 {strides = array<i32>} : memref<8x8x32xf32, #tpu.memory_space<vmem>>, vector<1x8x32xf32>,
    %394 = arith.index_cast %302 : i32 to index
    %c0_132 = arith.constant 0 : index
    %c0_133 = arith.constant 0 : index
    %395 = vector.load %arg11[%394, %c0_132, %c0_133] : memref<8x8x32xf32, #tpu.memory_space<vmem>>, vector<1x8x32xf32>
    %396 = vector.shape_cast %395 : vector<1x8x32xf32> to vector<8x32xf32>
    %397 = vector.shape_cast %383 : vector<8x32xf32> to vector<1x8x32xf32>
    tpu.vector_store %arg11[%394, %c0_132, %c0_133], %397 {strides = array<i32>} : memref<8x8x32xf32, #tpu.memory_space<vmem>>, vector<1x8x32xf32>,
    %c4_i32 = arith.constant 4 : i32
    %c7_i32_134 = arith.constant 7 : i32
    %398 = arith.subi %c7_i32_134, %c4_i32 : i32
    %c0_135 = arith.constant 0 : index
    %c0_136 = arith.constant 0 : index
    %399 = vector.load %arg8[%c0_135, %c0_136] : memref<8x64xf32, #tpu.memory_space<vmem>>, vector<8x64xf32>
    %400 = arith.truncf %399 : vector<8x64xf32> to vector<8x64xbf16>
    %c0_137 = arith.constant 0 : index
    %c0_138 = arith.constant 0 : index
    %401 = vector.load %arg4[%c0_137, %c0_138] : memref<64x256xbf16, #tpu.memory_space<vmem>>, vector<64x256xbf16>
    %cst_139 = arith.constant dense<0.000000e+00> : vector<8x256xf32>
    %402 = tpu.matmul %400, %401, %cst_139 {dimension_numbers = #tpu.dot_dimension_numbers<[1], [0], [0], [1], [0, 0, 1, 1], [], []>} : vector<8x64xbf16>, vector<64x256xbf16>, vector<8x256xf32> -> vector<8x256xf32>
    %403 = vector.extract_strided_slice %402 {offsets = [0, 0], sizes = [8, 128], strides = [1, 1]} : vector<8x256xf32> to vector<8x128xf32>
    %404 = arith.index_cast %c4_i32 : i32 to index
    %c0_140 = arith.constant 0 : index
    %c0_141 = arith.constant 0 : index
    %405 = vector.load %arg7[%404, %c0_140, %c0_141] : memref<8x8x256xf32, #tpu.memory_space<vmem>>, vector<1x8x256xf32>
    %406 = vector.shape_cast %405 : vector<1x8x256xf32> to vector<8x256xf32>
    %407 = vector.extract_strided_slice %406 {offsets = [0, 0], sizes = [8, 128], strides = [1, 1]} : vector<8x256xf32> to vector<8x128xf32>
    %408 = arith.addf %403, %407 : vector<8x128xf32>
    %409 = vector.extract_strided_slice %402 {offsets = [0, 128], sizes = [8, 128], strides = [1, 1]} : vector<8x256xf32> to vector<8x128xf32>
    %410 = arith.index_cast %398 : i32 to index
    %c0_142 = arith.constant 0 : index
    %c0_143 = arith.constant 0 : index
    %411 = vector.load %arg7[%410, %c0_142, %c0_143] : memref<8x8x256xf32, #tpu.memory_space<vmem>>, vector<1x8x256xf32>
    %412 = vector.shape_cast %411 : vector<1x8x256xf32> to vector<8x256xf32>
    %413 = vector.extract_strided_slice %412 {offsets = [0, 128], sizes = [8, 128], strides = [1, 1]} : vector<8x256xf32> to vector<8x128xf32>
    %414 = arith.addf %409, %413 : vector<8x128xf32>
    %c0_144 = arith.constant 0 : index
    %c0_145 = arith.constant 0 : index
    %415 = vector.load %arg9[%c0_144, %c0_145] : memref<8x64xf32, #tpu.memory_space<vmem>>, vector<8x64xf32>
    %416 = vector.extract_strided_slice %415 {offsets = [0, 0], sizes = [8, 32], strides = [1, 1]} : vector<8x64xf32> to vector<8x32xf32>
    %417 = vector.extract_strided_slice %408 {offsets = [0, 0], sizes = [8, 32], strides = [1, 1]} : vector<8x128xf32> to vector<8x32xf32>
    %418 = arith.negf %417 : vector<8x32xf32>
    %419 = math.exp %418 : vector<8x32xf32>
    %cst_146 = arith.constant 1.000000e+00 : f32
    %420 = vector.broadcast %cst_146 : f32 to vector<8x32xf32>
    %421 = arith.addf %420, %419 : vector<8x32xf32>
    %422 = arith.divf %420, %421 : vector<8x32xf32>
    %423 = vector.extract_strided_slice %408 {offsets = [0, 32], sizes = [8, 32], strides = [1, 1]} : vector<8x128xf32> to vector<8x32xf32>
    %424 = arith.negf %423 : vector<8x32xf32>
    %425 = math.exp %424 : vector<8x32xf32>
    %cst_147 = arith.constant 1.000000e+00 : f32
    %426 = vector.broadcast %cst_147 : f32 to vector<8x32xf32>
    %427 = arith.addf %426, %425 : vector<8x32xf32>
    %428 = arith.divf %426, %427 : vector<8x32xf32>
    %429 = vector.extract_strided_slice %408 {offsets = [0, 64], sizes = [8, 32], strides = [1, 1]} : vector<8x128xf32> to vector<8x32xf32>
    %430 = math.tanh %429 : vector<8x32xf32>
    %431 = vector.extract_strided_slice %408 {offsets = [0, 96], sizes = [8, 32], strides = [1, 1]} : vector<8x128xf32> to vector<8x32xf32>
    %432 = arith.negf %431 : vector<8x32xf32>
    %433 = math.exp %432 : vector<8x32xf32>
    %cst_148 = arith.constant 1.000000e+00 : f32
    %434 = vector.broadcast %cst_148 : f32 to vector<8x32xf32>
    %435 = arith.addf %434, %433 : vector<8x32xf32>
    %436 = arith.divf %434, %435 : vector<8x32xf32>
    %437 = arith.mulf %428, %416 : vector<8x32xf32>
    %438 = arith.mulf %422, %430 : vector<8x32xf32>
    %439 = arith.addf %437, %438 : vector<8x32xf32>
    %440 = math.tanh %439 : vector<8x32xf32>
    %441 = arith.mulf %436, %440 : vector<8x32xf32>
    %442 = vector.extract_strided_slice %415 {offsets = [0, 32], sizes = [8, 32], strides = [1, 1]} : vector<8x64xf32> to vector<8x32xf32>
    %443 = vector.extract_strided_slice %414 {offsets = [0, 0], sizes = [8, 32], strides = [1, 1]} : vector<8x128xf32> to vector<8x32xf32>
    %444 = arith.negf %443 : vector<8x32xf32>
    %445 = math.exp %444 : vector<8x32xf32>
    %cst_149 = arith.constant 1.000000e+00 : f32
    %446 = vector.broadcast %cst_149 : f32 to vector<8x32xf32>
    %447 = arith.addf %446, %445 : vector<8x32xf32>
    %448 = arith.divf %446, %447 : vector<8x32xf32>
    %449 = vector.extract_strided_slice %414 {offsets = [0, 32], sizes = [8, 32], strides = [1, 1]} : vector<8x128xf32> to vector<8x32xf32>
    %450 = arith.negf %449 : vector<8x32xf32>
    %451 = math.exp %450 : vector<8x32xf32>
    %cst_150 = arith.constant 1.000000e+00 : f32
    %452 = vector.broadcast %cst_150 : f32 to vector<8x32xf32>
    %453 = arith.addf %452, %451 : vector<8x32xf32>
    %454 = arith.divf %452, %453 : vector<8x32xf32>
    %455 = vector.extract_strided_slice %414 {offsets = [0, 64], sizes = [8, 32], strides = [1, 1]} : vector<8x128xf32> to vector<8x32xf32>
    %456 = math.tanh %455 : vector<8x32xf32>
    %457 = vector.extract_strided_slice %414 {offsets = [0, 96], sizes = [8, 32], strides = [1, 1]} : vector<8x128xf32> to vector<8x32xf32>
    %458 = arith.negf %457 : vector<8x32xf32>
    %459 = math.exp %458 : vector<8x32xf32>
    %cst_151 = arith.constant 1.000000e+00 : f32
    %460 = vector.broadcast %cst_151 : f32 to vector<8x32xf32>
    %461 = arith.addf %460, %459 : vector<8x32xf32>
    %462 = arith.divf %460, %461 : vector<8x32xf32>
    %463 = arith.mulf %454, %442 : vector<8x32xf32>
    %464 = arith.mulf %448, %456 : vector<8x32xf32>
    %465 = arith.addf %463, %464 : vector<8x32xf32>
    %466 = math.tanh %465 : vector<8x32xf32>
    %467 = arith.mulf %462, %466 : vector<8x32xf32>
    %468 = arith.index_cast %c4_i32 : i32 to index
    %c0_152 = arith.constant 0 : index
    %c0_153 = arith.constant 0 : index
    %469 = vector.load %arg2[%468, %c0_152, %c0_153] : memref<8x8x1xf32, #tpu.memory_space<vmem>>, vector<1x8x1xf32>
    %470 = vector.shape_cast %469 : vector<1x8x1xf32> to vector<8x1xf32>
    %471 = arith.index_cast %398 : i32 to index
    %c0_154 = arith.constant 0 : index
    %c0_155 = arith.constant 0 : index
    %472 = vector.load %arg2[%471, %c0_154, %c0_155] : memref<8x8x1xf32, #tpu.memory_space<vmem>>, vector<1x8x1xf32>
    %473 = vector.shape_cast %472 : vector<1x8x1xf32> to vector<8x1xf32>
    %474 = vector.broadcast %470 : vector<8x1xf32> to vector<8x32xf32>
    %475 = arith.mulf %441, %474 : vector<8x32xf32>
    %476 = vector.broadcast %470 : vector<8x1xf32> to vector<8x32xf32>
    %477 = arith.mulf %439, %476 : vector<8x32xf32>
    %478 = vector.broadcast %473 : vector<8x1xf32> to vector<8x32xf32>
    %479 = arith.mulf %467, %478 : vector<8x32xf32>
    %480 = vector.broadcast %473 : vector<8x1xf32> to vector<8x32xf32>
    %481 = arith.mulf %465, %480 : vector<8x32xf32>
    %482 = tpu.concatenate %475, %479 in 1 : vector<8x32xf32>, vector<8x32xf32> -> vector<8x64xf32>
    %c0_156 = arith.constant 0 : index
    %c0_157 = arith.constant 0 : index
    %483 = vector.load %arg8[%c0_156, %c0_157] : memref<8x64xf32, #tpu.memory_space<vmem>>, vector<8x64xf32>
    tpu.vector_store %arg8[%c0_156, %c0_157], %482 {strides = array<i32>} : memref<8x64xf32, #tpu.memory_space<vmem>>, vector<8x64xf32>,
    %484 = tpu.concatenate %477, %481 in 1 : vector<8x32xf32>, vector<8x32xf32> -> vector<8x64xf32>
    %c0_158 = arith.constant 0 : index
    %c0_159 = arith.constant 0 : index
    %485 = vector.load %arg9[%c0_158, %c0_159] : memref<8x64xf32, #tpu.memory_space<vmem>>, vector<8x64xf32>
    tpu.vector_store %arg9[%c0_158, %c0_159], %484 {strides = array<i32>} : memref<8x64xf32, #tpu.memory_space<vmem>>, vector<8x64xf32>,
    %486 = arith.index_cast %c4_i32 : i32 to index
    %c0_160 = arith.constant 0 : index
    %c0_161 = arith.constant 0 : index
    %487 = vector.load %arg10[%486, %c0_160, %c0_161] : memref<8x8x32xf32, #tpu.memory_space<vmem>>, vector<1x8x32xf32>
    %488 = vector.shape_cast %487 : vector<1x8x32xf32> to vector<8x32xf32>
    %489 = vector.shape_cast %475 : vector<8x32xf32> to vector<1x8x32xf32>
    tpu.vector_store %arg10[%486, %c0_160, %c0_161], %489 {strides = array<i32>} : memref<8x8x32xf32, #tpu.memory_space<vmem>>, vector<1x8x32xf32>,
    %490 = arith.index_cast %398 : i32 to index
    %c0_162 = arith.constant 0 : index
    %c0_163 = arith.constant 0 : index
    %491 = vector.load %arg11[%490, %c0_162, %c0_163] : memref<8x8x32xf32, #tpu.memory_space<vmem>>, vector<1x8x32xf32>
    %492 = vector.shape_cast %491 : vector<1x8x32xf32> to vector<8x32xf32>
    %493 = vector.shape_cast %479 : vector<8x32xf32> to vector<1x8x32xf32>
    tpu.vector_store %arg11[%490, %c0_162, %c0_163], %493 {strides = array<i32>} : memref<8x8x32xf32, #tpu.memory_space<vmem>>, vector<1x8x32xf32>,
    %c5_i32 = arith.constant 5 : i32
    %c7_i32_164 = arith.constant 7 : i32
    %494 = arith.subi %c7_i32_164, %c5_i32 : i32
    %c0_165 = arith.constant 0 : index
    %c0_166 = arith.constant 0 : index
    %495 = vector.load %arg8[%c0_165, %c0_166] : memref<8x64xf32, #tpu.memory_space<vmem>>, vector<8x64xf32>
    %496 = arith.truncf %495 : vector<8x64xf32> to vector<8x64xbf16>
    %c0_167 = arith.constant 0 : index
    %c0_168 = arith.constant 0 : index
    %497 = vector.load %arg4[%c0_167, %c0_168] : memref<64x256xbf16, #tpu.memory_space<vmem>>, vector<64x256xbf16>
    %cst_169 = arith.constant dense<0.000000e+00> : vector<8x256xf32>
    %498 = tpu.matmul %496, %497, %cst_169 {dimension_numbers = #tpu.dot_dimension_numbers<[1], [0], [0], [1], [0, 0, 1, 1], [], []>} : vector<8x64xbf16>, vector<64x256xbf16>, vector<8x256xf32> -> vector<8x256xf32>
    %499 = vector.extract_strided_slice %498 {offsets = [0, 0], sizes = [8, 128], strides = [1, 1]} : vector<8x256xf32> to vector<8x128xf32>
    %500 = arith.index_cast %c5_i32 : i32 to index
    %c0_170 = arith.constant 0 : index
    %c0_171 = arith.constant 0 : index
    %501 = vector.load %arg7[%500, %c0_170, %c0_171] : memref<8x8x256xf32, #tpu.memory_space<vmem>>, vector<1x8x256xf32>
    %502 = vector.shape_cast %501 : vector<1x8x256xf32> to vector<8x256xf32>
    %503 = vector.extract_strided_slice %502 {offsets = [0, 0], sizes = [8, 128], strides = [1, 1]} : vector<8x256xf32> to vector<8x128xf32>
    %504 = arith.addf %499, %503 : vector<8x128xf32>
    %505 = vector.extract_strided_slice %498 {offsets = [0, 128], sizes = [8, 128], strides = [1, 1]} : vector<8x256xf32> to vector<8x128xf32>
    %506 = arith.index_cast %494 : i32 to index
    %c0_172 = arith.constant 0 : index
    %c0_173 = arith.constant 0 : index
    %507 = vector.load %arg7[%506, %c0_172, %c0_173] : memref<8x8x256xf32, #tpu.memory_space<vmem>>, vector<1x8x256xf32>
    %508 = vector.shape_cast %507 : vector<1x8x256xf32> to vector<8x256xf32>
    %509 = vector.extract_strided_slice %508 {offsets = [0, 128], sizes = [8, 128], strides = [1, 1]} : vector<8x256xf32> to vector<8x128xf32>
    %510 = arith.addf %505, %509 : vector<8x128xf32>
    %c0_174 = arith.constant 0 : index
    %c0_175 = arith.constant 0 : index
    %511 = vector.load %arg9[%c0_174, %c0_175] : memref<8x64xf32, #tpu.memory_space<vmem>>, vector<8x64xf32>
    %512 = vector.extract_strided_slice %511 {offsets = [0, 0], sizes = [8, 32], strides = [1, 1]} : vector<8x64xf32> to vector<8x32xf32>
    %513 = vector.extract_strided_slice %504 {offsets = [0, 0], sizes = [8, 32], strides = [1, 1]} : vector<8x128xf32> to vector<8x32xf32>
    %514 = arith.negf %513 : vector<8x32xf32>
    %515 = math.exp %514 : vector<8x32xf32>
    %cst_176 = arith.constant 1.000000e+00 : f32
    %516 = vector.broadcast %cst_176 : f32 to vector<8x32xf32>
    %517 = arith.addf %516, %515 : vector<8x32xf32>
    %518 = arith.divf %516, %517 : vector<8x32xf32>
    %519 = vector.extract_strided_slice %504 {offsets = [0, 32], sizes = [8, 32], strides = [1, 1]} : vector<8x128xf32> to vector<8x32xf32>
    %520 = arith.negf %519 : vector<8x32xf32>
    %521 = math.exp %520 : vector<8x32xf32>
    %cst_177 = arith.constant 1.000000e+00 : f32
    %522 = vector.broadcast %cst_177 : f32 to vector<8x32xf32>
    %523 = arith.addf %522, %521 : vector<8x32xf32>
    %524 = arith.divf %522, %523 : vector<8x32xf32>
    %525 = vector.extract_strided_slice %504 {offsets = [0, 64], sizes = [8, 32], strides = [1, 1]} : vector<8x128xf32> to vector<8x32xf32>
    %526 = math.tanh %525 : vector<8x32xf32>
    %527 = vector.extract_strided_slice %504 {offsets = [0, 96], sizes = [8, 32], strides = [1, 1]} : vector<8x128xf32> to vector<8x32xf32>
    %528 = arith.negf %527 : vector<8x32xf32>
    %529 = math.exp %528 : vector<8x32xf32>
    %cst_178 = arith.constant 1.000000e+00 : f32
    %530 = vector.broadcast %cst_178 : f32 to vector<8x32xf32>
    %531 = arith.addf %530, %529 : vector<8x32xf32>
    %532 = arith.divf %530, %531 : vector<8x32xf32>
    %533 = arith.mulf %524, %512 : vector<8x32xf32>
    %534 = arith.mulf %518, %526 : vector<8x32xf32>
    %535 = arith.addf %533, %534 : vector<8x32xf32>
    %536 = math.tanh %535 : vector<8x32xf32>
    %537 = arith.mulf %532, %536 : vector<8x32xf32>
    %538 = vector.extract_strided_slice %511 {offsets = [0, 32], sizes = [8, 32], strides = [1, 1]} : vector<8x64xf32> to vector<8x32xf32>
    %539 = vector.extract_strided_slice %510 {offsets = [0, 0], sizes = [8, 32], strides = [1, 1]} : vector<8x128xf32> to vector<8x32xf32>
    %540 = arith.negf %539 : vector<8x32xf32>
    %541 = math.exp %540 : vector<8x32xf32>
    %cst_179 = arith.constant 1.000000e+00 : f32
    %542 = vector.broadcast %cst_179 : f32 to vector<8x32xf32>
    %543 = arith.addf %542, %541 : vector<8x32xf32>
    %544 = arith.divf %542, %543 : vector<8x32xf32>
    %545 = vector.extract_strided_slice %510 {offsets = [0, 32], sizes = [8, 32], strides = [1, 1]} : vector<8x128xf32> to vector<8x32xf32>
    %546 = arith.negf %545 : vector<8x32xf32>
    %547 = math.exp %546 : vector<8x32xf32>
    %cst_180 = arith.constant 1.000000e+00 : f32
    %548 = vector.broadcast %cst_180 : f32 to vector<8x32xf32>
    %549 = arith.addf %548, %547 : vector<8x32xf32>
    %550 = arith.divf %548, %549 : vector<8x32xf32>
    %551 = vector.extract_strided_slice %510 {offsets = [0, 64], sizes = [8, 32], strides = [1, 1]} : vector<8x128xf32> to vector<8x32xf32>
    %552 = math.tanh %551 : vector<8x32xf32>
    %553 = vector.extract_strided_slice %510 {offsets = [0, 96], sizes = [8, 32], strides = [1, 1]} : vector<8x128xf32> to vector<8x32xf32>
    %554 = arith.negf %553 : vector<8x32xf32>
    %555 = math.exp %554 : vector<8x32xf32>
    %cst_181 = arith.constant 1.000000e+00 : f32
    %556 = vector.broadcast %cst_181 : f32 to vector<8x32xf32>
    %557 = arith.addf %556, %555 : vector<8x32xf32>
    %558 = arith.divf %556, %557 : vector<8x32xf32>
    %559 = arith.mulf %550, %538 : vector<8x32xf32>
    %560 = arith.mulf %544, %552 : vector<8x32xf32>
    %561 = arith.addf %559, %560 : vector<8x32xf32>
    %562 = math.tanh %561 : vector<8x32xf32>
    %563 = arith.mulf %558, %562 : vector<8x32xf32>
    %564 = arith.index_cast %c5_i32 : i32 to index
    %c0_182 = arith.constant 0 : index
    %c0_183 = arith.constant 0 : index
    %565 = vector.load %arg2[%564, %c0_182, %c0_183] : memref<8x8x1xf32, #tpu.memory_space<vmem>>, vector<1x8x1xf32>
    %566 = vector.shape_cast %565 : vector<1x8x1xf32> to vector<8x1xf32>
    %567 = arith.index_cast %494 : i32 to index
    %c0_184 = arith.constant 0 : index
    %c0_185 = arith.constant 0 : index
    %568 = vector.load %arg2[%567, %c0_184, %c0_185] : memref<8x8x1xf32, #tpu.memory_space<vmem>>, vector<1x8x1xf32>
    %569 = vector.shape_cast %568 : vector<1x8x1xf32> to vector<8x1xf32>
    %570 = vector.broadcast %566 : vector<8x1xf32> to vector<8x32xf32>
    %571 = arith.mulf %537, %570 : vector<8x32xf32>
    %572 = vector.broadcast %566 : vector<8x1xf32> to vector<8x32xf32>
    %573 = arith.mulf %535, %572 : vector<8x32xf32>
    %574 = vector.broadcast %569 : vector<8x1xf32> to vector<8x32xf32>
    %575 = arith.mulf %563, %574 : vector<8x32xf32>
    %576 = vector.broadcast %569 : vector<8x1xf32> to vector<8x32xf32>
    %577 = arith.mulf %561, %576 : vector<8x32xf32>
    %578 = tpu.concatenate %571, %575 in 1 : vector<8x32xf32>, vector<8x32xf32> -> vector<8x64xf32>
    %c0_186 = arith.constant 0 : index
    %c0_187 = arith.constant 0 : index
    %579 = vector.load %arg8[%c0_186, %c0_187] : memref<8x64xf32, #tpu.memory_space<vmem>>, vector<8x64xf32>
    tpu.vector_store %arg8[%c0_186, %c0_187], %578 {strides = array<i32>} : memref<8x64xf32, #tpu.memory_space<vmem>>, vector<8x64xf32>,
    %580 = tpu.concatenate %573, %577 in 1 : vector<8x32xf32>, vector<8x32xf32> -> vector<8x64xf32>
    %c0_188 = arith.constant 0 : index
    %c0_189 = arith.constant 0 : index
    %581 = vector.load %arg9[%c0_188, %c0_189] : memref<8x64xf32, #tpu.memory_space<vmem>>, vector<8x64xf32>
    tpu.vector_store %arg9[%c0_188, %c0_189], %580 {strides = array<i32>} : memref<8x64xf32, #tpu.memory_space<vmem>>, vector<8x64xf32>,
    %582 = arith.index_cast %c5_i32 : i32 to index
    %c0_190 = arith.constant 0 : index
    %c0_191 = arith.constant 0 : index
    %583 = vector.load %arg10[%582, %c0_190, %c0_191] : memref<8x8x32xf32, #tpu.memory_space<vmem>>, vector<1x8x32xf32>
    %584 = vector.shape_cast %583 : vector<1x8x32xf32> to vector<8x32xf32>
    %585 = vector.shape_cast %571 : vector<8x32xf32> to vector<1x8x32xf32>
    tpu.vector_store %arg10[%582, %c0_190, %c0_191], %585 {strides = array<i32>} : memref<8x8x32xf32, #tpu.memory_space<vmem>>, vector<1x8x32xf32>,
    %586 = arith.index_cast %494 : i32 to index
    %c0_192 = arith.constant 0 : index
    %c0_193 = arith.constant 0 : index
    %587 = vector.load %arg11[%586, %c0_192, %c0_193] : memref<8x8x32xf32, #tpu.memory_space<vmem>>, vector<1x8x32xf32>
    %588 = vector.shape_cast %587 : vector<1x8x32xf32> to vector<8x32xf32>
    %589 = vector.shape_cast %575 : vector<8x32xf32> to vector<1x8x32xf32>
    tpu.vector_store %arg11[%586, %c0_192, %c0_193], %589 {strides = array<i32>} : memref<8x8x32xf32, #tpu.memory_space<vmem>>, vector<1x8x32xf32>,
    %c6_i32 = arith.constant 6 : i32
    %c7_i32_194 = arith.constant 7 : i32
    %590 = arith.subi %c7_i32_194, %c6_i32 : i32
    %c0_195 = arith.constant 0 : index
    %c0_196 = arith.constant 0 : index
    %591 = vector.load %arg8[%c0_195, %c0_196] : memref<8x64xf32, #tpu.memory_space<vmem>>, vector<8x64xf32>
    %592 = arith.truncf %591 : vector<8x64xf32> to vector<8x64xbf16>
    %c0_197 = arith.constant 0 : index
    %c0_198 = arith.constant 0 : index
    %593 = vector.load %arg4[%c0_197, %c0_198] : memref<64x256xbf16, #tpu.memory_space<vmem>>, vector<64x256xbf16>
    %cst_199 = arith.constant dense<0.000000e+00> : vector<8x256xf32>
    %594 = tpu.matmul %592, %593, %cst_199 {dimension_numbers = #tpu.dot_dimension_numbers<[1], [0], [0], [1], [0, 0, 1, 1], [], []>} : vector<8x64xbf16>, vector<64x256xbf16>, vector<8x256xf32> -> vector<8x256xf32>
    %595 = vector.extract_strided_slice %594 {offsets = [0, 0], sizes = [8, 128], strides = [1, 1]} : vector<8x256xf32> to vector<8x128xf32>
    %596 = arith.index_cast %c6_i32 : i32 to index
    %c0_200 = arith.constant 0 : index
    %c0_201 = arith.constant 0 : index
    %597 = vector.load %arg7[%596, %c0_200, %c0_201] : memref<8x8x256xf32, #tpu.memory_space<vmem>>, vector<1x8x256xf32>
    %598 = vector.shape_cast %597 : vector<1x8x256xf32> to vector<8x256xf32>
    %599 = vector.extract_strided_slice %598 {offsets = [0, 0], sizes = [8, 128], strides = [1, 1]} : vector<8x256xf32> to vector<8x128xf32>
    %600 = arith.addf %595, %599 : vector<8x128xf32>
    %601 = vector.extract_strided_slice %594 {offsets = [0, 128], sizes = [8, 128], strides = [1, 1]} : vector<8x256xf32> to vector<8x128xf32>
    %602 = arith.index_cast %590 : i32 to index
    %c0_202 = arith.constant 0 : index
    %c0_203 = arith.constant 0 : index
    %603 = vector.load %arg7[%602, %c0_202, %c0_203] : memref<8x8x256xf32, #tpu.memory_space<vmem>>, vector<1x8x256xf32>
    %604 = vector.shape_cast %603 : vector<1x8x256xf32> to vector<8x256xf32>
    %605 = vector.extract_strided_slice %604 {offsets = [0, 128], sizes = [8, 128], strides = [1, 1]} : vector<8x256xf32> to vector<8x128xf32>
    %606 = arith.addf %601, %605 : vector<8x128xf32>
    %c0_204 = arith.constant 0 : index
    %c0_205 = arith.constant 0 : index
    %607 = vector.load %arg9[%c0_204, %c0_205] : memref<8x64xf32, #tpu.memory_space<vmem>>, vector<8x64xf32>
    %608 = vector.extract_strided_slice %607 {offsets = [0, 0], sizes = [8, 32], strides = [1, 1]} : vector<8x64xf32> to vector<8x32xf32>
    %609 = vector.extract_strided_slice %600 {offsets = [0, 0], sizes = [8, 32], strides = [1, 1]} : vector<8x128xf32> to vector<8x32xf32>
    %610 = arith.negf %609 : vector<8x32xf32>
    %611 = math.exp %610 : vector<8x32xf32>
    %cst_206 = arith.constant 1.000000e+00 : f32
    %612 = vector.broadcast %cst_206 : f32 to vector<8x32xf32>
    %613 = arith.addf %612, %611 : vector<8x32xf32>
    %614 = arith.divf %612, %613 : vector<8x32xf32>
    %615 = vector.extract_strided_slice %600 {offsets = [0, 32], sizes = [8, 32], strides = [1, 1]} : vector<8x128xf32> to vector<8x32xf32>
    %616 = arith.negf %615 : vector<8x32xf32>
    %617 = math.exp %616 : vector<8x32xf32>
    %cst_207 = arith.constant 1.000000e+00 : f32
    %618 = vector.broadcast %cst_207 : f32 to vector<8x32xf32>
    %619 = arith.addf %618, %617 : vector<8x32xf32>
    %620 = arith.divf %618, %619 : vector<8x32xf32>
    %621 = vector.extract_strided_slice %600 {offsets = [0, 64], sizes = [8, 32], strides = [1, 1]} : vector<8x128xf32> to vector<8x32xf32>
    %622 = math.tanh %621 : vector<8x32xf32>
    %623 = vector.extract_strided_slice %600 {offsets = [0, 96], sizes = [8, 32], strides = [1, 1]} : vector<8x128xf32> to vector<8x32xf32>
    %624 = arith.negf %623 : vector<8x32xf32>
    %625 = math.exp %624 : vector<8x32xf32>
    %cst_208 = arith.constant 1.000000e+00 : f32
    %626 = vector.broadcast %cst_208 : f32 to vector<8x32xf32>
    %627 = arith.addf %626, %625 : vector<8x32xf32>
    %628 = arith.divf %626, %627 : vector<8x32xf32>
    %629 = arith.mulf %620, %608 : vector<8x32xf32>
    %630 = arith.mulf %614, %622 : vector<8x32xf32>
    %631 = arith.addf %629, %630 : vector<8x32xf32>
    %632 = math.tanh %631 : vector<8x32xf32>
    %633 = arith.mulf %628, %632 : vector<8x32xf32>
    %634 = vector.extract_strided_slice %607 {offsets = [0, 32], sizes = [8, 32], strides = [1, 1]} : vector<8x64xf32> to vector<8x32xf32>
    %635 = vector.extract_strided_slice %606 {offsets = [0, 0], sizes = [8, 32], strides = [1, 1]} : vector<8x128xf32> to vector<8x32xf32>
    %636 = arith.negf %635 : vector<8x32xf32>
    %637 = math.exp %636 : vector<8x32xf32>
    %cst_209 = arith.constant 1.000000e+00 : f32
    %638 = vector.broadcast %cst_209 : f32 to vector<8x32xf32>
    %639 = arith.addf %638, %637 : vector<8x32xf32>
    %640 = arith.divf %638, %639 : vector<8x32xf32>
    %641 = vector.extract_strided_slice %606 {offsets = [0, 32], sizes = [8, 32], strides = [1, 1]} : vector<8x128xf32> to vector<8x32xf32>
    %642 = arith.negf %641 : vector<8x32xf32>
    %643 = math.exp %642 : vector<8x32xf32>
    %cst_210 = arith.constant 1.000000e+00 : f32
    %644 = vector.broadcast %cst_210 : f32 to vector<8x32xf32>
    %645 = arith.addf %644, %643 : vector<8x32xf32>
    %646 = arith.divf %644, %645 : vector<8x32xf32>
    %647 = vector.extract_strided_slice %606 {offsets = [0, 64], sizes = [8, 32], strides = [1, 1]} : vector<8x128xf32> to vector<8x32xf32>
    %648 = math.tanh %647 : vector<8x32xf32>
    %649 = vector.extract_strided_slice %606 {offsets = [0, 96], sizes = [8, 32], strides = [1, 1]} : vector<8x128xf32> to vector<8x32xf32>
    %650 = arith.negf %649 : vector<8x32xf32>
    %651 = math.exp %650 : vector<8x32xf32>
    %cst_211 = arith.constant 1.000000e+00 : f32
    %652 = vector.broadcast %cst_211 : f32 to vector<8x32xf32>
    %653 = arith.addf %652, %651 : vector<8x32xf32>
    %654 = arith.divf %652, %653 : vector<8x32xf32>
    %655 = arith.mulf %646, %634 : vector<8x32xf32>
    %656 = arith.mulf %640, %648 : vector<8x32xf32>
    %657 = arith.addf %655, %656 : vector<8x32xf32>
    %658 = math.tanh %657 : vector<8x32xf32>
    %659 = arith.mulf %654, %658 : vector<8x32xf32>
    %660 = arith.index_cast %c6_i32 : i32 to index
    %c0_212 = arith.constant 0 : index
    %c0_213 = arith.constant 0 : index
    %661 = vector.load %arg2[%660, %c0_212, %c0_213] : memref<8x8x1xf32, #tpu.memory_space<vmem>>, vector<1x8x1xf32>
    %662 = vector.shape_cast %661 : vector<1x8x1xf32> to vector<8x1xf32>
    %663 = arith.index_cast %590 : i32 to index
    %c0_214 = arith.constant 0 : index
    %c0_215 = arith.constant 0 : index
    %664 = vector.load %arg2[%663, %c0_214, %c0_215] : memref<8x8x1xf32, #tpu.memory_space<vmem>>, vector<1x8x1xf32>
    %665 = vector.shape_cast %664 : vector<1x8x1xf32> to vector<8x1xf32>
    %666 = vector.broadcast %662 : vector<8x1xf32> to vector<8x32xf32>
    %667 = arith.mulf %633, %666 : vector<8x32xf32>
    %668 = vector.broadcast %662 : vector<8x1xf32> to vector<8x32xf32>
    %669 = arith.mulf %631, %668 : vector<8x32xf32>
    %670 = vector.broadcast %665 : vector<8x1xf32> to vector<8x32xf32>
    %671 = arith.mulf %659, %670 : vector<8x32xf32>
    %672 = vector.broadcast %665 : vector<8x1xf32> to vector<8x32xf32>
    %673 = arith.mulf %657, %672 : vector<8x32xf32>
    %674 = tpu.concatenate %667, %671 in 1 : vector<8x32xf32>, vector<8x32xf32> -> vector<8x64xf32>
    %c0_216 = arith.constant 0 : index
    %c0_217 = arith.constant 0 : index
    %675 = vector.load %arg8[%c0_216, %c0_217] : memref<8x64xf32, #tpu.memory_space<vmem>>, vector<8x64xf32>
    tpu.vector_store %arg8[%c0_216, %c0_217], %674 {strides = array<i32>} : memref<8x64xf32, #tpu.memory_space<vmem>>, vector<8x64xf32>,
    %676 = tpu.concatenate %669, %673 in 1 : vector<8x32xf32>, vector<8x32xf32> -> vector<8x64xf32>
    %c0_218 = arith.constant 0 : index
    %c0_219 = arith.constant 0 : index
    %677 = vector.load %arg9[%c0_218, %c0_219] : memref<8x64xf32, #tpu.memory_space<vmem>>, vector<8x64xf32>
    tpu.vector_store %arg9[%c0_218, %c0_219], %676 {strides = array<i32>} : memref<8x64xf32, #tpu.memory_space<vmem>>, vector<8x64xf32>,
    %678 = arith.index_cast %c6_i32 : i32 to index
    %c0_220 = arith.constant 0 : index
    %c0_221 = arith.constant 0 : index
    %679 = vector.load %arg10[%678, %c0_220, %c0_221] : memref<8x8x32xf32, #tpu.memory_space<vmem>>, vector<1x8x32xf32>
    %680 = vector.shape_cast %679 : vector<1x8x32xf32> to vector<8x32xf32>
    %681 = vector.shape_cast %667 : vector<8x32xf32> to vector<1x8x32xf32>
    tpu.vector_store %arg10[%678, %c0_220, %c0_221], %681 {strides = array<i32>} : memref<8x8x32xf32, #tpu.memory_space<vmem>>, vector<1x8x32xf32>,
    %682 = arith.index_cast %590 : i32 to index
    %c0_222 = arith.constant 0 : index
    %c0_223 = arith.constant 0 : index
    %683 = vector.load %arg11[%682, %c0_222, %c0_223] : memref<8x8x32xf32, #tpu.memory_space<vmem>>, vector<1x8x32xf32>
    %684 = vector.shape_cast %683 : vector<1x8x32xf32> to vector<8x32xf32>
    %685 = vector.shape_cast %671 : vector<8x32xf32> to vector<1x8x32xf32>
    tpu.vector_store %arg11[%682, %c0_222, %c0_223], %685 {strides = array<i32>} : memref<8x8x32xf32, #tpu.memory_space<vmem>>, vector<1x8x32xf32>,
    %c7_i32_224 = arith.constant 7 : i32
    %c7_i32_225 = arith.constant 7 : i32
    %686 = arith.subi %c7_i32_225, %c7_i32_224 : i32
    %c0_226 = arith.constant 0 : index
    %c0_227 = arith.constant 0 : index
    %687 = vector.load %arg8[%c0_226, %c0_227] : memref<8x64xf32, #tpu.memory_space<vmem>>, vector<8x64xf32>
    %688 = arith.truncf %687 : vector<8x64xf32> to vector<8x64xbf16>
    %c0_228 = arith.constant 0 : index
    %c0_229 = arith.constant 0 : index
    %689 = vector.load %arg4[%c0_228, %c0_229] : memref<64x256xbf16, #tpu.memory_space<vmem>>, vector<64x256xbf16>
    %cst_230 = arith.constant dense<0.000000e+00> : vector<8x256xf32>
    %690 = tpu.matmul %688, %689, %cst_230 {dimension_numbers = #tpu.dot_dimension_numbers<[1], [0], [0], [1], [0, 0, 1, 1], [], []>} : vector<8x64xbf16>, vector<64x256xbf16>, vector<8x256xf32> -> vector<8x256xf32>
    %691 = vector.extract_strided_slice %690 {offsets = [0, 0], sizes = [8, 128], strides = [1, 1]} : vector<8x256xf32> to vector<8x128xf32>
    %692 = arith.index_cast %c7_i32_224 : i32 to index
    %c0_231 = arith.constant 0 : index
    %c0_232 = arith.constant 0 : index
    %693 = vector.load %arg7[%692, %c0_231, %c0_232] : memref<8x8x256xf32, #tpu.memory_space<vmem>>, vector<1x8x256xf32>
    %694 = vector.shape_cast %693 : vector<1x8x256xf32> to vector<8x256xf32>
    %695 = vector.extract_strided_slice %694 {offsets = [0, 0], sizes = [8, 128], strides = [1, 1]} : vector<8x256xf32> to vector<8x128xf32>
    %696 = arith.addf %691, %695 : vector<8x128xf32>
    %697 = vector.extract_strided_slice %690 {offsets = [0, 128], sizes = [8, 128], strides = [1, 1]} : vector<8x256xf32> to vector<8x128xf32>
    %698 = arith.index_cast %686 : i32 to index
    %c0_233 = arith.constant 0 : index
    %c0_234 = arith.constant 0 : index
    %699 = vector.load %arg7[%698, %c0_233, %c0_234] : memref<8x8x256xf32, #tpu.memory_space<vmem>>, vector<1x8x256xf32>
    %700 = vector.shape_cast %699 : vector<1x8x256xf32> to vector<8x256xf32>
    %701 = vector.extract_strided_slice %700 {offsets = [0, 128], sizes = [8, 128], strides = [1, 1]} : vector<8x256xf32> to vector<8x128xf32>
    %702 = arith.addf %697, %701 : vector<8x128xf32>
    %c0_235 = arith.constant 0 : index
    %c0_236 = arith.constant 0 : index
    %703 = vector.load %arg9[%c0_235, %c0_236] : memref<8x64xf32, #tpu.memory_space<vmem>>, vector<8x64xf32>
    %704 = vector.extract_strided_slice %703 {offsets = [0, 0], sizes = [8, 32], strides = [1, 1]} : vector<8x64xf32> to vector<8x32xf32>
    %705 = vector.extract_strided_slice %696 {offsets = [0, 0], sizes = [8, 32], strides = [1, 1]} : vector<8x128xf32> to vector<8x32xf32>
    %706 = arith.negf %705 : vector<8x32xf32>
    %707 = math.exp %706 : vector<8x32xf32>
    %cst_237 = arith.constant 1.000000e+00 : f32
    %708 = vector.broadcast %cst_237 : f32 to vector<8x32xf32>
    %709 = arith.addf %708, %707 : vector<8x32xf32>
    %710 = arith.divf %708, %709 : vector<8x32xf32>
    %711 = vector.extract_strided_slice %696 {offsets = [0, 32], sizes = [8, 32], strides = [1, 1]} : vector<8x128xf32> to vector<8x32xf32>
    %712 = arith.negf %711 : vector<8x32xf32>
    %713 = math.exp %712 : vector<8x32xf32>
    %cst_238 = arith.constant 1.000000e+00 : f32
    %714 = vector.broadcast %cst_238 : f32 to vector<8x32xf32>
    %715 = arith.addf %714, %713 : vector<8x32xf32>
    %716 = arith.divf %714, %715 : vector<8x32xf32>
    %717 = vector.extract_strided_slice %696 {offsets = [0, 64], sizes = [8, 32], strides = [1, 1]} : vector<8x128xf32> to vector<8x32xf32>
    %718 = math.tanh %717 : vector<8x32xf32>
    %719 = vector.extract_strided_slice %696 {offsets = [0, 96], sizes = [8, 32], strides = [1, 1]} : vector<8x128xf32> to vector<8x32xf32>
    %720 = arith.negf %719 : vector<8x32xf32>
    %721 = math.exp %720 : vector<8x32xf32>
    %cst_239 = arith.constant 1.000000e+00 : f32
    %722 = vector.broadcast %cst_239 : f32 to vector<8x32xf32>
    %723 = arith.addf %722, %721 : vector<8x32xf32>
    %724 = arith.divf %722, %723 : vector<8x32xf32>
    %725 = arith.mulf %716, %704 : vector<8x32xf32>
    %726 = arith.mulf %710, %718 : vector<8x32xf32>
    %727 = arith.addf %725, %726 : vector<8x32xf32>
    %728 = math.tanh %727 : vector<8x32xf32>
    %729 = arith.mulf %724, %728 : vector<8x32xf32>
    %730 = vector.extract_strided_slice %703 {offsets = [0, 32], sizes = [8, 32], strides = [1, 1]} : vector<8x64xf32> to vector<8x32xf32>
    %731 = vector.extract_strided_slice %702 {offsets = [0, 0], sizes = [8, 32], strides = [1, 1]} : vector<8x128xf32> to vector<8x32xf32>
    %732 = arith.negf %731 : vector<8x32xf32>
    %733 = math.exp %732 : vector<8x32xf32>
    %cst_240 = arith.constant 1.000000e+00 : f32
    %734 = vector.broadcast %cst_240 : f32 to vector<8x32xf32>
    %735 = arith.addf %734, %733 : vector<8x32xf32>
    %736 = arith.divf %734, %735 : vector<8x32xf32>
    %737 = vector.extract_strided_slice %702 {offsets = [0, 32], sizes = [8, 32], strides = [1, 1]} : vector<8x128xf32> to vector<8x32xf32>
    %738 = arith.negf %737 : vector<8x32xf32>
    %739 = math.exp %738 : vector<8x32xf32>
    %cst_241 = arith.constant 1.000000e+00 : f32
    %740 = vector.broadcast %cst_241 : f32 to vector<8x32xf32>
    %741 = arith.addf %740, %739 : vector<8x32xf32>
    %742 = arith.divf %740, %741 : vector<8x32xf32>
    %743 = vector.extract_strided_slice %702 {offsets = [0, 64], sizes = [8, 32], strides = [1, 1]} : vector<8x128xf32> to vector<8x32xf32>
    %744 = math.tanh %743 : vector<8x32xf32>
    %745 = vector.extract_strided_slice %702 {offsets = [0, 96], sizes = [8, 32], strides = [1, 1]} : vector<8x128xf32> to vector<8x32xf32>
    %746 = arith.negf %745 : vector<8x32xf32>
    %747 = math.exp %746 : vector<8x32xf32>
    %cst_242 = arith.constant 1.000000e+00 : f32
    %748 = vector.broadcast %cst_242 : f32 to vector<8x32xf32>
    %749 = arith.addf %748, %747 : vector<8x32xf32>
    %750 = arith.divf %748, %749 : vector<8x32xf32>
    %751 = arith.mulf %742, %730 : vector<8x32xf32>
    %752 = arith.mulf %736, %744 : vector<8x32xf32>
    %753 = arith.addf %751, %752 : vector<8x32xf32>
    %754 = math.tanh %753 : vector<8x32xf32>
    %755 = arith.mulf %750, %754 : vector<8x32xf32>
    %756 = arith.index_cast %c7_i32_224 : i32 to index
    %c0_243 = arith.constant 0 : index
    %c0_244 = arith.constant 0 : index
    %757 = vector.load %arg2[%756, %c0_243, %c0_244] : memref<8x8x1xf32, #tpu.memory_space<vmem>>, vector<1x8x1xf32>
    %758 = vector.shape_cast %757 : vector<1x8x1xf32> to vector<8x1xf32>
    %759 = arith.index_cast %686 : i32 to index
    %c0_245 = arith.constant 0 : index
    %c0_246 = arith.constant 0 : index
    %760 = vector.load %arg2[%759, %c0_245, %c0_246] : memref<8x8x1xf32, #tpu.memory_space<vmem>>, vector<1x8x1xf32>
    %761 = vector.shape_cast %760 : vector<1x8x1xf32> to vector<8x1xf32>
    %762 = vector.broadcast %758 : vector<8x1xf32> to vector<8x32xf32>
    %763 = arith.mulf %729, %762 : vector<8x32xf32>
    %764 = vector.broadcast %758 : vector<8x1xf32> to vector<8x32xf32>
    %765 = arith.mulf %727, %764 : vector<8x32xf32>
    %766 = vector.broadcast %761 : vector<8x1xf32> to vector<8x32xf32>
    %767 = arith.mulf %755, %766 : vector<8x32xf32>
    %768 = vector.broadcast %761 : vector<8x1xf32> to vector<8x32xf32>
    %769 = arith.mulf %753, %768 : vector<8x32xf32>
    %770 = tpu.concatenate %763, %767 in 1 : vector<8x32xf32>, vector<8x32xf32> -> vector<8x64xf32>
    %c0_247 = arith.constant 0 : index
    %c0_248 = arith.constant 0 : index
    %771 = vector.load %arg8[%c0_247, %c0_248] : memref<8x64xf32, #tpu.memory_space<vmem>>, vector<8x64xf32>
    tpu.vector_store %arg8[%c0_247, %c0_248], %770 {strides = array<i32>} : memref<8x64xf32, #tpu.memory_space<vmem>>, vector<8x64xf32>,
    %772 = tpu.concatenate %765, %769 in 1 : vector<8x32xf32>, vector<8x32xf32> -> vector<8x64xf32>
    %c0_249 = arith.constant 0 : index
    %c0_250 = arith.constant 0 : index
    %773 = vector.load %arg9[%c0_249, %c0_250] : memref<8x64xf32, #tpu.memory_space<vmem>>, vector<8x64xf32>
    tpu.vector_store %arg9[%c0_249, %c0_250], %772 {strides = array<i32>} : memref<8x64xf32, #tpu.memory_space<vmem>>, vector<8x64xf32>,
    %774 = arith.index_cast %c7_i32_224 : i32 to index
    %c0_251 = arith.constant 0 : index
    %c0_252 = arith.constant 0 : index
    %775 = vector.load %arg10[%774, %c0_251, %c0_252] : memref<8x8x32xf32, #tpu.memory_space<vmem>>, vector<1x8x32xf32>
    %776 = vector.shape_cast %775 : vector<1x8x32xf32> to vector<8x32xf32>
    %777 = vector.shape_cast %763 : vector<8x32xf32> to vector<1x8x32xf32>
    tpu.vector_store %arg10[%774, %c0_251, %c0_252], %777 {strides = array<i32>} : memref<8x8x32xf32, #tpu.memory_space<vmem>>, vector<1x8x32xf32>,
    %778 = arith.index_cast %686 : i32 to index
    %c0_253 = arith.constant 0 : index
    %c0_254 = arith.constant 0 : index
    %779 = vector.load %arg11[%778, %c0_253, %c0_254] : memref<8x8x32xf32, #tpu.memory_space<vmem>>, vector<1x8x32xf32>
    %780 = vector.shape_cast %779 : vector<1x8x32xf32> to vector<8x32xf32>
    %781 = vector.shape_cast %767 : vector<8x32xf32> to vector<1x8x32xf32>
    tpu.vector_store %arg11[%778, %c0_253, %c0_254], %781 {strides = array<i32>} : memref<8x8x32xf32, #tpu.memory_space<vmem>>, vector<1x8x32xf32>,
    %c8_i32 = arith.constant 8 : i32
    %c0_255 = arith.constant 0 : index
    %c0_256 = arith.constant 0 : index
    %c0_257 = arith.constant 0 : index
    %782 = vector.load %arg10[%c0_255, %c0_256, %c0_257] : memref<8x8x32xf32, #tpu.memory_space<vmem>>, vector<8x8x32xf32>
    %c0_258 = arith.constant 0 : index
    %c0_259 = arith.constant 0 : index
    %c0_260 = arith.constant 0 : index
    %783 = vector.load %arg11[%c0_258, %c0_259, %c0_260] : memref<8x8x32xf32, #tpu.memory_space<vmem>>, vector<8x8x32xf32>
    %784 = tpu.concatenate %782, %783 in 2 : vector<8x8x32xf32>, vector<8x8x32xf32> -> vector<8x8x64xf32>
    %c0_261 = arith.constant 0 : index
    %c0_262 = arith.constant 0 : index
    %c0_263 = arith.constant 0 : index
    %785 = vector.load %arg6[%c0_261, %c0_262, %c0_263] : memref<8x8x64xf32, #tpu.memory_space<vmem>>, vector<8x8x64xf32>
    tpu.vector_store %arg6[%c0_261, %c0_262, %c0_263], %784 {strides = array<i32>} : memref<8x8x64xf32, #tpu.memory_space<vmem>>, vector<8x8x64xf32>,
    return
  }
  func.func @transform_0(%arg0: i32) -> (i32, i32, i32) {
    %c0_i32 = arith.constant 0 : i32
    %c0_i32_0 = arith.constant 0 : i32
    %c0_i32_1 = arith.constant 0 : i32
    return %c0_i32, %arg0, %c0_i32_0 : i32, i32, i32
  }
  func.func @transform_1(%arg0: i32) -> (i32, i32, i32) {
    %c0_i32 = arith.constant 0 : i32
    %c0_i32_0 = arith.constant 0 : i32
    %c0_i32_1 = arith.constant 0 : i32
    return %c0_i32, %arg0, %c0_i32_0 : i32, i32, i32
  }
  func.func @transform_2(%arg0: i32) -> (i32, i32) {
    %c0_i32 = arith.constant 0 : i32
    %c0_i32_0 = arith.constant 0 : i32
    %c0_i32_1 = arith.constant 0 : i32
    return %c0_i32, %c0_i32_0 : i32, i32
  }
  func.func @transform_3(%arg0: i32) -> (i32, i32) {
    %c0_i32 = arith.constant 0 : i32
    %c0_i32_0 = arith.constant 0 : i32
    %c0_i32_1 = arith.constant 0 : i32
    return %c0_i32, %c0_i32_0 : i32, i32
  }
  func.func @transform_4(%arg0: i32) -> (i32, i32) {
    %c0_i32 = arith.constant 0 : i32
    %c0_i32_0 = arith.constant 0 : i32
    %c0_i32_1 = arith.constant 0 : i32
    return %c0_i32, %c0_i32_0 : i32, i32
  }
  func.func @transform_5(%arg0: i32) -> (i32, i32, i32) {
    %c0_i32 = arith.constant 0 : i32
    %c0_i32_0 = arith.constant 0 : i32
    %c0_i32_1 = arith.constant 0 : i32
    return %c0_i32, %arg0, %c0_i32_0 : i32, i32, i32
  }
}

module attributes {stable_mosaic.version = 11 : i64} {
  func.func @bilstm_kernel(%arg0: i32, %arg1: memref<8x8x64xf32, #tpu.memory_space<vmem>>, %arg2: memref<8x8x1xf32, #tpu.memory_space<vmem>>, %arg3: memref<64x256xbf16, #tpu.memory_space<vmem>>, %arg4: memref<64x256xbf16, #tpu.memory_space<vmem>>, %arg5: memref<1x256xf32, #tpu.memory_space<vmem>>, %arg6: memref<8x8x64xf32, #tpu.memory_space<vmem>>, %arg7: memref<8x8x256xf32, #tpu.memory_space<vmem>>, %arg8: memref<8x64xf32, #tpu.memory_space<vmem>>, %arg9: memref<8x64xf32, #tpu.memory_space<vmem>>, %arg10: memref<8x8x32xf32, #tpu.memory_space<vmem>>, %arg11: memref<8x8x32xf32, #tpu.memory_space<vmem>>) attributes {dimension_semantics = [#tpu.dimension_semantics<parallel>], iteration_bounds = array<i64: 1>, scalar_prefetch = 0 : i64, scratch_operands = 5 : i64, tpu.core_type = #tpu.core_type<tc>, window_params = [{transform_indices = @transform_0, window_bounds = array<i64: 8, 8, 64>}, {transform_indices = @transform_1, window_bounds = array<i64: 8, 8, 1>}, {pipeline_mode = #tpu.pipeline_mode<synchronous>, transform_indices = @transform_2, window_bounds = array<i64: 64, 256>}, {pipeline_mode = #tpu.pipeline_mode<synchronous>, transform_indices = @transform_3, window_bounds = array<i64: 64, 256>}, {pipeline_mode = #tpu.pipeline_mode<synchronous>, transform_indices = @transform_4, window_bounds = array<i64: 1, 256>}, {transform_indices = @transform_5, window_bounds = array<i64: 8, 8, 64>}]} {
    %c0 = arith.constant 0 : index
    %c0_0 = arith.constant 0 : index
    %c0_1 = arith.constant 0 : index
    %0 = vector.load %arg1[%c0, %c0_0, %c0_1] : memref<8x8x64xf32, #tpu.memory_space<vmem>>, vector<8x8x64xf32>
    %1 = vector.shape_cast %0 : vector<8x8x64xf32> to vector<64x64xf32>
    %2 = arith.truncf %1 : vector<64x64xf32> to vector<64x64xbf16>
    %c0_2 = arith.constant 0 : index
    %c0_3 = arith.constant 0 : index
    %3 = vector.load %arg3[%c0_2, %c0_3] : memref<64x256xbf16, #tpu.memory_space<vmem>>, vector<64x256xbf16>
    %cst = arith.constant dense<0.000000e+00> : vector<64x256xf32>
    %4 = tpu.matmul %2, %3, %cst {dimension_numbers = #tpu.dot_dimension_numbers<[1], [0], [0], [1], [0, 0, 1, 1], [], []>} : vector<64x64xbf16>, vector<64x256xbf16>, vector<64x256xf32> -> vector<64x256xf32>
    %c0_4 = arith.constant 0 : index
    %c0_5 = arith.constant 0 : index
    %5 = vector.load %arg5[%c0_4, %c0_5] : memref<1x256xf32, #tpu.memory_space<vmem>>, vector<1x256xf32>
    %6 = vector.broadcast %5 : vector<1x256xf32> to vector<64x256xf32>
    %7 = arith.addf %4, %6 : vector<64x256xf32>
    %8 = vector.shape_cast %7 : vector<64x256xf32> to vector<8x8x256xf32>
    %c0_6 = arith.constant 0 : index
    %c0_7 = arith.constant 0 : index
    %c0_8 = arith.constant 0 : index
    %9 = vector.load %arg7[%c0_6, %c0_7, %c0_8] : memref<8x8x256xf32, #tpu.memory_space<vmem>>, vector<8x8x256xf32>
    tpu.vector_store %arg7[%c0_6, %c0_7, %c0_8], %8 {strides = array<i32>} : memref<8x8x256xf32, #tpu.memory_space<vmem>>, vector<8x8x256xf32>,
    %cst_9 = arith.constant 0.000000e+00 : f32
    %10 = vector.broadcast %cst_9 : f32 to vector<8x64xf32>
    %c0_10 = arith.constant 0 : index
    %c0_11 = arith.constant 0 : index
    %11 = vector.load %arg8[%c0_10, %c0_11] : memref<8x64xf32, #tpu.memory_space<vmem>>, vector<8x64xf32>
    tpu.vector_store %arg8[%c0_10, %c0_11], %10 {strides = array<i32>} : memref<8x64xf32, #tpu.memory_space<vmem>>, vector<8x64xf32>,
    %cst_12 = arith.constant 0.000000e+00 : f32
    %12 = vector.broadcast %cst_12 : f32 to vector<8x64xf32>
    %c0_13 = arith.constant 0 : index
    %c0_14 = arith.constant 0 : index
    %13 = vector.load %arg9[%c0_13, %c0_14] : memref<8x64xf32, #tpu.memory_space<vmem>>, vector<8x64xf32>
    tpu.vector_store %arg9[%c0_13, %c0_14], %12 {strides = array<i32>} : memref<8x64xf32, #tpu.memory_space<vmem>>, vector<8x64xf32>,
    %c0_i32 = arith.constant 0 : i32
    %c7_i32 = arith.constant 7 : i32
    %14 = arith.subi %c7_i32, %c0_i32 : i32
    %c0_15 = arith.constant 0 : index
    %c0_16 = arith.constant 0 : index
    %15 = vector.load %arg8[%c0_15, %c0_16] : memref<8x64xf32, #tpu.memory_space<vmem>>, vector<8x64xf32>
    %16 = arith.truncf %15 : vector<8x64xf32> to vector<8x64xbf16>
    %c0_17 = arith.constant 0 : index
    %c0_18 = arith.constant 0 : index
    %17 = vector.load %arg4[%c0_17, %c0_18] : memref<64x256xbf16, #tpu.memory_space<vmem>>, vector<64x256xbf16>
    %cst_19 = arith.constant dense<0.000000e+00> : vector<8x256xf32>
    %18 = tpu.matmul %16, %17, %cst_19 {dimension_numbers = #tpu.dot_dimension_numbers<[1], [0], [0], [1], [0, 0, 1, 1], [], []>} : vector<8x64xbf16>, vector<64x256xbf16>, vector<8x256xf32> -> vector<8x256xf32>
    %19 = vector.extract_strided_slice %18 {offsets = [0, 0], sizes = [8, 128], strides = [1, 1]} : vector<8x256xf32> to vector<8x128xf32>
    %20 = arith.index_cast %c0_i32 : i32 to index
    %c0_20 = arith.constant 0 : index
    %c0_21 = arith.constant 0 : index
    %21 = vector.load %arg7[%20, %c0_20, %c0_21] : memref<8x8x256xf32, #tpu.memory_space<vmem>>, vector<1x8x256xf32>
    %22 = vector.shape_cast %21 : vector<1x8x256xf32> to vector<8x256xf32>
    %23 = vector.extract_strided_slice %22 {offsets = [0, 0], sizes = [8, 128], strides = [1, 1]} : vector<8x256xf32> to vector<8x128xf32>
    %24 = arith.addf %19, %23 : vector<8x128xf32>
    %25 = vector.extract_strided_slice %18 {offsets = [0, 128], sizes = [8, 128], strides = [1, 1]} : vector<8x256xf32> to vector<8x128xf32>
    %26 = arith.index_cast %14 : i32 to index
    %c0_22 = arith.constant 0 : index
    %c0_23 = arith.constant 0 : index
    %27 = vector.load %arg7[%26, %c0_22, %c0_23] : memref<8x8x256xf32, #tpu.memory_space<vmem>>, vector<1x8x256xf32>
    %28 = vector.shape_cast %27 : vector<1x8x256xf32> to vector<8x256xf32>
    %29 = vector.extract_strided_slice %28 {offsets = [0, 128], sizes = [8, 128], strides = [1, 1]} : vector<8x256xf32> to vector<8x128xf32>
    %30 = arith.addf %25, %29 : vector<8x128xf32>
    %c0_24 = arith.constant 0 : index
    %c0_25 = arith.constant 0 : index
    %31 = vector.load %arg9[%c0_24, %c0_25] : memref<8x64xf32, #tpu.memory_space<vmem>>, vector<8x64xf32>
    %32 = vector.extract_strided_slice %31 {offsets = [0, 0], sizes = [8, 32], strides = [1, 1]} : vector<8x64xf32> to vector<8x32xf32>
    %33 = vector.extract_strided_slice %24 {offsets = [0, 0], sizes = [8, 32], strides = [1, 1]} : vector<8x128xf32> to vector<8x32xf32>
    %34 = arith.negf %33 : vector<8x32xf32>
    %35 = math.exp %34 : vector<8x32xf32>
    %cst_26 = arith.constant 1.000000e+00 : f32
    %36 = vector.broadcast %cst_26 : f32 to vector<8x32xf32>
    %37 = arith.addf %36, %35 : vector<8x32xf32>
    %38 = arith.divf %36, %37 : vector<8x32xf32>
    %39 = vector.extract_strided_slice %24 {offsets = [0, 32], sizes = [8, 32], strides = [1, 1]} : vector<8x128xf32> to vector<8x32xf32>
    %40 = arith.negf %39 : vector<8x32xf32>
    %41 = math.exp %40 : vector<8x32xf32>
    %cst_27 = arith.constant 1.000000e+00 : f32
    %42 = vector.broadcast %cst_27 : f32 to vector<8x32xf32>
    %43 = arith.addf %42, %41 : vector<8x32xf32>
    %44 = arith.divf %42, %43 : vector<8x32xf32>
    %45 = vector.extract_strided_slice %24 {offsets = [0, 64], sizes = [8, 32], strides = [1, 1]} : vector<8x128xf32> to vector<8x32xf32>
    %46 = math.tanh %45 : vector<8x32xf32>
    %47 = vector.extract_strided_slice %24 {offsets = [0, 96], sizes = [8, 32], strides = [1, 1]} : vector<8x128xf32> to vector<8x32xf32>
    %48 = arith.negf %47 : vector<8x32xf32>
    %49 = math.exp %48 : vector<8x32xf32>
    %cst_28 = arith.constant 1.000000e+00 : f32
    %50 = vector.broadcast %cst_28 : f32 to vector<8x32xf32>
    %51 = arith.addf %50, %49 : vector<8x32xf32>
    %52 = arith.divf %50, %51 : vector<8x32xf32>
    %53 = arith.mulf %44, %32 : vector<8x32xf32>
    %54 = arith.mulf %38, %46 : vector<8x32xf32>
    %55 = arith.addf %53, %54 : vector<8x32xf32>
    %56 = math.tanh %55 : vector<8x32xf32>
    %57 = arith.mulf %52, %56 : vector<8x32xf32>
    %58 = vector.extract_strided_slice %31 {offsets = [0, 32], sizes = [8, 32], strides = [1, 1]} : vector<8x64xf32> to vector<8x32xf32>
    %59 = vector.extract_strided_slice %30 {offsets = [0, 0], sizes = [8, 32], strides = [1, 1]} : vector<8x128xf32> to vector<8x32xf32>
    %60 = arith.negf %59 : vector<8x32xf32>
    %61 = math.exp %60 : vector<8x32xf32>
    %cst_29 = arith.constant 1.000000e+00 : f32
    %62 = vector.broadcast %cst_29 : f32 to vector<8x32xf32>
    %63 = arith.addf %62, %61 : vector<8x32xf32>
    %64 = arith.divf %62, %63 : vector<8x32xf32>
    %65 = vector.extract_strided_slice %30 {offsets = [0, 32], sizes = [8, 32], strides = [1, 1]} : vector<8x128xf32> to vector<8x32xf32>
    %66 = arith.negf %65 : vector<8x32xf32>
    %67 = math.exp %66 : vector<8x32xf32>
    %cst_30 = arith.constant 1.000000e+00 : f32
    %68 = vector.broadcast %cst_30 : f32 to vector<8x32xf32>
    %69 = arith.addf %68, %67 : vector<8x32xf32>
    %70 = arith.divf %68, %69 : vector<8x32xf32>
    %71 = vector.extract_strided_slice %30 {offsets = [0, 64], sizes = [8, 32], strides = [1, 1]} : vector<8x128xf32> to vector<8x32xf32>
    %72 = math.tanh %71 : vector<8x32xf32>
    %73 = vector.extract_strided_slice %30 {offsets = [0, 96], sizes = [8, 32], strides = [1, 1]} : vector<8x128xf32> to vector<8x32xf32>
    %74 = arith.negf %73 : vector<8x32xf32>
    %75 = math.exp %74 : vector<8x32xf32>
    %cst_31 = arith.constant 1.000000e+00 : f32
    %76 = vector.broadcast %cst_31 : f32 to vector<8x32xf32>
    %77 = arith.addf %76, %75 : vector<8x32xf32>
    %78 = arith.divf %76, %77 : vector<8x32xf32>
    %79 = arith.mulf %70, %58 : vector<8x32xf32>
    %80 = arith.mulf %64, %72 : vector<8x32xf32>
    %81 = arith.addf %79, %80 : vector<8x32xf32>
    %82 = math.tanh %81 : vector<8x32xf32>
    %83 = arith.mulf %78, %82 : vector<8x32xf32>
    %84 = arith.index_cast %c0_i32 : i32 to index
    %c0_32 = arith.constant 0 : index
    %c0_33 = arith.constant 0 : index
    %85 = vector.load %arg2[%84, %c0_32, %c0_33] : memref<8x8x1xf32, #tpu.memory_space<vmem>>, vector<1x8x1xf32>
    %86 = vector.shape_cast %85 : vector<1x8x1xf32> to vector<8x1xf32>
    %87 = arith.index_cast %14 : i32 to index
    %c0_34 = arith.constant 0 : index
    %c0_35 = arith.constant 0 : index
    %88 = vector.load %arg2[%87, %c0_34, %c0_35] : memref<8x8x1xf32, #tpu.memory_space<vmem>>, vector<1x8x1xf32>
    %89 = vector.shape_cast %88 : vector<1x8x1xf32> to vector<8x1xf32>
    %90 = vector.broadcast %86 : vector<8x1xf32> to vector<8x32xf32>
    %91 = arith.mulf %57, %90 : vector<8x32xf32>
    %92 = vector.broadcast %86 : vector<8x1xf32> to vector<8x32xf32>
    %93 = arith.mulf %55, %92 : vector<8x32xf32>
    %94 = vector.broadcast %89 : vector<8x1xf32> to vector<8x32xf32>
    %95 = arith.mulf %83, %94 : vector<8x32xf32>
    %96 = vector.broadcast %89 : vector<8x1xf32> to vector<8x32xf32>
    %97 = arith.mulf %81, %96 : vector<8x32xf32>
    %98 = tpu.concatenate %91, %95 in 1 : vector<8x32xf32>, vector<8x32xf32> -> vector<8x64xf32>
    %c0_36 = arith.constant 0 : index
    %c0_37 = arith.constant 0 : index
    %99 = vector.load %arg8[%c0_36, %c0_37] : memref<8x64xf32, #tpu.memory_space<vmem>>, vector<8x64xf32>
    tpu.vector_store %arg8[%c0_36, %c0_37], %98 {strides = array<i32>} : memref<8x64xf32, #tpu.memory_space<vmem>>, vector<8x64xf32>,
    %100 = tpu.concatenate %93, %97 in 1 : vector<8x32xf32>, vector<8x32xf32> -> vector<8x64xf32>
    %c0_38 = arith.constant 0 : index
    %c0_39 = arith.constant 0 : index
    %101 = vector.load %arg9[%c0_38, %c0_39] : memref<8x64xf32, #tpu.memory_space<vmem>>, vector<8x64xf32>
    tpu.vector_store %arg9[%c0_38, %c0_39], %100 {strides = array<i32>} : memref<8x64xf32, #tpu.memory_space<vmem>>, vector<8x64xf32>,
    %102 = arith.index_cast %c0_i32 : i32 to index
    %c0_40 = arith.constant 0 : index
    %c0_41 = arith.constant 0 : index
    %103 = vector.load %arg10[%102, %c0_40, %c0_41] : memref<8x8x32xf32, #tpu.memory_space<vmem>>, vector<1x8x32xf32>
    %104 = vector.shape_cast %103 : vector<1x8x32xf32> to vector<8x32xf32>
    %105 = vector.shape_cast %91 : vector<8x32xf32> to vector<1x8x32xf32>
    tpu.vector_store %arg10[%102, %c0_40, %c0_41], %105 {strides = array<i32>} : memref<8x8x32xf32, #tpu.memory_space<vmem>>, vector<1x8x32xf32>,
    %106 = arith.index_cast %14 : i32 to index
    %c0_42 = arith.constant 0 : index
    %c0_43 = arith.constant 0 : index
    %107 = vector.load %arg11[%106, %c0_42, %c0_43] : memref<8x8x32xf32, #tpu.memory_space<vmem>>, vector<1x8x32xf32>
    %108 = vector.shape_cast %107 : vector<1x8x32xf32> to vector<8x32xf32>
    %109 = vector.shape_cast %95 : vector<8x32xf32> to vector<1x8x32xf32>
    tpu.vector_store %arg11[%106, %c0_42, %c0_43], %109 {strides = array<i32>} : memref<8x8x32xf32, #tpu.memory_space<vmem>>, vector<1x8x32xf32>,
    %c1_i32 = arith.constant 1 : i32
    %c7_i32_44 = arith.constant 7 : i32
    %110 = arith.subi %c7_i32_44, %c1_i32 : i32
    %c0_45 = arith.constant 0 : index
    %c0_46 = arith.constant 0 : index
    %111 = vector.load %arg8[%c0_45, %c0_46] : memref<8x64xf32, #tpu.memory_space<vmem>>, vector<8x64xf32>
    %112 = arith.truncf %111 : vector<8x64xf32> to vector<8x64xbf16>
    %c0_47 = arith.constant 0 : index
    %c0_48 = arith.constant 0 : index
    %113 = vector.load %arg4[%c0_47, %c0_48] : memref<64x256xbf16, #tpu.memory_space<vmem>>, vector<64x256xbf16>
    %cst_49 = arith.constant dense<0.000000e+00> : vector<8x256xf32>
    %114 = tpu.matmul %112, %113, %cst_49 {dimension_numbers = #tpu.dot_dimension_numbers<[1], [0], [0], [1], [0, 0, 1, 1], [], []>} : vector<8x64xbf16>, vector<64x256xbf16>, vector<8x256xf32> -> vector<8x256xf32>
    %115 = vector.extract_strided_slice %114 {offsets = [0, 0], sizes = [8, 128], strides = [1, 1]} : vector<8x256xf32> to vector<8x128xf32>
    %116 = arith.index_cast %c1_i32 : i32 to index
    %c0_50 = arith.constant 0 : index
    %c0_51 = arith.constant 0 : index
    %117 = vector.load %arg7[%116, %c0_50, %c0_51] : memref<8x8x256xf32, #tpu.memory_space<vmem>>, vector<1x8x256xf32>
    %118 = vector.shape_cast %117 : vector<1x8x256xf32> to vector<8x256xf32>
    %119 = vector.extract_strided_slice %118 {offsets = [0, 0], sizes = [8, 128], strides = [1, 1]} : vector<8x256xf32> to vector<8x128xf32>
    %120 = arith.addf %115, %119 : vector<8x128xf32>
    %121 = vector.extract_strided_slice %114 {offsets = [0, 128], sizes = [8, 128], strides = [1, 1]} : vector<8x256xf32> to vector<8x128xf32>
    %122 = arith.index_cast %110 : i32 to index
    %c0_52 = arith.constant 0 : index
    %c0_53 = arith.constant 0 : index
    %123 = vector.load %arg7[%122, %c0_52, %c0_53] : memref<8x8x256xf32, #tpu.memory_space<vmem>>, vector<1x8x256xf32>
    %124 = vector.shape_cast %123 : vector<1x8x256xf32> to vector<8x256xf32>
    %125 = vector.extract_strided_slice %124 {offsets = [0, 128], sizes = [8, 128], strides = [1, 1]} : vector<8x256xf32> to vector<8x128xf32>
    %126 = arith.addf %121, %125 : vector<8x128xf32>
    %c0_54 = arith.constant 0 : index
    %c0_55 = arith.constant 0 : index
    %127 = vector.load %arg9[%c0_54, %c0_55] : memref<8x64xf32, #tpu.memory_space<vmem>>, vector<8x64xf32>
    %128 = vector.extract_strided_slice %127 {offsets = [0, 0], sizes = [8, 32], strides = [1, 1]} : vector<8x64xf32> to vector<8x32xf32>
    %129 = vector.extract_strided_slice %120 {offsets = [0, 0], sizes = [8, 32], strides = [1, 1]} : vector<8x128xf32> to vector<8x32xf32>
    %130 = arith.negf %129 : vector<8x32xf32>
    %131 = math.exp %130 : vector<8x32xf32>
    %cst_56 = arith.constant 1.000000e+00 : f32
    %132 = vector.broadcast %cst_56 : f32 to vector<8x32xf32>
    %133 = arith.addf %132, %131 : vector<8x32xf32>
    %134 = arith.divf %132, %133 : vector<8x32xf32>
    %135 = vector.extract_strided_slice %120 {offsets = [0, 32], sizes = [8, 32], strides = [1, 1]} : vector<8x128xf32> to vector<8x32xf32>
    %136 = arith.negf %135 : vector<8x32xf32>
    %137 = math.exp %136 : vector<8x32xf32>
    %cst_57 = arith.constant 1.000000e+00 : f32
    %138 = vector.broadcast %cst_57 : f32 to vector<8x32xf32>
    %139 = arith.addf %138, %137 : vector<8x32xf32>
    %140 = arith.divf %138, %139 : vector<8x32xf32>
    %141 = vector.extract_strided_slice %120 {offsets = [0, 64], sizes = [8, 32], strides = [1, 1]} : vector<8x128xf32> to vector<8x32xf32>
    %142 = math.tanh %141 : vector<8x32xf32>
    %143 = vector.extract_strided_slice %120 {offsets = [0, 96], sizes = [8, 32], strides = [1, 1]} : vector<8x128xf32> to vector<8x32xf32>
    %144 = arith.negf %143 : vector<8x32xf32>
    %145 = math.exp %144 : vector<8x32xf32>
    %cst_58 = arith.constant 1.000000e+00 : f32
    %146 = vector.broadcast %cst_58 : f32 to vector<8x32xf32>
    %147 = arith.addf %146, %145 : vector<8x32xf32>
    %148 = arith.divf %146, %147 : vector<8x32xf32>
    %149 = arith.mulf %140, %128 : vector<8x32xf32>
    %150 = arith.mulf %134, %142 : vector<8x32xf32>
    %151 = arith.addf %149, %150 : vector<8x32xf32>
    %152 = math.tanh %151 : vector<8x32xf32>
    %153 = arith.mulf %148, %152 : vector<8x32xf32>
    %154 = vector.extract_strided_slice %127 {offsets = [0, 32], sizes = [8, 32], strides = [1, 1]} : vector<8x64xf32> to vector<8x32xf32>
    %155 = vector.extract_strided_slice %126 {offsets = [0, 0], sizes = [8, 32], strides = [1, 1]} : vector<8x128xf32> to vector<8x32xf32>
    %156 = arith.negf %155 : vector<8x32xf32>
    %157 = math.exp %156 : vector<8x32xf32>
    %cst_59 = arith.constant 1.000000e+00 : f32
    %158 = vector.broadcast %cst_59 : f32 to vector<8x32xf32>
    %159 = arith.addf %158, %157 : vector<8x32xf32>
    %160 = arith.divf %158, %159 : vector<8x32xf32>
    %161 = vector.extract_strided_slice %126 {offsets = [0, 32], sizes = [8, 32], strides = [1, 1]} : vector<8x128xf32> to vector<8x32xf32>
    %162 = arith.negf %161 : vector<8x32xf32>
    %163 = math.exp %162 : vector<8x32xf32>
    %cst_60 = arith.constant 1.000000e+00 : f32
    %164 = vector.broadcast %cst_60 : f32 to vector<8x32xf32>
    %165 = arith.addf %164, %163 : vector<8x32xf32>
    %166 = arith.divf %164, %165 : vector<8x32xf32>
    %167 = vector.extract_strided_slice %126 {offsets = [0, 64], sizes = [8, 32], strides = [1, 1]} : vector<8x128xf32> to vector<8x32xf32>
    %168 = math.tanh %167 : vector<8x32xf32>
    %169 = vector.extract_strided_slice %126 {offsets = [0, 96], sizes = [8, 32], strides = [1, 1]} : vector<8x128xf32> to vector<8x32xf32>
    %170 = arith.negf %169 : vector<8x32xf32>
    %171 = math.exp %170 : vector<8x32xf32>
    %cst_61 = arith.constant 1.000000e+00 : f32
    %172 = vector.broadcast %cst_61 : f32 to vector<8x32xf32>
    %173 = arith.addf %172, %171 : vector<8x32xf32>
    %174 = arith.divf %172, %173 : vector<8x32xf32>
    %175 = arith.mulf %166, %154 : vector<8x32xf32>
    %176 = arith.mulf %160, %168 : vector<8x32xf32>
    %177 = arith.addf %175, %176 : vector<8x32xf32>
    %178 = math.tanh %177 : vector<8x32xf32>
    %179 = arith.mulf %174, %178 : vector<8x32xf32>
    %180 = arith.index_cast %c1_i32 : i32 to index
    %c0_62 = arith.constant 0 : index
    %c0_63 = arith.constant 0 : index
    %181 = vector.load %arg2[%180, %c0_62, %c0_63] : memref<8x8x1xf32, #tpu.memory_space<vmem>>, vector<1x8x1xf32>
    %182 = vector.shape_cast %181 : vector<1x8x1xf32> to vector<8x1xf32>
    %183 = arith.index_cast %110 : i32 to index
    %c0_64 = arith.constant 0 : index
    %c0_65 = arith.constant 0 : index
    %184 = vector.load %arg2[%183, %c0_64, %c0_65] : memref<8x8x1xf32, #tpu.memory_space<vmem>>, vector<1x8x1xf32>
    %185 = vector.shape_cast %184 : vector<1x8x1xf32> to vector<8x1xf32>
    %186 = vector.broadcast %182 : vector<8x1xf32> to vector<8x32xf32>
    %187 = arith.mulf %153, %186 : vector<8x32xf32>
    %188 = vector.broadcast %182 : vector<8x1xf32> to vector<8x32xf32>
    %189 = arith.mulf %151, %188 : vector<8x32xf32>
    %190 = vector.broadcast %185 : vector<8x1xf32> to vector<8x32xf32>
    %191 = arith.mulf %179, %190 : vector<8x32xf32>
    %192 = vector.broadcast %185 : vector<8x1xf32> to vector<8x32xf32>
    %193 = arith.mulf %177, %192 : vector<8x32xf32>
    %194 = tpu.concatenate %187, %191 in 1 : vector<8x32xf32>, vector<8x32xf32> -> vector<8x64xf32>
    %c0_66 = arith.constant 0 : index
    %c0_67 = arith.constant 0 : index
    %195 = vector.load %arg8[%c0_66, %c0_67] : memref<8x64xf32, #tpu.memory_space<vmem>>, vector<8x64xf32>
    tpu.vector_store %arg8[%c0_66, %c0_67], %194 {strides = array<i32>} : memref<8x64xf32, #tpu.memory_space<vmem>>, vector<8x64xf32>,
    %196 = tpu.concatenate %189, %193 in 1 : vector<8x32xf32>, vector<8x32xf32> -> vector<8x64xf32>
    %c0_68 = arith.constant 0 : index
    %c0_69 = arith.constant 0 : index
    %197 = vector.load %arg9[%c0_68, %c0_69] : memref<8x64xf32, #tpu.memory_space<vmem>>, vector<8x64xf32>
    tpu.vector_store %arg9[%c0_68, %c0_69], %196 {strides = array<i32>} : memref<8x64xf32, #tpu.memory_space<vmem>>, vector<8x64xf32>,
    %198 = arith.index_cast %c1_i32 : i32 to index
    %c0_70 = arith.constant 0 : index
    %c0_71 = arith.constant 0 : index
    %199 = vector.load %arg10[%198, %c0_70, %c0_71] : memref<8x8x32xf32, #tpu.memory_space<vmem>>, vector<1x8x32xf32>
    %200 = vector.shape_cast %199 : vector<1x8x32xf32> to vector<8x32xf32>
    %201 = vector.shape_cast %187 : vector<8x32xf32> to vector<1x8x32xf32>
    tpu.vector_store %arg10[%198, %c0_70, %c0_71], %201 {strides = array<i32>} : memref<8x8x32xf32, #tpu.memory_space<vmem>>, vector<1x8x32xf32>,
    %202 = arith.index_cast %110 : i32 to index
    %c0_72 = arith.constant 0 : index
    %c0_73 = arith.constant 0 : index
    %203 = vector.load %arg11[%202, %c0_72, %c0_73] : memref<8x8x32xf32, #tpu.memory_space<vmem>>, vector<1x8x32xf32>
    %204 = vector.shape_cast %203 : vector<1x8x32xf32> to vector<8x32xf32>
    %205 = vector.shape_cast %191 : vector<8x32xf32> to vector<1x8x32xf32>
    tpu.vector_store %arg11[%202, %c0_72, %c0_73], %205 {strides = array<i32>} : memref<8x8x32xf32, #tpu.memory_space<vmem>>, vector<1x8x32xf32>,
    %c2_i32 = arith.constant 2 : i32
    %c7_i32_74 = arith.constant 7 : i32
    %206 = arith.subi %c7_i32_74, %c2_i32 : i32
    %c0_75 = arith.constant 0 : index
    %c0_76 = arith.constant 0 : index
    %207 = vector.load %arg8[%c0_75, %c0_76] : memref<8x64xf32, #tpu.memory_space<vmem>>, vector<8x64xf32>
    %208 = arith.truncf %207 : vector<8x64xf32> to vector<8x64xbf16>
    %c0_77 = arith.constant 0 : index
    %c0_78 = arith.constant 0 : index
    %209 = vector.load %arg4[%c0_77, %c0_78] : memref<64x256xbf16, #tpu.memory_space<vmem>>, vector<64x256xbf16>
    %cst_79 = arith.constant dense<0.000000e+00> : vector<8x256xf32>
    %210 = tpu.matmul %208, %209, %cst_79 {dimension_numbers = #tpu.dot_dimension_numbers<[1], [0], [0], [1], [0, 0, 1, 1], [], []>} : vector<8x64xbf16>, vector<64x256xbf16>, vector<8x256xf32> -> vector<8x256xf32>
    %211 = vector.extract_strided_slice %210 {offsets = [0, 0], sizes = [8, 128], strides = [1, 1]} : vector<8x256xf32> to vector<8x128xf32>
    %212 = arith.index_cast %c2_i32 : i32 to index
    %c0_80 = arith.constant 0 : index
    %c0_81 = arith.constant 0 : index
    %213 = vector.load %arg7[%212, %c0_80, %c0_81] : memref<8x8x256xf32, #tpu.memory_space<vmem>>, vector<1x8x256xf32>
    %214 = vector.shape_cast %213 : vector<1x8x256xf32> to vector<8x256xf32>
    %215 = vector.extract_strided_slice %214 {offsets = [0, 0], sizes = [8, 128], strides = [1, 1]} : vector<8x256xf32> to vector<8x128xf32>
    %216 = arith.addf %211, %215 : vector<8x128xf32>
    %217 = vector.extract_strided_slice %210 {offsets = [0, 128], sizes = [8, 128], strides = [1, 1]} : vector<8x256xf32> to vector<8x128xf32>
    %218 = arith.index_cast %206 : i32 to index
    %c0_82 = arith.constant 0 : index
    %c0_83 = arith.constant 0 : index
    %219 = vector.load %arg7[%218, %c0_82, %c0_83] : memref<8x8x256xf32, #tpu.memory_space<vmem>>, vector<1x8x256xf32>
    %220 = vector.shape_cast %219 : vector<1x8x256xf32> to vector<8x256xf32>
    %221 = vector.extract_strided_slice %220 {offsets = [0, 128], sizes = [8, 128], strides = [1, 1]} : vector<8x256xf32> to vector<8x128xf32>
    %222 = arith.addf %217, %221 : vector<8x128xf32>
    %c0_84 = arith.constant 0 : index
    %c0_85 = arith.constant 0 : index
    %223 = vector.load %arg9[%c0_84, %c0_85] : memref<8x64xf32, #tpu.memory_space<vmem>>, vector<8x64xf32>
    %224 = vector.extract_strided_slice %223 {offsets = [0, 0], sizes = [8, 32], strides = [1, 1]} : vector<8x64xf32> to vector<8x32xf32>
    %225 = vector.extract_strided_slice %216 {offsets = [0, 0], sizes = [8, 32], strides = [1, 1]} : vector<8x128xf32> to vector<8x32xf32>
    %226 = arith.negf %225 : vector<8x32xf32>
    %227 = math.exp %226 : vector<8x32xf32>
    %cst_86 = arith.constant 1.000000e+00 : f32
    %228 = vector.broadcast %cst_86 : f32 to vector<8x32xf32>
    %229 = arith.addf %228, %227 : vector<8x32xf32>
    %230 = arith.divf %228, %229 : vector<8x32xf32>
    %231 = vector.extract_strided_slice %216 {offsets = [0, 32], sizes = [8, 32], strides = [1, 1]} : vector<8x128xf32> to vector<8x32xf32>
    %232 = arith.negf %231 : vector<8x32xf32>
    %233 = math.exp %232 : vector<8x32xf32>
    %cst_87 = arith.constant 1.000000e+00 : f32
    %234 = vector.broadcast %cst_87 : f32 to vector<8x32xf32>
    %235 = arith.addf %234, %233 : vector<8x32xf32>
    %236 = arith.divf %234, %235 : vector<8x32xf32>
    %237 = vector.extract_strided_slice %216 {offsets = [0, 64], sizes = [8, 32], strides = [1, 1]} : vector<8x128xf32> to vector<8x32xf32>
    %238 = math.tanh %237 : vector<8x32xf32>
    %239 = vector.extract_strided_slice %216 {offsets = [0, 96], sizes = [8, 32], strides = [1, 1]} : vector<8x128xf32> to vector<8x32xf32>
    %240 = arith.negf %239 : vector<8x32xf32>
    %241 = math.exp %240 : vector<8x32xf32>
    %cst_88 = arith.constant 1.000000e+00 : f32
    %242 = vector.broadcast %cst_88 : f32 to vector<8x32xf32>
    %243 = arith.addf %242, %241 : vector<8x32xf32>
    %244 = arith.divf %242, %243 : vector<8x32xf32>
    %245 = arith.mulf %236, %224 : vector<8x32xf32>
    %246 = arith.mulf %230, %238 : vector<8x32xf32>
    %247 = arith.addf %245, %246 : vector<8x32xf32>
    %248 = math.tanh %247 : vector<8x32xf32>
    %249 = arith.mulf %244, %248 : vector<8x32xf32>
    %250 = vector.extract_strided_slice %223 {offsets = [0, 32], sizes = [8, 32], strides = [1, 1]} : vector<8x64xf32> to vector<8x32xf32>
    %251 = vector.extract_strided_slice %222 {offsets = [0, 0], sizes = [8, 32], strides = [1, 1]} : vector<8x128xf32> to vector<8x32xf32>
    %252 = arith.negf %251 : vector<8x32xf32>
    %253 = math.exp %252 : vector<8x32xf32>
    %cst_89 = arith.constant 1.000000e+00 : f32
    %254 = vector.broadcast %cst_89 : f32 to vector<8x32xf32>
    %255 = arith.addf %254, %253 : vector<8x32xf32>
    %256 = arith.divf %254, %255 : vector<8x32xf32>
    %257 = vector.extract_strided_slice %222 {offsets = [0, 32], sizes = [8, 32], strides = [1, 1]} : vector<8x128xf32> to vector<8x32xf32>
    %258 = arith.negf %257 : vector<8x32xf32>
    %259 = math.exp %258 : vector<8x32xf32>
    %cst_90 = arith.constant 1.000000e+00 : f32
    %260 = vector.broadcast %cst_90 : f32 to vector<8x32xf32>
    %261 = arith.addf %260, %259 : vector<8x32xf32>
    %262 = arith.divf %260, %261 : vector<8x32xf32>
    %263 = vector.extract_strided_slice %222 {offsets = [0, 64], sizes = [8, 32], strides = [1, 1]} : vector<8x128xf32> to vector<8x32xf32>
    %264 = math.tanh %263 : vector<8x32xf32>
    %265 = vector.extract_strided_slice %222 {offsets = [0, 96], sizes = [8, 32], strides = [1, 1]} : vector<8x128xf32> to vector<8x32xf32>
    %266 = arith.negf %265 : vector<8x32xf32>
    %267 = math.exp %266 : vector<8x32xf32>
    %cst_91 = arith.constant 1.000000e+00 : f32
    %268 = vector.broadcast %cst_91 : f32 to vector<8x32xf32>
    %269 = arith.addf %268, %267 : vector<8x32xf32>
    %270 = arith.divf %268, %269 : vector<8x32xf32>
    %271 = arith.mulf %262, %250 : vector<8x32xf32>
    %272 = arith.mulf %256, %264 : vector<8x32xf32>
    %273 = arith.addf %271, %272 : vector<8x32xf32>
    %274 = math.tanh %273 : vector<8x32xf32>
    %275 = arith.mulf %270, %274 : vector<8x32xf32>
    %276 = arith.index_cast %c2_i32 : i32 to index
    %c0_92 = arith.constant 0 : index
    %c0_93 = arith.constant 0 : index
    %277 = vector.load %arg2[%276, %c0_92, %c0_93] : memref<8x8x1xf32, #tpu.memory_space<vmem>>, vector<1x8x1xf32>
    %278 = vector.shape_cast %277 : vector<1x8x1xf32> to vector<8x1xf32>
    %279 = arith.index_cast %206 : i32 to index
    %c0_94 = arith.constant 0 : index
    %c0_95 = arith.constant 0 : index
    %280 = vector.load %arg2[%279, %c0_94, %c0_95] : memref<8x8x1xf32, #tpu.memory_space<vmem>>, vector<1x8x1xf32>
    %281 = vector.shape_cast %280 : vector<1x8x1xf32> to vector<8x1xf32>
    %282 = vector.broadcast %278 : vector<8x1xf32> to vector<8x32xf32>
    %283 = arith.mulf %249, %282 : vector<8x32xf32>
    %284 = vector.broadcast %278 : vector<8x1xf32> to vector<8x32xf32>
    %285 = arith.mulf %247, %284 : vector<8x32xf32>
    %286 = vector.broadcast %281 : vector<8x1xf32> to vector<8x32xf32>
    %287 = arith.mulf %275, %286 : vector<8x32xf32>
    %288 = vector.broadcast %281 : vector<8x1xf32> to vector<8x32xf32>
    %289 = arith.mulf %273, %288 : vector<8x32xf32>
    %290 = tpu.concatenate %283, %287 in 1 : vector<8x32xf32>, vector<8x32xf32> -> vector<8x64xf32>
    %c0_96 = arith.constant 0 : index
    %c0_97 = arith.constant 0 : index
    %291 = vector.load %arg8[%c0_96, %c0_97] : memref<8x64xf32, #tpu.memory_space<vmem>>, vector<8x64xf32>
    tpu.vector_store %arg8[%c0_96, %c0_97], %290 {strides = array<i32>} : memref<8x64xf32, #tpu.memory_space<vmem>>, vector<8x64xf32>,
    %292 = tpu.concatenate %285, %289 in 1 : vector<8x32xf32>, vector<8x32xf32> -> vector<8x64xf32>
    %c0_98 = arith.constant 0 : index
    %c0_99 = arith.constant 0 : index
    %293 = vector.load %arg9[%c0_98, %c0_99] : memref<8x64xf32, #tpu.memory_space<vmem>>, vector<8x64xf32>
    tpu.vector_store %arg9[%c0_98, %c0_99], %292 {strides = array<i32>} : memref<8x64xf32, #tpu.memory_space<vmem>>, vector<8x64xf32>,
    %294 = arith.index_cast %c2_i32 : i32 to index
    %c0_100 = arith.constant 0 : index
    %c0_101 = arith.constant 0 : index
    %295 = vector.load %arg10[%294, %c0_100, %c0_101] : memref<8x8x32xf32, #tpu.memory_space<vmem>>, vector<1x8x32xf32>
    %296 = vector.shape_cast %295 : vector<1x8x32xf32> to vector<8x32xf32>
    %297 = vector.shape_cast %283 : vector<8x32xf32> to vector<1x8x32xf32>
    tpu.vector_store %arg10[%294, %c0_100, %c0_101], %297 {strides = array<i32>} : memref<8x8x32xf32, #tpu.memory_space<vmem>>, vector<1x8x32xf32>,
    %298 = arith.index_cast %206 : i32 to index
    %c0_102 = arith.constant 0 : index
    %c0_103 = arith.constant 0 : index
    %299 = vector.load %arg11[%298, %c0_102, %c0_103] : memref<8x8x32xf32, #tpu.memory_space<vmem>>, vector<1x8x32xf32>
    %300 = vector.shape_cast %299 : vector<1x8x32xf32> to vector<8x32xf32>
    %301 = vector.shape_cast %287 : vector<8x32xf32> to vector<1x8x32xf32>
    tpu.vector_store %arg11[%298, %c0_102, %c0_103], %301 {strides = array<i32>} : memref<8x8x32xf32, #tpu.memory_space<vmem>>, vector<1x8x32xf32>,
    %c3_i32 = arith.constant 3 : i32
    %c7_i32_104 = arith.constant 7 : i32
    %302 = arith.subi %c7_i32_104, %c3_i32 : i32
    %c0_105 = arith.constant 0 : index
    %c0_106 = arith.constant 0 : index
    %303 = vector.load %arg8[%c0_105, %c0_106] : memref<8x64xf32, #tpu.memory_space<vmem>>, vector<8x64xf32>
    %304 = arith.truncf %303 : vector<8x64xf32> to vector<8x64xbf16>
    %c0_107 = arith.constant 0 : index
    %c0_108 = arith.constant 0 : index
    %305 = vector.load %arg4[%c0_107, %c0_108] : memref<64x256xbf16, #tpu.memory_space<vmem>>, vector<64x256xbf16>
    %cst_109 = arith.constant dense<0.000000e+00> : vector<8x256xf32>
    %306 = tpu.matmul %304, %305, %cst_109 {dimension_numbers = #tpu.dot_dimension_numbers<[1], [0], [0], [1], [0, 0, 1, 1], [], []>} : vector<8x64xbf16>, vector<64x256xbf16>, vector<8x256xf32> -> vector<8x256xf32>
    %307 = vector.extract_strided_slice %306 {offsets = [0, 0], sizes = [8, 128], strides = [1, 1]} : vector<8x256xf32> to vector<8x128xf32>
    %308 = arith.index_cast %c3_i32 : i32 to index
    %c0_110 = arith.constant 0 : index
    %c0_111 = arith.constant 0 : index
    %309 = vector.load %arg7[%308, %c0_110, %c0_111] : memref<8x8x256xf32, #tpu.memory_space<vmem>>, vector<1x8x256xf32>
    %310 = vector.shape_cast %309 : vector<1x8x256xf32> to vector<8x256xf32>
    %311 = vector.extract_strided_slice %310 {offsets = [0, 0], sizes = [8, 128], strides = [1, 1]} : vector<8x256xf32> to vector<8x128xf32>
    %312 = arith.addf %307, %311 : vector<8x128xf32>
    %313 = vector.extract_strided_slice %306 {offsets = [0, 128], sizes = [8, 128], strides = [1, 1]} : vector<8x256xf32> to vector<8x128xf32>
    %314 = arith.index_cast %302 : i32 to index
    %c0_112 = arith.constant 0 : index
    %c0_113 = arith.constant 0 : index
    %315 = vector.load %arg7[%314, %c0_112, %c0_113] : memref<8x8x256xf32, #tpu.memory_space<vmem>>, vector<1x8x256xf32>
    %316 = vector.shape_cast %315 : vector<1x8x256xf32> to vector<8x256xf32>
    %317 = vector.extract_strided_slice %316 {offsets = [0, 128], sizes = [8, 128], strides = [1, 1]} : vector<8x256xf32> to vector<8x128xf32>
    %318 = arith.addf %313, %317 : vector<8x128xf32>
    %c0_114 = arith.constant 0 : index
    %c0_115 = arith.constant 0 : index
    %319 = vector.load %arg9[%c0_114, %c0_115] : memref<8x64xf32, #tpu.memory_space<vmem>>, vector<8x64xf32>
    %320 = vector.extract_strided_slice %319 {offsets = [0, 0], sizes = [8, 32], strides = [1, 1]} : vector<8x64xf32> to vector<8x32xf32>
    %321 = vector.extract_strided_slice %312 {offsets = [0, 0], sizes = [8, 32], strides = [1, 1]} : vector<8x128xf32> to vector<8x32xf32>
    %322 = arith.negf %321 : vector<8x32xf32>
    %323 = math.exp %322 : vector<8x32xf32>
    %cst_116 = arith.constant 1.000000e+00 : f32
    %324 = vector.broadcast %cst_116 : f32 to vector<8x32xf32>
    %325 = arith.addf %324, %323 : vector<8x32xf32>
    %326 = arith.divf %324, %325 : vector<8x32xf32>
    %327 = vector.extract_strided_slice %312 {offsets = [0, 32], sizes = [8, 32], strides = [1, 1]} : vector<8x128xf32> to vector<8x32xf32>
    %328 = arith.negf %327 : vector<8x32xf32>
    %329 = math.exp %328 : vector<8x32xf32>
    %cst_117 = arith.constant 1.000000e+00 : f32
    %330 = vector.broadcast %cst_117 : f32 to vector<8x32xf32>
    %331 = arith.addf %330, %329 : vector<8x32xf32>
    %332 = arith.divf %330, %331 : vector<8x32xf32>
    %333 = vector.extract_strided_slice %312 {offsets = [0, 64], sizes = [8, 32], strides = [1, 1]} : vector<8x128xf32> to vector<8x32xf32>
    %334 = math.tanh %333 : vector<8x32xf32>
    %335 = vector.extract_strided_slice %312 {offsets = [0, 96], sizes = [8, 32], strides = [1, 1]} : vector<8x128xf32> to vector<8x32xf32>
    %336 = arith.negf %335 : vector<8x32xf32>
    %337 = math.exp %336 : vector<8x32xf32>
    %cst_118 = arith.constant 1.000000e+00 : f32
    %338 = vector.broadcast %cst_118 : f32 to vector<8x32xf32>
    %339 = arith.addf %338, %337 : vector<8x32xf32>
    %340 = arith.divf %338, %339 : vector<8x32xf32>
    %341 = arith.mulf %332, %320 : vector<8x32xf32>
    %342 = arith.mulf %326, %334 : vector<8x32xf32>
    %343 = arith.addf %341, %342 : vector<8x32xf32>
    %344 = math.tanh %343 : vector<8x32xf32>
    %345 = arith.mulf %340, %344 : vector<8x32xf32>
    %346 = vector.extract_strided_slice %319 {offsets = [0, 32], sizes = [8, 32], strides = [1, 1]} : vector<8x64xf32> to vector<8x32xf32>
    %347 = vector.extract_strided_slice %318 {offsets = [0, 0], sizes = [8, 32], strides = [1, 1]} : vector<8x128xf32> to vector<8x32xf32>
    %348 = arith.negf %347 : vector<8x32xf32>
    %349 = math.exp %348 : vector<8x32xf32>
    %cst_119 = arith.constant 1.000000e+00 : f32
    %350 = vector.broadcast %cst_119 : f32 to vector<8x32xf32>
    %351 = arith.addf %350, %349 : vector<8x32xf32>
    %352 = arith.divf %350, %351 : vector<8x32xf32>
    %353 = vector.extract_strided_slice %318 {offsets = [0, 32], sizes = [8, 32], strides = [1, 1]} : vector<8x128xf32> to vector<8x32xf32>
    %354 = arith.negf %353 : vector<8x32xf32>
    %355 = math.exp %354 : vector<8x32xf32>
    %cst_120 = arith.constant 1.000000e+00 : f32
    %356 = vector.broadcast %cst_120 : f32 to vector<8x32xf32>
    %357 = arith.addf %356, %355 : vector<8x32xf32>
    %358 = arith.divf %356, %357 : vector<8x32xf32>
    %359 = vector.extract_strided_slice %318 {offsets = [0, 64], sizes = [8, 32], strides = [1, 1]} : vector<8x128xf32> to vector<8x32xf32>
    %360 = math.tanh %359 : vector<8x32xf32>
    %361 = vector.extract_strided_slice %318 {offsets = [0, 96], sizes = [8, 32], strides = [1, 1]} : vector<8x128xf32> to vector<8x32xf32>
    %362 = arith.negf %361 : vector<8x32xf32>
    %363 = math.exp %362 : vector<8x32xf32>
    %cst_121 = arith.constant 1.000000e+00 : f32
    %364 = vector.broadcast %cst_121 : f32 to vector<8x32xf32>
    %365 = arith.addf %364, %363 : vector<8x32xf32>
    %366 = arith.divf %364, %365 : vector<8x32xf32>
    %367 = arith.mulf %358, %346 : vector<8x32xf32>
    %368 = arith.mulf %352, %360 : vector<8x32xf32>
    %369 = arith.addf %367, %368 : vector<8x32xf32>
    %370 = math.tanh %369 : vector<8x32xf32>
    %371 = arith.mulf %366, %370 : vector<8x32xf32>
    %372 = arith.index_cast %c3_i32 : i32 to index
    %c0_122 = arith.constant 0 : index
    %c0_123 = arith.constant 0 : index
    %373 = vector.load %arg2[%372, %c0_122, %c0_123] : memref<8x8x1xf32, #tpu.memory_space<vmem>>, vector<1x8x1xf32>
    %374 = vector.shape_cast %373 : vector<1x8x1xf32> to vector<8x1xf32>
    %375 = arith.index_cast %302 : i32 to index
    %c0_124 = arith.constant 0 : index
    %c0_125 = arith.constant 0 : index
    %376 = vector.load %arg2[%375, %c0_124, %c0_125] : memref<8x8x1xf32, #tpu.memory_space<vmem>>, vector<1x8x1xf32>
    %377 = vector.shape_cast %376 : vector<1x8x1xf32> to vector<8x1xf32>
    %378 = vector.broadcast %374 : vector<8x1xf32> to vector<8x32xf32>
    %379 = arith.mulf %345, %378 : vector<8x32xf32>
    %380 = vector.broadcast %374 : vector<8x1xf32> to vector<8x32xf32>
    %381 = arith.mulf %343, %380 : vector<8x32xf32>
    %382 = vector.broadcast %377 : vector<8x1xf32> to vector<8x32xf32>
    %383 = arith.mulf %371, %382 : vector<8x32xf32>
    %384 = vector.broadcast %377 : vector<8x1xf32> to vector<8x32xf32>
    %385 = arith.mulf %369, %384 : vector<8x32xf32>
    %386 = tpu.concatenate %379, %383 in 1 : vector<8x32xf32>, vector<8x32xf32> -> vector<8x64xf32>
    %c0_126 = arith.constant 0 : index
    %c0_127 = arith.constant 0 : index
    %387 = vector.load %arg8[%c0_126, %c0_127] : memref<8x64xf32, #tpu.memory_space<vmem>>, vector<8x64xf32>
    tpu.vector_store %arg8[%c0_126, %c0_127], %386 {strides = array<i32>} : memref<8x64xf32, #tpu.memory_space<vmem>>, vector<8x64xf32>,
    %388 = tpu.concatenate %381, %385 in 1 : vector<8x32xf32>, vector<8x32xf32> -> vector<8x64xf32>
    %c0_128 = arith.constant 0 : index
    %c0_129 = arith.constant 0 : index
    %389 = vector.load %arg9[%c0_128, %c0_129] : memref<8x64xf32, #tpu.memory_space<vmem>>, vector<8x64xf32>
    tpu.vector_store %arg9[%c0_128, %c0_129], %388 {strides = array<i32>} : memref<8x64xf32, #tpu.memory_space<vmem>>, vector<8x64xf32>,
    %390 = arith.index_cast %c3_i32 : i32 to index
    %c0_130 = arith.constant 0 : index
    %c0_131 = arith.constant 0 : index
    %391 = vector.load %arg10[%390, %c0_130, %c0_131] : memref<8x8x32xf32, #tpu.memory_space<vmem>>, vector<1x8x32xf32>
    %392 = vector.shape_cast %391 : vector<1x8x32xf32> to vector<8x32xf32>
    %393 = vector.shape_cast %379 : vector<8x32xf32> to vector<1x8x32xf32>
    tpu.vector_store %arg10[%390, %c0_130, %c0_131], %393 {strides = array<i32>} : memref<8x8x32xf32, #tpu.memory_space<vmem>>, vector<1x8x32xf32>,
    %394 = arith.index_cast %302 : i32 to index
    %c0_132 = arith.constant 0 : index
    %c0_133 = arith.constant 0 : index
    %395 = vector.load %arg11[%394, %c0_132, %c0_133] : memref<8x8x32xf32, #tpu.memory_space<vmem>>, vector<1x8x32xf32>
    %396 = vector.shape_cast %395 : vector<1x8x32xf32> to vector<8x32xf32>
    %397 = vector.shape_cast %383 : vector<8x32xf32> to vector<1x8x32xf32>
    tpu.vector_store %arg11[%394, %c0_132, %c0_133], %397 {strides = array<i32>} : memref<8x8x32xf32, #tpu.memory_space<vmem>>, vector<1x8x32xf32>,
    %c4_i32 = arith.constant 4 : i32
    %c7_i32_134 = arith.constant 7 : i32
    %398 = arith.subi %c7_i32_134, %c4_i32 : i32
    %c0_135 = arith.constant 0 : index
    %c0_136 = arith.constant 0 : index
    %399 = vector.load %arg8[%c0_135, %c0_136] : memref<8x64xf32, #tpu.memory_space<vmem>>, vector<8x64xf32>
    %400 = arith.truncf %399 : vector<8x64xf32> to vector<8x64xbf16>
    %c0_137 = arith.constant 0 : index
    %c0_138 = arith.constant 0 : index
    %401 = vector.load %arg4[%c0_137, %c0_138] : memref<64x256xbf16, #tpu.memory_space<vmem>>, vector<64x256xbf16>
    %cst_139 = arith.constant dense<0.000000e+00> : vector<8x256xf32>
    %402 = tpu.matmul %400, %401, %cst_139 {dimension_numbers = #tpu.dot_dimension_numbers<[1], [0], [0], [1], [0, 0, 1, 1], [], []>} : vector<8x64xbf16>, vector<64x256xbf16>, vector<8x256xf32> -> vector<8x256xf32>
    %403 = vector.extract_strided_slice %402 {offsets = [0, 0], sizes = [8, 128], strides = [1, 1]} : vector<8x256xf32> to vector<8x128xf32>
    %404 = arith.index_cast %c4_i32 : i32 to index
    %c0_140 = arith.constant 0 : index
    %c0_141 = arith.constant 0 : index
    %405 = vector.load %arg7[%404, %c0_140, %c0_141] : memref<8x8x256xf32, #tpu.memory_space<vmem>>, vector<1x8x256xf32>
    %406 = vector.shape_cast %405 : vector<1x8x256xf32> to vector<8x256xf32>
    %407 = vector.extract_strided_slice %406 {offsets = [0, 0], sizes = [8, 128], strides = [1, 1]} : vector<8x256xf32> to vector<8x128xf32>
    %408 = arith.addf %403, %407 : vector<8x128xf32>
    %409 = vector.extract_strided_slice %402 {offsets = [0, 128], sizes = [8, 128], strides = [1, 1]} : vector<8x256xf32> to vector<8x128xf32>
    %410 = arith.index_cast %398 : i32 to index
    %c0_142 = arith.constant 0 : index
    %c0_143 = arith.constant 0 : index
    %411 = vector.load %arg7[%410, %c0_142, %c0_143] : memref<8x8x256xf32, #tpu.memory_space<vmem>>, vector<1x8x256xf32>
    %412 = vector.shape_cast %411 : vector<1x8x256xf32> to vector<8x256xf32>
    %413 = vector.extract_strided_slice %412 {offsets = [0, 128], sizes = [8, 128], strides = [1, 1]} : vector<8x256xf32> to vector<8x128xf32>
    %414 = arith.addf %409, %413 : vector<8x128xf32>
    %c0_144 = arith.constant 0 : index
    %c0_145 = arith.constant 0 : index
    %415 = vector.load %arg9[%c0_144, %c0_145] : memref<8x64xf32, #tpu.memory_space<vmem>>, vector<8x64xf32>
    %416 = vector.extract_strided_slice %415 {offsets = [0, 0], sizes = [8, 32], strides = [1, 1]} : vector<8x64xf32> to vector<8x32xf32>
    %417 = vector.extract_strided_slice %408 {offsets = [0, 0], sizes = [8, 32], strides = [1, 1]} : vector<8x128xf32> to vector<8x32xf32>
    %418 = arith.negf %417 : vector<8x32xf32>
    %419 = math.exp %418 : vector<8x32xf32>
    %cst_146 = arith.constant 1.000000e+00 : f32
    %420 = vector.broadcast %cst_146 : f32 to vector<8x32xf32>
    %421 = arith.addf %420, %419 : vector<8x32xf32>
    %422 = arith.divf %420, %421 : vector<8x32xf32>
    %423 = vector.extract_strided_slice %408 {offsets = [0, 32], sizes = [8, 32], strides = [1, 1]} : vector<8x128xf32> to vector<8x32xf32>
    %424 = arith.negf %423 : vector<8x32xf32>
    %425 = math.exp %424 : vector<8x32xf32>
    %cst_147 = arith.constant 1.000000e+00 : f32
    %426 = vector.broadcast %cst_147 : f32 to vector<8x32xf32>
    %427 = arith.addf %426, %425 : vector<8x32xf32>
    %428 = arith.divf %426, %427 : vector<8x32xf32>
    %429 = vector.extract_strided_slice %408 {offsets = [0, 64], sizes = [8, 32], strides = [1, 1]} : vector<8x128xf32> to vector<8x32xf32>
    %430 = math.tanh %429 : vector<8x32xf32>
    %431 = vector.extract_strided_slice %408 {offsets = [0, 96], sizes = [8, 32], strides = [1, 1]} : vector<8x128xf32> to vector<8x32xf32>
    %432 = arith.negf %431 : vector<8x32xf32>
    %433 = math.exp %432 : vector<8x32xf32>
    %cst_148 = arith.constant 1.000000e+00 : f32
    %434 = vector.broadcast %cst_148 : f32 to vector<8x32xf32>
    %435 = arith.addf %434, %433 : vector<8x32xf32>
    %436 = arith.divf %434, %435 : vector<8x32xf32>
    %437 = arith.mulf %428, %416 : vector<8x32xf32>
    %438 = arith.mulf %422, %430 : vector<8x32xf32>
    %439 = arith.addf %437, %438 : vector<8x32xf32>
    %440 = math.tanh %439 : vector<8x32xf32>
    %441 = arith.mulf %436, %440 : vector<8x32xf32>
    %442 = vector.extract_strided_slice %415 {offsets = [0, 32], sizes = [8, 32], strides = [1, 1]} : vector<8x64xf32> to vector<8x32xf32>
    %443 = vector.extract_strided_slice %414 {offsets = [0, 0], sizes = [8, 32], strides = [1, 1]} : vector<8x128xf32> to vector<8x32xf32>
    %444 = arith.negf %443 : vector<8x32xf32>
    %445 = math.exp %444 : vector<8x32xf32>
    %cst_149 = arith.constant 1.000000e+00 : f32
    %446 = vector.broadcast %cst_149 : f32 to vector<8x32xf32>
    %447 = arith.addf %446, %445 : vector<8x32xf32>
    %448 = arith.divf %446, %447 : vector<8x32xf32>
    %449 = vector.extract_strided_slice %414 {offsets = [0, 32], sizes = [8, 32], strides = [1, 1]} : vector<8x128xf32> to vector<8x32xf32>
    %450 = arith.negf %449 : vector<8x32xf32>
    %451 = math.exp %450 : vector<8x32xf32>
    %cst_150 = arith.constant 1.000000e+00 : f32
    %452 = vector.broadcast %cst_150 : f32 to vector<8x32xf32>
    %453 = arith.addf %452, %451 : vector<8x32xf32>
    %454 = arith.divf %452, %453 : vector<8x32xf32>
    %455 = vector.extract_strided_slice %414 {offsets = [0, 64], sizes = [8, 32], strides = [1, 1]} : vector<8x128xf32> to vector<8x32xf32>
    %456 = math.tanh %455 : vector<8x32xf32>
    %457 = vector.extract_strided_slice %414 {offsets = [0, 96], sizes = [8, 32], strides = [1, 1]} : vector<8x128xf32> to vector<8x32xf32>
    %458 = arith.negf %457 : vector<8x32xf32>
    %459 = math.exp %458 : vector<8x32xf32>
    %cst_151 = arith.constant 1.000000e+00 : f32
    %460 = vector.broadcast %cst_151 : f32 to vector<8x32xf32>
    %461 = arith.addf %460, %459 : vector<8x32xf32>
    %462 = arith.divf %460, %461 : vector<8x32xf32>
    %463 = arith.mulf %454, %442 : vector<8x32xf32>
    %464 = arith.mulf %448, %456 : vector<8x32xf32>
    %465 = arith.addf %463, %464 : vector<8x32xf32>
    %466 = math.tanh %465 : vector<8x32xf32>
    %467 = arith.mulf %462, %466 : vector<8x32xf32>
    %468 = arith.index_cast %c4_i32 : i32 to index
    %c0_152 = arith.constant 0 : index
    %c0_153 = arith.constant 0 : index
    %469 = vector.load %arg2[%468, %c0_152, %c0_153] : memref<8x8x1xf32, #tpu.memory_space<vmem>>, vector<1x8x1xf32>
    %470 = vector.shape_cast %469 : vector<1x8x1xf32> to vector<8x1xf32>
    %471 = arith.index_cast %398 : i32 to index
    %c0_154 = arith.constant 0 : index
    %c0_155 = arith.constant 0 : index
    %472 = vector.load %arg2[%471, %c0_154, %c0_155] : memref<8x8x1xf32, #tpu.memory_space<vmem>>, vector<1x8x1xf32>
    %473 = vector.shape_cast %472 : vector<1x8x1xf32> to vector<8x1xf32>
    %474 = vector.broadcast %470 : vector<8x1xf32> to vector<8x32xf32>
    %475 = arith.mulf %441, %474 : vector<8x32xf32>
    %476 = vector.broadcast %470 : vector<8x1xf32> to vector<8x32xf32>
    %477 = arith.mulf %439, %476 : vector<8x32xf32>
    %478 = vector.broadcast %473 : vector<8x1xf32> to vector<8x32xf32>
    %479 = arith.mulf %467, %478 : vector<8x32xf32>
    %480 = vector.broadcast %473 : vector<8x1xf32> to vector<8x32xf32>
    %481 = arith.mulf %465, %480 : vector<8x32xf32>
    %482 = tpu.concatenate %475, %479 in 1 : vector<8x32xf32>, vector<8x32xf32> -> vector<8x64xf32>
    %c0_156 = arith.constant 0 : index
    %c0_157 = arith.constant 0 : index
    %483 = vector.load %arg8[%c0_156, %c0_157] : memref<8x64xf32, #tpu.memory_space<vmem>>, vector<8x64xf32>
    tpu.vector_store %arg8[%c0_156, %c0_157], %482 {strides = array<i32>} : memref<8x64xf32, #tpu.memory_space<vmem>>, vector<8x64xf32>,
    %484 = tpu.concatenate %477, %481 in 1 : vector<8x32xf32>, vector<8x32xf32> -> vector<8x64xf32>
    %c0_158 = arith.constant 0 : index
    %c0_159 = arith.constant 0 : index
    %485 = vector.load %arg9[%c0_158, %c0_159] : memref<8x64xf32, #tpu.memory_space<vmem>>, vector<8x64xf32>
    tpu.vector_store %arg9[%c0_158, %c0_159], %484 {strides = array<i32>} : memref<8x64xf32, #tpu.memory_space<vmem>>, vector<8x64xf32>,
    %486 = arith.index_cast %c4_i32 : i32 to index
    %c0_160 = arith.constant 0 : index
    %c0_161 = arith.constant 0 : index
    %487 = vector.load %arg10[%486, %c0_160, %c0_161] : memref<8x8x32xf32, #tpu.memory_space<vmem>>, vector<1x8x32xf32>
    %488 = vector.shape_cast %487 : vector<1x8x32xf32> to vector<8x32xf32>
    %489 = vector.shape_cast %475 : vector<8x32xf32> to vector<1x8x32xf32>
    tpu.vector_store %arg10[%486, %c0_160, %c0_161], %489 {strides = array<i32>} : memref<8x8x32xf32, #tpu.memory_space<vmem>>, vector<1x8x32xf32>,
    %490 = arith.index_cast %398 : i32 to index
    %c0_162 = arith.constant 0 : index
    %c0_163 = arith.constant 0 : index
    %491 = vector.load %arg11[%490, %c0_162, %c0_163] : memref<8x8x32xf32, #tpu.memory_space<vmem>>, vector<1x8x32xf32>
    %492 = vector.shape_cast %491 : vector<1x8x32xf32> to vector<8x32xf32>
    %493 = vector.shape_cast %479 : vector<8x32xf32> to vector<1x8x32xf32>
    tpu.vector_store %arg11[%490, %c0_162, %c0_163], %493 {strides = array<i32>} : memref<8x8x32xf32, #tpu.memory_space<vmem>>, vector<1x8x32xf32>,
    %c5_i32 = arith.constant 5 : i32
    %c7_i32_164 = arith.constant 7 : i32
    %494 = arith.subi %c7_i32_164, %c5_i32 : i32
    %c0_165 = arith.constant 0 : index
    %c0_166 = arith.constant 0 : index
    %495 = vector.load %arg8[%c0_165, %c0_166] : memref<8x64xf32, #tpu.memory_space<vmem>>, vector<8x64xf32>
    %496 = arith.truncf %495 : vector<8x64xf32> to vector<8x64xbf16>
    %c0_167 = arith.constant 0 : index
    %c0_168 = arith.constant 0 : index
    %497 = vector.load %arg4[%c0_167, %c0_168] : memref<64x256xbf16, #tpu.memory_space<vmem>>, vector<64x256xbf16>
    %cst_169 = arith.constant dense<0.000000e+00> : vector<8x256xf32>
    %498 = tpu.matmul %496, %497, %cst_169 {dimension_numbers = #tpu.dot_dimension_numbers<[1], [0], [0], [1], [0, 0, 1, 1], [], []>} : vector<8x64xbf16>, vector<64x256xbf16>, vector<8x256xf32> -> vector<8x256xf32>
    %499 = vector.extract_strided_slice %498 {offsets = [0, 0], sizes = [8, 128], strides = [1, 1]} : vector<8x256xf32> to vector<8x128xf32>
    %500 = arith.index_cast %c5_i32 : i32 to index
    %c0_170 = arith.constant 0 : index
    %c0_171 = arith.constant 0 : index
    %501 = vector.load %arg7[%500, %c0_170, %c0_171] : memref<8x8x256xf32, #tpu.memory_space<vmem>>, vector<1x8x256xf32>
    %502 = vector.shape_cast %501 : vector<1x8x256xf32> to vector<8x256xf32>
    %503 = vector.extract_strided_slice %502 {offsets = [0, 0], sizes = [8, 128], strides = [1, 1]} : vector<8x256xf32> to vector<8x128xf32>
    %504 = arith.addf %499, %503 : vector<8x128xf32>
    %505 = vector.extract_strided_slice %498 {offsets = [0, 128], sizes = [8, 128], strides = [1, 1]} : vector<8x256xf32> to vector<8x128xf32>
    %506 = arith.index_cast %494 : i32 to index
    %c0_172 = arith.constant 0 : index
    %c0_173 = arith.constant 0 : index
    %507 = vector.load %arg7[%506, %c0_172, %c0_173] : memref<8x8x256xf32, #tpu.memory_space<vmem>>, vector<1x8x256xf32>
    %508 = vector.shape_cast %507 : vector<1x8x256xf32> to vector<8x256xf32>
    %509 = vector.extract_strided_slice %508 {offsets = [0, 128], sizes = [8, 128], strides = [1, 1]} : vector<8x256xf32> to vector<8x128xf32>
    %510 = arith.addf %505, %509 : vector<8x128xf32>
    %c0_174 = arith.constant 0 : index
    %c0_175 = arith.constant 0 : index
    %511 = vector.load %arg9[%c0_174, %c0_175] : memref<8x64xf32, #tpu.memory_space<vmem>>, vector<8x64xf32>
    %512 = vector.extract_strided_slice %511 {offsets = [0, 0], sizes = [8, 32], strides = [1, 1]} : vector<8x64xf32> to vector<8x32xf32>
    %513 = vector.extract_strided_slice %504 {offsets = [0, 0], sizes = [8, 32], strides = [1, 1]} : vector<8x128xf32> to vector<8x32xf32>
    %514 = arith.negf %513 : vector<8x32xf32>
    %515 = math.exp %514 : vector<8x32xf32>
    %cst_176 = arith.constant 1.000000e+00 : f32
    %516 = vector.broadcast %cst_176 : f32 to vector<8x32xf32>
    %517 = arith.addf %516, %515 : vector<8x32xf32>
    %518 = arith.divf %516, %517 : vector<8x32xf32>
    %519 = vector.extract_strided_slice %504 {offsets = [0, 32], sizes = [8, 32], strides = [1, 1]} : vector<8x128xf32> to vector<8x32xf32>
    %520 = arith.negf %519 : vector<8x32xf32>
    %521 = math.exp %520 : vector<8x32xf32>
    %cst_177 = arith.constant 1.000000e+00 : f32
    %522 = vector.broadcast %cst_177 : f32 to vector<8x32xf32>
    %523 = arith.addf %522, %521 : vector<8x32xf32>
    %524 = arith.divf %522, %523 : vector<8x32xf32>
    %525 = vector.extract_strided_slice %504 {offsets = [0, 64], sizes = [8, 32], strides = [1, 1]} : vector<8x128xf32> to vector<8x32xf32>
    %526 = math.tanh %525 : vector<8x32xf32>
    %527 = vector.extract_strided_slice %504 {offsets = [0, 96], sizes = [8, 32], strides = [1, 1]} : vector<8x128xf32> to vector<8x32xf32>
    %528 = arith.negf %527 : vector<8x32xf32>
    %529 = math.exp %528 : vector<8x32xf32>
    %cst_178 = arith.constant 1.000000e+00 : f32
    %530 = vector.broadcast %cst_178 : f32 to vector<8x32xf32>
    %531 = arith.addf %530, %529 : vector<8x32xf32>
    %532 = arith.divf %530, %531 : vector<8x32xf32>
    %533 = arith.mulf %524, %512 : vector<8x32xf32>
    %534 = arith.mulf %518, %526 : vector<8x32xf32>
    %535 = arith.addf %533, %534 : vector<8x32xf32>
    %536 = math.tanh %535 : vector<8x32xf32>
    %537 = arith.mulf %532, %536 : vector<8x32xf32>
    %538 = vector.extract_strided_slice %511 {offsets = [0, 32], sizes = [8, 32], strides = [1, 1]} : vector<8x64xf32> to vector<8x32xf32>
    %539 = vector.extract_strided_slice %510 {offsets = [0, 0], sizes = [8, 32], strides = [1, 1]} : vector<8x128xf32> to vector<8x32xf32>
    %540 = arith.negf %539 : vector<8x32xf32>
    %541 = math.exp %540 : vector<8x32xf32>
    %cst_179 = arith.constant 1.000000e+00 : f32
    %542 = vector.broadcast %cst_179 : f32 to vector<8x32xf32>
    %543 = arith.addf %542, %541 : vector<8x32xf32>
    %544 = arith.divf %542, %543 : vector<8x32xf32>
    %545 = vector.extract_strided_slice %510 {offsets = [0, 32], sizes = [8, 32], strides = [1, 1]} : vector<8x128xf32> to vector<8x32xf32>
    %546 = arith.negf %545 : vector<8x32xf32>
    %547 = math.exp %546 : vector<8x32xf32>
    %cst_180 = arith.constant 1.000000e+00 : f32
    %548 = vector.broadcast %cst_180 : f32 to vector<8x32xf32>
    %549 = arith.addf %548, %547 : vector<8x32xf32>
    %550 = arith.divf %548, %549 : vector<8x32xf32>
    %551 = vector.extract_strided_slice %510 {offsets = [0, 64], sizes = [8, 32], strides = [1, 1]} : vector<8x128xf32> to vector<8x32xf32>
    %552 = math.tanh %551 : vector<8x32xf32>
    %553 = vector.extract_strided_slice %510 {offsets = [0, 96], sizes = [8, 32], strides = [1, 1]} : vector<8x128xf32> to vector<8x32xf32>
    %554 = arith.negf %553 : vector<8x32xf32>
    %555 = math.exp %554 : vector<8x32xf32>
    %cst_181 = arith.constant 1.000000e+00 : f32
    %556 = vector.broadcast %cst_181 : f32 to vector<8x32xf32>
    %557 = arith.addf %556, %555 : vector<8x32xf32>
    %558 = arith.divf %556, %557 : vector<8x32xf32>
    %559 = arith.mulf %550, %538 : vector<8x32xf32>
    %560 = arith.mulf %544, %552 : vector<8x32xf32>
    %561 = arith.addf %559, %560 : vector<8x32xf32>
    %562 = math.tanh %561 : vector<8x32xf32>
    %563 = arith.mulf %558, %562 : vector<8x32xf32>
    %564 = arith.index_cast %c5_i32 : i32 to index
    %c0_182 = arith.constant 0 : index
    %c0_183 = arith.constant 0 : index
    %565 = vector.load %arg2[%564, %c0_182, %c0_183] : memref<8x8x1xf32, #tpu.memory_space<vmem>>, vector<1x8x1xf32>
    %566 = vector.shape_cast %565 : vector<1x8x1xf32> to vector<8x1xf32>
    %567 = arith.index_cast %494 : i32 to index
    %c0_184 = arith.constant 0 : index
    %c0_185 = arith.constant 0 : index
    %568 = vector.load %arg2[%567, %c0_184, %c0_185] : memref<8x8x1xf32, #tpu.memory_space<vmem>>, vector<1x8x1xf32>
    %569 = vector.shape_cast %568 : vector<1x8x1xf32> to vector<8x1xf32>
    %570 = vector.broadcast %566 : vector<8x1xf32> to vector<8x32xf32>
    %571 = arith.mulf %537, %570 : vector<8x32xf32>
    %572 = vector.broadcast %566 : vector<8x1xf32> to vector<8x32xf32>
    %573 = arith.mulf %535, %572 : vector<8x32xf32>
    %574 = vector.broadcast %569 : vector<8x1xf32> to vector<8x32xf32>
    %575 = arith.mulf %563, %574 : vector<8x32xf32>
    %576 = vector.broadcast %569 : vector<8x1xf32> to vector<8x32xf32>
    %577 = arith.mulf %561, %576 : vector<8x32xf32>
    %578 = tpu.concatenate %571, %575 in 1 : vector<8x32xf32>, vector<8x32xf32> -> vector<8x64xf32>
    %c0_186 = arith.constant 0 : index
    %c0_187 = arith.constant 0 : index
    %579 = vector.load %arg8[%c0_186, %c0_187] : memref<8x64xf32, #tpu.memory_space<vmem>>, vector<8x64xf32>
    tpu.vector_store %arg8[%c0_186, %c0_187], %578 {strides = array<i32>} : memref<8x64xf32, #tpu.memory_space<vmem>>, vector<8x64xf32>,
    %580 = tpu.concatenate %573, %577 in 1 : vector<8x32xf32>, vector<8x32xf32> -> vector<8x64xf32>
    %c0_188 = arith.constant 0 : index
    %c0_189 = arith.constant 0 : index
    %581 = vector.load %arg9[%c0_188, %c0_189] : memref<8x64xf32, #tpu.memory_space<vmem>>, vector<8x64xf32>
    tpu.vector_store %arg9[%c0_188, %c0_189], %580 {strides = array<i32>} : memref<8x64xf32, #tpu.memory_space<vmem>>, vector<8x64xf32>,
    %582 = arith.index_cast %c5_i32 : i32 to index
    %c0_190 = arith.constant 0 : index
    %c0_191 = arith.constant 0 : index
    %583 = vector.load %arg10[%582, %c0_190, %c0_191] : memref<8x8x32xf32, #tpu.memory_space<vmem>>, vector<1x8x32xf32>
    %584 = vector.shape_cast %583 : vector<1x8x32xf32> to vector<8x32xf32>
    %585 = vector.shape_cast %571 : vector<8x32xf32> to vector<1x8x32xf32>
    tpu.vector_store %arg10[%582, %c0_190, %c0_191], %585 {strides = array<i32>} : memref<8x8x32xf32, #tpu.memory_space<vmem>>, vector<1x8x32xf32>,
    %586 = arith.index_cast %494 : i32 to index
    %c0_192 = arith.constant 0 : index
    %c0_193 = arith.constant 0 : index
    %587 = vector.load %arg11[%586, %c0_192, %c0_193] : memref<8x8x32xf32, #tpu.memory_space<vmem>>, vector<1x8x32xf32>
    %588 = vector.shape_cast %587 : vector<1x8x32xf32> to vector<8x32xf32>
    %589 = vector.shape_cast %575 : vector<8x32xf32> to vector<1x8x32xf32>
    tpu.vector_store %arg11[%586, %c0_192, %c0_193], %589 {strides = array<i32>} : memref<8x8x32xf32, #tpu.memory_space<vmem>>, vector<1x8x32xf32>,
    %c6_i32 = arith.constant 6 : i32
    %c7_i32_194 = arith.constant 7 : i32
    %590 = arith.subi %c7_i32_194, %c6_i32 : i32
    %c0_195 = arith.constant 0 : index
    %c0_196 = arith.constant 0 : index
    %591 = vector.load %arg8[%c0_195, %c0_196] : memref<8x64xf32, #tpu.memory_space<vmem>>, vector<8x64xf32>
    %592 = arith.truncf %591 : vector<8x64xf32> to vector<8x64xbf16>
    %c0_197 = arith.constant 0 : index
    %c0_198 = arith.constant 0 : index
    %593 = vector.load %arg4[%c0_197, %c0_198] : memref<64x256xbf16, #tpu.memory_space<vmem>>, vector<64x256xbf16>
    %cst_199 = arith.constant dense<0.000000e+00> : vector<8x256xf32>
    %594 = tpu.matmul %592, %593, %cst_199 {dimension_numbers = #tpu.dot_dimension_numbers<[1], [0], [0], [1], [0, 0, 1, 1], [], []>} : vector<8x64xbf16>, vector<64x256xbf16>, vector<8x256xf32> -> vector<8x256xf32>
    %595 = vector.extract_strided_slice %594 {offsets = [0, 0], sizes = [8, 128], strides = [1, 1]} : vector<8x256xf32> to vector<8x128xf32>
    %596 = arith.index_cast %c6_i32 : i32 to index
    %c0_200 = arith.constant 0 : index
    %c0_201 = arith.constant 0 : index
    %597 = vector.load %arg7[%596, %c0_200, %c0_201] : memref<8x8x256xf32, #tpu.memory_space<vmem>>, vector<1x8x256xf32>
    %598 = vector.shape_cast %597 : vector<1x8x256xf32> to vector<8x256xf32>
    %599 = vector.extract_strided_slice %598 {offsets = [0, 0], sizes = [8, 128], strides = [1, 1]} : vector<8x256xf32> to vector<8x128xf32>
    %600 = arith.addf %595, %599 : vector<8x128xf32>
    %601 = vector.extract_strided_slice %594 {offsets = [0, 128], sizes = [8, 128], strides = [1, 1]} : vector<8x256xf32> to vector<8x128xf32>
    %602 = arith.index_cast %590 : i32 to index
    %c0_202 = arith.constant 0 : index
    %c0_203 = arith.constant 0 : index
    %603 = vector.load %arg7[%602, %c0_202, %c0_203] : memref<8x8x256xf32, #tpu.memory_space<vmem>>, vector<1x8x256xf32>
    %604 = vector.shape_cast %603 : vector<1x8x256xf32> to vector<8x256xf32>
    %605 = vector.extract_strided_slice %604 {offsets = [0, 128], sizes = [8, 128], strides = [1, 1]} : vector<8x256xf32> to vector<8x128xf32>
    %606 = arith.addf %601, %605 : vector<8x128xf32>
    %c0_204 = arith.constant 0 : index
    %c0_205 = arith.constant 0 : index
    %607 = vector.load %arg9[%c0_204, %c0_205] : memref<8x64xf32, #tpu.memory_space<vmem>>, vector<8x64xf32>
    %608 = vector.extract_strided_slice %607 {offsets = [0, 0], sizes = [8, 32], strides = [1, 1]} : vector<8x64xf32> to vector<8x32xf32>
    %609 = vector.extract_strided_slice %600 {offsets = [0, 0], sizes = [8, 32], strides = [1, 1]} : vector<8x128xf32> to vector<8x32xf32>
    %610 = arith.negf %609 : vector<8x32xf32>
    %611 = math.exp %610 : vector<8x32xf32>
    %cst_206 = arith.constant 1.000000e+00 : f32
    %612 = vector.broadcast %cst_206 : f32 to vector<8x32xf32>
    %613 = arith.addf %612, %611 : vector<8x32xf32>
    %614 = arith.divf %612, %613 : vector<8x32xf32>
    %615 = vector.extract_strided_slice %600 {offsets = [0, 32], sizes = [8, 32], strides = [1, 1]} : vector<8x128xf32> to vector<8x32xf32>
    %616 = arith.negf %615 : vector<8x32xf32>
    %617 = math.exp %616 : vector<8x32xf32>
    %cst_207 = arith.constant 1.000000e+00 : f32
    %618 = vector.broadcast %cst_207 : f32 to vector<8x32xf32>
    %619 = arith.addf %618, %617 : vector<8x32xf32>
    %620 = arith.divf %618, %619 : vector<8x32xf32>
    %621 = vector.extract_strided_slice %600 {offsets = [0, 64], sizes = [8, 32], strides = [1, 1]} : vector<8x128xf32> to vector<8x32xf32>
    %622 = math.tanh %621 : vector<8x32xf32>
    %623 = vector.extract_strided_slice %600 {offsets = [0, 96], sizes = [8, 32], strides = [1, 1]} : vector<8x128xf32> to vector<8x32xf32>
    %624 = arith.negf %623 : vector<8x32xf32>
    %625 = math.exp %624 : vector<8x32xf32>
    %cst_208 = arith.constant 1.000000e+00 : f32
    %626 = vector.broadcast %cst_208 : f32 to vector<8x32xf32>
    %627 = arith.addf %626, %625 : vector<8x32xf32>
    %628 = arith.divf %626, %627 : vector<8x32xf32>
    %629 = arith.mulf %620, %608 : vector<8x32xf32>
    %630 = arith.mulf %614, %622 : vector<8x32xf32>
    %631 = arith.addf %629, %630 : vector<8x32xf32>
    %632 = math.tanh %631 : vector<8x32xf32>
    %633 = arith.mulf %628, %632 : vector<8x32xf32>
    %634 = vector.extract_strided_slice %607 {offsets = [0, 32], sizes = [8, 32], strides = [1, 1]} : vector<8x64xf32> to vector<8x32xf32>
    %635 = vector.extract_strided_slice %606 {offsets = [0, 0], sizes = [8, 32], strides = [1, 1]} : vector<8x128xf32> to vector<8x32xf32>
    %636 = arith.negf %635 : vector<8x32xf32>
    %637 = math.exp %636 : vector<8x32xf32>
    %cst_209 = arith.constant 1.000000e+00 : f32
    %638 = vector.broadcast %cst_209 : f32 to vector<8x32xf32>
    %639 = arith.addf %638, %637 : vector<8x32xf32>
    %640 = arith.divf %638, %639 : vector<8x32xf32>
    %641 = vector.extract_strided_slice %606 {offsets = [0, 32], sizes = [8, 32], strides = [1, 1]} : vector<8x128xf32> to vector<8x32xf32>
    %642 = arith.negf %641 : vector<8x32xf32>
    %643 = math.exp %642 : vector<8x32xf32>
    %cst_210 = arith.constant 1.000000e+00 : f32
    %644 = vector.broadcast %cst_210 : f32 to vector<8x32xf32>
    %645 = arith.addf %644, %643 : vector<8x32xf32>
    %646 = arith.divf %644, %645 : vector<8x32xf32>
    %647 = vector.extract_strided_slice %606 {offsets = [0, 64], sizes = [8, 32], strides = [1, 1]} : vector<8x128xf32> to vector<8x32xf32>
    %648 = math.tanh %647 : vector<8x32xf32>
    %649 = vector.extract_strided_slice %606 {offsets = [0, 96], sizes = [8, 32], strides = [1, 1]} : vector<8x128xf32> to vector<8x32xf32>
    %650 = arith.negf %649 : vector<8x32xf32>
    %651 = math.exp %650 : vector<8x32xf32>
    %cst_211 = arith.constant 1.000000e+00 : f32
    %652 = vector.broadcast %cst_211 : f32 to vector<8x32xf32>
    %653 = arith.addf %652, %651 : vector<8x32xf32>
    %654 = arith.divf %652, %653 : vector<8x32xf32>
    %655 = arith.mulf %646, %634 : vector<8x32xf32>
    %656 = arith.mulf %640, %648 : vector<8x32xf32>
    %657 = arith.addf %655, %656 : vector<8x32xf32>
    %658 = math.tanh %657 : vector<8x32xf32>
    %659 = arith.mulf %654, %658 : vector<8x32xf32>
    %660 = arith.index_cast %c6_i32 : i32 to index
    %c0_212 = arith.constant 0 : index
    %c0_213 = arith.constant 0 : index
    %661 = vector.load %arg2[%660, %c0_212, %c0_213] : memref<8x8x1xf32, #tpu.memory_space<vmem>>, vector<1x8x1xf32>
    %662 = vector.shape_cast %661 : vector<1x8x1xf32> to vector<8x1xf32>
    %663 = arith.index_cast %590 : i32 to index
    %c0_214 = arith.constant 0 : index
    %c0_215 = arith.constant 0 : index
    %664 = vector.load %arg2[%663, %c0_214, %c0_215] : memref<8x8x1xf32, #tpu.memory_space<vmem>>, vector<1x8x1xf32>
    %665 = vector.shape_cast %664 : vector<1x8x1xf32> to vector<8x1xf32>
    %666 = vector.broadcast %662 : vector<8x1xf32> to vector<8x32xf32>
    %667 = arith.mulf %633, %666 : vector<8x32xf32>
    %668 = vector.broadcast %662 : vector<8x1xf32> to vector<8x32xf32>
    %669 = arith.mulf %631, %668 : vector<8x32xf32>
    %670 = vector.broadcast %665 : vector<8x1xf32> to vector<8x32xf32>
    %671 = arith.mulf %659, %670 : vector<8x32xf32>
    %672 = vector.broadcast %665 : vector<8x1xf32> to vector<8x32xf32>
    %673 = arith.mulf %657, %672 : vector<8x32xf32>
    %674 = tpu.concatenate %667, %671 in 1 : vector<8x32xf32>, vector<8x32xf32> -> vector<8x64xf32>
    %c0_216 = arith.constant 0 : index
    %c0_217 = arith.constant 0 : index
    %675 = vector.load %arg8[%c0_216, %c0_217] : memref<8x64xf32, #tpu.memory_space<vmem>>, vector<8x64xf32>
    tpu.vector_store %arg8[%c0_216, %c0_217], %674 {strides = array<i32>} : memref<8x64xf32, #tpu.memory_space<vmem>>, vector<8x64xf32>,
    %676 = tpu.concatenate %669, %673 in 1 : vector<8x32xf32>, vector<8x32xf32> -> vector<8x64xf32>
    %c0_218 = arith.constant 0 : index
    %c0_219 = arith.constant 0 : index
    %677 = vector.load %arg9[%c0_218, %c0_219] : memref<8x64xf32, #tpu.memory_space<vmem>>, vector<8x64xf32>
    tpu.vector_store %arg9[%c0_218, %c0_219], %676 {strides = array<i32>} : memref<8x64xf32, #tpu.memory_space<vmem>>, vector<8x64xf32>,
    %678 = arith.index_cast %c6_i32 : i32 to index
    %c0_220 = arith.constant 0 : index
    %c0_221 = arith.constant 0 : index
    %679 = vector.load %arg10[%678, %c0_220, %c0_221] : memref<8x8x32xf32, #tpu.memory_space<vmem>>, vector<1x8x32xf32>
    %680 = vector.shape_cast %679 : vector<1x8x32xf32> to vector<8x32xf32>
    %681 = vector.shape_cast %667 : vector<8x32xf32> to vector<1x8x32xf32>
    tpu.vector_store %arg10[%678, %c0_220, %c0_221], %681 {strides = array<i32>} : memref<8x8x32xf32, #tpu.memory_space<vmem>>, vector<1x8x32xf32>,
    %682 = arith.index_cast %590 : i32 to index
    %c0_222 = arith.constant 0 : index
    %c0_223 = arith.constant 0 : index
    %683 = vector.load %arg11[%682, %c0_222, %c0_223] : memref<8x8x32xf32, #tpu.memory_space<vmem>>, vector<1x8x32xf32>
    %684 = vector.shape_cast %683 : vector<1x8x32xf32> to vector<8x32xf32>
    %685 = vector.shape_cast %671 : vector<8x32xf32> to vector<1x8x32xf32>
    tpu.vector_store %arg11[%682, %c0_222, %c0_223], %685 {strides = array<i32>} : memref<8x8x32xf32, #tpu.memory_space<vmem>>, vector<1x8x32xf32>,
    %c7_i32_224 = arith.constant 7 : i32
    %c7_i32_225 = arith.constant 7 : i32
    %686 = arith.subi %c7_i32_225, %c7_i32_224 : i32
    %c0_226 = arith.constant 0 : index
    %c0_227 = arith.constant 0 : index
    %687 = vector.load %arg8[%c0_226, %c0_227] : memref<8x64xf32, #tpu.memory_space<vmem>>, vector<8x64xf32>
    %688 = arith.truncf %687 : vector<8x64xf32> to vector<8x64xbf16>
    %c0_228 = arith.constant 0 : index
    %c0_229 = arith.constant 0 : index
    %689 = vector.load %arg4[%c0_228, %c0_229] : memref<64x256xbf16, #tpu.memory_space<vmem>>, vector<64x256xbf16>
    %cst_230 = arith.constant dense<0.000000e+00> : vector<8x256xf32>
    %690 = tpu.matmul %688, %689, %cst_230 {dimension_numbers = #tpu.dot_dimension_numbers<[1], [0], [0], [1], [0, 0, 1, 1], [], []>} : vector<8x64xbf16>, vector<64x256xbf16>, vector<8x256xf32> -> vector<8x256xf32>
    %691 = vector.extract_strided_slice %690 {offsets = [0, 0], sizes = [8, 128], strides = [1, 1]} : vector<8x256xf32> to vector<8x128xf32>
    %692 = arith.index_cast %c7_i32_224 : i32 to index
    %c0_231 = arith.constant 0 : index
    %c0_232 = arith.constant 0 : index
    %693 = vector.load %arg7[%692, %c0_231, %c0_232] : memref<8x8x256xf32, #tpu.memory_space<vmem>>, vector<1x8x256xf32>
    %694 = vector.shape_cast %693 : vector<1x8x256xf32> to vector<8x256xf32>
    %695 = vector.extract_strided_slice %694 {offsets = [0, 0], sizes = [8, 128], strides = [1, 1]} : vector<8x256xf32> to vector<8x128xf32>
    %696 = arith.addf %691, %695 : vector<8x128xf32>
    %697 = vector.extract_strided_slice %690 {offsets = [0, 128], sizes = [8, 128], strides = [1, 1]} : vector<8x256xf32> to vector<8x128xf32>
    %698 = arith.index_cast %686 : i32 to index
    %c0_233 = arith.constant 0 : index
    %c0_234 = arith.constant 0 : index
    %699 = vector.load %arg7[%698, %c0_233, %c0_234] : memref<8x8x256xf32, #tpu.memory_space<vmem>>, vector<1x8x256xf32>
    %700 = vector.shape_cast %699 : vector<1x8x256xf32> to vector<8x256xf32>
    %701 = vector.extract_strided_slice %700 {offsets = [0, 128], sizes = [8, 128], strides = [1, 1]} : vector<8x256xf32> to vector<8x128xf32>
    %702 = arith.addf %697, %701 : vector<8x128xf32>
    %c0_235 = arith.constant 0 : index
    %c0_236 = arith.constant 0 : index
    %703 = vector.load %arg9[%c0_235, %c0_236] : memref<8x64xf32, #tpu.memory_space<vmem>>, vector<8x64xf32>
    %704 = vector.extract_strided_slice %703 {offsets = [0, 0], sizes = [8, 32], strides = [1, 1]} : vector<8x64xf32> to vector<8x32xf32>
    %705 = vector.extract_strided_slice %696 {offsets = [0, 0], sizes = [8, 32], strides = [1, 1]} : vector<8x128xf32> to vector<8x32xf32>
    %706 = arith.negf %705 : vector<8x32xf32>
    %707 = math.exp %706 : vector<8x32xf32>
    %cst_237 = arith.constant 1.000000e+00 : f32
    %708 = vector.broadcast %cst_237 : f32 to vector<8x32xf32>
    %709 = arith.addf %708, %707 : vector<8x32xf32>
    %710 = arith.divf %708, %709 : vector<8x32xf32>
    %711 = vector.extract_strided_slice %696 {offsets = [0, 32], sizes = [8, 32], strides = [1, 1]} : vector<8x128xf32> to vector<8x32xf32>
    %712 = arith.negf %711 : vector<8x32xf32>
    %713 = math.exp %712 : vector<8x32xf32>
    %cst_238 = arith.constant 1.000000e+00 : f32
    %714 = vector.broadcast %cst_238 : f32 to vector<8x32xf32>
    %715 = arith.addf %714, %713 : vector<8x32xf32>
    %716 = arith.divf %714, %715 : vector<8x32xf32>
    %717 = vector.extract_strided_slice %696 {offsets = [0, 64], sizes = [8, 32], strides = [1, 1]} : vector<8x128xf32> to vector<8x32xf32>
    %718 = math.tanh %717 : vector<8x32xf32>
    %719 = vector.extract_strided_slice %696 {offsets = [0, 96], sizes = [8, 32], strides = [1, 1]} : vector<8x128xf32> to vector<8x32xf32>
    %720 = arith.negf %719 : vector<8x32xf32>
    %721 = math.exp %720 : vector<8x32xf32>
    %cst_239 = arith.constant 1.000000e+00 : f32
    %722 = vector.broadcast %cst_239 : f32 to vector<8x32xf32>
    %723 = arith.addf %722, %721 : vector<8x32xf32>
    %724 = arith.divf %722, %723 : vector<8x32xf32>
    %725 = arith.mulf %716, %704 : vector<8x32xf32>
    %726 = arith.mulf %710, %718 : vector<8x32xf32>
    %727 = arith.addf %725, %726 : vector<8x32xf32>
    %728 = math.tanh %727 : vector<8x32xf32>
    %729 = arith.mulf %724, %728 : vector<8x32xf32>
    %730 = vector.extract_strided_slice %703 {offsets = [0, 32], sizes = [8, 32], strides = [1, 1]} : vector<8x64xf32> to vector<8x32xf32>
    %731 = vector.extract_strided_slice %702 {offsets = [0, 0], sizes = [8, 32], strides = [1, 1]} : vector<8x128xf32> to vector<8x32xf32>
    %732 = arith.negf %731 : vector<8x32xf32>
    %733 = math.exp %732 : vector<8x32xf32>
    %cst_240 = arith.constant 1.000000e+00 : f32
    %734 = vector.broadcast %cst_240 : f32 to vector<8x32xf32>
    %735 = arith.addf %734, %733 : vector<8x32xf32>
    %736 = arith.divf %734, %735 : vector<8x32xf32>
    %737 = vector.extract_strided_slice %702 {offsets = [0, 32], sizes = [8, 32], strides = [1, 1]} : vector<8x128xf32> to vector<8x32xf32>
    %738 = arith.negf %737 : vector<8x32xf32>
    %739 = math.exp %738 : vector<8x32xf32>
    %cst_241 = arith.constant 1.000000e+00 : f32
    %740 = vector.broadcast %cst_241 : f32 to vector<8x32xf32>
    %741 = arith.addf %740, %739 : vector<8x32xf32>
    %742 = arith.divf %740, %741 : vector<8x32xf32>
    %743 = vector.extract_strided_slice %702 {offsets = [0, 64], sizes = [8, 32], strides = [1, 1]} : vector<8x128xf32> to vector<8x32xf32>
    %744 = math.tanh %743 : vector<8x32xf32>
    %745 = vector.extract_strided_slice %702 {offsets = [0, 96], sizes = [8, 32], strides = [1, 1]} : vector<8x128xf32> to vector<8x32xf32>
    %746 = arith.negf %745 : vector<8x32xf32>
    %747 = math.exp %746 : vector<8x32xf32>
    %cst_242 = arith.constant 1.000000e+00 : f32
    %748 = vector.broadcast %cst_242 : f32 to vector<8x32xf32>
    %749 = arith.addf %748, %747 : vector<8x32xf32>
    %750 = arith.divf %748, %749 : vector<8x32xf32>
    %751 = arith.mulf %742, %730 : vector<8x32xf32>
    %752 = arith.mulf %736, %744 : vector<8x32xf32>
    %753 = arith.addf %751, %752 : vector<8x32xf32>
    %754 = math.tanh %753 : vector<8x32xf32>
    %755 = arith.mulf %750, %754 : vector<8x32xf32>
    %756 = arith.index_cast %c7_i32_224 : i32 to index
    %c0_243 = arith.constant 0 : index
    %c0_244 = arith.constant 0 : index
    %757 = vector.load %arg2[%756, %c0_243, %c0_244] : memref<8x8x1xf32, #tpu.memory_space<vmem>>, vector<1x8x1xf32>
    %758 = vector.shape_cast %757 : vector<1x8x1xf32> to vector<8x1xf32>
    %759 = arith.index_cast %686 : i32 to index
    %c0_245 = arith.constant 0 : index
    %c0_246 = arith.constant 0 : index
    %760 = vector.load %arg2[%759, %c0_245, %c0_246] : memref<8x8x1xf32, #tpu.memory_space<vmem>>, vector<1x8x1xf32>
    %761 = vector.shape_cast %760 : vector<1x8x1xf32> to vector<8x1xf32>
    %762 = vector.broadcast %758 : vector<8x1xf32> to vector<8x32xf32>
    %763 = arith.mulf %729, %762 : vector<8x32xf32>
    %764 = vector.broadcast %758 : vector<8x1xf32> to vector<8x32xf32>
    %765 = arith.mulf %727, %764 : vector<8x32xf32>
    %766 = vector.broadcast %761 : vector<8x1xf32> to vector<8x32xf32>
    %767 = arith.mulf %755, %766 : vector<8x32xf32>
    %768 = vector.broadcast %761 : vector<8x1xf32> to vector<8x32xf32>
    %769 = arith.mulf %753, %768 : vector<8x32xf32>
    %770 = tpu.concatenate %763, %767 in 1 : vector<8x32xf32>, vector<8x32xf32> -> vector<8x64xf32>
    %c0_247 = arith.constant 0 : index
    %c0_248 = arith.constant 0 : index
    %771 = vector.load %arg8[%c0_247, %c0_248] : memref<8x64xf32, #tpu.memory_space<vmem>>, vector<8x64xf32>
    tpu.vector_store %arg8[%c0_247, %c0_248], %770 {strides = array<i32>} : memref<8x64xf32, #tpu.memory_space<vmem>>, vector<8x64xf32>,
    %772 = tpu.concatenate %765, %769 in 1 : vector<8x32xf32>, vector<8x32xf32> -> vector<8x64xf32>
    %c0_249 = arith.constant 0 : index
    %c0_250 = arith.constant 0 : index
    %773 = vector.load %arg9[%c0_249, %c0_250] : memref<8x64xf32, #tpu.memory_space<vmem>>, vector<8x64xf32>
    tpu.vector_store %arg9[%c0_249, %c0_250], %772 {strides = array<i32>} : memref<8x64xf32, #tpu.memory_space<vmem>>, vector<8x64xf32>,
    %774 = arith.index_cast %c7_i32_224 : i32 to index
    %c0_251 = arith.constant 0 : index
    %c0_252 = arith.constant 0 : index
    %775 = vector.load %arg10[%774, %c0_251, %c0_252] : memref<8x8x32xf32, #tpu.memory_space<vmem>>, vector<1x8x32xf32>
    %776 = vector.shape_cast %775 : vector<1x8x32xf32> to vector<8x32xf32>
    %777 = vector.shape_cast %763 : vector<8x32xf32> to vector<1x8x32xf32>
    tpu.vector_store %arg10[%774, %c0_251, %c0_252], %777 {strides = array<i32>} : memref<8x8x32xf32, #tpu.memory_space<vmem>>, vector<1x8x32xf32>,
    %778 = arith.index_cast %686 : i32 to index
    %c0_253 = arith.constant 0 : index
    %c0_254 = arith.constant 0 : index
    %779 = vector.load %arg11[%778, %c0_253, %c0_254] : memref<8x8x32xf32, #tpu.memory_space<vmem>>, vector<1x8x32xf32>
    %780 = vector.shape_cast %779 : vector<1x8x32xf32> to vector<8x32xf32>
    %781 = vector.shape_cast %767 : vector<8x32xf32> to vector<1x8x32xf32>
    tpu.vector_store %arg11[%778, %c0_253, %c0_254], %781 {strides = array<i32>} : memref<8x8x32xf32, #tpu.memory_space<vmem>>, vector<1x8x32xf32>,
    %c8_i32 = arith.constant 8 : i32
    %c0_255 = arith.constant 0 : index
    %c0_256 = arith.constant 0 : index
    %c0_257 = arith.constant 0 : index
    %782 = vector.load %arg10[%c0_255, %c0_256, %c0_257] : memref<8x8x32xf32, #tpu.memory_space<vmem>>, vector<8x8x32xf32>
    %c0_258 = arith.constant 0 : index
    %c0_259 = arith.constant 0 : index
    %c0_260 = arith.constant 0 : index
    %783 = vector.load %arg11[%c0_258, %c0_259, %c0_260] : memref<8x8x32xf32, #tpu.memory_space<vmem>>, vector<8x8x32xf32>
    %784 = tpu.concatenate %782, %783 in 2 : vector<8x8x32xf32>, vector<8x8x32xf32> -> vector<8x8x64xf32>
    %c0_261 = arith.constant 0 : index
    %c0_262 = arith.constant 0 : index
    %c0_263 = arith.constant 0 : index
    %785 = vector.load %arg6[%c0_261, %c0_262, %c0_263] : memref<8x8x64xf32, #tpu.memory_space<vmem>>, vector<8x8x64xf32>
    tpu.vector_store %arg6[%c0_261, %c0_262, %c0_263], %784 {strides = array<i32>} : memref<8x8x64xf32, #tpu.memory_space<vmem>>, vector<8x8x64xf32>,
    return
  }
  func.func @transform_0(%arg0: i32) -> (i32, i32, i32) {
    %c0_i32 = arith.constant 0 : i32
    %c0_i32_0 = arith.constant 0 : i32
    %c0_i32_1 = arith.constant 0 : i32
    return %c0_i32, %arg0, %c0_i32_0 : i32, i32, i32
  }
  func.func @transform_1(%arg0: i32) -> (i32, i32, i32) {
    %c0_i32 = arith.constant 0 : i32
    %c0_i32_0 = arith.constant 0 : i32
    %c0_i32_1 = arith.constant 0 : i32
    return %c0_i32, %arg0, %c0_i32_0 : i32, i32, i32
  }
  func.func @transform_2(%arg0: i32) -> (i32, i32) {
    %c0_i32 = arith.constant 0 : i32
    %c0_i32_0 = arith.constant 0 : i32
    %c0_i32_1 = arith.constant 0 : i32
    return %c0_i32, %c0_i32_0 : i32, i32
  }
  func.func @transform_3(%arg0: i32) -> (i32, i32) {
    %c0_i32 = arith.constant 0 : i32
    %c0_i32_0 = arith.constant 0 : i32
    %c0_i32_1 = arith.constant 0 : i32
    return %c0_i32, %c0_i32_0 : i32, i32
  }
  func.func @transform_4(%arg0: i32) -> (i32, i32) {
    %c0_i32 = arith.constant 0 : i32
    %c0_i32_0 = arith.constant 0 : i32
    %c0_i32_1 = arith.constant 0 : i32
    return %c0_i32, %c0_i32_0 : i32, i32
  }
  func.func @transform_5(%arg0: i32) -> (i32, i32, i32) {
    %c0_i32 = arith.constant 0 : i32
    %c0_i32_0 = arith.constant 0 : i32
    %c0_i32_1 = arith.constant 0 : i32
    return %c0_i32, %arg0, %c0_i32_0 : i32, i32, i32
  }
}

module attributes {stable_mosaic.version = 11 : i64} {
  func.func @ff_loss_kernel(%arg0: memref<8x8x64xf32, #tpu.memory_space<vmem>>, %arg1: memref<64x1xi32, #tpu.memory_space<vmem>>, %arg2: memref<64x1xf32, #tpu.memory_space<vmem>>, %arg3: memref<64x32xbf16, #tpu.memory_space<vmem>>, %arg4: memref<1x32xf32, #tpu.memory_space<vmem>>, %arg5: memref<32x2xbf16, #tpu.memory_space<vmem>>, %arg6: memref<1x2xf32, #tpu.memory_space<vmem>>, %arg7: memref<1x1xf32, #tpu.memory_space<vmem>>, %arg8: memref<64x1xi32, #tpu.memory_space<vmem>>) attributes {dimension_semantics = [], scalar_prefetch = 0 : i64, scratch_operands = 0 : i64, tpu.core_type = #tpu.core_type<tc>} {
    %c0 = arith.constant 0 : index
    %c0_0 = arith.constant 0 : index
    %c0_1 = arith.constant 0 : index
    %0 = vector.load %arg0[%c0, %c0_0, %c0_1] : memref<8x8x64xf32, #tpu.memory_space<vmem>>, vector<8x8x64xf32>
    %1 = vector.shape_cast %0 : vector<8x8x64xf32> to vector<64x64xf32>
    %2 = arith.truncf %1 : vector<64x64xf32> to vector<64x64xbf16>
    %c0_2 = arith.constant 0 : index
    %c0_3 = arith.constant 0 : index
    %3 = vector.load %arg3[%c0_2, %c0_3] : memref<64x32xbf16, #tpu.memory_space<vmem>>, vector<64x32xbf16>
    %cst = arith.constant dense<0.000000e+00> : vector<64x32xf32>
    %4 = tpu.matmul %2, %3, %cst {dimension_numbers = #tpu.dot_dimension_numbers<[1], [0], [0], [1], [0, 0, 1, 1], [], []>} : vector<64x64xbf16>, vector<64x32xbf16>, vector<64x32xf32> -> vector<64x32xf32>
    %c0_4 = arith.constant 0 : index
    %c0_5 = arith.constant 0 : index
    %5 = vector.load %arg4[%c0_4, %c0_5] : memref<1x32xf32, #tpu.memory_space<vmem>>, vector<1x32xf32>
    %6 = vector.broadcast %5 : vector<1x32xf32> to vector<64x32xf32>
    %7 = arith.addf %4, %6 : vector<64x32xf32>
    %cst_6 = arith.constant 0.000000e+00 : f32
    %8 = vector.broadcast %cst_6 : f32 to vector<64x32xf32>
    %9 = arith.maximumf %7, %8 : vector<64x32xf32>
    %10 = arith.truncf %9 : vector<64x32xf32> to vector<64x32xbf16>
    %c0_7 = arith.constant 0 : index
    %c0_8 = arith.constant 0 : index
    %11 = vector.load %arg5[%c0_7, %c0_8] : memref<32x2xbf16, #tpu.memory_space<vmem>>, vector<32x2xbf16>
    %cst_9 = arith.constant dense<0.000000e+00> : vector<64x2xf32>
    %12 = tpu.matmul %10, %11, %cst_9 {dimension_numbers = #tpu.dot_dimension_numbers<[1], [0], [0], [1], [0, 0, 1, 1], [], []>} : vector<64x32xbf16>, vector<32x2xbf16>, vector<64x2xf32> -> vector<64x2xf32>
    %c0_10 = arith.constant 0 : index
    %c0_11 = arith.constant 0 : index
    %13 = vector.load %arg6[%c0_10, %c0_11] : memref<1x2xf32, #tpu.memory_space<vmem>>, vector<1x2xf32>
    %14 = vector.broadcast %13 : vector<1x2xf32> to vector<64x2xf32>
    %15 = arith.addf %12, %14 : vector<64x2xf32>
    %16 = vector.extract_strided_slice %15 {offsets = [0, 0], sizes = [64, 1], strides = [1, 1]} : vector<64x2xf32> to vector<64x1xf32>
    %17 = vector.extract_strided_slice %15 {offsets = [0, 1], sizes = [64, 1], strides = [1, 1]} : vector<64x2xf32> to vector<64x1xf32>
    %18 = arith.maximumf %16, %17 : vector<64x1xf32>
    %19 = arith.subf %16, %18 : vector<64x1xf32>
    %20 = math.exp %19 : vector<64x1xf32>
    %21 = arith.subf %17, %18 : vector<64x1xf32>
    %22 = math.exp %21 : vector<64x1xf32>
    %23 = arith.addf %20, %22 : vector<64x1xf32>
    %24 = math.log %23 : vector<64x1xf32>
    %25 = arith.addf %18, %24 : vector<64x1xf32>
    %c0_12 = arith.constant 0 : index
    %c0_13 = arith.constant 0 : index
    %26 = vector.load %arg1[%c0_12, %c0_13] : memref<64x1xi32, #tpu.memory_space<vmem>>, vector<64x1xi32>
    %c1_i32 = arith.constant 1 : i32
    %27 = vector.broadcast %c1_i32 : i32 to vector<64x1xi32>
    %28 = arith.cmpi eq, %26, %27 : vector<64x1xi32>
    %29 = arith.select %28, %17, %16 : vector<64x1xi1>, vector<64x1xf32>
    %30 = arith.subf %25, %29 : vector<64x1xf32>
    %c0_14 = arith.constant 0 : index
    %c0_15 = arith.constant 0 : index
    %31 = vector.load %arg2[%c0_14, %c0_15] : memref<64x1xf32, #tpu.memory_space<vmem>>, vector<64x1xf32>
    %32 = arith.mulf %30, %31 : vector<64x1xf32>
    %cst_16 = arith.constant dense<0.000000e+00> : vector<1xf32>
    %33 = vector.multi_reduction <add>, %32, %cst_16 [0] : vector<64x1xf32> to vector<1xf32>
    %34 = vector.shape_cast %33 : vector<1xf32> to vector<1x1xf32>
    %c0_17 = arith.constant 0 : index
    %c0_18 = arith.constant 0 : index
    %35 = vector.load %arg7[%c0_17, %c0_18] : memref<1x1xf32, #tpu.memory_space<vmem>>, vector<1x1xf32>
    tpu.vector_store %arg7[%c0_17, %c0_18], %34 {strides = array<i32>} : memref<1x1xf32, #tpu.memory_space<vmem>>, vector<1x1xf32>,
    %36 = arith.cmpf ogt, %17, %16 : vector<64x1xf32>
    %37 = arith.extui %36 : vector<64x1xi1> to vector<64x1xi32>
    %c0_19 = arith.constant 0 : index
    %c0_20 = arith.constant 0 : index
    %38 = vector.load %arg8[%c0_19, %c0_20] : memref<64x1xi32, #tpu.memory_space<vmem>>, vector<64x1xi32>
    tpu.vector_store %arg8[%c0_19, %c0_20], %37 {strides = array<i32>} : memref<64x1xi32, #tpu.memory_space<vmem>>, vector<64x1xi32>,
    return
  }
}

</mosaic_0001>

<llo_original>
// kernel: segmenter_forward.5
$region0: #{segmenter_forward.5}
  #allocation0 [shape = 'u32[]', space=smem, size = 0x4, offset = 0x4, fixed_abs, tag = 'smem constant byte address 0x4 - core index']
  #allocation1 [shape = 'u32[72,128]{1,0:T(1,128)}', space=vmem, size = 0x9000, scoped, tag = 'internal scratch']
  %s0 = inlined_call_operand.vmem [shape: f32[8,8,64], index: 0, kind: input, shape index: {}]
  %s1 = inlined_call_operand.vmem [shape: s32[64,1], index: 1, kind: input, shape index: {}]
  %s2 = inlined_call_operand.vmem [shape: f32[64,1], index: 2, kind: input, shape index: {}]
  %s3 = inlined_call_operand.vmem [shape: bf16[64,32], index: 3, kind: input, shape index: {}]
  %s4 = inlined_call_operand.vmem [shape: f32[1,32], index: 4, kind: input, shape index: {}]
  %s5 = inlined_call_operand.vmem [shape: bf16[32,2], index: 5, kind: input, shape index: {}]
  %s6 = inlined_call_operand.vmem [shape: f32[1,2], index: 6, kind: input, shape index: {}]
  %s7 = inlined_call_operand.hbm [shape: f32[1,1], index: 7, kind: output, shape index: {0}]
  %s8 = inlined_call_operand.vmem [shape: s32[64,1], index: 8, kind: output, shape index: {1}]
  %9 = xla_tuple %s7, %s8
  %s10 = sld [smem:[#allocation0]]
  $region46: #{segmenter_forward.5} parent=0
    _
  %s12 = ssub.s32 1, %s10
  %s13 = scalar_select 0, %s12, %s10
  $region1: #{segmenter_forward.5} parent=0
    #allocation2 [shape = 'u8[512]{0}', space=vmem, size = 0x400, scoped, tag = 'output window, operand 0, single buffered']
    #allocation3 [shape = 's32[1]{0}', space=sflag, size = 0x4, scoped, tag = 'scoped memory for segmenter_forward.5']
    %14 = vsyncpa [#allocation3], 0
    // Predicated region
    $region2: #{segmenter_forward.5} parent=1 // pred_check
      _
    $region3: #{segmenter_forward.5} parent=1 // pred_check_branch
      %16 = sbr.rel (0) target = $region5
    $region4: #{segmenter_forward.5} parent=1 // pred_region
      _
    $region5: #{segmenter_forward.5} parent=1 // pred_fallthru
      _
    // Predicated region
    $region6: #{segmenter_forward.5} parent=1 // pred_check
      _
    $region7: #{segmenter_forward.5} parent=1 // pred_check_branch
      %18 = sbr.rel (0) target = $region9
    $region8: #{segmenter_forward.5} parent=1 // pred_region
      _
    $region9: #{segmenter_forward.5} parent=1 // pred_fallthru
      _
    // Predicated region
    $region10: #{segmenter_forward.5} parent=1 // pred_check
      _
    $region11: #{segmenter_forward.5} parent=1 // pred_check_branch
      %20 = sbr.rel (0) target = $region13
    $region12: #{segmenter_forward.5} parent=1 // pred_region
      _
    $region13: #{segmenter_forward.5} parent=1 // pred_fallthru
      _
    // Predicated region
    $region14: #{segmenter_forward.5} parent=1 // pred_check
      _
    $region15: #{segmenter_forward.5} parent=1 // pred_check_branch
      %22 = sbr.rel (0) target = $region17
    $region16: #{segmenter_forward.5} parent=1 // pred_region
      _
    $region17: #{segmenter_forward.5} parent=1 // pred_fallthru
      _
    // Predicated region
    $region18: #{segmenter_forward.5} parent=1 // pred_check
      _
    $region19: #{segmenter_forward.5} parent=1 // pred_check_branch
      %24 = sbr.rel (0) target = $region21
    $region20: #{segmenter_forward.5} parent=1 // pred_region
      _
    $region21: #{segmenter_forward.5} parent=1 // pred_fallthru
      _
    // Predicated region
    $region22: #{segmenter_forward.5} parent=1 // pred_check
      _
    $region23: #{segmenter_forward.5} parent=1 // pred_check_branch
      %26 = sbr.rel (0) target = $region25
    $region24: #{segmenter_forward.5} parent=1 // pred_region
      _
    $region25: #{segmenter_forward.5} parent=1 // pred_fallthru
      _
    // Predicated region
    $region26: #{segmenter_forward.5} parent=1 // pred_check
      _
    $region27: #{segmenter_forward.5} parent=1 // pred_check_branch
      %28 = sbr.rel (0) target = $region29
    $region28: #{segmenter_forward.5} parent=1 // pred_region
      _
    $region29: #{segmenter_forward.5} parent=1 // pred_fallthru
      _
    %v30 = vld [vmem:[%s0] sm:$0xff]
    %v31 = vld [vmem:[%s0 + $0x8] sm:$0xff]
    %v32 = vld [vmem:[%s0 + $0x10] sm:$0xff]
    %v33 = vld [vmem:[%s0 + $0x18] sm:$0xff]
    %v34 = vld [vmem:[%s0 + $0x20] sm:$0xff]
    %v35 = vld [vmem:[%s0 + $0x28] sm:$0xff]
    %v36 = vld [vmem:[%s0 + $0x30] sm:$0xff]
    %v37 = vld [vmem:[%s0 + $0x38] sm:$0xff]
    %v38 = vpack.c.bf16 %v31, %v30
    %v39 = vpack.c.bf16 %v33, %v32
    %v40 = vpack.c.bf16 %v35, %v34
    %v41 = vpack.c.bf16 %v37, %v36
    %v42 = vld [vmem:[%s3] sm:$0xf]
    %v43 = vld [vmem:[%s3 + $0x4] sm:$0xf]
    %v44 = vld [vmem:[%s3 + $0x8] sm:$0xf]
    %v45 = vld [vmem:[%s3 + $0xc] sm:$0xf]
    %v46 = vld [vmem:[%s3 + $0x10] sm:$0xf]
    %v47 = vld [vmem:[%s3 + $0x14] sm:$0xf]
    %v48 = vld [vmem:[%s3 + $0x18] sm:$0xf]
    %v49 = vld [vmem:[%s3 + $0x1c] sm:$0xf]
    %v50 = vld [vmem:[%s4] sm:$0x1]
    %v52 = vperm.slane %v50, 0
    %v62 = vunpack.c.l.b16 %v42
    %v63 = vunpack.c.l.b16 %v43
    %v64 = vunpack.c.l.b16 %v44
    %v65 = vunpack.c.l.b16 %v45
    %v66 = vunpack.c.l.b16 %v46
    %v67 = vunpack.c.l.b16 %v47
    %v68 = vunpack.c.l.b16 %v48
    %v69 = vunpack.c.l.b16 %v49
    %v70 = vpack.c.b16 %v63, %v62
    %v71 = vpack.c.b16 %v65, %v64
    %v72 = vpack.c.b16 %v67, %v66
    %v73 = vpack.c.b16 %v69, %v68
    %vm78 = vcmask 523264
    %v80 = vsel %vm78, %v38, 0
    %v83 = vsel %vm78, %v39, 0
    %v86 = vsel %vm78, %v40, 0
    %v89 = vsel %vm78, %v41, 0
    %91 = vmatpush.bf16.msra.mxu0 0
    %92 = vmatpush.bf16.msra.mxu0 0
    %93 = vmatpush.bf16.msra.mxu0 0
    %94 = vmatpush.bf16.msra.mxu0 0
    %95 = vmatpush.bf16.msra.mxu0 %v73
    %96 = vmatpush.bf16.msra.mxu0 %v72
    %97 = vmatpush.bf16.msra.mxu0 %v71
    %98 = vmatpush.bf16.msra.mxu0 %v70
    %99 = vmatmul.bf16.gmra.mxu0 %v80
    %v100 = vpop.f32.mrf.mxu0
    %v101 = vadd.f32 %v52, %v100
    %v102 = vpop.f32.mrf.mxu0
    %v103 = vadd.f32 %v52, %v102
    %104 = vmatmul.bf16.gmra.mxu0 %v83
    %v105 = vpop.f32.mrf.mxu0
    %v106 = vadd.f32 %v52, %v105
    %v107 = vpop.f32.mrf.mxu0
    %v108 = vadd.f32 %v52, %v107
    %109 = vmatmul.bf16.gmra.mxu0 %v86
    %v110 = vpop.f32.mrf.mxu0
    %v111 = vadd.f32 %v52, %v110
    %v112 = vpop.f32.mrf.mxu0
    %v113 = vadd.f32 %v52, %v112
    %114 = vmatmul.bf16.gmra.mxu0 %v89
    %v115 = vpop.f32.mrf.mxu0
    %v116 = vadd.f32 %v52, %v115
    %v117 = vpop.f32.mrf.mxu0
    %v118 = vadd.f32 %v52, %v117
    %119 = vdwg.mxu0
    %v120 = vmax.f32 %v101, 0.0
    %v121 = vmax.f32 %v103, 0.0
    %v122 = vmax.f32 %v106, 0.0
    %v123 = vmax.f32 %v108, 0.0
    %v124 = vmax.f32 %v111, 0.0
    %v125 = vmax.f32 %v113, 0.0
    %v126 = vmax.f32 %v116, 0.0
    %v127 = vmax.f32 %v118, 0.0
    %v128 = vpack.c.bf16 %v121, %v120
    %v129 = vpack.c.bf16 %v123, %v122
    %v130 = vpack.c.bf16 %v125, %v124
    %v131 = vpack.c.bf16 %v127, %v126
    %v132 = vld [vmem:[%s5] sm:$0xf]
    %v133 = vld [vmem:[%s5 + $0x4] sm:$0xf]
    %v134 = vld [vmem:[%s5 + $0x8] sm:$0xf]
    %v135 = vld [vmem:[%s5 + $0xc] sm:$0xf]
    %v136 = vld [vmem:[%s6] sm:$0x1]
    %v138 = vperm.slane %v136, 0
    %v144 = vunpack.c.l.b16 %v132
    %v145 = vunpack.c.l.b16 %v133
    %v146 = vunpack.c.l.b16 %v134
    %v147 = vunpack.c.l.b16 %v135
    %v148 = vpack.c.b16 %v145, %v144
    %v149 = vpack.c.b16 %v147, %v146
    %vm152 = vcmask 261120
    %v154 = vsel %vm152, %v128, 0
    %v157 = vsel %vm152, %v129, 0
    %v160 = vsel %vm152, %v130, 0
    %v163 = vsel %vm152, %v131, 0
    %165 = vmatpush.bf16.msra.mxu0 0
    %166 = vmatpush.bf16.msra.mxu0 0
    %167 = vmatpush.bf16.msra.mxu0 0
    %168 = vmatpush.bf16.msra.mxu0 0
    %169 = vmatpush.bf16.msra.mxu0 0
    %170 = vmatpush.bf16.msra.mxu0 0
    %171 = vmatpush.bf16.msra.mxu0 %v149
    %172 = vmatpush.bf16.msra.mxu0 %v148
    %173 = vmatmul.bf16.gmra.mxu0 %v154
    %v174 = vpop.f32.mrf.mxu0
    %v175 = vadd.f32 %v138, %v174
    %v176 = vpop.f32.mrf.mxu0
    %v177 = vadd.f32 %v138, %v176
    %178 = vmatmul.bf16.gmra.mxu0 %v157
    %v179 = vpop.f32.mrf.mxu0
    %v180 = vadd.f32 %v138, %v179
    %v181 = vpop.f32.mrf.mxu0
    %v182 = vadd.f32 %v138, %v181
    %183 = vmatmul.bf16.gmra.mxu0 %v160
    %v184 = vpop.f32.mrf.mxu0
    %v185 = vadd.f32 %v138, %v184
    %v186 = vpop.f32.mrf.mxu0
    %v187 = vadd.f32 %v138, %v186
    %188 = vmatmul.bf16.gmra.mxu0 %v163
    %v189 = vpop.f32.mrf.mxu0
    %v190 = vadd.f32 %v138, %v189
    %v191 = vpop.f32.mrf.mxu0
    %v192 = vadd.f32 %v138, %v191
    %193 = vdwg.mxu0
    %202 = vrot.lane.b32.xlu0 %v175, 127
    %v203 = vpop.permute.xlu0 %202
    %204 = vrot.lane.b32.xlu0 %v177, 127
    %v205 = vpop.permute.xlu0 %204
    %206 = vrot.lane.b32.xlu0 %v180, 127
    %v207 = vpop.permute.xlu0 %206
    %208 = vrot.lane.b32.xlu0 %v182, 127
    %v209 = vpop.permute.xlu0 %208
    %210 = vrot.lane.b32.xlu0 %v185, 127
    %v211 = vpop.permute.xlu0 %210
    %212 = vrot.lane.b32.xlu0 %v187, 127
    %v213 = vpop.permute.xlu0 %212
    %214 = vrot.lane.b32.xlu0 %v190, 127
    %v215 = vpop.permute.xlu0 %214
    %216 = vrot.lane.b32.xlu0 %v192, 127
    %v217 = vpop.permute.xlu0 %216
    %v226 = vmax.f32 %v175, %v203
    %v227 = vmax.f32 %v177, %v205
    %v228 = vmax.f32 %v180, %v207
    %v229 = vmax.f32 %v182, %v209
    %v230 = vmax.f32 %v185, %v211
    %v231 = vmax.f32 %v187, %v213
    %v232 = vmax.f32 %v190, %v215
    %v233 = vmax.f32 %v192, %v217
    %v234 = vsub.f32 %v175, %v226
    %v235 = vsub.f32 %v177, %v227
    %v236 = vsub.f32 %v180, %v228
    %v237 = vsub.f32 %v182, %v229
    %v238 = vsub.f32 %v185, %v230
    %v239 = vsub.f32 %v187, %v231
    %v240 = vsub.f32 %v190, %v232
    %v241 = vsub.f32 %v192, %v233
    %v242 = vmul.f32 %v234, 1.442695
    %v243 = vpow.pop %v242
    %v244 = vmul.f32 %v235, 1.442695
    %v245 = vpow.pop %v244
    %v246 = vmul.f32 %v236, 1.442695
    %v247 = vpow.pop %v246
    %v248 = vmul.f32 %v237, 1.442695
    %v249 = vpow.pop %v248
    %v250 = vmul.f32 %v238, 1.442695
    %v251 = vpow.pop %v250
    %v252 = vmul.f32 %v239, 1.442695
    %v253 = vpow.pop %v252
    %v254 = vmul.f32 %v240, 1.442695
    %v255 = vpow.pop %v254
    %v256 = vmul.f32 %v241, 1.442695
    %v257 = vpow.pop %v256
    %266 = vrot.lane.b32.xlu0 %v226, 1
    %v267 = vpop.permute.xlu0 %266
    %268 = vrot.lane.b32.xlu0 %v227, 1
    %v269 = vpop.permute.xlu0 %268
    %270 = vrot.lane.b32.xlu0 %v228, 1
    %v271 = vpop.permute.xlu0 %270
    %272 = vrot.lane.b32.xlu0 %v229, 1
    %v273 = vpop.permute.xlu0 %272
    %274 = vrot.lane.b32.xlu0 %v230, 1
    %v275 = vpop.permute.xlu0 %274
    %276 = vrot.lane.b32.xlu0 %v231, 1
    %v277 = vpop.permute.xlu0 %276
    %278 = vrot.lane.b32.xlu0 %v232, 1
    %v279 = vpop.permute.xlu0 %278
    %280 = vrot.lane.b32.xlu0 %v233, 1
    %v281 = vpop.permute.xlu0 %280
    %v290 = vsub.f32 %v175, %v267
    %v291 = vsub.f32 %v177, %v269
    %v292 = vsub.f32 %v180, %v271
    %v293 = vsub.f32 %v182, %v273
    %v294 = vsub.f32 %v185, %v275
    %v295 = vsub.f32 %v187, %v277
    %v296 = vsub.f32 %v190, %v279
    %v297 = vsub.f32 %v192, %v281
    %v298 = vmul.f32 %v290, 1.442695
    %v299 = vpow.pop %v298
    %v300 = vmul.f32 %v291, 1.442695
    %v301 = vpow.pop %v300
    %v302 = vmul.f32 %v292, 1.442695
    %v303 = vpow.pop %v302
    %v304 = vmul.f32 %v293, 1.442695
    %v305 = vpow.pop %v304
    %v306 = vmul.f32 %v294, 1.442695
    %v307 = vpow.pop %v306
    %v308 = vmul.f32 %v295, 1.442695
    %v309 = vpow.pop %v308
    %v310 = vmul.f32 %v296, 1.442695
    %v311 = vpow.pop %v310
    %v312 = vmul.f32 %v297, 1.442695
    %v313 = vpow.pop %v312
    %322 = vrot.lane.b32.xlu0 %v299, 127
    %v323 = vpop.permute.xlu0 %322
    %324 = vrot.lane.b32.xlu0 %v301, 127
    %v325 = vpop.permute.xlu0 %324
    %326 = vrot.lane.b32.xlu0 %v303, 127
    %v327 = vpop.permute.xlu0 %326
    %328 = vrot.lane.b32.xlu0 %v305, 127
    %v329 = vpop.permute.xlu0 %328
    %330 = vrot.lane.b32.xlu0 %v307, 127
    %v331 = vpop.permute.xlu0 %330
    %332 = vrot.lane.b32.xlu0 %v309, 127
    %v333 = vpop.permute.xlu0 %332
    %334 = vrot.lane.b32.xlu0 %v311, 127
    %v335 = vpop.permute.xlu0 %334
    %336 = vrot.lane.b32.xlu0 %v313, 127
    %v337 = vpop.permute.xlu0 %336
    %v346 = vadd.f32 %v243, %v323
    %v347 = vadd.f32 %v245, %v325
    %v348 = vadd.f32 %v247, %v327
    %v349 = vadd.f32 %v249, %v329
    %v350 = vadd.f32 %v251, %v331
    %v351 = vadd.f32 %v253, %v333
    %v352 = vadd.f32 %v255, %v335
    %v353 = vadd.f32 %v257, %v337
    %v354 = vlog2.pop %v346
    %v355 = vmul.f32 %v354, 0.6931472
    %v356 = vlog2.pop %v347
    %v357 = vmul.f32 %v356, 0.6931472
    %v358 = vlog2.pop %v348
    %v359 = vmul.f32 %v358, 0.6931472
    %v360 = vlog2.pop %v349
    %v361 = vmul.f32 %v360, 0.6931472
    %v362 = vlog2.pop %v350
    %v363 = vmul.f32 %v362, 0.6931472
    %v364 = vlog2.pop %v351
    %v365 = vmul.f32 %v364, 0.6931472
    %v366 = vlog2.pop %v352
    %v367 = vmul.f32 %v366, 0.6931472
    %v368 = vlog2.pop %v353
    %v369 = vmul.f32 %v368, 0.6931472
    %v370 = vadd.f32 %v226, %v355
    %v371 = vadd.f32 %v227, %v357
    %v372 = vadd.f32 %v228, %v359
    %v373 = vadd.f32 %v229, %v361
    %v374 = vadd.f32 %v230, %v363
    %v375 = vadd.f32 %v231, %v365
    %v376 = vadd.f32 %v232, %v367
    %v377 = vadd.f32 %v233, %v369
    %v378 = vld [vmem:[%s1] sm:$0xff]
    %v379 = vld [vmem:[%s1 + $0x8] sm:$0xff]
    %v380 = vld [vmem:[%s1 + $0x10] sm:$0xff]
    %v381 = vld [vmem:[%s1 + $0x18] sm:$0xff]
    %v382 = vld [vmem:[%s1 + $0x20] sm:$0xff]
    %v383 = vld [vmem:[%s1 + $0x28] sm:$0xff]
    %v384 = vld [vmem:[%s1 + $0x30] sm:$0xff]
    %v385 = vld [vmem:[%s1 + $0x38] sm:$0xff]
    %vm386 = vcmp.eq.s32.totalorder %v378, 1
    %vm387 = vcmp.eq.s32.totalorder %v379, 1
    %vm388 = vcmp.eq.s32.totalorder %v380, 1
    %vm389 = vcmp.eq.s32.totalorder %v381, 1
    %vm390 = vcmp.eq.s32.totalorder %v382, 1
    %vm391 = vcmp.eq.s32.totalorder %v383, 1
    %vm392 = vcmp.eq.s32.totalorder %v384, 1
    %vm393 = vcmp.eq.s32.totalorder %v385, 1
    %v394 = vsel %vm386, %v203, %v175
    %v395 = vsel %vm387, %v205, %v177
    %v396 = vsel %vm388, %v207, %v180
    %v397 = vsel %vm389, %v209, %v182
    %v398 = vsel %vm390, %v211, %v185
    %v399 = vsel %vm391, %v213, %v187
    %v400 = vsel %vm392, %v215, %v190
    %v401 = vsel %vm393, %v217, %v192
    %v402 = vsub.f32 %v370, %v394
    %v403 = vsub.f32 %v371, %v395
    %v404 = vsub.f32 %v372, %v396
    %v405 = vsub.f32 %v373, %v397
    %v406 = vsub.f32 %v374, %v398
    %v407 = vsub.f32 %v375, %v399
    %v408 = vsub.f32 %v376, %v400
    %v409 = vsub.f32 %v377, %v401
    %v410 = vld [vmem:[%s2] sm:$0xff]
    %v411 = vld [vmem:[%s2 + $0x8] sm:$0xff]
    %v412 = vld [vmem:[%s2 + $0x10] sm:$0xff]
    %v413 = vld [vmem:[%s2 + $0x18] sm:$0xff]
    %v414 = vld [vmem:[%s2 + $0x20] sm:$0xff]
    %v415 = vld [vmem:[%s2 + $0x28] sm:$0xff]
    %v416 = vld [vmem:[%s2 + $0x30] sm:$0xff]
    %v417 = vld [vmem:[%s2 + $0x38] sm:$0xff]
    %v418 = vmul.f32 %v402, %v410
    %v419 = vmul.f32 %v403, %v411
    %v420 = vmul.f32 %v404, %v412
    %v421 = vmul.f32 %v405, %v413
    %v422 = vmul.f32 %v406, %v414
    %v423 = vmul.f32 %v407, %v415
    %v424 = vmul.f32 %v408, %v416
    %v425 = vmul.f32 %v409, %v417
    %vm426 = vcmask 7168
    %v427 = vsel %vm426, %v418, 0.0
    %v428 = vsel %vm426, %v419, 0.0
    %v429 = vadd.f32 %v427, %v428
    %v430 = vsel %vm426, %v420, 0.0
    %v431 = vadd.f32 %v429, %v430
    %v432 = vsel %vm426, %v421, 0.0
    %v433 = vadd.f32 %v431, %v432
    %v434 = vsel %vm426, %v422, 0.0
    %v435 = vadd.f32 %v433, %v434
    %v436 = vsel %vm426, %v423, 0.0
    %v437 = vadd.f32 %v435, %v436
    %v438 = vsel %vm426, %v424, 0.0
    %v439 = vadd.f32 %v437, %v438
    %v440 = vsel %vm426, %v425, 0.0
    %v441 = vadd.f32 %v439, %v440
    %v442 = vrot.slane %v441, 4
    %v443 = vadd.f32 %v441, %v442
    %v444 = vrot.slane %v443, 2
    %v445 = vadd.f32 %v443, %v444
    %v446 = vrot.slane %v445, 1
    %v447 = vadd.f32 %v445, %v446
    %vm448 = vcmask 0
    %449 = vst.msk [vmem:[#allocation2] sm:$0x1] %vm448, %v447
    %450 = vrot.lane.b32.xlu0 %v175, 1
    %v451 = vpop.permute.xlu0 %450
    %452 = vrot.lane.b32.xlu0 %v177, 1
    %v453 = vpop.permute.xlu0 %452
    %454 = vrot.lane.b32.xlu0 %v180, 1
    %v455 = vpop.permute.xlu0 %454
    %456 = vrot.lane.b32.xlu0 %v182, 1
    %v457 = vpop.permute.xlu0 %456
    %458 = vrot.lane.b32.xlu0 %v185, 1
    %v459 = vpop.permute.xlu0 %458
    %460 = vrot.lane.b32.xlu0 %v187, 1
    %v461 = vpop.permute.xlu0 %460
    %462 = vrot.lane.b32.xlu0 %v190, 1
    %v463 = vpop.permute.xlu0 %462
    %464 = vrot.lane.b32.xlu0 %v192, 1
    %v465 = vpop.permute.xlu0 %464
    %vm474 = vcmp.gt.f32.partialorder %v175, %v451
    %vm475 = vcmp.gt.f32.partialorder %v177, %v453
    %vm476 = vcmp.gt.f32.partialorder %v180, %v455
    %vm477 = vcmp.gt.f32.partialorder %v182, %v457
    %vm478 = vcmp.gt.f32.partialorder %v185, %v459
    %vm479 = vcmp.gt.f32.partialorder %v187, %v461
    %vm480 = vcmp.gt.f32.partialorder %v190, %v463
    %vm481 = vcmp.gt.f32.partialorder %v192, %v465
    %v482 = vsel %vm474, 1, 0
    %v483 = vsel %vm475, 1, 0
    %v484 = vsel %vm476, 1, 0
    %v485 = vsel %vm477, 1, 0
    %v486 = vsel %vm478, 1, 0
    %v487 = vsel %vm479, 1, 0
    %v488 = vsel %vm480, 1, 0
    %v489 = vsel %vm481, 1, 0
    %490 = vrot.lane.b32.xlu0 %v482, 127
    %v491 = vpop.permute.xlu0 %490
    %492 = vrot.lane.b32.xlu0 %v483, 127
    %v493 = vpop.permute.xlu0 %492
    %494 = vrot.lane.b32.xlu0 %v484, 127
    %v495 = vpop.permute.xlu0 %494
    %496 = vrot.lane.b32.xlu0 %v485, 127
    %v497 = vpop.permute.xlu0 %496
    %498 = vrot.lane.b32.xlu0 %v486, 127
    %v499 = vpop.permute.xlu0 %498
    %500 = vrot.lane.b32.xlu0 %v487, 127
    %v501 = vpop.permute.xlu0 %500
    %502 = vrot.lane.b32.xlu0 %v488, 127
    %v503 = vpop.permute.xlu0 %502
    %504 = vrot.lane.b32.xlu0 %v489, 127
    %v505 = vpop.permute.xlu0 %504
    %506 = vst.msk [vmem:[%s8] sm:$0xff] %vm426, %v491
    %507 = vst.msk [vmem:[%s8 + $0x8] sm:$0xff] %vm426, %v493
    %508 = vst.msk [vmem:[%s8 + $0x10] sm:$0xff] %vm426, %v495
    %509 = vst.msk [vmem:[%s8 + $0x18] sm:$0xff] %vm426, %v497
    %510 = vst.msk [vmem:[%s8 + $0x20] sm:$0xff] %vm426, %v499
    %511 = vst.msk [vmem:[%s8 + $0x28] sm:$0xff] %vm426, %v501
    %512 = vst.msk [vmem:[%s8 + $0x30] sm:$0xff] %vm426, %v503
    %513 = vst.msk [vmem:[%s8 + $0x38] sm:$0xff] %vm426, %v505
    // Predicated region
    $region30: #{segmenter_forward.5} parent=1 // pred_check
      _
    $region31: #{segmenter_forward.5} parent=1 // pred_check_branch
      %515 = sbr.rel (0) target = $region33
    $region32: #{segmenter_forward.5} parent=1 // pred_region
      %517 = vsyncadd [#allocation3], 0
      %s519 = sshll.u32 [#allocation2], 4
      %s520 = int_to_ptr.vmem [resolvable:$true] %s519
      %s521 = sshll.u32 %s7, 4
      %s522 = int_to_ptr.hbm [resolvable:$true] %s521
      %524 = dma.vmem_to_hbm [thread:$0]  %s520, 16, %s522, [#allocation3]
    $region33: #{segmenter_forward.5} parent=1 // pred_fallthru
      _
    // Predicated region
    $region34: #{segmenter_forward.5} parent=1 // pred_check
      _
    $region35: #{segmenter_forward.5} parent=1 // pred_check_branch
      %526 = sbr.rel (0) target = $region37
    $region36: #{segmenter_forward.5} parent=1 // pred_region
      _
    $region37: #{segmenter_forward.5} parent=1 // pred_fallthru
      _
    // Predicated region
    $region38: #{segmenter_forward.5} parent=1 // pred_check
      _
    $region39: #{segmenter_forward.5} parent=1 // pred_check_branch
      %528 = sbr.rel (0) target = $region41
    $region40: #{segmenter_forward.5} parent=1 // pred_region
      %530 = dma.done [#allocation3], 16
    $region41: #{segmenter_forward.5} parent=1 // pred_fallthru
      _
    // Predicated region
    $region42: #{segmenter_forward.5} parent=1 // pred_check
      _
    $region43: #{segmenter_forward.5} parent=1 // pred_check_branch
      %532 = sbr.rel (0) target = $region45
    $region44: #{segmenter_forward.5} parent=1 // pred_region
      _
    $region45: #{segmenter_forward.5} parent=1 // pred_fallthru
      _
    %533 = vsyncpa [#allocation3], 1

// kernel: segmenter_forward.4
$region0: #{segmenter_forward.4}
  #allocation0 [shape = 'u32[]', space=smem, size = 0x4, offset = 0x4, fixed_abs, tag = 'smem constant byte address 0x4 - core index']
  #allocation1 [shape = 'u32[72,128]{1,0:T(1,128)}', space=vmem, size = 0x9000, scoped, tag = 'internal scratch']
  #allocation2 [shape = 'f32[8,8,256]{2,1,0:T(8,128)}', space=vmem, size = 0x10000, scoped, tag = 'scratch operand']
  #allocation3 [shape = 'f32[8,64]{1,0:T(8,128)}', space=vmem, size = 0x1000, scoped, tag = 'scratch operand']
  #allocation4 [shape = 'f32[8,64]{1,0:T(8,128)}', space=vmem, size = 0x1000, scoped, tag = 'scratch operand']
  #allocation5 [shape = 'f32[8,8,32]{2,1,0:T(8,128)}', space=vmem, size = 0x8000, scoped, tag = 'scratch operand']
  #allocation6 [shape = 'f32[8,8,32]{2,1,0:T(8,128)}', space=vmem, size = 0x8000, scoped, tag = 'scratch operand']
  %s0 = inlined_call_operand.vmem [shape: f32[8,8,64], index: 0, kind: input, shape index: {}]
  %s1 = inlined_call_operand.vmem [shape: f32[8,8,1], index: 1, kind: input, shape index: {}]
  %s2 = inlined_call_operand.vmem [shape: bf16[64,256], index: 2, kind: input, shape index: {}]
  %s3 = inlined_call_operand.vmem [shape: bf16[64,256], index: 3, kind: input, shape index: {}]
  %s4 = inlined_call_operand.vmem [shape: f32[1,256], index: 4, kind: input, shape index: {}]
  %s5 = inlined_call_operand.vmem [shape: f32[8,8,64], index: 5, kind: output, shape index: {}]
  %s6 = sld [smem:[#allocation0]]
  $region30: #{segmenter_forward.4} parent=0
    _
  %s8 = ssub.s32 1, %s6
  %s9 = scalar_select 0, %s8, %s6
  // Predicated region
  $region2: #{segmenter_forward.4} parent=0 // pred_check
    _
  $region3: #{segmenter_forward.4} parent=0 // pred_check_branch
    %11 = sbr.rel (0) target = $region5
  $region4: #{segmenter_forward.4} parent=0 // pred_region
    _
  $region5: #{segmenter_forward.4} parent=0 // pred_fallthru
    _
  // Predicated region
  $region6: #{segmenter_forward.4} parent=0 // pred_check
    _
  $region7: #{segmenter_forward.4} parent=0 // pred_check_branch
    %13 = sbr.rel (0) target = $region9
  $region8: #{segmenter_forward.4} parent=0 // pred_region
    _
  $region9: #{segmenter_forward.4} parent=0 // pred_fallthru
    _
  // Predicated region
  $region10: #{segmenter_forward.4} parent=0 // pred_check
    _
  $region11: #{segmenter_forward.4} parent=0 // pred_check_branch
    %15 = sbr.rel (0) target = $region13
  $region12: #{segmenter_forward.4} parent=0 // pred_region
    _
  $region13: #{segmenter_forward.4} parent=0 // pred_fallthru
    _
  // Predicated region
  $region14: #{segmenter_forward.4} parent=0 // pred_check
    _
  $region15: #{segmenter_forward.4} parent=0 // pred_check_branch
    %17 = sbr.rel (0) target = $region17
  $region16: #{segmenter_forward.4} parent=0 // pred_region
    _
  $region17: #{segmenter_forward.4} parent=0 // pred_fallthru
    _
  // Predicated region
  $region18: #{segmenter_forward.4} parent=0 // pred_check
    _
  $region19: #{segmenter_forward.4} parent=0 // pred_check_branch
    %19 = sbr.rel (0) target = $region21
  $region20: #{segmenter_forward.4} parent=0 // pred_region
    _
  $region21: #{segmenter_forward.4} parent=0 // pred_fallthru
    _
  %v21 = vld [vmem:[%s0] sm:$0xff]
  %v22 = vld [vmem:[%s0 + $0x8] sm:$0xff]
  %v23 = vld [vmem:[%s0 + $0x10] sm:$0xff]
  %v24 = vld [vmem:[%s0 + $0x18] sm:$0xff]
  %v25 = vld [vmem:[%s0 + $0x20] sm:$0xff]
  %v26 = vld [vmem:[%s0 + $0x28] sm:$0xff]
  %v27 = vld [vmem:[%s0 + $0x30] sm:$0xff]
  %v28 = vld [vmem:[%s0 + $0x38] sm:$0xff]
  %v29 = vpack.c.bf16 %v22, %v21
  %v30 = vpack.c.bf16 %v24, %v23
  %v31 = vpack.c.bf16 %v26, %v25
  %v32 = vpack.c.bf16 %v28, %v27
  %v33 = vld [vmem:[%s2] sm:$0xff]
  %v34 = vld [vmem:[%s2 + $0x8] sm:$0xff]
  %v35 = vld [vmem:[%s2 + $0x10] sm:$0xff]
  %v36 = vld [vmem:[%s2 + $0x18] sm:$0xff]
  %v37 = vld [vmem:[%s2 + $0x20] sm:$0xff]
  %v38 = vld [vmem:[%s2 + $0x28] sm:$0xff]
  %v39 = vld [vmem:[%s2 + $0x30] sm:$0xff]
  %v40 = vld [vmem:[%s2 + $0x38] sm:$0xff]
  %v41 = vld [vmem:[%s4] sm:$0x3]
  %v43 = vperm.slane %v41, 0
  %v44 = vperm.slane %v41, 1
  %v55 = vunpack.c.l.b16 %v33
  %v56 = vunpack.c.h.b16 %v33
  %v57 = vunpack.c.l.b16 %v34
  %v58 = vunpack.c.h.b16 %v34
  %v59 = vunpack.c.l.b16 %v35
  %v60 = vunpack.c.h.b16 %v35
  %v61 = vunpack.c.l.b16 %v36
  %v62 = vunpack.c.h.b16 %v36
  %v63 = vunpack.c.l.b16 %v37
  %v64 = vunpack.c.h.b16 %v37
  %v65 = vunpack.c.l.b16 %v38
  %v66 = vunpack.c.h.b16 %v38
  %v67 = vunpack.c.l.b16 %v39
  %v68 = vunpack.c.h.b16 %v39
  %v69 = vunpack.c.l.b16 %v40
  %v70 = vunpack.c.h.b16 %v40
  %v71 = vpack.c.b16 %v57, %v55
  %v72 = vpack.c.b16 %v58, %v56
  %v73 = vpack.c.b16 %v61, %v59
  %v74 = vpack.c.b16 %v62, %v60
  %v75 = vpack.c.b16 %v65, %v63
  %v76 = vpack.c.b16 %v66, %v64
  %v77 = vpack.c.b16 %v69, %v67
  %v78 = vpack.c.b16 %v70, %v68
  %vm87 = vcmask 523264
  %v89 = vsel %vm87, %v29, 0
  %v92 = vsel %vm87, %v30, 0
  %v95 = vsel %vm87, %v31, 0
  %v98 = vsel %vm87, %v32, 0
  %100 = vmatpush.bf16.msra.mxu0 0
  %101 = vmatpush.bf16.msra.mxu0 0
  %102 = vmatpush.bf16.msra.mxu0 0
  %103 = vmatpush.bf16.msra.mxu0 0
  %104 = vmatpush.bf16.msra.mxu0 %v77
  %105 = vmatpush.bf16.msra.mxu0 %v75
  %106 = vmatpush.bf16.msra.mxu0 %v73
  %107 = vmatpush.bf16.msra.mxu0 %v71
  %108 = vmatmul.bf16.gmra.mxu0 %v89
  %v109 = vpop.f32.mrf.mxu0
  %v110 = vadd.f32 %v43, %v109
  %v111 = vpop.f32.mrf.mxu0
  %v112 = vadd.f32 %v43, %v111
  %113 = vmatmul.bf16.gmra.mxu0 %v92
  %v114 = vpop.f32.mrf.mxu0
  %v115 = vadd.f32 %v43, %v114
  %v116 = vpop.f32.mrf.mxu0
  %v117 = vadd.f32 %v43, %v116
  %118 = vmatmul.bf16.gmra.mxu0 %v95
  %v119 = vpop.f32.mrf.mxu0
  %v120 = vadd.f32 %v43, %v119
  %v121 = vpop.f32.mrf.mxu0
  %v122 = vadd.f32 %v43, %v121
  %123 = vmatmul.bf16.gmra.mxu0 %v98
  %v124 = vpop.f32.mrf.mxu0
  %v125 = vadd.f32 %v43, %v124
  %v126 = vpop.f32.mrf.mxu0
  %v127 = vadd.f32 %v43, %v126
  %128 = vdwg.mxu0
  %129 = vmatpush.bf16.msra.mxu0 0
  %130 = vmatpush.bf16.msra.mxu0 0
  %131 = vmatpush.bf16.msra.mxu0 0
  %132 = vmatpush.bf16.msra.mxu0 0
  %133 = vmatpush.bf16.msra.mxu0 %v78
  %134 = vmatpush.bf16.msra.mxu0 %v76
  %135 = vmatpush.bf16.msra.mxu0 %v74
  %136 = vmatpush.bf16.msra.mxu0 %v72
  %137 = vmatmul.bf16.gmra.mxu0 %v89
  %v138 = vpop.f32.mrf.mxu0
  %v139 = vadd.f32 %v44, %v138
  %v140 = vpop.f32.mrf.mxu0
  %v141 = vadd.f32 %v44, %v140
  %142 = vmatmul.bf16.gmra.mxu0 %v92
  %v143 = vpop.f32.mrf.mxu0
  %v144 = vadd.f32 %v44, %v143
  %v145 = vpop.f32.mrf.mxu0
  %v146 = vadd.f32 %v44, %v145
  %147 = vmatmul.bf16.gmra.mxu0 %v95
  %v148 = vpop.f32.mrf.mxu0
  %v149 = vadd.f32 %v44, %v148
  %v150 = vpop.f32.mrf.mxu0
  %v151 = vadd.f32 %v44, %v150
  %152 = vmatmul.bf16.gmra.mxu0 %v98
  %v153 = vpop.f32.mrf.mxu0
  %v154 = vadd.f32 %v44, %v153
  %v155 = vpop.f32.mrf.mxu0
  %v156 = vadd.f32 %v44, %v155
  %157 = vdwg.mxu0
  %158 = vst [vmem:[#allocation2] sm:$0xff] %v110
  %159 = vst [vmem:[#allocation2 + $0x8] sm:$0xff] %v139
  %160 = vst [vmem:[#allocation2 + $0x10] sm:$0xff] %v112
  %161 = vst [vmem:[#allocation2 + $0x18] sm:$0xff] %v141
  %162 = vst [vmem:[#allocation2 + $0x20] sm:$0xff] %v115
  %163 = vst [vmem:[#allocation2 + $0x28] sm:$0xff] %v144
  %164 = vst [vmem:[#allocation2 + $0x30] sm:$0xff] %v117
  %165 = vst [vmem:[#allocation2 + $0x38] sm:$0xff] %v146
  %166 = vst [vmem:[#allocation2 + $0x40] sm:$0xff] %v120
  %167 = vst [vmem:[#allocation2 + $0x48] sm:$0xff] %v149
  %168 = vst [vmem:[#allocation2 + $0x50] sm:$0xff] %v122
  %169 = vst [vmem:[#allocation2 + $0x58] sm:$0xff] %v151
  %170 = vst [vmem:[#allocation2 + $0x60] sm:$0xff] %v125
  %171 = vst [vmem:[#allocation2 + $0x68] sm:$0xff] %v154
  %172 = vst [vmem:[#allocation2 + $0x70] sm:$0xff] %v127
  %173 = vst [vmem:[#allocation2 + $0x78] sm:$0xff] %v156
  %174 = vst.msk [vmem:[#allocation3] sm:$0xff] %vm87, 0.0
  %175 = vst.msk [vmem:[#allocation4] sm:$0xff] %vm87, 0.0
  %v176 = vld [vmem:[#allocation3] sm:$0xff]
  %v177 = vpack.c.bf16 %v176, %v176
  %v178 = vld [vmem:[%s3] sm:$0xff]
  %v179 = vld [vmem:[%s3 + $0x8] sm:$0xff]
  %v180 = vld [vmem:[%s3 + $0x10] sm:$0xff]
  %v181 = vld [vmem:[%s3 + $0x18] sm:$0xff]
  %v182 = vld [vmem:[%s3 + $0x20] sm:$0xff]
  %v183 = vld [vmem:[%s3 + $0x28] sm:$0xff]
  %v184 = vld [vmem:[%s3 + $0x30] sm:$0xff]
  %v185 = vld [vmem:[%s3 + $0x38] sm:$0xff]
  %v194 = vunpack.c.l.b16 %v178
  %v195 = vunpack.c.h.b16 %v178
  %v196 = vunpack.c.l.b16 %v179
  %v197 = vunpack.c.h.b16 %v179
  %v198 = vunpack.c.l.b16 %v180
  %v199 = vunpack.c.h.b16 %v180
  %v200 = vunpack.c.l.b16 %v181
  %v201 = vunpack.c.h.b16 %v181
  %v202 = vunpack.c.l.b16 %v182
  %v203 = vunpack.c.h.b16 %v182
  %v204 = vunpack.c.l.b16 %v183
  %v205 = vunpack.c.h.b16 %v183
  %v206 = vunpack.c.l.b16 %v184
  %v207 = vunpack.c.h.b16 %v184
  %v208 = vunpack.c.l.b16 %v185
  %v209 = vunpack.c.h.b16 %v185
  %v210 = vpack.c.b16 %v196, %v194
  %v211 = vpack.c.b16 %v197, %v195
  %v212 = vpack.c.b16 %v200, %v198
  %v213 = vpack.c.b16 %v201, %v199
  %v214 = vpack.c.b16 %v204, %v202
  %v215 = vpack.c.b16 %v205, %v203
  %v216 = vpack.c.b16 %v208, %v206
  %v217 = vpack.c.b16 %v209, %v207
  %v227 = vsel %vm87, %v177, 0
  %229 = vmatpush.bf16.msra.mxu0 0
  %230 = vmatpush.bf16.msra.mxu0 0
  %231 = vmatpush.bf16.msra.mxu0 0
  %232 = vmatpush.bf16.msra.mxu0 0
  %233 = vmatpush.bf16.msra.mxu0 %v216
  %234 = vmatpush.bf16.msra.mxu0 %v214
  %235 = vmatpush.bf16.msra.mxu0 %v212
  %236 = vmatpush.bf16.msra.mxu0 %v210
  %237 = vmatmul.bf16.gmra.mxu0 %v227
  %v238 = vpop.f32.mrf.mxu0
  %v239 = vadd.f32 0.0, %v238
  %v240 = vpop.f32.mrf.mxu0
  %241 = vdwg.mxu0
  %242 = vmatpush.bf16.msra.mxu0 0
  %243 = vmatpush.bf16.msra.mxu0 0
  %244 = vmatpush.bf16.msra.mxu0 0
  %245 = vmatpush.bf16.msra.mxu0 0
  %246 = vmatpush.bf16.msra.mxu0 %v217
  %247 = vmatpush.bf16.msra.mxu0 %v215
  %248 = vmatpush.bf16.msra.mxu0 %v213
  %249 = vmatpush.bf16.msra.mxu0 %v211
  %250 = vmatmul.bf16.gmra.mxu0 %v227
  %v251 = vpop.f32.mrf.mxu0
  %v252 = vadd.f32 0.0, %v251
  %v253 = vpop.f32.mrf.mxu0
  %254 = vdwg.mxu0
  %v255 = vld [vmem:[#allocation2] sm:$0xff]
  %v256 = vadd.f32 %v239, %v255
  %s257 = scalar_lea.vmem [#allocation2], 112
  %v258 = vld [vmem:[%s257 + $0x8] sm:$0xff]
  %v259 = vadd.f32 %v252, %v258
  %v260 = vld [vmem:[#allocation4] sm:$0xff]
  %v261 = vxor.u32 %v256, 2147483648
  %v262 = vmul.f32 %v261, 1.442695
  %v263 = vpow.pop %v262
  %v264 = vadd.f32 %v263, 1.0
  %v265 = vrcp.pop %v264
  %v266 = vmul.f32 %v264, %v265
  %v267 = vsub.f32 1.0, %v266
  %v268 = vmul.f32 %v265, %v267
  %v269 = vadd.f32 %v265, %v268
  %vm270 = vweird.f32 %v264
  %vm271 = vweird.f32 %v265
  %vm272 = vmor %vm270, %vm271
  %v273 = vsel %vm272, %v265, %v269
  %v274 = vand.u32 2147483647, %v264
  %vm275 = vcmp.eq.f32.partialorder %v274, 8.507059e+37
  %v276 = vand.u32 %v264, 2147483648
  %v277 = vor.u32 1.1754944e-38, %v276
  %v278 = vsel %vm275, %v277, %v273
  %v279 = vmul.f32 1.0, %v278
  %v280 = vtanh.pop %v256
  %282 = vrot.lane.b32.xlu0 %v260, 32
  %v283 = vpop.permute.xlu0 %282
  %v285 = vmul.f32 %v279, %v283
  %287 = vrot.lane.b32.xlu0 %v280, 64
  %v288 = vpop.permute.xlu0 %287
  %v290 = vmul.f32 %v279, %v288
  %292 = vrot.lane.b32.xlu0 %v290, 32
  %v293 = vpop.permute.xlu0 %292
  %v295 = vadd.f32 %v285, %v293
  %v296 = vtanh.pop %v295
  %298 = vrot.lane.b32.xlu0 %v296, 64
  %v299 = vpop.permute.xlu0 %298
  %v301 = vmul.f32 %v279, %v299
  %v302 = vxor.u32 %v259, 2147483648
  %v303 = vmul.f32 %v302, 1.442695
  %v304 = vpow.pop %v303
  %v305 = vadd.f32 %v304, 1.0
  %v306 = vrcp.pop %v305
  %v307 = vmul.f32 %v305, %v306
  %v308 = vsub.f32 1.0, %v307
  %v309 = vmul.f32 %v306, %v308
  %v310 = vadd.f32 %v306, %v309
  %vm311 = vweird.f32 %v305
  %vm312 = vweird.f32 %v306
  %vm313 = vmor %vm311, %vm312
  %v314 = vsel %vm313, %v306, %v310
  %v315 = vand.u32 2147483647, %v305
  %vm316 = vcmp.eq.f32.partialorder %v315, 8.507059e+37
  %v317 = vand.u32 %v305, 2147483648
  %v318 = vor.u32 1.1754944e-38, %v317
  %v319 = vsel %vm316, %v318, %v314
  %v320 = vmul.f32 1.0, %v319
  %v321 = vtanh.pop %v259
  %v322 = vmul.f32 %v320, %v260
  %324 = vrot.lane.b32.xlu0 %v321, 64
  %v325 = vpop.permute.xlu0 %324
  %v327 = vmul.f32 %v320, %v325
  %329 = vrot.lane.b32.xlu0 %v327, 32
  %v330 = vpop.permute.xlu0 %329
  %v332 = vadd.f32 %v322, %v330
  %v333 = vtanh.pop %v332
  %335 = vrot.lane.b32.xlu0 %v333, 64
  %v336 = vpop.permute.xlu0 %335
  %v338 = vmul.f32 %v320, %v336
  %v339 = vld [vmem:[%s1] sm:$0xff]
  %s340 = scalar_lea.vmem %s1, 56
  %v341 = vld [vmem:[%s340] sm:$0xff]
  %343 = vset.pattern.permute.xlu0 0
  %344 = vperm.xlu0 %343, %v339
  %v345 = vpop.permute.xlu0 %344
  %v347 = vmul.f32 %v301, %v345
  %v348 = vmul.f32 %v295, %v345
  %350 = vset.pattern.permute.xlu0 0
  %351 = vperm.xlu0 %350, %v341
  %v352 = vpop.permute.xlu0 %351
  %v354 = vmul.f32 %v338, %v352
  %v355 = vmul.f32 %v332, %v352
  %357 = vrot.lane.b32.xlu0 %v347, 32
  %v358 = vpop.permute.xlu0 %357
  %361 = vrot.lane.b32.xlu0 %v354, 64
  %v362 = vpop.permute.xlu0 %361
  %vm364 = vcmask 261120
  %v365 = vsel %vm364, %v358, %v362
  %366 = vst.msk [vmem:[#allocation3] sm:$0xff] %vm87, %v365
  %368 = vrot.lane.b32.xlu0 %v348, 96
  %v369 = vpop.permute.xlu0 %368
  %v371 = vsel %vm364, %v369, %v355
  %372 = vst.msk [vmem:[#allocation4] sm:$0xff] %vm87, %v371
  %373 = vst.msk [vmem:[#allocation5] sm:$0xff] %vm364, %v358
  %374 = vrot.lane.b32.xlu0 %v354, 32
  %v375 = vpop.permute.xlu0 %374
  %s377 = scalar_lea.vmem [#allocation6], 56
  %378 = vst.msk [vmem:[%s377] sm:$0xff] %vm364, %v375
  %v379 = vld [vmem:[#allocation3] sm:$0xff]
  %v380 = vpack.c.bf16 %v379, %v379
  %v381 = vld [vmem:[%s3] sm:$0xff]
  %v382 = vld [vmem:[%s3 + $0x8] sm:$0xff]
  %v383 = vld [vmem:[%s3 + $0x10] sm:$0xff]
  %v384 = vld [vmem:[%s3 + $0x18] sm:$0xff]
  %v385 = vld [vmem:[%s3 + $0x20] sm:$0xff]
  %v386 = vld [vmem:[%s3 + $0x28] sm:$0xff]
  %v387 = vld [vmem:[%s3 + $0x30] sm:$0xff]
  %v388 = vld [vmem:[%s3 + $0x38] sm:$0xff]
  %v397 = vunpack.c.l.b16 %v381
  %v398 = vunpack.c.h.b16 %v381
  %v399 = vunpack.c.l.b16 %v382
  %v400 = vunpack.c.h.b16 %v382
  %v401 = vunpack.c.l.b16 %v383
  %v402 = vunpack.c.h.b16 %v383
  %v403 = vunpack.c.l.b16 %v384
  %v404 = vunpack.c.h.b16 %v384
  %v405 = vunpack.c.l.b16 %v385
  %v406 = vunpack.c.h.b16 %v385
  %v407 = vunpack.c.l.b16 %v386
  %v408 = vunpack.c.h.b16 %v386
  %v409 = vunpack.c.l.b16 %v387
  %v410 = vunpack.c.h.b16 %v387
  %v411 = vunpack.c.l.b16 %v388
  %v412 = vunpack.c.h.b16 %v388
  %v413 = vpack.c.b16 %v399, %v397
  %v414 = vpack.c.b16 %v400, %v398
  %v415 = vpack.c.b16 %v403, %v401
  %v416 = vpack.c.b16 %v404, %v402
  %v417 = vpack.c.b16 %v407, %v405
  %v418 = vpack.c.b16 %v408, %v406
  %v419 = vpack.c.b16 %v411, %v409
  %v420 = vpack.c.b16 %v412, %v410
  %v430 = vsel %vm87, %v380, 0
  %432 = vmatpush.bf16.msra.mxu0 0
  %433 = vmatpush.bf16.msra.mxu0 0
  %434 = vmatpush.bf16.msra.mxu0 0
  %435 = vmatpush.bf16.msra.mxu0 0
  %436 = vmatpush.bf16.msra.mxu0 %v419
  %437 = vmatpush.bf16.msra.mxu0 %v417
  %438 = vmatpush.bf16.msra.mxu0 %v415
  %439 = vmatpush.bf16.msra.mxu0 %v413
  %440 = vmatmul.bf16.gmra.mxu0 %v430
  %v441 = vpop.f32.mrf.mxu0
  %v442 = vadd.f32 0.0, %v441
  %v443 = vpop.f32.mrf.mxu0
  %444 = vdwg.mxu0
  %445 = vmatpush.bf16.msra.mxu0 0
  %446 = vmatpush.bf16.msra.mxu0 0
  %447 = vmatpush.bf16.msra.mxu0 0
  %448 = vmatpush.bf16.msra.mxu0 0
  %449 = vmatpush.bf16.msra.mxu0 %v420
  %450 = vmatpush.bf16.msra.mxu0 %v418
  %451 = vmatpush.bf16.msra.mxu0 %v416
  %452 = vmatpush.bf16.msra.mxu0 %v414
  %453 = vmatmul.bf16.gmra.mxu0 %v430
  %v454 = vpop.f32.mrf.mxu0
  %v455 = vadd.f32 0.0, %v454
  %v456 = vpop.f32.mrf.mxu0
  %457 = vdwg.mxu0
  %s458 = scalar_lea.vmem [#allocation2], 16
  %v459 = vld [vmem:[%s458] sm:$0xff]
  %v460 = vadd.f32 %v442, %v459
  %s461 = scalar_lea.vmem [#allocation2], 96
  %v462 = vld [vmem:[%s461 + $0x8] sm:$0xff]
  %v463 = vadd.f32 %v455, %v462
  %v464 = vld [vmem:[#allocation4] sm:$0xff]
  %v465 = vxor.u32 %v460, 2147483648
  %v466 = vmul.f32 %v465, 1.442695
  %v467 = vpow.pop %v466
  %v468 = vadd.f32 %v467, 1.0
  %v469 = vrcp.pop %v468
  %v470 = vmul.f32 %v468, %v469
  %v471 = vsub.f32 1.0, %v470
  %v472 = vmul.f32 %v469, %v471
  %v473 = vadd.f32 %v469, %v472
  %vm474 = vweird.f32 %v468
  %vm475 = vweird.f32 %v469
  %vm476 = vmor %vm474, %vm475
  %v477 = vsel %vm476, %v469, %v473
  %v478 = vand.u32 2147483647, %v468
  %vm479 = vcmp.eq.f32.partialorder %v478, 8.507059e+37
  %v480 = vand.u32 %v468, 2147483648
  %v481 = vor.u32 1.1754944e-38, %v480
  %v482 = vsel %vm479, %v481, %v477
  %v483 = vmul.f32 1.0, %v482
  %v484 = vtanh.pop %v460
  %486 = vrot.lane.b32.xlu0 %v464, 32
  %v487 = vpop.permute.xlu0 %486
  %v489 = vmul.f32 %v483, %v487
  %491 = vrot.lane.b32.xlu0 %v484, 64
  %v492 = vpop.permute.xlu0 %491
  %v494 = vmul.f32 %v483, %v492
  %496 = vrot.lane.b32.xlu0 %v494, 32
  %v497 = vpop.permute.xlu0 %496
  %v499 = vadd.f32 %v489, %v497
  %v500 = vtanh.pop %v499
  %502 = vrot.lane.b32.xlu0 %v500, 64
  %v503 = vpop.permute.xlu0 %502
  %v505 = vmul.f32 %v483, %v503
  %v506 = vxor.u32 %v463, 2147483648
  %v507 = vmul.f32 %v506, 1.442695
  %v508 = vpow.pop %v507
  %v509 = vadd.f32 %v508, 1.0
  %v510 = vrcp.pop %v509
  %v511 = vmul.f32 %v509, %v510
  %v512 = vsub.f32 1.0, %v511
  %v513 = vmul.f32 %v510, %v512
  %v514 = vadd.f32 %v510, %v513
  %vm515 = vweird.f32 %v509
  %vm516 = vweird.f32 %v510
  %vm517 = vmor %vm515, %vm516
  %v518 = vsel %vm517, %v510, %v514
  %v519 = vand.u32 2147483647, %v509
  %vm520 = vcmp.eq.f32.partialorder %v519, 8.507059e+37
  %v521 = vand.u32 %v509, 2147483648
  %v522 = vor.u32 1.1754944e-38, %v521
  %v523 = vsel %vm520, %v522, %v518
  %v524 = vmul.f32 1.0, %v523
  %v525 = vtanh.pop %v463
  %v526 = vmul.f32 %v524, %v464
  %528 = vrot.lane.b32.xlu0 %v525, 64
  %v529 = vpop.permute.xlu0 %528
  %v531 = vmul.f32 %v524, %v529
  %533 = vrot.lane.b32.xlu0 %v531, 32
  %v534 = vpop.permute.xlu0 %533
  %v536 = vadd.f32 %v526, %v534
  %v537 = vtanh.pop %v536
  %539 = vrot.lane.b32.xlu0 %v537, 64
  %v540 = vpop.permute.xlu0 %539
  %v542 = vmul.f32 %v524, %v540
  %s543 = scalar_lea.vmem %s1, 8
  %v544 = vld [vmem:[%s543] sm:$0xff]
  %s545 = scalar_lea.vmem %s1, 48
  %v546 = vld [vmem:[%s545] sm:$0xff]
  %548 = vset.pattern.permute.xlu0 0
  %549 = vperm.xlu0 %548, %v544
  %v550 = vpop.permute.xlu0 %549
  %v552 = vmul.f32 %v505, %v550
  %v553 = vmul.f32 %v499, %v550
  %555 = vset.pattern.permute.xlu0 0
  %556 = vperm.xlu0 %555, %v546
  %v557 = vpop.permute.xlu0 %556
  %v559 = vmul.f32 %v542, %v557
  %v560 = vmul.f32 %v536, %v557
  %562 = vrot.lane.b32.xlu0 %v552, 32
  %v563 = vpop.permute.xlu0 %562
  %566 = vrot.lane.b32.xlu0 %v559, 64
  %v567 = vpop.permute.xlu0 %566
  %v569 = vsel %vm364, %v563, %v567
  %570 = vst.msk [vmem:[#allocation3] sm:$0xff] %vm87, %v569
  %572 = vrot.lane.b32.xlu0 %v553, 96
  %v573 = vpop.permute.xlu0 %572
  %v575 = vsel %vm364, %v573, %v560
  %576 = vst.msk [vmem:[#allocation4] sm:$0xff] %vm87, %v575
  %s577 = scalar_lea.vmem [#allocation5], 8
  %578 = vst.msk [vmem:[%s577] sm:$0xff] %vm364, %v563
  %579 = vrot.lane.b32.xlu0 %v559, 32
  %v580 = vpop.permute.xlu0 %579
  %s582 = scalar_lea.vmem [#allocation6], 48
  %583 = vst.msk [vmem:[%s582] sm:$0xff] %vm364, %v580
  %v584 = vld [vmem:[#allocation3] sm:$0xff]
  %v585 = vpack.c.bf16 %v584, %v584
  %v586 = vld [vmem:[%s3] sm:$0xff]
  %v587 = vld [vmem:[%s3 + $0x8] sm:$0xff]
  %v588 = vld [vmem:[%s3 + $0x10] sm:$0xff]
  %v589 = vld [vmem:[%s3 + $0x18] sm:$0xff]
  %v590 = vld [vmem:[%s3 + $0x20] sm:$0xff]
  %v591 = vld [vmem:[%s3 + $0x28] sm:$0xff]
  %v592 = vld [vmem:[%s3 + $0x30] sm:$0xff]
  %v593 = vld [vmem:[%s3 + $0x38] sm:$0xff]
  %v602 = vunpack.c.l.b16 %v586
  %v603 = vunpack.c.h.b16 %v586
  %v604 = vunpack.c.l.b16 %v587
  %v605 = vunpack.c.h.b16 %v587
  %v606 = vunpack.c.l.b16 %v588
  %v607 = vunpack.c.h.b16 %v588
  %v608 = vunpack.c.l.b16 %v589
  %v609 = vunpack.c.h.b16 %v589
  %v610 = vunpack.c.l.b16 %v590
  %v611 = vunpack.c.h.b16 %v590
  %v612 = vunpack.c.l.b16 %v591
  %v613 = vunpack.c.h.b16 %v591
  %v614 = vunpack.c.l.b16 %v592
  %v615 = vunpack.c.h.b16 %v592
  %v616 = vunpack.c.l.b16 %v593
  %v617 = vunpack.c.h.b16 %v593
  %v618 = vpack.c.b16 %v604, %v602
  %v619 = vpack.c.b16 %v605, %v603
  %v620 = vpack.c.b16 %v608, %v606
  %v621 = vpack.c.b16 %v609, %v607
  %v622 = vpack.c.b16 %v612, %v610
  %v623 = vpack.c.b16 %v613, %v611
  %v624 = vpack.c.b16 %v616, %v614
  %v625 = vpack.c.b16 %v617, %v615
  %v635 = vsel %vm87, %v585, 0
  %637 = vmatpush.bf16.msra.mxu0 0
  %638 = vmatpush.bf16.msra.mxu0 0
  %639 = vmatpush.bf16.msra.mxu0 0
  %640 = vmatpush.bf16.msra.mxu0 0
  %641 = vmatpush.bf16.msra.mxu0 %v624
  %642 = vmatpush.bf16.msra.mxu0 %v622
  %643 = vmatpush.bf16.msra.mxu0 %v620
  %644 = vmatpush.bf16.msra.mxu0 %v618
  %645 = vmatmul.bf16.gmra.mxu0 %v635
  %v646 = vpop.f32.mrf.mxu0
  %v647 = vadd.f32 0.0, %v646
  %v648 = vpop.f32.mrf.mxu0
  %649 = vdwg.mxu0
  %650 = vmatpush.bf16.msra.mxu0 0
  %651 = vmatpush.bf16.msra.mxu0 0
  %652 = vmatpush.bf16.msra.mxu0 0
  %653 = vmatpush.bf16.msra.mxu0 0
  %654 = vmatpush.bf16.msra.mxu0 %v625
  %655 = vmatpush.bf16.msra.mxu0 %v623
  %656 = vmatpush.bf16.msra.mxu0 %v621
  %657 = vmatpush.bf16.msra.mxu0 %v619
  %658 = vmatmul.bf16.gmra.mxu0 %v635
  %v659 = vpop.f32.mrf.mxu0
  %v660 = vadd.f32 0.0, %v659
  %v661 = vpop.f32.mrf.mxu0
  %662 = vdwg.mxu0
  %s663 = scalar_lea.vmem [#allocation2], 32
  %v664 = vld [vmem:[%s663] sm:$0xff]
  %v665 = vadd.f32 %v647, %v664
  %s666 = scalar_lea.vmem [#allocation2], 80
  %v667 = vld [vmem:[%s666 + $0x8] sm:$0xff]
  %v668 = vadd.f32 %v660, %v667
  %v669 = vld [vmem:[#allocation4] sm:$0xff]
  %v670 = vxor.u32 %v665, 2147483648
  %v671 = vmul.f32 %v670, 1.442695
  %v672 = vpow.pop %v671
  %v673 = vadd.f32 %v672, 1.0
  %v674 = vrcp.pop %v673
  %v675 = vmul.f32 %v673, %v674
  %v676 = vsub.f32 1.0, %v675
  %v677 = vmul.f32 %v674, %v676
  %v678 = vadd.f32 %v674, %v677
  %vm679 = vweird.f32 %v673
  %vm680 = vweird.f32 %v674
  %vm681 = vmor %vm679, %vm680
  %v682 = vsel %vm681, %v674, %v678
  %v683 = vand.u32 2147483647, %v673
  %vm684 = vcmp.eq.f32.partialorder %v683, 8.507059e+37
  %v685 = vand.u32 %v673, 2147483648
  %v686 = vor.u32 1.1754944e-38, %v685
  %v687 = vsel %vm684, %v686, %v682
  %v688 = vmul.f32 1.0, %v687
  %v689 = vtanh.pop %v665
  %691 = vrot.lane.b32.xlu0 %v669, 32
  %v692 = vpop.permute.xlu0 %691
  %v694 = vmul.f32 %v688, %v692
  %696 = vrot.lane.b32.xlu0 %v689, 64
  %v697 = vpop.permute.xlu0 %696
  %v699 = vmul.f32 %v688, %v697
  %701 = vrot.lane.b32.xlu0 %v699, 32
  %v702 = vpop.permute.xlu0 %701
  %v704 = vadd.f32 %v694, %v702
  %v705 = vtanh.pop %v704
  %707 = vrot.lane.b32.xlu0 %v705, 64
  %v708 = vpop.permute.xlu0 %707
  %v710 = vmul.f32 %v688, %v708
  %v711 = vxor.u32 %v668, 2147483648
  %v712 = vmul.f32 %v711, 1.442695
  %v713 = vpow.pop %v712
  %v714 = vadd.f32 %v713, 1.0
  %v715 = vrcp.pop %v714
  %v716 = vmul.f32 %v714, %v715
  %v717 = vsub.f32 1.0, %v716
  %v718 = vmul.f32 %v715, %v717
  %v719 = vadd.f32 %v715, %v718
  %vm720 = vweird.f32 %v714
  %vm721 = vweird.f32 %v715
  %vm722 = vmor %vm720, %vm721
  %v723 = vsel %vm722, %v715, %v719
  %v724 = vand.u32 2147483647, %v714
  %vm725 = vcmp.eq.f32.partialorder %v724, 8.507059e+37
  %v726 = vand.u32 %v714, 2147483648
  %v727 = vor.u32 1.1754944e-38, %v726
  %v728 = vsel %vm725, %v727, %v723
  %v729 = vmul.f32 1.0, %v728
  %v730 = vtanh.pop %v668
  %v731 = vmul.f32 %v729, %v669
  %733 = vrot.lane.b32.xlu0 %v730, 64
  %v734 = vpop.permute.xlu0 %733
  %v736 = vmul.f32 %v729, %v734
  %738 = vrot.lane.b32.xlu0 %v736, 32
  %v739 = vpop.permute.xlu0 %738
  %v741 = vadd.f32 %v731, %v739
  %v742 = vtanh.pop %v741
  %744 = vrot.lane.b32.xlu0 %v742, 64
  %v745 = vpop.permute.xlu0 %744
  %v747 = vmul.f32 %v729, %v745
  %s748 = scalar_lea.vmem %s1, 16
  %v749 = vld [vmem:[%s748] sm:$0xff]
  %s750 = scalar_lea.vmem %s1, 40
  %v751 = vld [vmem:[%s750] sm:$0xff]
  %753 = vset.pattern.permute.xlu0 0
  %754 = vperm.xlu0 %753, %v749
  %v755 = vpop.permute.xlu0 %754
  %v757 = vmul.f32 %v710, %v755
  %v758 = vmul.f32 %v704, %v755
  %760 = vset.pattern.permute.xlu0 0
  %761 = vperm.xlu0 %760, %v751
  %v762 = vpop.permute.xlu0 %761
  %v764 = vmul.f32 %v747, %v762
  %v765 = vmul.f32 %v741, %v762
  %767 = vrot.lane.b32.xlu0 %v757, 32
  %v768 = vpop.permute.xlu0 %767
  %771 = vrot.lane.b32.xlu0 %v764, 64
  %v772 = vpop.permute.xlu0 %771
  %v774 = vsel %vm364, %v768, %v772
  %775 = vst.msk [vmem:[#allocation3] sm:$0xff] %vm87, %v774
  %777 = vrot.lane.b32.xlu0 %v758, 96
  %v778 = vpop.permute.xlu0 %777
  %v780 = vsel %vm364, %v778, %v765
  %781 = vst.msk [vmem:[#allocation4] sm:$0xff] %vm87, %v780
  %s782 = scalar_lea.vmem [#allocation5], 16
  %783 = vst.msk [vmem:[%s782] sm:$0xff] %vm364, %v768
  %784 = vrot.lane.b32.xlu0 %v764, 32
  %v785 = vpop.permute.xlu0 %784
  %s787 = scalar_lea.vmem [#allocation6], 40
  %788 = vst.msk [vmem:[%s787] sm:$0xff] %vm364, %v785
  %v789 = vld [vmem:[#allocation3] sm:$0xff]
  %v790 = vpack.c.bf16 %v789, %v789
  %v791 = vld [vmem:[%s3] sm:$0xff]
  %v792 = vld [vmem:[%s3 + $0x8] sm:$0xff]
  %v793 = vld [vmem:[%s3 + $0x10] sm:$0xff]
  %v794 = vld [vmem:[%s3 + $0x18] sm:$0xff]
  %v795 = vld [vmem:[%s3 + $0x20] sm:$0xff]
  %v796 = vld [vmem:[%s3 + $0x28] sm:$0xff]
  %v797 = vld [vmem:[%s3 + $0x30] sm:$0xff]
  %v798 = vld [vmem:[%s3 + $0x38] sm:$0xff]
  %v807 = vunpack.c.l.b16 %v791
  %v808 = vunpack.c.h.b16 %v791
  %v809 = vunpack.c.l.b16 %v792
  %v810 = vunpack.c.h.b16 %v792
  %v811 = vunpack.c.l.b16 %v793
  %v812 = vunpack.c.h.b16 %v793
  %v813 = vunpack.c.l.b16 %v794
  %v814 = vunpack.c.h.b16 %v794
  %v815 = vunpack.c.l.b16 %v795
  %v816 = vunpack.c.h.b16 %v795
  %v817 = vunpack.c.l.b16 %v796
  %v818 = vunpack.c.h.b16 %v796
  %v819 = vunpack.c.l.b16 %v797
  %v820 = vunpack.c.h.b16 %v797
  %v821 = vunpack.c.l.b16 %v798
  %v822 = vunpack.c.h.b16 %v798
  %v823 = vpack.c.b16 %v809, %v807
  %v824 = vpack.c.b16 %v810, %v808
  %v825 = vpack.c.b16 %v813, %v811
  %v826 = vpack.c.b16 %v814, %v812
  %v827 = vpack.c.b16 %v817, %v815
  %v828 = vpack.c.b16 %v818, %v816
  %v829 = vpack.c.b16 %v821, %v819
  %v830 = vpack.c.b16 %v822, %v820
  %v840 = vsel %vm87, %v790, 0
  %842 = vmatpush.bf16.msra.mxu0 0
  %843 = vmatpush.bf16.msra.mxu0 0
  %844 = vmatpush.bf16.msra.mxu0 0
  %845 = vmatpush.bf16.msra.mxu0 0
  %846 = vmatpush.bf16.msra.mxu0 %v829
  %847 = vmatpush.bf16.msra.mxu0 %v827
  %848 = vmatpush.bf16.msra.mxu0 %v825
  %849 = vmatpush.bf16.msra.mxu0 %v823
  %850 = vmatmul.bf16.gmra.mxu0 %v840
  %v851 = vpop.f32.mrf.mxu0
  %v852 = vadd.f32 0.0, %v851
  %v853 = vpop.f32.mrf.mxu0
  %854 = vdwg.mxu0
  %855 = vmatpush.bf16.msra.mxu0 0
  %856 = vmatpush.bf16.msra.mxu0 0
  %857 = vmatpush.bf16.msra.mxu0 0
  %858 = vmatpush.bf16.msra.mxu0 0
  %859 = vmatpush.bf16.msra.mxu0 %v830
  %860 = vmatpush.bf16.msra.mxu0 %v828
  %861 = vmatpush.bf16.msra.mxu0 %v826
  %862 = vmatpush.bf16.msra.mxu0 %v824
  %863 = vmatmul.bf16.gmra.mxu0 %v840
  %v864 = vpop.f32.mrf.mxu0
  %v865 = vadd.f32 0.0, %v864
  %v866 = vpop.f32.mrf.mxu0
  %867 = vdwg.mxu0
  %s868 = scalar_lea.vmem [#allocation2], 48
  %v869 = vld [vmem:[%s868] sm:$0xff]
  %v870 = vadd.f32 %v852, %v869
  %s871 = scalar_lea.vmem [#allocation2], 64
  %v872 = vld [vmem:[%s871 + $0x8] sm:$0xff]
  %v873 = vadd.f32 %v865, %v872
  %v874 = vld [vmem:[#allocation4] sm:$0xff]
  %v875 = vxor.u32 %v870, 2147483648
  %v876 = vmul.f32 %v875, 1.442695
  %v877 = vpow.pop %v876
  %v878 = vadd.f32 %v877, 1.0
  %v879 = vrcp.pop %v878
  %v880 = vmul.f32 %v878, %v879
  %v881 = vsub.f32 1.0, %v880
  %v882 = vmul.f32 %v879, %v881
  %v883 = vadd.f32 %v879, %v882
  %vm884 = vweird.f32 %v878
  %vm885 = vweird.f32 %v879
  %vm886 = vmor %vm884, %vm885
  %v887 = vsel %vm886, %v879, %v883
  %v888 = vand.u32 2147483647, %v878
  %vm889 = vcmp.eq.f32.partialorder %v888, 8.507059e+37
  %v890 = vand.u32 %v878, 2147483648
  %v891 = vor.u32 1.1754944e-38, %v890
  %v892 = vsel %vm889, %v891, %v887
  %v893 = vmul.f32 1.0, %v892
  %v894 = vtanh.pop %v870
  %896 = vrot.lane.b32.xlu0 %v874, 32
  %v897 = vpop.permute.xlu0 %896
  %v899 = vmul.f32 %v893, %v897
  %901 = vrot.lane.b32.xlu0 %v894, 64
  %v902 = vpop.permute.xlu0 %901
  %v904 = vmul.f32 %v893, %v902
  %906 = vrot.lane.b32.xlu0 %v904, 32
  %v907 = vpop.permute.xlu0 %906
  %v909 = vadd.f32 %v899, %v907
  %v910 = vtanh.pop %v909
  %912 = vrot.lane.b32.xlu0 %v910, 64
  %v913 = vpop.permute.xlu0 %912
  %v915 = vmul.f32 %v893, %v913
  %v916 = vxor.u32 %v873, 2147483648
  %v917 = vmul.f32 %v916, 1.442695
  %v918 = vpow.pop %v917
  %v919 = vadd.f32 %v918, 1.0
  %v920 = vrcp.pop %v919
  %v921 = vmul.f32 %v919, %v920
  %v922 = vsub.f32 1.0, %v921
  %v923 = vmul.f32 %v920, %v922
  %v924 = vadd.f32 %v920, %v923
  %vm925 = vweird.f32 %v919
  %vm926 = vweird.f32 %v920
  %vm927 = vmor %vm925, %vm926
  %v928 = vsel %vm927, %v920, %v924
  %v929 = vand.u32 2147483647, %v919
  %vm930 = vcmp.eq.f32.partialorder %v929, 8.507059e+37
  %v931 = vand.u32 %v919, 2147483648
  %v932 = vor.u32 1.1754944e-38, %v931
  %v933 = vsel %vm930, %v932, %v928
  %v934 = vmul.f32 1.0, %v933
  %v935 = vtanh.pop %v873
  %v936 = vmul.f32 %v934, %v874
  %938 = vrot.lane.b32.xlu0 %v935, 64
  %v939 = vpop.permute.xlu0 %938
  %v941 = vmul.f32 %v934, %v939
  %943 = vrot.lane.b32.xlu0 %v941, 32
  %v944 = vpop.permute.xlu0 %943
  %v946 = vadd.f32 %v936, %v944
  %v947 = vtanh.pop %v946
  %949 = vrot.lane.b32.xlu0 %v947, 64
  %v950 = vpop.permute.xlu0 %949
  %v952 = vmul.f32 %v934, %v950
  %s953 = scalar_lea.vmem %s1, 24
  %v954 = vld [vmem:[%s953] sm:$0xff]
  %s955 = scalar_lea.vmem %s1, 32
  %v956 = vld [vmem:[%s955] sm:$0xff]
  %958 = vset.pattern.permute.xlu0 0
  %959 = vperm.xlu0 %958, %v954
  %v960 = vpop.permute.xlu0 %959
  %v962 = vmul.f32 %v915, %v960
  %v963 = vmul.f32 %v909, %v960
  %965 = vset.pattern.permute.xlu0 0
  %966 = vperm.xlu0 %965, %v956
  %v967 = vpop.permute.xlu0 %966
  %v969 = vmul.f32 %v952, %v967
  %v970 = vmul.f32 %v946, %v967
  %972 = vrot.lane.b32.xlu0 %v962, 32
  %v973 = vpop.permute.xlu0 %972
  %976 = vrot.lane.b32.xlu0 %v969, 64
  %v977 = vpop.permute.xlu0 %976
  %v979 = vsel %vm364, %v973, %v977
  %980 = vst.msk [vmem:[#allocation3] sm:$0xff] %vm87, %v979
  %982 = vrot.lane.b32.xlu0 %v963, 96
  %v983 = vpop.permute.xlu0 %982
  %v985 = vsel %vm364, %v983, %v970
  %986 = vst.msk [vmem:[#allocation4] sm:$0xff] %vm87, %v985
  %s987 = scalar_lea.vmem [#allocation5], 24
  %988 = vst.msk [vmem:[%s987] sm:$0xff] %vm364, %v973
  %989 = vrot.lane.b32.xlu0 %v969, 32
  %v990 = vpop.permute.xlu0 %989
  %s992 = scalar_lea.vmem [#allocation6], 32
  %993 = vst.msk [vmem:[%s992] sm:$0xff] %vm364, %v990
  %v994 = vld [vmem:[#allocation3] sm:$0xff]
  %v995 = vpack.c.bf16 %v994, %v994
  %v996 = vld [vmem:[%s3] sm:$0xff]
  %v997 = vld [vmem:[%s3 + $0x8] sm:$0xff]
  %v998 = vld [vmem:[%s3 + $0x10] sm:$0xff]
  %v999 = vld [vmem:[%s3 + $0x18] sm:$0xff]
  %v1000 = vld [vmem:[%s3 + $0x20] sm:$0xff]
  %v1001 = vld [vmem:[%s3 + $0x28] sm:$0xff]
  %v1002 = vld [vmem:[%s3 + $0x30] sm:$0xff]
  %v1003 = vld [vmem:[%s3 + $0x38] sm:$0xff]
  %v1012 = vunpack.c.l.b16 %v996
  %v1013 = vunpack.c.h.b16 %v996
  %v1014 = vunpack.c.l.b16 %v997
  %v1015 = vunpack.c.h.b16 %v997
  %v1016 = vunpack.c.l.b16 %v998
  %v1017 = vunpack.c.h.b16 %v998
  %v1018 = vunpack.c.l.b16 %v999
  %v1019 = vunpack.c.h.b16 %v999
  %v1020 = vunpack.c.l.b16 %v1000
  %v1021 = vunpack.c.h.b16 %v1000
  %v1022 = vunpack.c.l.b16 %v1001
  %v1023 = vunpack.c.h.b16 %v1001
  %v1024 = vunpack.c.l.b16 %v1002
  %v1025 = vunpack.c.h.b16 %v1002
  %v1026 = vunpack.c.l.b16 %v1003
  %v1027 = vunpack.c.h.b16 %v1003
  %v1028 = vpack.c.b16 %v1014, %v1012
  %v1029 = vpack.c.b16 %v1015, %v1013
  %v1030 = vpack.c.b16 %v1018, %v1016
  %v1031 = vpack.c.b16 %v1019, %v1017
  %v1032 = vpack.c.b16 %v1022, %v1020
  %v1033 = vpack.c.b16 %v1023, %v1021
  %v1034 = vpack.c.b16 %v1026, %v1024
  %v1035 = vpack.c.b16 %v1027, %v1025
  %v1045 = vsel %vm87, %v995, 0
  %1047 = vmatpush.bf16.msra.mxu0 0
  %1048 = vmatpush.bf16.msra.mxu0 0
  %1049 = vmatpush.bf16.msra.mxu0 0
  %1050 = vmatpush.bf16.msra.mxu0 0
  %1051 = vmatpush.bf16.msra.mxu0 %v1034
  %1052 = vmatpush.bf16.msra.mxu0 %v1032
  %1053 = vmatpush.bf16.msra.mxu0 %v1030
  %1054 = vmatpush.bf16.msra.mxu0 %v1028
  %1055 = vmatmul.bf16.gmra.mxu0 %v1045
  %v1056 = vpop.f32.mrf.mxu0
  %v1057 = vadd.f32 0.0, %v1056
  %v1058 = vpop.f32.mrf.mxu0
  %1059 = vdwg.mxu0
  %1060 = vmatpush.bf16.msra.mxu0 0
  %1061 = vmatpush.bf16.msra.mxu0 0
  %1062 = vmatpush.bf16.msra.mxu0 0
  %1063 = vmatpush.bf16.msra.mxu0 0
  %1064 = vmatpush.bf16.msra.mxu0 %v1035
  %1065 = vmatpush.bf16.msra.mxu0 %v1033
  %1066 = vmatpush.bf16.msra.mxu0 %v1031
  %1067 = vmatpush.bf16.msra.mxu0 %v1029
  %1068 = vmatmul.bf16.gmra.mxu0 %v1045
  %v1069 = vpop.f32.mrf.mxu0
  %v1070 = vadd.f32 0.0, %v1069
  %v1071 = vpop.f32.mrf.mxu0
  %1072 = vdwg.mxu0
  %v1073 = vld [vmem:[%s871] sm:$0xff]
  %v1074 = vadd.f32 %v1057, %v1073
  %v1075 = vld [vmem:[%s868 + $0x8] sm:$0xff]
  %v1076 = vadd.f32 %v1070, %v1075
  %v1077 = vld [vmem:[#allocation4] sm:$0xff]
  %v1078 = vxor.u32 %v1074, 2147483648
  %v1079 = vmul.f32 %v1078, 1.442695
  %v1080 = vpow.pop %v1079
  %v1081 = vadd.f32 %v1080, 1.0
  %v1082 = vrcp.pop %v1081
  %v1083 = vmul.f32 %v1081, %v1082
  %v1084 = vsub.f32 1.0, %v1083
  %v1085 = vmul.f32 %v1082, %v1084
  %v1086 = vadd.f32 %v1082, %v1085
  %vm1087 = vweird.f32 %v1081
  %vm1088 = vweird.f32 %v1082
  %vm1089 = vmor %vm1087, %vm1088
  %v1090 = vsel %vm1089, %v1082, %v1086
  %v1091 = vand.u32 2147483647, %v1081
  %vm1092 = vcmp.eq.f32.partialorder %v1091, 8.507059e+37
  %v1093 = vand.u32 %v1081, 2147483648
  %v1094 = vor.u32 1.1754944e-38, %v1093
  %v1095 = vsel %vm1092, %v1094, %v1090
  %v1096 = vmul.f32 1.0, %v1095
  %v1097 = vtanh.pop %v1074
  %1099 = vrot.lane.b32.xlu0 %v1077, 32
  %v1100 = vpop.permute.xlu0 %1099
  %v1102 = vmul.f32 %v1096, %v1100
  %1104 = vrot.lane.b32.xlu0 %v1097, 64
  %v1105 = vpop.permute.xlu0 %1104
  %v1107 = vmul.f32 %v1096, %v1105
  %1109 = vrot.lane.b32.xlu0 %v1107, 32
  %v1110 = vpop.permute.xlu0 %1109
  %v1112 = vadd.f32 %v1102, %v1110
  %v1113 = vtanh.pop %v1112
  %1115 = vrot.lane.b32.xlu0 %v1113, 64
  %v1116 = vpop.permute.xlu0 %1115
  %v1118 = vmul.f32 %v1096, %v1116
  %v1119 = vxor.u32 %v1076, 2147483648
  %v1120 = vmul.f32 %v1119, 1.442695
  %v1121 = vpow.pop %v1120
  %v1122 = vadd.f32 %v1121, 1.0
  %v1123 = vrcp.pop %v1122
  %v1124 = vmul.f32 %v1122, %v1123
  %v1125 = vsub.f32 1.0, %v1124
  %v1126 = vmul.f32 %v1123, %v1125
  %v1127 = vadd.f32 %v1123, %v1126
  %vm1128 = vweird.f32 %v1122
  %vm1129 = vweird.f32 %v1123
  %vm1130 = vmor %vm1128, %vm1129
  %v1131 = vsel %vm1130, %v1123, %v1127
  %v1132 = vand.u32 2147483647, %v1122
  %vm1133 = vcmp.eq.f32.partialorder %v1132, 8.507059e+37
  %v1134 = vand.u32 %v1122, 2147483648
  %v1135 = vor.u32 1.1754944e-38, %v1134
  %v1136 = vsel %vm1133, %v1135, %v1131
  %v1137 = vmul.f32 1.0, %v1136
  %v1138 = vtanh.pop %v1076
  %v1139 = vmul.f32 %v1137, %v1077
  %1141 = vrot.lane.b32.xlu0 %v1138, 64
  %v1142 = vpop.permute.xlu0 %1141
  %v1144 = vmul.f32 %v1137, %v1142
  %1146 = vrot.lane.b32.xlu0 %v1144, 32
  %v1147 = vpop.permute.xlu0 %1146
  %v1149 = vadd.f32 %v1139, %v1147
  %v1150 = vtanh.pop %v1149
  %1152 = vrot.lane.b32.xlu0 %v1150, 64
  %v1153 = vpop.permute.xlu0 %1152
  %v1155 = vmul.f32 %v1137, %v1153
  %v1156 = vld [vmem:[%s955] sm:$0xff]
  %v1157 = vld [vmem:[%s953] sm:$0xff]
  %1159 = vset.pattern.permute.xlu0 0
  %1160 = vperm.xlu0 %1159, %v1156
  %v1161 = vpop.permute.xlu0 %1160
  %v1163 = vmul.f32 %v1118, %v1161
  %v1164 = vmul.f32 %v1112, %v1161
  %1166 = vset.pattern.permute.xlu0 0
  %1167 = vperm.xlu0 %1166, %v1157
  %v1168 = vpop.permute.xlu0 %1167
  %v1170 = vmul.f32 %v1155, %v1168
  %v1171 = vmul.f32 %v1149, %v1168
  %1173 = vrot.lane.b32.xlu0 %v1163, 32
  %v1174 = vpop.permute.xlu0 %1173
  %1177 = vrot.lane.b32.xlu0 %v1170, 64
  %v1178 = vpop.permute.xlu0 %1177
  %v1180 = vsel %vm364, %v1174, %v1178
  %1181 = vst.msk [vmem:[#allocation3] sm:$0xff] %vm87, %v1180
  %1183 = vrot.lane.b32.xlu0 %v1164, 96
  %v1184 = vpop.permute.xlu0 %1183
  %v1186 = vsel %vm364, %v1184, %v1171
  %1187 = vst.msk [vmem:[#allocation4] sm:$0xff] %vm87, %v1186
  %s1188 = scalar_lea.vmem [#allocation5], 32
  %1189 = vst.msk [vmem:[%s1188] sm:$0xff] %vm364, %v1174
  %1190 = vrot.lane.b32.xlu0 %v1170, 32
  %v1191 = vpop.permute.xlu0 %1190
  %s1193 = scalar_lea.vmem [#allocation6], 24
  %1194 = vst.msk [vmem:[%s1193] sm:$0xff] %vm364, %v1191
  %v1195 = vld [vmem:[#allocation3] sm:$0xff]
  %v1196 = vpack.c.bf16 %v1195, %v1195
  %v1197 = vld [vmem:[%s3] sm:$0xff]
  %v1198 = vld [vmem:[%s3 + $0x8] sm:$0xff]
  %v1199 = vld [vmem:[%s3 + $0x10] sm:$0xff]
  %v1200 = vld [vmem:[%s3 + $0x18] sm:$0xff]
  %v1201 = vld [vmem:[%s3 + $0x20] sm:$0xff]
  %v1202 = vld [vmem:[%s3 + $0x28] sm:$0xff]
  %v1203 = vld [vmem:[%s3 + $0x30] sm:$0xff]
  %v1204 = vld [vmem:[%s3 + $0x38] sm:$0xff]
  %v1213 = vunpack.c.l.b16 %v1197
  %v1214 = vunpack.c.h.b16 %v1197
  %v1215 = vunpack.c.l.b16 %v1198
  %v1216 = vunpack.c.h.b16 %v1198
  %v1217 = vunpack.c.l.b16 %v1199
  %v1218 = vunpack.c.h.b16 %v1199
  %v1219 = vunpack.c.l.b16 %v1200
  %v1220 = vunpack.c.h.b16 %v1200
  %v1221 = vunpack.c.l.b16 %v1201
  %v1222 = vunpack.c.h.b16 %v1201
  %v1223 = vunpack.c.l.b16 %v1202
  %v1224 = vunpack.c.h.b16 %v1202
  %v1225 = vunpack.c.l.b16 %v1203
  %v1226 = vunpack.c.h.b16 %v1203
  %v1227 = vunpack.c.l.b16 %v1204
  %v1228 = vunpack.c.h.b16 %v1204
  %v1229 = vpack.c.b16 %v1215, %v1213
  %v1230 = vpack.c.b16 %v1216, %v1214
  %v1231 = vpack.c.b16 %v1219, %v1217
  %v1232 = vpack.c.b16 %v1220, %v1218
  %v1233 = vpack.c.b16 %v1223, %v1221
  %v1234 = vpack.c.b16 %v1224, %v1222
  %v1235 = vpack.c.b16 %v1227, %v1225
  %v1236 = vpack.c.b16 %v1228, %v1226
  %v1246 = vsel %vm87, %v1196, 0
  %1248 = vmatpush.bf16.msra.mxu0 0
  %1249 = vmatpush.bf16.msra.mxu0 0
  %1250 = vmatpush.bf16.msra.mxu0 0
  %1251 = vmatpush.bf16.msra.mxu0 0
  %1252 = vmatpush.bf16.msra.mxu0 %v1235
  %1253 = vmatpush.bf16.msra.mxu0 %v1233
  %1254 = vmatpush.bf16.msra.mxu0 %v1231
  %1255 = vmatpush.bf16.msra.mxu0 %v1229
  %1256 = vmatmul.bf16.gmra.mxu0 %v1246
  %v1257 = vpop.f32.mrf.mxu0
  %v1258 = vadd.f32 0.0, %v1257
  %v1259 = vpop.f32.mrf.mxu0
  %1260 = vdwg.mxu0
  %1261 = vmatpush.bf16.msra.mxu0 0
  %1262 = vmatpush.bf16.msra.mxu0 0
  %1263 = vmatpush.bf16.msra.mxu0 0
  %1264 = vmatpush.bf16.msra.mxu0 0
  %1265 = vmatpush.bf16.msra.mxu0 %v1236
  %1266 = vmatpush.bf16.msra.mxu0 %v1234
  %1267 = vmatpush.bf16.msra.mxu0 %v1232
  %1268 = vmatpush.bf16.msra.mxu0 %v1230
  %1269 = vmatmul.bf16.gmra.mxu0 %v1246
  %v1270 = vpop.f32.mrf.mxu0
  %v1271 = vadd.f32 0.0, %v1270
  %v1272 = vpop.f32.mrf.mxu0
  %1273 = vdwg.mxu0
  %v1274 = vld [vmem:[%s666] sm:$0xff]
  %v1275 = vadd.f32 %v1258, %v1274
  %v1276 = vld [vmem:[%s663 + $0x8] sm:$0xff]
  %v1277 = vadd.f32 %v1271, %v1276
  %v1278 = vld [vmem:[#allocation4] sm:$0xff]
  %v1279 = vxor.u32 %v1275, 2147483648
  %v1280 = vmul.f32 %v1279, 1.442695
  %v1281 = vpow.pop %v1280
  %v1282 = vadd.f32 %v1281, 1.0
  %v1283 = vrcp.pop %v1282
  %v1284 = vmul.f32 %v1282, %v1283
  %v1285 = vsub.f32 1.0, %v1284
  %v1286 = vmul.f32 %v1283, %v1285
  %v1287 = vadd.f32 %v1283, %v1286
  %vm1288 = vweird.f32 %v1282
  %vm1289 = vweird.f32 %v1283
  %vm1290 = vmor %vm1288, %vm1289
  %v1291 = vsel %vm1290, %v1283, %v1287
  %v1292 = vand.u32 2147483647, %v1282
  %vm1293 = vcmp.eq.f32.partialorder %v1292, 8.507059e+37
  %v1294 = vand.u32 %v1282, 2147483648
  %v1295 = vor.u32 1.1754944e-38, %v1294
  %v1296 = vsel %vm1293, %v1295, %v1291
  %v1297 = vmul.f32 1.0, %v1296
  %v1298 = vtanh.pop %v1275
  %1300 = vrot.lane.b32.xlu0 %v1278, 32
  %v1301 = vpop.permute.xlu0 %1300
  %v1303 = vmul.f32 %v1297, %v1301
  %1305 = vrot.lane.b32.xlu0 %v1298, 64
  %v1306 = vpop.permute.xlu0 %1305
  %v1308 = vmul.f32 %v1297, %v1306
  %1310 = vrot.lane.b32.xlu0 %v1308, 32
  %v1311 = vpop.permute.xlu0 %1310
  %v1313 = vadd.f32 %v1303, %v1311
  %v1314 = vtanh.pop %v1313
  %1316 = vrot.lane.b32.xlu0 %v1314, 64
  %v1317 = vpop.permute.xlu0 %1316
  %v1319 = vmul.f32 %v1297, %v1317
  %v1320 = vxor.u32 %v1277, 2147483648
  %v1321 = vmul.f32 %v1320, 1.442695
  %v1322 = vpow.pop %v1321
  %v1323 = vadd.f32 %v1322, 1.0
  %v1324 = vrcp.pop %v1323
  %v1325 = vmul.f32 %v1323, %v1324
  %v1326 = vsub.f32 1.0, %v1325
  %v1327 = vmul.f32 %v1324, %v1326
  %v1328 = vadd.f32 %v1324, %v1327
  %vm1329 = vweird.f32 %v1323
  %vm1330 = vweird.f32 %v1324
  %vm1331 = vmor %vm1329, %vm1330
  %v1332 = vsel %vm1331, %v1324, %v1328
  %v1333 = vand.u32 2147483647, %v1323
  %vm1334 = vcmp.eq.f32.partialorder %v1333, 8.507059e+37
  %v1335 = vand.u32 %v1323, 2147483648
  %v1336 = vor.u32 1.1754944e-38, %v1335
  %v1337 = vsel %vm1334, %v1336, %v1332
  %v1338 = vmul.f32 1.0, %v1337
  %v1339 = vtanh.pop %v1277
  %v1340 = vmul.f32 %v1338, %v1278
  %1342 = vrot.lane.b32.xlu0 %v1339, 64
  %v1343 = vpop.permute.xlu0 %1342
  %v1345 = vmul.f32 %v1338, %v1343
  %1347 = vrot.lane.b32.xlu0 %v1345, 32
  %v1348 = vpop.permute.xlu0 %1347
  %v1350 = vadd.f32 %v1340, %v1348
  %v1351 = vtanh.pop %v1350
  %1353 = vrot.lane.b32.xlu0 %v1351, 64
  %v1354 = vpop.permute.xlu0 %1353
  %v1356 = vmul.f32 %v1338, %v1354
  %v1357 = vld [vmem:[%s750] sm:$0xff]
  %v1358 = vld [vmem:[%s748] sm:$0xff]
  %1360 = vset.pattern.permute.xlu0 0
  %1361 = vperm.xlu0 %1360, %v1357
  %v1362 = vpop.permute.xlu0 %1361
  %v1364 = vmul.f32 %v1319, %v1362
  %v1365 = vmul.f32 %v1313, %v1362
  %1367 = vset.pattern.permute.xlu0 0
  %1368 = vperm.xlu0 %1367, %v1358
  %v1369 = vpop.permute.xlu0 %1368
  %v1371 = vmul.f32 %v1356, %v1369
  %v1372 = vmul.f32 %v1350, %v1369
  %1374 = vrot.lane.b32.xlu0 %v1364, 32
  %v1375 = vpop.permute.xlu0 %1374
  %1378 = vrot.lane.b32.xlu0 %v1371, 64
  %v1379 = vpop.permute.xlu0 %1378
  %v1381 = vsel %vm364, %v1375, %v1379
  %1382 = vst.msk [vmem:[#allocation3] sm:$0xff] %vm87, %v1381
  %1384 = vrot.lane.b32.xlu0 %v1365, 96
  %v1385 = vpop.permute.xlu0 %1384
  %v1387 = vsel %vm364, %v1385, %v1372
  %1388 = vst.msk [vmem:[#allocation4] sm:$0xff] %vm87, %v1387
  %s1389 = scalar_lea.vmem [#allocation5], 40
  %1390 = vst.msk [vmem:[%s1389] sm:$0xff] %vm364, %v1375
  %1391 = vrot.lane.b32.xlu0 %v1371, 32
  %v1392 = vpop.permute.xlu0 %1391
  %s1394 = scalar_lea.vmem [#allocation6], 16
  %1395 = vst.msk [vmem:[%s1394] sm:$0xff] %vm364, %v1392
  %v1396 = vld [vmem:[#allocation3] sm:$0xff]
  %v1397 = vpack.c.bf16 %v1396, %v1396
  %v1398 = vld [vmem:[%s3] sm:$0xff]
  %v1399 = vld [vmem:[%s3 + $0x8] sm:$0xff]
  %v1400 = vld [vmem:[%s3 + $0x10] sm:$0xff]
  %v1401 = vld [vmem:[%s3 + $0x18] sm:$0xff]
  %v1402 = vld [vmem:[%s3 + $0x20] sm:$0xff]
  %v1403 = vld [vmem:[%s3 + $0x28] sm:$0xff]
  %v1404 = vld [vmem:[%s3 + $0x30] sm:$0xff]
  %v1405 = vld [vmem:[%s3 + $0x38] sm:$0xff]
  %v1414 = vunpack.c.l.b16 %v1398
  %v1415 = vunpack.c.h.b16 %v1398
  %v1416 = vunpack.c.l.b16 %v1399
  %v1417 = vunpack.c.h.b16 %v1399
  %v1418 = vunpack.c.l.b16 %v1400
  %v1419 = vunpack.c.h.b16 %v1400
  %v1420 = vunpack.c.l.b16 %v1401
  %v1421 = vunpack.c.h.b16 %v1401
  %v1422 = vunpack.c.l.b16 %v1402
  %v1423 = vunpack.c.h.b16 %v1402
  %v1424 = vunpack.c.l.b16 %v1403
  %v1425 = vunpack.c.h.b16 %v1403
  %v1426 = vunpack.c.l.b16 %v1404
  %v1427 = vunpack.c.h.b16 %v1404
  %v1428 = vunpack.c.l.b16 %v1405
  %v1429 = vunpack.c.h.b16 %v1405
  %v1430 = vpack.c.b16 %v1416, %v1414
  %v1431 = vpack.c.b16 %v1417, %v1415
  %v1432 = vpack.c.b16 %v1420, %v1418
  %v1433 = vpack.c.b16 %v1421, %v1419
  %v1434 = vpack.c.b16 %v1424, %v1422
  %v1435 = vpack.c.b16 %v1425, %v1423
  %v1436 = vpack.c.b16 %v1428, %v1426
  %v1437 = vpack.c.b16 %v1429, %v1427
  %v1447 = vsel %vm87, %v1397, 0
  %1449 = vmatpush.bf16.msra.mxu0 0
  %1450 = vmatpush.bf16.msra.mxu0 0
  %1451 = vmatpush.bf16.msra.mxu0 0
  %1452 = vmatpush.bf16.msra.mxu0 0
  %1453 = vmatpush.bf16.msra.mxu0 %v1436
  %1454 = vmatpush.bf16.msra.mxu0 %v1434
  %1455 = vmatpush.bf16.msra.mxu0 %v1432
  %1456 = vmatpush.bf16.msra.mxu0 %v1430
  %1457 = vmatmul.bf16.gmra.mxu0 %v1447
  %v1458 = vpop.f32.mrf.mxu0
  %v1459 = vadd.f32 0.0, %v1458
  %v1460 = vpop.f32.mrf.mxu0
  %1461 = vdwg.mxu0
  %1462 = vmatpush.bf16.msra.mxu0 0
  %1463 = vmatpush.bf16.msra.mxu0 0
  %1464 = vmatpush.bf16.msra.mxu0 0
  %1465 = vmatpush.bf16.msra.mxu0 0
  %1466 = vmatpush.bf16.msra.mxu0 %v1437
  %1467 = vmatpush.bf16.msra.mxu0 %v1435
  %1468 = vmatpush.bf16.msra.mxu0 %v1433
  %1469 = vmatpush.bf16.msra.mxu0 %v1431
  %1470 = vmatmul.bf16.gmra.mxu0 %v1447
  %v1471 = vpop.f32.mrf.mxu0
  %v1472 = vadd.f32 0.0, %v1471
  %v1473 = vpop.f32.mrf.mxu0
  %1474 = vdwg.mxu0
  %v1475 = vld [vmem:[%s461] sm:$0xff]
  %v1476 = vadd.f32 %v1459, %v1475
  %v1477 = vld [vmem:[%s458 + $0x8] sm:$0xff]
  %v1478 = vadd.f32 %v1472, %v1477
  %v1479 = vld [vmem:[#allocation4] sm:$0xff]
  %v1480 = vxor.u32 %v1476, 2147483648
  %v1481 = vmul.f32 %v1480, 1.442695
  %v1482 = vpow.pop %v1481
  %v1483 = vadd.f32 %v1482, 1.0
  %v1484 = vrcp.pop %v1483
  %v1485 = vmul.f32 %v1483, %v1484
  %v1486 = vsub.f32 1.0, %v1485
  %v1487 = vmul.f32 %v1484, %v1486
  %v1488 = vadd.f32 %v1484, %v1487
  %vm1489 = vweird.f32 %v1483
  %vm1490 = vweird.f32 %v1484
  %vm1491 = vmor %vm1489, %vm1490
  %v1492 = vsel %vm1491, %v1484, %v1488
  %v1493 = vand.u32 2147483647, %v1483
  %vm1494 = vcmp.eq.f32.partialorder %v1493, 8.507059e+37
  %v1495 = vand.u32 %v1483, 2147483648
  %v1496 = vor.u32 1.1754944e-38, %v1495
  %v1497 = vsel %vm1494, %v1496, %v1492
  %v1498 = vmul.f32 1.0, %v1497
  %v1499 = vtanh.pop %v1476
  %1501 = vrot.lane.b32.xlu0 %v1479, 32
  %v1502 = vpop.permute.xlu0 %1501
  %v1504 = vmul.f32 %v1498, %v1502
  %1506 = vrot.lane.b32.xlu0 %v1499, 64
  %v1507 = vpop.permute.xlu0 %1506
  %v1509 = vmul.f32 %v1498, %v1507
  %1511 = vrot.lane.b32.xlu0 %v1509, 32
  %v1512 = vpop.permute.xlu0 %1511
  %v1514 = vadd.f32 %v1504, %v1512
  %v1515 = vtanh.pop %v1514
  %1517 = vrot.lane.b32.xlu0 %v1515, 64
  %v1518 = vpop.permute.xlu0 %1517
  %v1520 = vmul.f32 %v1498, %v1518
  %v1521 = vxor.u32 %v1478, 2147483648
  %v1522 = vmul.f32 %v1521, 1.442695
  %v1523 = vpow.pop %v1522
  %v1524 = vadd.f32 %v1523, 1.0
  %v1525 = vrcp.pop %v1524
  %v1526 = vmul.f32 %v1524, %v1525
  %v1527 = vsub.f32 1.0, %v1526
  %v1528 = vmul.f32 %v1525, %v1527
  %v1529 = vadd.f32 %v1525, %v1528
  %vm1530 = vweird.f32 %v1524
  %vm1531 = vweird.f32 %v1525
  %vm1532 = vmor %vm1530, %vm1531
  %v1533 = vsel %vm1532, %v1525, %v1529
  %v1534 = vand.u32 2147483647, %v1524
  %vm1535 = vcmp.eq.f32.partialorder %v1534, 8.507059e+37
  %v1536 = vand.u32 %v1524, 2147483648
  %v1537 = vor.u32 1.1754944e-38, %v1536
  %v1538 = vsel %vm1535, %v1537, %v1533
  %v1539 = vmul.f32 1.0, %v1538
  %v1540 = vtanh.pop %v1478
  %v1541 = vmul.f32 %v1539, %v1479
  %1543 = vrot.lane.b32.xlu0 %v1540, 64
  %v1544 = vpop.permute.xlu0 %1543
  %v1546 = vmul.f32 %v1539, %v1544
  %1548 = vrot.lane.b32.xlu0 %v1546, 32
  %v1549 = vpop.permute.xlu0 %1548
  %v1551 = vadd.f32 %v1541, %v1549
  %v1552 = vtanh.pop %v1551
  %1554 = vrot.lane.b32.xlu0 %v1552, 64
  %v1555 = vpop.permute.xlu0 %1554
  %v1557 = vmul.f32 %v1539, %v1555
  %v1558 = vld [vmem:[%s545] sm:$0xff]
  %v1559 = vld [vmem:[%s543] sm:$0xff]
  %1561 = vset.pattern.permute.xlu0 0
  %1562 = vperm.xlu0 %1561, %v1558
  %v1563 = vpop.permute.xlu0 %1562
  %v1565 = vmul.f32 %v1520, %v1563
  %v1566 = vmul.f32 %v1514, %v1563
  %1568 = vset.pattern.permute.xlu0 0
  %1569 = vperm.xlu0 %1568, %v1559
  %v1570 = vpop.permute.xlu0 %1569
  %v1572 = vmul.f32 %v1557, %v1570
  %v1573 = vmul.f32 %v1551, %v1570
  %1575 = vrot.lane.b32.xlu0 %v1565, 32
  %v1576 = vpop.permute.xlu0 %1575
  %1579 = vrot.lane.b32.xlu0 %v1572, 64
  %v1580 = vpop.permute.xlu0 %1579
  %v1582 = vsel %vm364, %v1576, %v1580
  %1583 = vst.msk [vmem:[#allocation3] sm:$0xff] %vm87, %v1582
  %1585 = vrot.lane.b32.xlu0 %v1566, 96
  %v1586 = vpop.permute.xlu0 %1585
  %v1588 = vsel %vm364, %v1586, %v1573
  %1589 = vst.msk [vmem:[#allocation4] sm:$0xff] %vm87, %v1588
  %s1590 = scalar_lea.vmem [#allocation5], 48
  %1591 = vst.msk [vmem:[%s1590] sm:$0xff] %vm364, %v1576
  %1592 = vrot.lane.b32.xlu0 %v1572, 32
  %v1593 = vpop.permute.xlu0 %1592
  %s1595 = scalar_lea.vmem [#allocation6], 8
  %1596 = vst.msk [vmem:[%s1595] sm:$0xff] %vm364, %v1593
  %v1597 = vld [vmem:[#allocation3] sm:$0xff]
  %v1598 = vpack.c.bf16 %v1597, %v1597
  %v1599 = vld [vmem:[%s3] sm:$0xff]
  %v1600 = vld [vmem:[%s3 + $0x8] sm:$0xff]
  %v1601 = vld [vmem:[%s3 + $0x10] sm:$0xff]
  %v1602 = vld [vmem:[%s3 + $0x18] sm:$0xff]
  %v1603 = vld [vmem:[%s3 + $0x20] sm:$0xff]
  %v1604 = vld [vmem:[%s3 + $0x28] sm:$0xff]
  %v1605 = vld [vmem:[%s3 + $0x30] sm:$0xff]
  %v1606 = vld [vmem:[%s3 + $0x38] sm:$0xff]
  %v1615 = vunpack.c.l.b16 %v1599
  %v1616 = vunpack.c.h.b16 %v1599
  %v1617 = vunpack.c.l.b16 %v1600
  %v1618 = vunpack.c.h.b16 %v1600
  %v1619 = vunpack.c.l.b16 %v1601
  %v1620 = vunpack.c.h.b16 %v1601
  %v1621 = vunpack.c.l.b16 %v1602
  %v1622 = vunpack.c.h.b16 %v1602
  %v1623 = vunpack.c.l.b16 %v1603
  %v1624 = vunpack.c.h.b16 %v1603
  %v1625 = vunpack.c.l.b16 %v1604
  %v1626 = vunpack.c.h.b16 %v1604
  %v1627 = vunpack.c.l.b16 %v1605
  %v1628 = vunpack.c.h.b16 %v1605
  %v1629 = vunpack.c.l.b16 %v1606
  %v1630 = vunpack.c.h.b16 %v1606
  %v1631 = vpack.c.b16 %v1617, %v1615
  %v1632 = vpack.c.b16 %v1618, %v1616
  %v1633 = vpack.c.b16 %v1621, %v1619
  %v1634 = vpack.c.b16 %v1622, %v1620
  %v1635 = vpack.c.b16 %v1625, %v1623
  %v1636 = vpack.c.b16 %v1626, %v1624
  %v1637 = vpack.c.b16 %v1629, %v1627
  %v1638 = vpack.c.b16 %v1630, %v1628
  %v1648 = vsel %vm87, %v1598, 0
  %1650 = vmatpush.bf16.msra.mxu0 0
  %1651 = vmatpush.bf16.msra.mxu0 0
  %1652 = vmatpush.bf16.msra.mxu0 0
  %1653 = vmatpush.bf16.msra.mxu0 0
  %1654 = vmatpush.bf16.msra.mxu0 %v1637
  %1655 = vmatpush.bf16.msra.mxu0 %v1635
  %1656 = vmatpush.bf16.msra.mxu0 %v1633
  %1657 = vmatpush.bf16.msra.mxu0 %v1631
  %1658 = vmatmul.bf16.gmra.mxu0 %v1648
  %v1659 = vpop.f32.mrf.mxu0
  %v1660 = vadd.f32 0.0, %v1659
  %v1661 = vpop.f32.mrf.mxu0
  %1662 = vdwg.mxu0
  %1663 = vmatpush.bf16.msra.mxu0 0
  %1664 = vmatpush.bf16.msra.mxu0 0
  %1665 = vmatpush.bf16.msra.mxu0 0
  %1666 = vmatpush.bf16.msra.mxu0 0
  %1667 = vmatpush.bf16.msra.mxu0 %v1638
  %1668 = vmatpush.bf16.msra.mxu0 %v1636
  %1669 = vmatpush.bf16.msra.mxu0 %v1634
  %1670 = vmatpush.bf16.msra.mxu0 %v1632
  %1671 = vmatmul.bf16.gmra.mxu0 %v1648
  %v1672 = vpop.f32.mrf.mxu0
  %v1673 = vadd.f32 0.0, %v1672
  %v1674 = vpop.f32.mrf.mxu0
  %1675 = vdwg.mxu0
  %v1676 = vld [vmem:[%s257] sm:$0xff]
  %v1677 = vadd.f32 %v1660, %v1676
  %v1678 = vld [vmem:[#allocation2 + $0x8] sm:$0xff]
  %v1679 = vadd.f32 %v1673, %v1678
  %v1680 = vld [vmem:[#allocation4] sm:$0xff]
  %v1681 = vxor.u32 %v1677, 2147483648
  %v1682 = vmul.f32 %v1681, 1.442695
  %v1683 = vpow.pop %v1682
  %v1684 = vadd.f32 %v1683, 1.0
  %v1685 = vrcp.pop %v1684
  %v1686 = vmul.f32 %v1684, %v1685
  %v1687 = vsub.f32 1.0, %v1686
  %v1688 = vmul.f32 %v1685, %v1687
  %v1689 = vadd.f32 %v1685, %v1688
  %vm1690 = vweird.f32 %v1684
  %vm1691 = vweird.f32 %v1685
  %vm1692 = vmor %vm1690, %vm1691
  %v1693 = vsel %vm1692, %v1685, %v1689
  %v1694 = vand.u32 2147483647, %v1684
  %vm1695 = vcmp.eq.f32.partialorder %v1694, 8.507059e+37
  %v1696 = vand.u32 %v1684, 2147483648
  %v1697 = vor.u32 1.1754944e-38, %v1696
  %v1698 = vsel %vm1695, %v1697, %v1693
  %v1699 = vmul.f32 1.0, %v1698
  %v1700 = vtanh.pop %v1677
  %1702 = vrot.lane.b32.xlu0 %v1680, 32
  %v1703 = vpop.permute.xlu0 %1702
  %v1705 = vmul.f32 %v1699, %v1703
  %1707 = vrot.lane.b32.xlu0 %v1700, 64
  %v1708 = vpop.permute.xlu0 %1707
  %v1710 = vmul.f32 %v1699, %v1708
  %1712 = vrot.lane.b32.xlu0 %v1710, 32
  %v1713 = vpop.permute.xlu0 %1712
  %v1715 = vadd.f32 %v1705, %v1713
  %v1716 = vtanh.pop %v1715
  %1718 = vrot.lane.b32.xlu0 %v1716, 64
  %v1719 = vpop.permute.xlu0 %1718
  %v1721 = vmul.f32 %v1699, %v1719
  %v1722 = vxor.u32 %v1679, 2147483648
  %v1723 = vmul.f32 %v1722, 1.442695
  %v1724 = vpow.pop %v1723
  %v1725 = vadd.f32 %v1724, 1.0
  %v1726 = vrcp.pop %v1725
  %v1727 = vmul.f32 %v1725, %v1726
  %v1728 = vsub.f32 1.0, %v1727
  %v1729 = vmul.f32 %v1726, %v1728
  %v1730 = vadd.f32 %v1726, %v1729
  %vm1731 = vweird.f32 %v1725
  %vm1732 = vweird.f32 %v1726
  %vm1733 = vmor %vm1731, %vm1732
  %v1734 = vsel %vm1733, %v1726, %v1730
  %v1735 = vand.u32 2147483647, %v1725
  %vm1736 = vcmp.eq.f32.partialorder %v1735, 8.507059e+37
  %v1737 = vand.u32 %v1725, 2147483648
  %v1738 = vor.u32 1.1754944e-38, %v1737
  %v1739 = vsel %vm1736, %v1738, %v1734
  %v1740 = vmul.f32 1.0, %v1739
  %v1741 = vtanh.pop %v1679
  %v1742 = vmul.f32 %v1740, %v1680
  %1744 = vrot.lane.b32.xlu0 %v1741, 64
  %v1745 = vpop.permute.xlu0 %1744
  %v1747 = vmul.f32 %v1740, %v1745
  %1749 = vrot.lane.b32.xlu0 %v1747, 32
  %v1750 = vpop.permute.xlu0 %1749
  %v1752 = vadd.f32 %v1742, %v1750
  %v1753 = vtanh.pop %v1752
  %1755 = vrot.lane.b32.xlu0 %v1753, 64
  %v1756 = vpop.permute.xlu0 %1755
  %v1758 = vmul.f32 %v1740, %v1756
  %v1759 = vld [vmem:[%s340] sm:$0xff]
  %v1760 = vld [vmem:[%s1] sm:$0xff]
  %1762 = vset.pattern.permute.xlu0 0
  %1763 = vperm.xlu0 %1762, %v1759
  %v1764 = vpop.permute.xlu0 %1763
  %v1766 = vmul.f32 %v1721, %v1764
  %v1767 = vmul.f32 %v1715, %v1764
  %1769 = vset.pattern.permute.xlu0 0
  %1770 = vperm.xlu0 %1769, %v1760
  %v1771 = vpop.permute.xlu0 %1770
  %v1773 = vmul.f32 %v1758, %v1771
  %v1774 = vmul.f32 %v1752, %v1771
  %1776 = vrot.lane.b32.xlu0 %v1766, 32
  %v1777 = vpop.permute.xlu0 %1776
  %1780 = vrot.lane.b32.xlu0 %v1773, 64
  %v1781 = vpop.permute.xlu0 %1780
  %v1783 = vsel %vm364, %v1777, %v1781
  %1784 = vst.msk [vmem:[#allocation3] sm:$0xff] %vm87, %v1783
  %1786 = vrot.lane.b32.xlu0 %v1767, 96
  %v1787 = vpop.permute.xlu0 %1786
  %v1789 = vsel %vm364, %v1787, %v1774
  %1790 = vst.msk [vmem:[#allocation4] sm:$0xff] %vm87, %v1789
  %s1791 = scalar_lea.vmem [#allocation5], 56
  %1792 = vst.msk [vmem:[%s1791] sm:$0xff] %vm364, %v1777
  %1793 = vrot.lane.b32.xlu0 %v1773, 32
  %v1794 = vpop.permute.xlu0 %1793
  %1796 = vst.msk [vmem:[#allocation6] sm:$0xff] %vm364, %v1794
  %v1797 = vld [vmem:[#allocation5] sm:$0xff]
  %v1798 = vld [vmem:[#allocation5 + $0x8] sm:$0xff]
  %v1799 = vld [vmem:[#allocation5 + $0x10] sm:$0xff]
  %v1800 = vld [vmem:[#allocation5 + $0x18] sm:$0xff]
  %v1801 = vld [vmem:[#allocation5 + $0x20] sm:$0xff]
  %v1802 = vld [vmem:[#allocation5 + $0x28] sm:$0xff]
  %v1803 = vld [vmem:[#allocation5 + $0x30] sm:$0xff]
  %v1804 = vld [vmem:[#allocation5 + $0x38] sm:$0xff]
  %v1805 = vld [vmem:[#allocation6] sm:$0xff]
  %v1806 = vld [vmem:[#allocation6 + $0x8] sm:$0xff]
  %v1807 = vld [vmem:[#allocation6 + $0x10] sm:$0xff]
  %v1808 = vld [vmem:[#allocation6 + $0x18] sm:$0xff]
  %v1809 = vld [vmem:[#allocation6 + $0x20] sm:$0xff]
  %v1810 = vld [vmem:[#allocation6 + $0x28] sm:$0xff]
  %v1811 = vld [vmem:[#allocation6 + $0x30] sm:$0xff]
  %v1812 = vld [vmem:[#allocation6 + $0x38] sm:$0xff]
  %1821 = vrot.lane.b32.xlu0 %v1805, 32
  %v1822 = vpop.permute.xlu0 %1821
  %1823 = vrot.lane.b32.xlu0 %v1806, 32
  %v1824 = vpop.permute.xlu0 %1823
  %1825 = vrot.lane.b32.xlu0 %v1807, 32
  %v1826 = vpop.permute.xlu0 %1825
  %1827 = vrot.lane.b32.xlu0 %v1808, 32
  %v1828 = vpop.permute.xlu0 %1827
  %1829 = vrot.lane.b32.xlu0 %v1809, 32
  %v1830 = vpop.permute.xlu0 %1829
  %1831 = vrot.lane.b32.xlu0 %v1810, 32
  %v1832 = vpop.permute.xlu0 %1831
  %1833 = vrot.lane.b32.xlu0 %v1811, 32
  %v1834 = vpop.permute.xlu0 %1833
  %1835 = vrot.lane.b32.xlu0 %v1812, 32
  %v1836 = vpop.permute.xlu0 %1835
  %v1845 = vsel %vm364, %v1797, %v1822
  %v1846 = vsel %vm364, %v1798, %v1824
  %v1847 = vsel %vm364, %v1799, %v1826
  %v1848 = vsel %vm364, %v1800, %v1828
  %v1849 = vsel %vm364, %v1801, %v1830
  %v1850 = vsel %vm364, %v1802, %v1832
  %v1851 = vsel %vm364, %v1803, %v1834
  %v1852 = vsel %vm364, %v1804, %v1836
  %1853 = vst.msk [vmem:[%s5] sm:$0xff] %vm87, %v1845
  %1854 = vst.msk [vmem:[%s5 + $0x8] sm:$0xff] %vm87, %v1846
  %1855 = vst.msk [vmem:[%s5 + $0x10] sm:$0xff] %vm87, %v1847
  %1856 = vst.msk [vmem:[%s5 + $0x18] sm:$0xff] %vm87, %v1848
  %1857 = vst.msk [vmem:[%s5 + $0x20] sm:$0xff] %vm87, %v1849
  %1858 = vst.msk [vmem:[%s5 + $0x28] sm:$0xff] %vm87, %v1850
  %1859 = vst.msk [vmem:[%s5 + $0x30] sm:$0xff] %vm87, %v1851
  %1860 = vst.msk [vmem:[%s5 + $0x38] sm:$0xff] %vm87, %v1852
  // Predicated region
  $region22: #{segmenter_forward.4} parent=0 // pred_check
    _
  $region23: #{segmenter_forward.4} parent=0 // pred_check_branch
    %1862 = sbr.rel (0) target = $region25
  $region24: #{segmenter_forward.4} parent=0 // pred_region
    _
  $region25: #{segmenter_forward.4} parent=0 // pred_fallthru
    _
  // Predicated region
  $region26: #{segmenter_forward.4} parent=0 // pred_check
    _
  $region27: #{segmenter_forward.4} parent=0 // pred_check_branch
    %1864 = sbr.rel (0) target = $region29
  $region28: #{segmenter_forward.4} parent=0 // pred_region
    _
  $region29: #{segmenter_forward.4} parent=0 // pred_fallthru
    _

// kernel: segmenter_forward.3
$region0: #{segmenter_forward.3}
  #allocation0 [shape = 'u32[]', space=smem, size = 0x4, offset = 0x4, fixed_abs, tag = 'smem constant byte address 0x4 - core index']
  #allocation1 [shape = 'u32[72,128]{1,0:T(1,128)}', space=vmem, size = 0x9000, scoped, tag = 'internal scratch']
  #allocation2 [shape = 'f32[8,8,256]{2,1,0:T(8,128)}', space=vmem, size = 0x10000, scoped, tag = 'scratch operand']
  #allocation3 [shape = 'f32[8,64]{1,0:T(8,128)}', space=vmem, size = 0x1000, scoped, tag = 'scratch operand']
  #allocation4 [shape = 'f32[8,64]{1,0:T(8,128)}', space=vmem, size = 0x1000, scoped, tag = 'scratch operand']
  #allocation5 [shape = 'f32[8,8,32]{2,1,0:T(8,128)}', space=vmem, size = 0x8000, scoped, tag = 'scratch operand']
  #allocation6 [shape = 'f32[8,8,32]{2,1,0:T(8,128)}', space=vmem, size = 0x8000, scoped, tag = 'scratch operand']
  %s0 = inlined_call_operand.vmem [shape: f32[8,8,32], index: 0, kind: input, shape index: {}]
  %s1 = inlined_call_operand.vmem [shape: f32[8,8,1], index: 1, kind: input, shape index: {}]
  %s2 = inlined_call_operand.vmem [shape: bf16[32,256], index: 2, kind: input, shape index: {}]
  %s3 = inlined_call_operand.vmem [shape: bf16[64,256], index: 3, kind: input, shape index: {}]
  %s4 = inlined_call_operand.vmem [shape: f32[1,256], index: 4, kind: input, shape index: {}]
  %s5 = inlined_call_operand.vmem [shape: f32[8,8,64], index: 5, kind: output, shape index: {}]
  %s6 = sld [smem:[#allocation0]]
  $region30: #{segmenter_forward.3} parent=0
    _
  %s8 = ssub.s32 1, %s6
  %s9 = scalar_select 0, %s8, %s6
  // Predicated region
  $region2: #{segmenter_forward.3} parent=0 // pred_check
    _
  $region3: #{segmenter_forward.3} parent=0 // pred_check_branch
    %11 = sbr.rel (0) target = $region5
  $region4: #{segmenter_forward.3} parent=0 // pred_region
    _
  $region5: #{segmenter_forward.3} parent=0 // pred_fallthru
    _
  // Predicated region
  $region6: #{segmenter_forward.3} parent=0 // pred_check
    _
  $region7: #{segmenter_forward.3} parent=0 // pred_check_branch
    %13 = sbr.rel (0) target = $region9
  $region8: #{segmenter_forward.3} parent=0 // pred_region
    _
  $region9: #{segmenter_forward.3} parent=0 // pred_fallthru
    _
  // Predicated region
  $region10: #{segmenter_forward.3} parent=0 // pred_check
    _
  $region11: #{segmenter_forward.3} parent=0 // pred_check_branch
    %15 = sbr.rel (0) target = $region13
  $region12: #{segmenter_forward.3} parent=0 // pred_region
    _
  $region13: #{segmenter_forward.3} parent=0 // pred_fallthru
    _
  // Predicated region
  $region14: #{segmenter_forward.3} parent=0 // pred_check
    _
  $region15: #{segmenter_forward.3} parent=0 // pred_check_branch
    %17 = sbr.rel (0) target = $region17
  $region16: #{segmenter_forward.3} parent=0 // pred_region
    _
  $region17: #{segmenter_forward.3} parent=0 // pred_fallthru
    _
  // Predicated region
  $region18: #{segmenter_forward.3} parent=0 // pred_check
    _
  $region19: #{segmenter_forward.3} parent=0 // pred_check_branch
    %19 = sbr.rel (0) target = $region21
  $region20: #{segmenter_forward.3} parent=0 // pred_region
    _
  $region21: #{segmenter_forward.3} parent=0 // pred_fallthru
    _
  %v21 = vld [vmem:[%s0] sm:$0xff]
  %v22 = vld [vmem:[%s0 + $0x8] sm:$0xff]
  %v23 = vld [vmem:[%s0 + $0x10] sm:$0xff]
  %v24 = vld [vmem:[%s0 + $0x18] sm:$0xff]
  %v25 = vld [vmem:[%s0 + $0x20] sm:$0xff]
  %v26 = vld [vmem:[%s0 + $0x28] sm:$0xff]
  %v27 = vld [vmem:[%s0 + $0x30] sm:$0xff]
  %v28 = vld [vmem:[%s0 + $0x38] sm:$0xff]
  %v29 = vpack.c.bf16 %v22, %v21
  %v30 = vpack.c.bf16 %v24, %v23
  %v31 = vpack.c.bf16 %v26, %v25
  %v32 = vpack.c.bf16 %v28, %v27
  %v33 = vld [vmem:[%s2] sm:$0xff]
  %v34 = vld [vmem:[%s2 + $0x8] sm:$0xff]
  %v35 = vld [vmem:[%s2 + $0x10] sm:$0xff]
  %v36 = vld [vmem:[%s2 + $0x18] sm:$0xff]
  %v37 = vld [vmem:[%s4] sm:$0x3]
  %v39 = vperm.slane %v37, 0
  %v40 = vperm.slane %v37, 1
  %v47 = vunpack.c.l.b16 %v33
  %v48 = vunpack.c.h.b16 %v33
  %v49 = vunpack.c.l.b16 %v34
  %v50 = vunpack.c.h.b16 %v34
  %v51 = vunpack.c.l.b16 %v35
  %v52 = vunpack.c.h.b16 %v35
  %v53 = vunpack.c.l.b16 %v36
  %v54 = vunpack.c.h.b16 %v36
  %v55 = vpack.c.b16 %v49, %v47
  %v56 = vpack.c.b16 %v50, %v48
  %v57 = vpack.c.b16 %v53, %v51
  %v58 = vpack.c.b16 %v54, %v52
  %vm63 = vcmask 261120
  %v65 = vsel %vm63, %v29, 0
  %v68 = vsel %vm63, %v30, 0
  %v71 = vsel %vm63, %v31, 0
  %v74 = vsel %vm63, %v32, 0
  %76 = vmatpush.bf16.msra.mxu0 0
  %77 = vmatpush.bf16.msra.mxu0 0
  %78 = vmatpush.bf16.msra.mxu0 0
  %79 = vmatpush.bf16.msra.mxu0 0
  %80 = vmatpush.bf16.msra.mxu0 0
  %81 = vmatpush.bf16.msra.mxu0 0
  %82 = vmatpush.bf16.msra.mxu0 %v57
  %83 = vmatpush.bf16.msra.mxu0 %v55
  %84 = vmatmul.bf16.gmra.mxu0 %v65
  %v85 = vpop.f32.mrf.mxu0
  %v86 = vadd.f32 %v39, %v85
  %v87 = vpop.f32.mrf.mxu0
  %v88 = vadd.f32 %v39, %v87
  %89 = vmatmul.bf16.gmra.mxu0 %v68
  %v90 = vpop.f32.mrf.mxu0
  %v91 = vadd.f32 %v39, %v90
  %v92 = vpop.f32.mrf.mxu0
  %v93 = vadd.f32 %v39, %v92
  %94 = vmatmul.bf16.gmra.mxu0 %v71
  %v95 = vpop.f32.mrf.mxu0
  %v96 = vadd.f32 %v39, %v95
  %v97 = vpop.f32.mrf.mxu0
  %v98 = vadd.f32 %v39, %v97
  %99 = vmatmul.bf16.gmra.mxu0 %v74
  %v100 = vpop.f32.mrf.mxu0
  %v101 = vadd.f32 %v39, %v100
  %v102 = vpop.f32.mrf.mxu0
  %v103 = vadd.f32 %v39, %v102
  %104 = vdwg.mxu0
  %105 = vmatpush.bf16.msra.mxu0 0
  %106 = vmatpush.bf16.msra.mxu0 0
  %107 = vmatpush.bf16.msra.mxu0 0
  %108 = vmatpush.bf16.msra.mxu0 0
  %109 = vmatpush.bf16.msra.mxu0 0
  %110 = vmatpush.bf16.msra.mxu0 0
  %111 = vmatpush.bf16.msra.mxu0 %v58
  %112 = vmatpush.bf16.msra.mxu0 %v56
  %113 = vmatmul.bf16.gmra.mxu0 %v65
  %v114 = vpop.f32.mrf.mxu0
  %v115 = vadd.f32 %v40, %v114
  %v116 = vpop.f32.mrf.mxu0
  %v117 = vadd.f32 %v40, %v116
  %118 = vmatmul.bf16.gmra.mxu0 %v68
  %v119 = vpop.f32.mrf.mxu0
  %v120 = vadd.f32 %v40, %v119
  %v121 = vpop.f32.mrf.mxu0
  %v122 = vadd.f32 %v40, %v121
  %123 = vmatmul.bf16.gmra.mxu0 %v71
  %v124 = vpop.f32.mrf.mxu0
  %v125 = vadd.f32 %v40, %v124
  %v126 = vpop.f32.mrf.mxu0
  %v127 = vadd.f32 %v40, %v126
  %128 = vmatmul.bf16.gmra.mxu0 %v74
  %v129 = vpop.f32.mrf.mxu0
  %v130 = vadd.f32 %v40, %v129
  %v131 = vpop.f32.mrf.mxu0
  %v132 = vadd.f32 %v40, %v131
  %133 = vdwg.mxu0
  %134 = vst [vmem:[#allocation2] sm:$0xff] %v86
  %135 = vst [vmem:[#allocation2 + $0x8] sm:$0xff] %v115
  %136 = vst [vmem:[#allocation2 + $0x10] sm:$0xff] %v88
  %137 = vst [vmem:[#allocation2 + $0x18] sm:$0xff] %v117
  %138 = vst [vmem:[#allocation2 + $0x20] sm:$0xff] %v91
  %139 = vst [vmem:[#allocation2 + $0x28] sm:$0xff] %v120
  %140 = vst [vmem:[#allocation2 + $0x30] sm:$0xff] %v93
  %141 = vst [vmem:[#allocation2 + $0x38] sm:$0xff] %v122
  %142 = vst [vmem:[#allocation2 + $0x40] sm:$0xff] %v96
  %143 = vst [vmem:[#allocation2 + $0x48] sm:$0xff] %v125
  %144 = vst [vmem:[#allocation2 + $0x50] sm:$0xff] %v98
  %145 = vst [vmem:[#allocation2 + $0x58] sm:$0xff] %v127
  %146 = vst [vmem:[#allocation2 + $0x60] sm:$0xff] %v101
  %147 = vst [vmem:[#allocation2 + $0x68] sm:$0xff] %v130
  %148 = vst [vmem:[#allocation2 + $0x70] sm:$0xff] %v103
  %149 = vst [vmem:[#allocation2 + $0x78] sm:$0xff] %v132
  %vm150 = vcmask 523264
  %151 = vst.msk [vmem:[#allocation3] sm:$0xff] %vm150, 0.0
  %152 = vst.msk [vmem:[#allocation4] sm:$0xff] %vm150, 0.0
  %v153 = vld [vmem:[#allocation3] sm:$0xff]
  %v154 = vpack.c.bf16 %v153, %v153
  %v155 = vld [vmem:[%s3] sm:$0xff]
  %v156 = vld [vmem:[%s3 + $0x8] sm:$0xff]
  %v157 = vld [vmem:[%s3 + $0x10] sm:$0xff]
  %v158 = vld [vmem:[%s3 + $0x18] sm:$0xff]
  %v159 = vld [vmem:[%s3 + $0x20] sm:$0xff]
  %v160 = vld [vmem:[%s3 + $0x28] sm:$0xff]
  %v161 = vld [vmem:[%s3 + $0x30] sm:$0xff]
  %v162 = vld [vmem:[%s3 + $0x38] sm:$0xff]
  %v171 = vunpack.c.l.b16 %v155
  %v172 = vunpack.c.h.b16 %v155
  %v173 = vunpack.c.l.b16 %v156
  %v174 = vunpack.c.h.b16 %v156
  %v175 = vunpack.c.l.b16 %v157
  %v176 = vunpack.c.h.b16 %v157
  %v177 = vunpack.c.l.b16 %v158
  %v178 = vunpack.c.h.b16 %v158
  %v179 = vunpack.c.l.b16 %v159
  %v180 = vunpack.c.h.b16 %v159
  %v181 = vunpack.c.l.b16 %v160
  %v182 = vunpack.c.h.b16 %v160
  %v183 = vunpack.c.l.b16 %v161
  %v184 = vunpack.c.h.b16 %v161
  %v185 = vunpack.c.l.b16 %v162
  %v186 = vunpack.c.h.b16 %v162
  %v187 = vpack.c.b16 %v173, %v171
  %v188 = vpack.c.b16 %v174, %v172
  %v189 = vpack.c.b16 %v177, %v175
  %v190 = vpack.c.b16 %v178, %v176
  %v191 = vpack.c.b16 %v181, %v179
  %v192 = vpack.c.b16 %v182, %v180
  %v193 = vpack.c.b16 %v185, %v183
  %v194 = vpack.c.b16 %v186, %v184
  %v204 = vsel %vm150, %v154, 0
  %206 = vmatpush.bf16.msra.mxu0 0
  %207 = vmatpush.bf16.msra.mxu0 0
  %208 = vmatpush.bf16.msra.mxu0 0
  %209 = vmatpush.bf16.msra.mxu0 0
  %210 = vmatpush.bf16.msra.mxu0 %v193
  %211 = vmatpush.bf16.msra.mxu0 %v191
  %212 = vmatpush.bf16.msra.mxu0 %v189
  %213 = vmatpush.bf16.msra.mxu0 %v187
  %214 = vmatmul.bf16.gmra.mxu0 %v204
  %v215 = vpop.f32.mrf.mxu0
  %v216 = vadd.f32 0.0, %v215
  %v217 = vpop.f32.mrf.mxu0
  %218 = vdwg.mxu0
  %219 = vmatpush.bf16.msra.mxu0 0
  %220 = vmatpush.bf16.msra.mxu0 0
  %221 = vmatpush.bf16.msra.mxu0 0
  %222 = vmatpush.bf16.msra.mxu0 0
  %223 = vmatpush.bf16.msra.mxu0 %v194
  %224 = vmatpush.bf16.msra.mxu0 %v192
  %225 = vmatpush.bf16.msra.mxu0 %v190
  %226 = vmatpush.bf16.msra.mxu0 %v188
  %227 = vmatmul.bf16.gmra.mxu0 %v204
  %v228 = vpop.f32.mrf.mxu0
  %v229 = vadd.f32 0.0, %v228
  %v230 = vpop.f32.mrf.mxu0
  %231 = vdwg.mxu0
  %v232 = vld [vmem:[#allocation2] sm:$0xff]
  %v233 = vadd.f32 %v216, %v232
  %s234 = scalar_lea.vmem [#allocation2], 112
  %v235 = vld [vmem:[%s234 + $0x8] sm:$0xff]
  %v236 = vadd.f32 %v229, %v235
  %v237 = vld [vmem:[#allocation4] sm:$0xff]
  %v238 = vxor.u32 %v233, 2147483648
  %v239 = vmul.f32 %v238, 1.442695
  %v240 = vpow.pop %v239
  %v241 = vadd.f32 %v240, 1.0
  %v242 = vrcp.pop %v241
  %v243 = vmul.f32 %v241, %v242
  %v244 = vsub.f32 1.0, %v243
  %v245 = vmul.f32 %v242, %v244
  %v246 = vadd.f32 %v242, %v245
  %vm247 = vweird.f32 %v241
  %vm248 = vweird.f32 %v242
  %vm249 = vmor %vm247, %vm248
  %v250 = vsel %vm249, %v242, %v246
  %v251 = vand.u32 2147483647, %v241
  %vm252 = vcmp.eq.f32.partialorder %v251, 8.507059e+37
  %v253 = vand.u32 %v241, 2147483648
  %v254 = vor.u32 1.1754944e-38, %v253
  %v255 = vsel %vm252, %v254, %v250
  %v256 = vmul.f32 1.0, %v255
  %v257 = vtanh.pop %v233
  %259 = vrot.lane.b32.xlu0 %v237, 32
  %v260 = vpop.permute.xlu0 %259
  %v262 = vmul.f32 %v256, %v260
  %264 = vrot.lane.b32.xlu0 %v257, 64
  %v265 = vpop.permute.xlu0 %264
  %v267 = vmul.f32 %v256, %v265
  %269 = vrot.lane.b32.xlu0 %v267, 32
  %v270 = vpop.permute.xlu0 %269
  %v272 = vadd.f32 %v262, %v270
  %v273 = vtanh.pop %v272
  %275 = vrot.lane.b32.xlu0 %v273, 64
  %v276 = vpop.permute.xlu0 %275
  %v278 = vmul.f32 %v256, %v276
  %v279 = vxor.u32 %v236, 2147483648
  %v280 = vmul.f32 %v279, 1.442695
  %v281 = vpow.pop %v280
  %v282 = vadd.f32 %v281, 1.0
  %v283 = vrcp.pop %v282
  %v284 = vmul.f32 %v282, %v283
  %v285 = vsub.f32 1.0, %v284
  %v286 = vmul.f32 %v283, %v285
  %v287 = vadd.f32 %v283, %v286
  %vm288 = vweird.f32 %v282
  %vm289 = vweird.f32 %v283
  %vm290 = vmor %vm288, %vm289
  %v291 = vsel %vm290, %v283, %v287
  %v292 = vand.u32 2147483647, %v282
  %vm293 = vcmp.eq.f32.partialorder %v292, 8.507059e+37
  %v294 = vand.u32 %v282, 2147483648
  %v295 = vor.u32 1.1754944e-38, %v294
  %v296 = vsel %vm293, %v295, %v291
  %v297 = vmul.f32 1.0, %v296
  %v298 = vtanh.pop %v236
  %v299 = vmul.f32 %v297, %v237
  %301 = vrot.lane.b32.xlu0 %v298, 64
  %v302 = vpop.permute.xlu0 %301
  %v304 = vmul.f32 %v297, %v302
  %306 = vrot.lane.b32.xlu0 %v304, 32
  %v307 = vpop.permute.xlu0 %306
  %v309 = vadd.f32 %v299, %v307
  %v310 = vtanh.pop %v309
  %312 = vrot.lane.b32.xlu0 %v310, 64
  %v313 = vpop.permute.xlu0 %312
  %v315 = vmul.f32 %v297, %v313
  %v316 = vld [vmem:[%s1] sm:$0xff]
  %s317 = scalar_lea.vmem %s1, 56
  %v318 = vld [vmem:[%s317] sm:$0xff]
  %320 = vset.pattern.permute.xlu0 0
  %321 = vperm.xlu0 %320, %v316
  %v322 = vpop.permute.xlu0 %321
  %v324 = vmul.f32 %v278, %v322
  %v325 = vmul.f32 %v272, %v322
  %327 = vset.pattern.permute.xlu0 0
  %328 = vperm.xlu0 %327, %v318
  %v329 = vpop.permute.xlu0 %328
  %v331 = vmul.f32 %v315, %v329
  %v332 = vmul.f32 %v309, %v329
  %334 = vrot.lane.b32.xlu0 %v324, 32
  %v335 = vpop.permute.xlu0 %334
  %338 = vrot.lane.b32.xlu0 %v331, 64
  %v339 = vpop.permute.xlu0 %338
  %v341 = vsel %vm63, %v335, %v339
  %342 = vst.msk [vmem:[#allocation3] sm:$0xff] %vm150, %v341
  %344 = vrot.lane.b32.xlu0 %v325, 96
  %v345 = vpop.permute.xlu0 %344
  %v347 = vsel %vm63, %v345, %v332
  %348 = vst.msk [vmem:[#allocation4] sm:$0xff] %vm150, %v347
  %349 = vst.msk [vmem:[#allocation5] sm:$0xff] %vm63, %v335
  %350 = vrot.lane.b32.xlu0 %v331, 32
  %v351 = vpop.permute.xlu0 %350
  %s353 = scalar_lea.vmem [#allocation6], 56
  %354 = vst.msk [vmem:[%s353] sm:$0xff] %vm63, %v351
  %v355 = vld [vmem:[#allocation3] sm:$0xff]
  %v356 = vpack.c.bf16 %v355, %v355
  %v357 = vld [vmem:[%s3] sm:$0xff]
  %v358 = vld [vmem:[%s3 + $0x8] sm:$0xff]
  %v359 = vld [vmem:[%s3 + $0x10] sm:$0xff]
  %v360 = vld [vmem:[%s3 + $0x18] sm:$0xff]
  %v361 = vld [vmem:[%s3 + $0x20] sm:$0xff]
  %v362 = vld [vmem:[%s3 + $0x28] sm:$0xff]
  %v363 = vld [vmem:[%s3 + $0x30] sm:$0xff]
  %v364 = vld [vmem:[%s3 + $0x38] sm:$0xff]
  %v373 = vunpack.c.l.b16 %v357
  %v374 = vunpack.c.h.b16 %v357
  %v375 = vunpack.c.l.b16 %v358
  %v376 = vunpack.c.h.b16 %v358
  %v377 = vunpack.c.l.b16 %v359
  %v378 = vunpack.c.h.b16 %v359
  %v379 = vunpack.c.l.b16 %v360
  %v380 = vunpack.c.h.b16 %v360
  %v381 = vunpack.c.l.b16 %v361
  %v382 = vunpack.c.h.b16 %v361
  %v383 = vunpack.c.l.b16 %v362
  %v384 = vunpack.c.h.b16 %v362
  %v385 = vunpack.c.l.b16 %v363
  %v386 = vunpack.c.h.b16 %v363
  %v387 = vunpack.c.l.b16 %v364
  %v388 = vunpack.c.h.b16 %v364
  %v389 = vpack.c.b16 %v375, %v373
  %v390 = vpack.c.b16 %v376, %v374
  %v391 = vpack.c.b16 %v379, %v377
  %v392 = vpack.c.b16 %v380, %v378
  %v393 = vpack.c.b16 %v383, %v381
  %v394 = vpack.c.b16 %v384, %v382
  %v395 = vpack.c.b16 %v387, %v385
  %v396 = vpack.c.b16 %v388, %v386
  %v406 = vsel %vm150, %v356, 0
  %408 = vmatpush.bf16.msra.mxu0 0
  %409 = vmatpush.bf16.msra.mxu0 0
  %410 = vmatpush.bf16.msra.mxu0 0
  %411 = vmatpush.bf16.msra.mxu0 0
  %412 = vmatpush.bf16.msra.mxu0 %v395
  %413 = vmatpush.bf16.msra.mxu0 %v393
  %414 = vmatpush.bf16.msra.mxu0 %v391
  %415 = vmatpush.bf16.msra.mxu0 %v389
  %416 = vmatmul.bf16.gmra.mxu0 %v406
  %v417 = vpop.f32.mrf.mxu0
  %v418 = vadd.f32 0.0, %v417
  %v419 = vpop.f32.mrf.mxu0
  %420 = vdwg.mxu0
  %421 = vmatpush.bf16.msra.mxu0 0
  %422 = vmatpush.bf16.msra.mxu0 0
  %423 = vmatpush.bf16.msra.mxu0 0
  %424 = vmatpush.bf16.msra.mxu0 0
  %425 = vmatpush.bf16.msra.mxu0 %v396
  %426 = vmatpush.bf16.msra.mxu0 %v394
  %427 = vmatpush.bf16.msra.mxu0 %v392
  %428 = vmatpush.bf16.msra.mxu0 %v390
  %429 = vmatmul.bf16.gmra.mxu0 %v406
  %v430 = vpop.f32.mrf.mxu0
  %v431 = vadd.f32 0.0, %v430
  %v432 = vpop.f32.mrf.mxu0
  %433 = vdwg.mxu0
  %s434 = scalar_lea.vmem [#allocation2], 16
  %v435 = vld [vmem:[%s434] sm:$0xff]
  %v436 = vadd.f32 %v418, %v435
  %s437 = scalar_lea.vmem [#allocation2], 96
  %v438 = vld [vmem:[%s437 + $0x8] sm:$0xff]
  %v439 = vadd.f32 %v431, %v438
  %v440 = vld [vmem:[#allocation4] sm:$0xff]
  %v441 = vxor.u32 %v436, 2147483648
  %v442 = vmul.f32 %v441, 1.442695
  %v443 = vpow.pop %v442
  %v444 = vadd.f32 %v443, 1.0
  %v445 = vrcp.pop %v444
  %v446 = vmul.f32 %v444, %v445
  %v447 = vsub.f32 1.0, %v446
  %v448 = vmul.f32 %v445, %v447
  %v449 = vadd.f32 %v445, %v448
  %vm450 = vweird.f32 %v444
  %vm451 = vweird.f32 %v445
  %vm452 = vmor %vm450, %vm451
  %v453 = vsel %vm452, %v445, %v449
  %v454 = vand.u32 2147483647, %v444
  %vm455 = vcmp.eq.f32.partialorder %v454, 8.507059e+37
  %v456 = vand.u32 %v444, 2147483648
  %v457 = vor.u32 1.1754944e-38, %v456
  %v458 = vsel %vm455, %v457, %v453
  %v459 = vmul.f32 1.0, %v458
  %v460 = vtanh.pop %v436
  %462 = vrot.lane.b32.xlu0 %v440, 32
  %v463 = vpop.permute.xlu0 %462
  %v465 = vmul.f32 %v459, %v463
  %467 = vrot.lane.b32.xlu0 %v460, 64
  %v468 = vpop.permute.xlu0 %467
  %v470 = vmul.f32 %v459, %v468
  %472 = vrot.lane.b32.xlu0 %v470, 32
  %v473 = vpop.permute.xlu0 %472
  %v475 = vadd.f32 %v465, %v473
  %v476 = vtanh.pop %v475
  %478 = vrot.lane.b32.xlu0 %v476, 64
  %v479 = vpop.permute.xlu0 %478
  %v481 = vmul.f32 %v459, %v479
  %v482 = vxor.u32 %v439, 2147483648
  %v483 = vmul.f32 %v482, 1.442695
  %v484 = vpow.pop %v483
  %v485 = vadd.f32 %v484, 1.0
  %v486 = vrcp.pop %v485
  %v487 = vmul.f32 %v485, %v486
  %v488 = vsub.f32 1.0, %v487
  %v489 = vmul.f32 %v486, %v488
  %v490 = vadd.f32 %v486, %v489
  %vm491 = vweird.f32 %v485
  %vm492 = vweird.f32 %v486
  %vm493 = vmor %vm491, %vm492
  %v494 = vsel %vm493, %v486, %v490
  %v495 = vand.u32 2147483647, %v485
  %vm496 = vcmp.eq.f32.partialorder %v495, 8.507059e+37
  %v497 = vand.u32 %v485, 2147483648
  %v498 = vor.u32 1.1754944e-38, %v497
  %v499 = vsel %vm496, %v498, %v494
  %v500 = vmul.f32 1.0, %v499
  %v501 = vtanh.pop %v439
  %v502 = vmul.f32 %v500, %v440
  %504 = vrot.lane.b32.xlu0 %v501, 64
  %v505 = vpop.permute.xlu0 %504
  %v507 = vmul.f32 %v500, %v505
  %509 = vrot.lane.b32.xlu0 %v507, 32
  %v510 = vpop.permute.xlu0 %509
  %v512 = vadd.f32 %v502, %v510
  %v513 = vtanh.pop %v512
  %515 = vrot.lane.b32.xlu0 %v513, 64
  %v516 = vpop.permute.xlu0 %515
  %v518 = vmul.f32 %v500, %v516
  %s519 = scalar_lea.vmem %s1, 8
  %v520 = vld [vmem:[%s519] sm:$0xff]
  %s521 = scalar_lea.vmem %s1, 48
  %v522 = vld [vmem:[%s521] sm:$0xff]
  %524 = vset.pattern.permute.xlu0 0
  %525 = vperm.xlu0 %524, %v520
  %v526 = vpop.permute.xlu0 %525
  %v528 = vmul.f32 %v481, %v526
  %v529 = vmul.f32 %v475, %v526
  %531 = vset.pattern.permute.xlu0 0
  %532 = vperm.xlu0 %531, %v522
  %v533 = vpop.permute.xlu0 %532
  %v535 = vmul.f32 %v518, %v533
  %v536 = vmul.f32 %v512, %v533
  %538 = vrot.lane.b32.xlu0 %v528, 32
  %v539 = vpop.permute.xlu0 %538
  %542 = vrot.lane.b32.xlu0 %v535, 64
  %v543 = vpop.permute.xlu0 %542
  %v545 = vsel %vm63, %v539, %v543
  %546 = vst.msk [vmem:[#allocation3] sm:$0xff] %vm150, %v545
  %548 = vrot.lane.b32.xlu0 %v529, 96
  %v549 = vpop.permute.xlu0 %548
  %v551 = vsel %vm63, %v549, %v536
  %552 = vst.msk [vmem:[#allocation4] sm:$0xff] %vm150, %v551
  %s553 = scalar_lea.vmem [#allocation5], 8
  %554 = vst.msk [vmem:[%s553] sm:$0xff] %vm63, %v539
  %555 = vrot.lane.b32.xlu0 %v535, 32
  %v556 = vpop.permute.xlu0 %555
  %s558 = scalar_lea.vmem [#allocation6], 48
  %559 = vst.msk [vmem:[%s558] sm:$0xff] %vm63, %v556
  %v560 = vld [vmem:[#allocation3] sm:$0xff]
  %v561 = vpack.c.bf16 %v560, %v560
  %v562 = vld [vmem:[%s3] sm:$0xff]
  %v563 = vld [vmem:[%s3 + $0x8] sm:$0xff]
  %v564 = vld [vmem:[%s3 + $0x10] sm:$0xff]
  %v565 = vld [vmem:[%s3 + $0x18] sm:$0xff]
  %v566 = vld [vmem:[%s3 + $0x20] sm:$0xff]
  %v567 = vld [vmem:[%s3 + $0x28] sm:$0xff]
  %v568 = vld [vmem:[%s3 + $0x30] sm:$0xff]
  %v569 = vld [vmem:[%s3 + $0x38] sm:$0xff]
  %v578 = vunpack.c.l.b16 %v562
  %v579 = vunpack.c.h.b16 %v562
  %v580 = vunpack.c.l.b16 %v563
  %v581 = vunpack.c.h.b16 %v563
  %v582 = vunpack.c.l.b16 %v564
  %v583 = vunpack.c.h.b16 %v564
  %v584 = vunpack.c.l.b16 %v565
  %v585 = vunpack.c.h.b16 %v565
  %v586 = vunpack.c.l.b16 %v566
  %v587 = vunpack.c.h.b16 %v566
  %v588 = vunpack.c.l.b16 %v567
  %v589 = vunpack.c.h.b16 %v567
  %v590 = vunpack.c.l.b16 %v568
  %v591 = vunpack.c.h.b16 %v568
  %v592 = vunpack.c.l.b16 %v569
  %v593 = vunpack.c.h.b16 %v569
  %v594 = vpack.c.b16 %v580, %v578
  %v595 = vpack.c.b16 %v581, %v579
  %v596 = vpack.c.b16 %v584, %v582
  %v597 = vpack.c.b16 %v585, %v583
  %v598 = vpack.c.b16 %v588, %v586
  %v599 = vpack.c.b16 %v589, %v587
  %v600 = vpack.c.b16 %v592, %v590
  %v601 = vpack.c.b16 %v593, %v591
  %v611 = vsel %vm150, %v561, 0
  %613 = vmatpush.bf16.msra.mxu0 0
  %614 = vmatpush.bf16.msra.mxu0 0
  %615 = vmatpush.bf16.msra.mxu0 0
  %616 = vmatpush.bf16.msra.mxu0 0
  %617 = vmatpush.bf16.msra.mxu0 %v600
  %618 = vmatpush.bf16.msra.mxu0 %v598
  %619 = vmatpush.bf16.msra.mxu0 %v596
  %620 = vmatpush.bf16.msra.mxu0 %v594
  %621 = vmatmul.bf16.gmra.mxu0 %v611
  %v622 = vpop.f32.mrf.mxu0
  %v623 = vadd.f32 0.0, %v622
  %v624 = vpop.f32.mrf.mxu0
  %625 = vdwg.mxu0
  %626 = vmatpush.bf16.msra.mxu0 0
  %627 = vmatpush.bf16.msra.mxu0 0
  %628 = vmatpush.bf16.msra.mxu0 0
  %629 = vmatpush.bf16.msra.mxu0 0
  %630 = vmatpush.bf16.msra.mxu0 %v601
  %631 = vmatpush.bf16.msra.mxu0 %v599
  %632 = vmatpush.bf16.msra.mxu0 %v597
  %633 = vmatpush.bf16.msra.mxu0 %v595
  %634 = vmatmul.bf16.gmra.mxu0 %v611
  %v635 = vpop.f32.mrf.mxu0
  %v636 = vadd.f32 0.0, %v635
  %v637 = vpop.f32.mrf.mxu0
  %638 = vdwg.mxu0
  %s639 = scalar_lea.vmem [#allocation2], 32
  %v640 = vld [vmem:[%s639] sm:$0xff]
  %v641 = vadd.f32 %v623, %v640
  %s642 = scalar_lea.vmem [#allocation2], 80
  %v643 = vld [vmem:[%s642 + $0x8] sm:$0xff]
  %v644 = vadd.f32 %v636, %v643
  %v645 = vld [vmem:[#allocation4] sm:$0xff]
  %v646 = vxor.u32 %v641, 2147483648
  %v647 = vmul.f32 %v646, 1.442695
  %v648 = vpow.pop %v647
  %v649 = vadd.f32 %v648, 1.0
  %v650 = vrcp.pop %v649
  %v651 = vmul.f32 %v649, %v650
  %v652 = vsub.f32 1.0, %v651
  %v653 = vmul.f32 %v650, %v652
  %v654 = vadd.f32 %v650, %v653
  %vm655 = vweird.f32 %v649
  %vm656 = vweird.f32 %v650
  %vm657 = vmor %vm655, %vm656
  %v658 = vsel %vm657, %v650, %v654
  %v659 = vand.u32 2147483647, %v649
  %vm660 = vcmp.eq.f32.partialorder %v659, 8.507059e+37
  %v661 = vand.u32 %v649, 2147483648
  %v662 = vor.u32 1.1754944e-38, %v661
  %v663 = vsel %vm660, %v662, %v658
  %v664 = vmul.f32 1.0, %v663
  %v665 = vtanh.pop %v641
  %667 = vrot.lane.b32.xlu0 %v645, 32
  %v668 = vpop.permute.xlu0 %667
  %v670 = vmul.f32 %v664, %v668
  %672 = vrot.lane.b32.xlu0 %v665, 64
  %v673 = vpop.permute.xlu0 %672
  %v675 = vmul.f32 %v664, %v673
  %677 = vrot.lane.b32.xlu0 %v675, 32
  %v678 = vpop.permute.xlu0 %677
  %v680 = vadd.f32 %v670, %v678
  %v681 = vtanh.pop %v680
  %683 = vrot.lane.b32.xlu0 %v681, 64
  %v684 = vpop.permute.xlu0 %683
  %v686 = vmul.f32 %v664, %v684
  %v687 = vxor.u32 %v644, 2147483648
  %v688 = vmul.f32 %v687, 1.442695
  %v689 = vpow.pop %v688
  %v690 = vadd.f32 %v689, 1.0
  %v691 = vrcp.pop %v690
  %v692 = vmul.f32 %v690, %v691
  %v693 = vsub.f32 1.0, %v692
  %v694 = vmul.f32 %v691, %v693
  %v695 = vadd.f32 %v691, %v694
  %vm696 = vweird.f32 %v690
  %vm697 = vweird.f32 %v691
  %vm698 = vmor %vm696, %vm697
  %v699 = vsel %vm698, %v691, %v695
  %v700 = vand.u32 2147483647, %v690
  %vm701 = vcmp.eq.f32.partialorder %v700, 8.507059e+37
  %v702 = vand.u32 %v690, 2147483648
  %v703 = vor.u32 1.1754944e-38, %v702
  %v704 = vsel %vm701, %v703, %v699
  %v705 = vmul.f32 1.0, %v704
  %v706 = vtanh.pop %v644
  %v707 = vmul.f32 %v705, %v645
  %709 = vrot.lane.b32.xlu0 %v706, 64
  %v710 = vpop.permute.xlu0 %709
  %v712 = vmul.f32 %v705, %v710
  %714 = vrot.lane.b32.xlu0 %v712, 32
  %v715 = vpop.permute.xlu0 %714
  %v717 = vadd.f32 %v707, %v715
  %v718 = vtanh.pop %v717
  %720 = vrot.lane.b32.xlu0 %v718, 64
  %v721 = vpop.permute.xlu0 %720
  %v723 = vmul.f32 %v705, %v721
  %s724 = scalar_lea.vmem %s1, 16
  %v725 = vld [vmem:[%s724] sm:$0xff]
  %s726 = scalar_lea.vmem %s1, 40
  %v727 = vld [vmem:[%s726] sm:$0xff]
  %729 = vset.pattern.permute.xlu0 0
  %730 = vperm.xlu0 %729, %v725
  %v731 = vpop.permute.xlu0 %730
  %v733 = vmul.f32 %v686, %v731
  %v734 = vmul.f32 %v680, %v731
  %736 = vset.pattern.permute.xlu0 0
  %737 = vperm.xlu0 %736, %v727
  %v738 = vpop.permute.xlu0 %737
  %v740 = vmul.f32 %v723, %v738
  %v741 = vmul.f32 %v717, %v738
  %743 = vrot.lane.b32.xlu0 %v733, 32
  %v744 = vpop.permute.xlu0 %743
  %747 = vrot.lane.b32.xlu0 %v740, 64
  %v748 = vpop.permute.xlu0 %747
  %v750 = vsel %vm63, %v744, %v748
  %751 = vst.msk [vmem:[#allocation3] sm:$0xff] %vm150, %v750
  %753 = vrot.lane.b32.xlu0 %v734, 96
  %v754 = vpop.permute.xlu0 %753
  %v756 = vsel %vm63, %v754, %v741
  %757 = vst.msk [vmem:[#allocation4] sm:$0xff] %vm150, %v756
  %s758 = scalar_lea.vmem [#allocation5], 16
  %759 = vst.msk [vmem:[%s758] sm:$0xff] %vm63, %v744
  %760 = vrot.lane.b32.xlu0 %v740, 32
  %v761 = vpop.permute.xlu0 %760
  %s763 = scalar_lea.vmem [#allocation6], 40
  %764 = vst.msk [vmem:[%s763] sm:$0xff] %vm63, %v761
  %v765 = vld [vmem:[#allocation3] sm:$0xff]
  %v766 = vpack.c.bf16 %v765, %v765
  %v767 = vld [vmem:[%s3] sm:$0xff]
  %v768 = vld [vmem:[%s3 + $0x8] sm:$0xff]
  %v769 = vld [vmem:[%s3 + $0x10] sm:$0xff]
  %v770 = vld [vmem:[%s3 + $0x18] sm:$0xff]
  %v771 = vld [vmem:[%s3 + $0x20] sm:$0xff]
  %v772 = vld [vmem:[%s3 + $0x28] sm:$0xff]
  %v773 = vld [vmem:[%s3 + $0x30] sm:$0xff]
  %v774 = vld [vmem:[%s3 + $0x38] sm:$0xff]
  %v783 = vunpack.c.l.b16 %v767
  %v784 = vunpack.c.h.b16 %v767
  %v785 = vunpack.c.l.b16 %v768
  %v786 = vunpack.c.h.b16 %v768
  %v787 = vunpack.c.l.b16 %v769
  %v788 = vunpack.c.h.b16 %v769
  %v789 = vunpack.c.l.b16 %v770
  %v790 = vunpack.c.h.b16 %v770
  %v791 = vunpack.c.l.b16 %v771
  %v792 = vunpack.c.h.b16 %v771
  %v793 = vunpack.c.l.b16 %v772
  %v794 = vunpack.c.h.b16 %v772
  %v795 = vunpack.c.l.b16 %v773
  %v796 = vunpack.c.h.b16 %v773
  %v797 = vunpack.c.l.b16 %v774
  %v798 = vunpack.c.h.b16 %v774
  %v799 = vpack.c.b16 %v785, %v783
  %v800 = vpack.c.b16 %v786, %v784
  %v801 = vpack.c.b16 %v789, %v787
  %v802 = vpack.c.b16 %v790, %v788
  %v803 = vpack.c.b16 %v793, %v791
  %v804 = vpack.c.b16 %v794, %v792
  %v805 = vpack.c.b16 %v797, %v795
  %v806 = vpack.c.b16 %v798, %v796
  %v816 = vsel %vm150, %v766, 0
  %818 = vmatpush.bf16.msra.mxu0 0
  %819 = vmatpush.bf16.msra.mxu0 0
  %820 = vmatpush.bf16.msra.mxu0 0
  %821 = vmatpush.bf16.msra.mxu0 0
  %822 = vmatpush.bf16.msra.mxu0 %v805
  %823 = vmatpush.bf16.msra.mxu0 %v803
  %824 = vmatpush.bf16.msra.mxu0 %v801
  %825 = vmatpush.bf16.msra.mxu0 %v799
  %826 = vmatmul.bf16.gmra.mxu0 %v816
  %v827 = vpop.f32.mrf.mxu0
  %v828 = vadd.f32 0.0, %v827
  %v829 = vpop.f32.mrf.mxu0
  %830 = vdwg.mxu0
  %831 = vmatpush.bf16.msra.mxu0 0
  %832 = vmatpush.bf16.msra.mxu0 0
  %833 = vmatpush.bf16.msra.mxu0 0
  %834 = vmatpush.bf16.msra.mxu0 0
  %835 = vmatpush.bf16.msra.mxu0 %v806
  %836 = vmatpush.bf16.msra.mxu0 %v804
  %837 = vmatpush.bf16.msra.mxu0 %v802
  %838 = vmatpush.bf16.msra.mxu0 %v800
  %839 = vmatmul.bf16.gmra.mxu0 %v816
  %v840 = vpop.f32.mrf.mxu0
  %v841 = vadd.f32 0.0, %v840
  %v842 = vpop.f32.mrf.mxu0
  %843 = vdwg.mxu0
  %s844 = scalar_lea.vmem [#allocation2], 48
  %v845 = vld [vmem:[%s844] sm:$0xff]
  %v846 = vadd.f32 %v828, %v845
  %s847 = scalar_lea.vmem [#allocation2], 64
  %v848 = vld [vmem:[%s847 + $0x8] sm:$0xff]
  %v849 = vadd.f32 %v841, %v848
  %v850 = vld [vmem:[#allocation4] sm:$0xff]
  %v851 = vxor.u32 %v846, 2147483648
  %v852 = vmul.f32 %v851, 1.442695
  %v853 = vpow.pop %v852
  %v854 = vadd.f32 %v853, 1.0
  %v855 = vrcp.pop %v854
  %v856 = vmul.f32 %v854, %v855
  %v857 = vsub.f32 1.0, %v856
  %v858 = vmul.f32 %v855, %v857
  %v859 = vadd.f32 %v855, %v858
  %vm860 = vweird.f32 %v854
  %vm861 = vweird.f32 %v855
  %vm862 = vmor %vm860, %vm861
  %v863 = vsel %vm862, %v855, %v859
  %v864 = vand.u32 2147483647, %v854
  %vm865 = vcmp.eq.f32.partialorder %v864, 8.507059e+37
  %v866 = vand.u32 %v854, 2147483648
  %v867 = vor.u32 1.1754944e-38, %v866
  %v868 = vsel %vm865, %v867, %v863
  %v869 = vmul.f32 1.0, %v868
  %v870 = vtanh.pop %v846
  %872 = vrot.lane.b32.xlu0 %v850, 32
  %v873 = vpop.permute.xlu0 %872
  %v875 = vmul.f32 %v869, %v873
  %877 = vrot.lane.b32.xlu0 %v870, 64
  %v878 = vpop.permute.xlu0 %877
  %v880 = vmul.f32 %v869, %v878
  %882 = vrot.lane.b32.xlu0 %v880, 32
  %v883 = vpop.permute.xlu0 %882
  %v885 = vadd.f32 %v875, %v883
  %v886 = vtanh.pop %v885
  %888 = vrot.lane.b32.xlu0 %v886, 64
  %v889 = vpop.permute.xlu0 %888
  %v891 = vmul.f32 %v869, %v889
  %v892 = vxor.u32 %v849, 2147483648
  %v893 = vmul.f32 %v892, 1.442695
  %v894 = vpow.pop %v893
  %v895 = vadd.f32 %v894, 1.0
  %v896 = vrcp.pop %v895
  %v897 = vmul.f32 %v895, %v896
  %v898 = vsub.f32 1.0, %v897
  %v899 = vmul.f32 %v896, %v898
  %v900 = vadd.f32 %v896, %v899
  %vm901 = vweird.f32 %v895
  %vm902 = vweird.f32 %v896
  %vm903 = vmor %vm901, %vm902
  %v904 = vsel %vm903, %v896, %v900
  %v905 = vand.u32 2147483647, %v895
  %vm906 = vcmp.eq.f32.partialorder %v905, 8.507059e+37
  %v907 = vand.u32 %v895, 2147483648
  %v908 = vor.u32 1.1754944e-38, %v907
  %v909 = vsel %vm906, %v908, %v904
  %v910 = vmul.f32 1.0, %v909
  %v911 = vtanh.pop %v849
  %v912 = vmul.f32 %v910, %v850
  %914 = vrot.lane.b32.xlu0 %v911, 64
  %v915 = vpop.permute.xlu0 %914
  %v917 = vmul.f32 %v910, %v915
  %919 = vrot.lane.b32.xlu0 %v917, 32
  %v920 = vpop.permute.xlu0 %919
  %v922 = vadd.f32 %v912, %v920
  %v923 = vtanh.pop %v922
  %925 = vrot.lane.b32.xlu0 %v923, 64
  %v926 = vpop.permute.xlu0 %925
  %v928 = vmul.f32 %v910, %v926
  %s929 = scalar_lea.vmem %s1, 24
  %v930 = vld [vmem:[%s929] sm:$0xff]
  %s931 = scalar_lea.vmem %s1, 32
  %v932 = vld [vmem:[%s931] sm:$0xff]
  %934 = vset.pattern.permute.xlu0 0
  %935 = vperm.xlu0 %934, %v930
  %v936 = vpop.permute.xlu0 %935
  %v938 = vmul.f32 %v891, %v936
  %v939 = vmul.f32 %v885, %v936
  %941 = vset.pattern.permute.xlu0 0
  %942 = vperm.xlu0 %941, %v932
  %v943 = vpop.permute.xlu0 %942
  %v945 = vmul.f32 %v928, %v943
  %v946 = vmul.f32 %v922, %v943
  %948 = vrot.lane.b32.xlu0 %v938, 32
  %v949 = vpop.permute.xlu0 %948
  %952 = vrot.lane.b32.xlu0 %v945, 64
  %v953 = vpop.permute.xlu0 %952
  %v955 = vsel %vm63, %v949, %v953
  %956 = vst.msk [vmem:[#allocation3] sm:$0xff] %vm150, %v955
  %958 = vrot.lane.b32.xlu0 %v939, 96
  %v959 = vpop.permute.xlu0 %958
  %v961 = vsel %vm63, %v959, %v946
  %962 = vst.msk [vmem:[#allocation4] sm:$0xff] %vm150, %v961
  %s963 = scalar_lea.vmem [#allocation5], 24
  %964 = vst.msk [vmem:[%s963] sm:$0xff] %vm63, %v949
  %965 = vrot.lane.b32.xlu0 %v945, 32
  %v966 = vpop.permute.xlu0 %965
  %s968 = scalar_lea.vmem [#allocation6], 32
  %969 = vst.msk [vmem:[%s968] sm:$0xff] %vm63, %v966
  %v970 = vld [vmem:[#allocation3] sm:$0xff]
  %v971 = vpack.c.bf16 %v970, %v970
  %v972 = vld [vmem:[%s3] sm:$0xff]
  %v973 = vld [vmem:[%s3 + $0x8] sm:$0xff]
  %v974 = vld [vmem:[%s3 + $0x10] sm:$0xff]
  %v975 = vld [vmem:[%s3 + $0x18] sm:$0xff]
  %v976 = vld [vmem:[%s3 + $0x20] sm:$0xff]
  %v977 = vld [vmem:[%s3 + $0x28] sm:$0xff]
  %v978 = vld [vmem:[%s3 + $0x30] sm:$0xff]
  %v979 = vld [vmem:[%s3 + $0x38] sm:$0xff]
  %v988 = vunpack.c.l.b16 %v972
  %v989 = vunpack.c.h.b16 %v972
  %v990 = vunpack.c.l.b16 %v973
  %v991 = vunpack.c.h.b16 %v973
  %v992 = vunpack.c.l.b16 %v974
  %v993 = vunpack.c.h.b16 %v974
  %v994 = vunpack.c.l.b16 %v975
  %v995 = vunpack.c.h.b16 %v975
  %v996 = vunpack.c.l.b16 %v976
  %v997 = vunpack.c.h.b16 %v976
  %v998 = vunpack.c.l.b16 %v977
  %v999 = vunpack.c.h.b16 %v977
  %v1000 = vunpack.c.l.b16 %v978
  %v1001 = vunpack.c.h.b16 %v978
  %v1002 = vunpack.c.l.b16 %v979
  %v1003 = vunpack.c.h.b16 %v979
  %v1004 = vpack.c.b16 %v990, %v988
  %v1005 = vpack.c.b16 %v991, %v989
  %v1006 = vpack.c.b16 %v994, %v992
  %v1007 = vpack.c.b16 %v995, %v993
  %v1008 = vpack.c.b16 %v998, %v996
  %v1009 = vpack.c.b16 %v999, %v997
  %v1010 = vpack.c.b16 %v1002, %v1000
  %v1011 = vpack.c.b16 %v1003, %v1001
  %v1021 = vsel %vm150, %v971, 0
  %1023 = vmatpush.bf16.msra.mxu0 0
  %1024 = vmatpush.bf16.msra.mxu0 0
  %1025 = vmatpush.bf16.msra.mxu0 0
  %1026 = vmatpush.bf16.msra.mxu0 0
  %1027 = vmatpush.bf16.msra.mxu0 %v1010
  %1028 = vmatpush.bf16.msra.mxu0 %v1008
  %1029 = vmatpush.bf16.msra.mxu0 %v1006
  %1030 = vmatpush.bf16.msra.mxu0 %v1004
  %1031 = vmatmul.bf16.gmra.mxu0 %v1021
  %v1032 = vpop.f32.mrf.mxu0
  %v1033 = vadd.f32 0.0, %v1032
  %v1034 = vpop.f32.mrf.mxu0
  %1035 = vdwg.mxu0
  %1036 = vmatpush.bf16.msra.mxu0 0
  %1037 = vmatpush.bf16.msra.mxu0 0
  %1038 = vmatpush.bf16.msra.mxu0 0
  %1039 = vmatpush.bf16.msra.mxu0 0
  %1040 = vmatpush.bf16.msra.mxu0 %v1011
  %1041 = vmatpush.bf16.msra.mxu0 %v1009
  %1042 = vmatpush.bf16.msra.mxu0 %v1007
  %1043 = vmatpush.bf16.msra.mxu0 %v1005
  %1044 = vmatmul.bf16.gmra.mxu0 %v1021
  %v1045 = vpop.f32.mrf.mxu0
  %v1046 = vadd.f32 0.0, %v1045
  %v1047 = vpop.f32.mrf.mxu0
  %1048 = vdwg.mxu0
  %v1049 = vld [vmem:[%s847] sm:$0xff]
  %v1050 = vadd.f32 %v1033, %v1049
  %v1051 = vld [vmem:[%s844 + $0x8] sm:$0xff]
  %v1052 = vadd.f32 %v1046, %v1051
  %v1053 = vld [vmem:[#allocation4] sm:$0xff]
  %v1054 = vxor.u32 %v1050, 2147483648
  %v1055 = vmul.f32 %v1054, 1.442695
  %v1056 = vpow.pop %v1055
  %v1057 = vadd.f32 %v1056, 1.0
  %v1058 = vrcp.pop %v1057
  %v1059 = vmul.f32 %v1057, %v1058
  %v1060 = vsub.f32 1.0, %v1059
  %v1061 = vmul.f32 %v1058, %v1060
  %v1062 = vadd.f32 %v1058, %v1061
  %vm1063 = vweird.f32 %v1057
  %vm1064 = vweird.f32 %v1058
  %vm1065 = vmor %vm1063, %vm1064
  %v1066 = vsel %vm1065, %v1058, %v1062
  %v1067 = vand.u32 2147483647, %v1057
  %vm1068 = vcmp.eq.f32.partialorder %v1067, 8.507059e+37
  %v1069 = vand.u32 %v1057, 2147483648
  %v1070 = vor.u32 1.1754944e-38, %v1069
  %v1071 = vsel %vm1068, %v1070, %v1066
  %v1072 = vmul.f32 1.0, %v1071
  %v1073 = vtanh.pop %v1050
  %1075 = vrot.lane.b32.xlu0 %v1053, 32
  %v1076 = vpop.permute.xlu0 %1075
  %v1078 = vmul.f32 %v1072, %v1076
  %1080 = vrot.lane.b32.xlu0 %v1073, 64
  %v1081 = vpop.permute.xlu0 %1080
  %v1083 = vmul.f32 %v1072, %v1081
  %1085 = vrot.lane.b32.xlu0 %v1083, 32
  %v1086 = vpop.permute.xlu0 %1085
  %v1088 = vadd.f32 %v1078, %v1086
  %v1089 = vtanh.pop %v1088
  %1091 = vrot.lane.b32.xlu0 %v1089, 64
  %v1092 = vpop.permute.xlu0 %1091
  %v1094 = vmul.f32 %v1072, %v1092
  %v1095 = vxor.u32 %v1052, 2147483648
  %v1096 = vmul.f32 %v1095, 1.442695
  %v1097 = vpow.pop %v1096
  %v1098 = vadd.f32 %v1097, 1.0
  %v1099 = vrcp.pop %v1098
  %v1100 = vmul.f32 %v1098, %v1099
  %v1101 = vsub.f32 1.0, %v1100
  %v1102 = vmul.f32 %v1099, %v1101
  %v1103 = vadd.f32 %v1099, %v1102
  %vm1104 = vweird.f32 %v1098
  %vm1105 = vweird.f32 %v1099
  %vm1106 = vmor %vm1104, %vm1105
  %v1107 = vsel %vm1106, %v1099, %v1103
  %v1108 = vand.u32 2147483647, %v1098
  %vm1109 = vcmp.eq.f32.partialorder %v1108, 8.507059e+37
  %v1110 = vand.u32 %v1098, 2147483648
  %v1111 = vor.u32 1.1754944e-38, %v1110
  %v1112 = vsel %vm1109, %v1111, %v1107
  %v1113 = vmul.f32 1.0, %v1112
  %v1114 = vtanh.pop %v1052
  %v1115 = vmul.f32 %v1113, %v1053
  %1117 = vrot.lane.b32.xlu0 %v1114, 64
  %v1118 = vpop.permute.xlu0 %1117
  %v1120 = vmul.f32 %v1113, %v1118
  %1122 = vrot.lane.b32.xlu0 %v1120, 32
  %v1123 = vpop.permute.xlu0 %1122
  %v1125 = vadd.f32 %v1115, %v1123
  %v1126 = vtanh.pop %v1125
  %1128 = vrot.lane.b32.xlu0 %v1126, 64
  %v1129 = vpop.permute.xlu0 %1128
  %v1131 = vmul.f32 %v1113, %v1129
  %v1132 = vld [vmem:[%s931] sm:$0xff]
  %v1133 = vld [vmem:[%s929] sm:$0xff]
  %1135 = vset.pattern.permute.xlu0 0
  %1136 = vperm.xlu0 %1135, %v1132
  %v1137 = vpop.permute.xlu0 %1136
  %v1139 = vmul.f32 %v1094, %v1137
  %v1140 = vmul.f32 %v1088, %v1137
  %1142 = vset.pattern.permute.xlu0 0
  %1143 = vperm.xlu0 %1142, %v1133
  %v1144 = vpop.permute.xlu0 %1143
  %v1146 = vmul.f32 %v1131, %v1144
  %v1147 = vmul.f32 %v1125, %v1144
  %1149 = vrot.lane.b32.xlu0 %v1139, 32
  %v1150 = vpop.permute.xlu0 %1149
  %1153 = vrot.lane.b32.xlu0 %v1146, 64
  %v1154 = vpop.permute.xlu0 %1153
  %v1156 = vsel %vm63, %v1150, %v1154
  %1157 = vst.msk [vmem:[#allocation3] sm:$0xff] %vm150, %v1156
  %1159 = vrot.lane.b32.xlu0 %v1140, 96
  %v1160 = vpop.permute.xlu0 %1159
  %v1162 = vsel %vm63, %v1160, %v1147
  %1163 = vst.msk [vmem:[#allocation4] sm:$0xff] %vm150, %v1162
  %s1164 = scalar_lea.vmem [#allocation5], 32
  %1165 = vst.msk [vmem:[%s1164] sm:$0xff] %vm63, %v1150
  %1166 = vrot.lane.b32.xlu0 %v1146, 32
  %v1167 = vpop.permute.xlu0 %1166
  %s1169 = scalar_lea.vmem [#allocation6], 24
  %1170 = vst.msk [vmem:[%s1169] sm:$0xff] %vm63, %v1167
  %v1171 = vld [vmem:[#allocation3] sm:$0xff]
  %v1172 = vpack.c.bf16 %v1171, %v1171
  %v1173 = vld [vmem:[%s3] sm:$0xff]
  %v1174 = vld [vmem:[%s3 + $0x8] sm:$0xff]
  %v1175 = vld [vmem:[%s3 + $0x10] sm:$0xff]
  %v1176 = vld [vmem:[%s3 + $0x18] sm:$0xff]
  %v1177 = vld [vmem:[%s3 + $0x20] sm:$0xff]
  %v1178 = vld [vmem:[%s3 + $0x28] sm:$0xff]
  %v1179 = vld [vmem:[%s3 + $0x30] sm:$0xff]
  %v1180 = vld [vmem:[%s3 + $0x38] sm:$0xff]
  %v1189 = vunpack.c.l.b16 %v1173
  %v1190 = vunpack.c.h.b16 %v1173
  %v1191 = vunpack.c.l.b16 %v1174
  %v1192 = vunpack.c.h.b16 %v1174
  %v1193 = vunpack.c.l.b16 %v1175
  %v1194 = vunpack.c.h.b16 %v1175
  %v1195 = vunpack.c.l.b16 %v1176
  %v1196 = vunpack.c.h.b16 %v1176
  %v1197 = vunpack.c.l.b16 %v1177
  %v1198 = vunpack.c.h.b16 %v1177
  %v1199 = vunpack.c.l.b16 %v1178
  %v1200 = vunpack.c.h.b16 %v1178
  %v1201 = vunpack.c.l.b16 %v1179
  %v1202 = vunpack.c.h.b16 %v1179
  %v1203 = vunpack.c.l.b16 %v1180
  %v1204 = vunpack.c.h.b16 %v1180
  %v1205 = vpack.c.b16 %v1191, %v1189
  %v1206 = vpack.c.b16 %v1192, %v1190
  %v1207 = vpack.c.b16 %v1195, %v1193
  %v1208 = vpack.c.b16 %v1196, %v1194
  %v1209 = vpack.c.b16 %v1199, %v1197
  %v1210 = vpack.c.b16 %v1200, %v1198
  %v1211 = vpack.c.b16 %v1203, %v1201
  %v1212 = vpack.c.b16 %v1204, %v1202
  %v1222 = vsel %vm150, %v1172, 0
  %1224 = vmatpush.bf16.msra.mxu0 0
  %1225 = vmatpush.bf16.msra.mxu0 0
  %1226 = vmatpush.bf16.msra.mxu0 0
  %1227 = vmatpush.bf16.msra.mxu0 0
  %1228 = vmatpush.bf16.msra.mxu0 %v1211
  %1229 = vmatpush.bf16.msra.mxu0 %v1209
  %1230 = vmatpush.bf16.msra.mxu0 %v1207
  %1231 = vmatpush.bf16.msra.mxu0 %v1205
  %1232 = vmatmul.bf16.gmra.mxu0 %v1222
  %v1233 = vpop.f32.mrf.mxu0
  %v1234 = vadd.f32 0.0, %v1233
  %v1235 = vpop.f32.mrf.mxu0
  %1236 = vdwg.mxu0
  %1237 = vmatpush.bf16.msra.mxu0 0
  %1238 = vmatpush.bf16.msra.mxu0 0
  %1239 = vmatpush.bf16.msra.mxu0 0
  %1240 = vmatpush.bf16.msra.mxu0 0
  %1241 = vmatpush.bf16.msra.mxu0 %v1212
  %1242 = vmatpush.bf16.msra.mxu0 %v1210
  %1243 = vmatpush.bf16.msra.mxu0 %v1208
  %1244 = vmatpush.bf16.msra.mxu0 %v1206
  %1245 = vmatmul.bf16.gmra.mxu0 %v1222
  %v1246 = vpop.f32.mrf.mxu0
  %v1247 = vadd.f32 0.0, %v1246
  %v1248 = vpop.f32.mrf.mxu0
  %1249 = vdwg.mxu0
  %v1250 = vld [vmem:[%s642] sm:$0xff]
  %v1251 = vadd.f32 %v1234, %v1250
  %v1252 = vld [vmem:[%s639 + $0x8] sm:$0xff]
  %v1253 = vadd.f32 %v1247, %v1252
  %v1254 = vld [vmem:[#allocation4] sm:$0xff]
  %v1255 = vxor.u32 %v1251, 2147483648
  %v1256 = vmul.f32 %v1255, 1.442695
  %v1257 = vpow.pop %v1256
  %v1258 = vadd.f32 %v1257, 1.0
  %v1259 = vrcp.pop %v1258
  %v1260 = vmul.f32 %v1258, %v1259
  %v1261 = vsub.f32 1.0, %v1260
  %v1262 = vmul.f32 %v1259, %v1261
  %v1263 = vadd.f32 %v1259, %v1262
  %vm1264 = vweird.f32 %v1258
  %vm1265 = vweird.f32 %v1259
  %vm1266 = vmor %vm1264, %vm1265
  %v1267 = vsel %vm1266, %v1259, %v1263
  %v1268 = vand.u32 2147483647, %v1258
  %vm1269 = vcmp.eq.f32.partialorder %v1268, 8.507059e+37
  %v1270 = vand.u32 %v1258, 2147483648
  %v1271 = vor.u32 1.1754944e-38, %v1270
  %v1272 = vsel %vm1269, %v1271, %v1267
  %v1273 = vmul.f32 1.0, %v1272
  %v1274 = vtanh.pop %v1251
  %1276 = vrot.lane.b32.xlu0 %v1254, 32
  %v1277 = vpop.permute.xlu0 %1276
  %v1279 = vmul.f32 %v1273, %v1277
  %1281 = vrot.lane.b32.xlu0 %v1274, 64
  %v1282 = vpop.permute.xlu0 %1281
  %v1284 = vmul.f32 %v1273, %v1282
  %1286 = vrot.lane.b32.xlu0 %v1284, 32
  %v1287 = vpop.permute.xlu0 %1286
  %v1289 = vadd.f32 %v1279, %v1287
  %v1290 = vtanh.pop %v1289
  %1292 = vrot.lane.b32.xlu0 %v1290, 64
  %v1293 = vpop.permute.xlu0 %1292
  %v1295 = vmul.f32 %v1273, %v1293
  %v1296 = vxor.u32 %v1253, 2147483648
  %v1297 = vmul.f32 %v1296, 1.442695
  %v1298 = vpow.pop %v1297
  %v1299 = vadd.f32 %v1298, 1.0
  %v1300 = vrcp.pop %v1299
  %v1301 = vmul.f32 %v1299, %v1300
  %v1302 = vsub.f32 1.0, %v1301
  %v1303 = vmul.f32 %v1300, %v1302
  %v1304 = vadd.f32 %v1300, %v1303
  %vm1305 = vweird.f32 %v1299
  %vm1306 = vweird.f32 %v1300
  %vm1307 = vmor %vm1305, %vm1306
  %v1308 = vsel %vm1307, %v1300, %v1304
  %v1309 = vand.u32 2147483647, %v1299
  %vm1310 = vcmp.eq.f32.partialorder %v1309, 8.507059e+37
  %v1311 = vand.u32 %v1299, 2147483648
  %v1312 = vor.u32 1.1754944e-38, %v1311
  %v1313 = vsel %vm1310, %v1312, %v1308
  %v1314 = vmul.f32 1.0, %v1313
  %v1315 = vtanh.pop %v1253
  %v1316 = vmul.f32 %v1314, %v1254
  %1318 = vrot.lane.b32.xlu0 %v1315, 64
  %v1319 = vpop.permute.xlu0 %1318
  %v1321 = vmul.f32 %v1314, %v1319
  %1323 = vrot.lane.b32.xlu0 %v1321, 32
  %v1324 = vpop.permute.xlu0 %1323
  %v1326 = vadd.f32 %v1316, %v1324
  %v1327 = vtanh.pop %v1326
  %1329 = vrot.lane.b32.xlu0 %v1327, 64
  %v1330 = vpop.permute.xlu0 %1329
  %v1332 = vmul.f32 %v1314, %v1330
  %v1333 = vld [vmem:[%s726] sm:$0xff]
  %v1334 = vld [vmem:[%s724] sm:$0xff]
  %1336 = vset.pattern.permute.xlu0 0
  %1337 = vperm.xlu0 %1336, %v1333
  %v1338 = vpop.permute.xlu0 %1337
  %v1340 = vmul.f32 %v1295, %v1338
  %v1341 = vmul.f32 %v1289, %v1338
  %1343 = vset.pattern.permute.xlu0 0
  %1344 = vperm.xlu0 %1343, %v1334
  %v1345 = vpop.permute.xlu0 %1344
  %v1347 = vmul.f32 %v1332, %v1345
  %v1348 = vmul.f32 %v1326, %v1345
  %1350 = vrot.lane.b32.xlu0 %v1340, 32
  %v1351 = vpop.permute.xlu0 %1350
  %1354 = vrot.lane.b32.xlu0 %v1347, 64
  %v1355 = vpop.permute.xlu0 %1354
  %v1357 = vsel %vm63, %v1351, %v1355
  %1358 = vst.msk [vmem:[#allocation3] sm:$0xff] %vm150, %v1357
  %1360 = vrot.lane.b32.xlu0 %v1341, 96
  %v1361 = vpop.permute.xlu0 %1360
  %v1363 = vsel %vm63, %v1361, %v1348
  %1364 = vst.msk [vmem:[#allocation4] sm:$0xff] %vm150, %v1363
  %s1365 = scalar_lea.vmem [#allocation5], 40
  %1366 = vst.msk [vmem:[%s1365] sm:$0xff] %vm63, %v1351
  %1367 = vrot.lane.b32.xlu0 %v1347, 32
  %v1368 = vpop.permute.xlu0 %1367
  %s1370 = scalar_lea.vmem [#allocation6], 16
  %1371 = vst.msk [vmem:[%s1370] sm:$0xff] %vm63, %v1368
  %v1372 = vld [vmem:[#allocation3] sm:$0xff]
  %v1373 = vpack.c.bf16 %v1372, %v1372
  %v1374 = vld [vmem:[%s3] sm:$0xff]
  %v1375 = vld [vmem:[%s3 + $0x8] sm:$0xff]
  %v1376 = vld [vmem:[%s3 + $0x10] sm:$0xff]
  %v1377 = vld [vmem:[%s3 + $0x18] sm:$0xff]
  %v1378 = vld [vmem:[%s3 + $0x20] sm:$0xff]
  %v1379 = vld [vmem:[%s3 + $0x28] sm:$0xff]
  %v1380 = vld [vmem:[%s3 + $0x30] sm:$0xff]
  %v1381 = vld [vmem:[%s3 + $0x38] sm:$0xff]
  %v1390 = vunpack.c.l.b16 %v1374
  %v1391 = vunpack.c.h.b16 %v1374
  %v1392 = vunpack.c.l.b16 %v1375
  %v1393 = vunpack.c.h.b16 %v1375
  %v1394 = vunpack.c.l.b16 %v1376
  %v1395 = vunpack.c.h.b16 %v1376
  %v1396 = vunpack.c.l.b16 %v1377
  %v1397 = vunpack.c.h.b16 %v1377
  %v1398 = vunpack.c.l.b16 %v1378
  %v1399 = vunpack.c.h.b16 %v1378
  %v1400 = vunpack.c.l.b16 %v1379
  %v1401 = vunpack.c.h.b16 %v1379
  %v1402 = vunpack.c.l.b16 %v1380
  %v1403 = vunpack.c.h.b16 %v1380
  %v1404 = vunpack.c.l.b16 %v1381
  %v1405 = vunpack.c.h.b16 %v1381
  %v1406 = vpack.c.b16 %v1392, %v1390
  %v1407 = vpack.c.b16 %v1393, %v1391
  %v1408 = vpack.c.b16 %v1396, %v1394
  %v1409 = vpack.c.b16 %v1397, %v1395
  %v1410 = vpack.c.b16 %v1400, %v1398
  %v1411 = vpack.c.b16 %v1401, %v1399
  %v1412 = vpack.c.b16 %v1404, %v1402
  %v1413 = vpack.c.b16 %v1405, %v1403
  %v1423 = vsel %vm150, %v1373, 0
  %1425 = vmatpush.bf16.msra.mxu0 0
  %1426 = vmatpush.bf16.msra.mxu0 0
  %1427 = vmatpush.bf16.msra.mxu0 0
  %1428 = vmatpush.bf16.msra.mxu0 0
  %1429 = vmatpush.bf16.msra.mxu0 %v1412
  %1430 = vmatpush.bf16.msra.mxu0 %v1410
  %1431 = vmatpush.bf16.msra.mxu0 %v1408
  %1432 = vmatpush.bf16.msra.mxu0 %v1406
  %1433 = vmatmul.bf16.gmra.mxu0 %v1423
  %v1434 = vpop.f32.mrf.mxu0
  %v1435 = vadd.f32 0.0, %v1434
  %v1436 = vpop.f32.mrf.mxu0
  %1437 = vdwg.mxu0
  %1438 = vmatpush.bf16.msra.mxu0 0
  %1439 = vmatpush.bf16.msra.mxu0 0
  %1440 = vmatpush.bf16.msra.mxu0 0
  %1441 = vmatpush.bf16.msra.mxu0 0
  %1442 = vmatpush.bf16.msra.mxu0 %v1413
  %1443 = vmatpush.bf16.msra.mxu0 %v1411
  %1444 = vmatpush.bf16.msra.mxu0 %v1409
  %1445 = vmatpush.bf16.msra.mxu0 %v1407
  %1446 = vmatmul.bf16.gmra.mxu0 %v1423
  %v1447 = vpop.f32.mrf.mxu0
  %v1448 = vadd.f32 0.0, %v1447
  %v1449 = vpop.f32.mrf.mxu0
  %1450 = vdwg.mxu0
  %v1451 = vld [vmem:[%s437] sm:$0xff]
  %v1452 = vadd.f32 %v1435, %v1451
  %v1453 = vld [vmem:[%s434 + $0x8] sm:$0xff]
  %v1454 = vadd.f32 %v1448, %v1453
  %v1455 = vld [vmem:[#allocation4] sm:$0xff]
  %v1456 = vxor.u32 %v1452, 2147483648
  %v1457 = vmul.f32 %v1456, 1.442695
  %v1458 = vpow.pop %v1457
  %v1459 = vadd.f32 %v1458, 1.0
  %v1460 = vrcp.pop %v1459
  %v1461 = vmul.f32 %v1459, %v1460
  %v1462 = vsub.f32 1.0, %v1461
  %v1463 = vmul.f32 %v1460, %v1462
  %v1464 = vadd.f32 %v1460, %v1463
  %vm1465 = vweird.f32 %v1459
  %vm1466 = vweird.f32 %v1460
  %vm1467 = vmor %vm1465, %vm1466
  %v1468 = vsel %vm1467, %v1460, %v1464
  %v1469 = vand.u32 2147483647, %v1459
  %vm1470 = vcmp.eq.f32.partialorder %v1469, 8.507059e+37
  %v1471 = vand.u32 %v1459, 2147483648
  %v1472 = vor.u32 1.1754944e-38, %v1471
  %v1473 = vsel %vm1470, %v1472, %v1468
  %v1474 = vmul.f32 1.0, %v1473
  %v1475 = vtanh.pop %v1452
  %1477 = vrot.lane.b32.xlu0 %v1455, 32
  %v1478 = vpop.permute.xlu0 %1477
  %v1480 = vmul.f32 %v1474, %v1478
  %1482 = vrot.lane.b32.xlu0 %v1475, 64
  %v1483 = vpop.permute.xlu0 %1482
  %v1485 = vmul.f32 %v1474, %v1483
  %1487 = vrot.lane.b32.xlu0 %v1485, 32
  %v1488 = vpop.permute.xlu0 %1487
  %v1490 = vadd.f32 %v1480, %v1488
  %v1491 = vtanh.pop %v1490
  %1493 = vrot.lane.b32.xlu0 %v1491, 64
  %v1494 = vpop.permute.xlu0 %1493
  %v1496 = vmul.f32 %v1474, %v1494
  %v1497 = vxor.u32 %v1454, 2147483648
  %v1498 = vmul.f32 %v1497, 1.442695
  %v1499 = vpow.pop %v1498
  %v1500 = vadd.f32 %v1499, 1.0
  %v1501 = vrcp.pop %v1500
  %v1502 = vmul.f32 %v1500, %v1501
  %v1503 = vsub.f32 1.0, %v1502
  %v1504 = vmul.f32 %v1501, %v1503
  %v1505 = vadd.f32 %v1501, %v1504
  %vm1506 = vweird.f32 %v1500
  %vm1507 = vweird.f32 %v1501
  %vm1508 = vmor %vm1506, %vm1507
  %v1509 = vsel %vm1508, %v1501, %v1505
  %v1510 = vand.u32 2147483647, %v1500
  %vm1511 = vcmp.eq.f32.partialorder %v1510, 8.507059e+37
  %v1512 = vand.u32 %v1500, 2147483648
  %v1513 = vor.u32 1.1754944e-38, %v1512
  %v1514 = vsel %vm1511, %v1513, %v1509
  %v1515 = vmul.f32 1.0, %v1514
  %v1516 = vtanh.pop %v1454
  %v1517 = vmul.f32 %v1515, %v1455
  %1519 = vrot.lane.b32.xlu0 %v1516, 64
  %v1520 = vpop.permute.xlu0 %1519
  %v1522 = vmul.f32 %v1515, %v1520
  %1524 = vrot.lane.b32.xlu0 %v1522, 32
  %v1525 = vpop.permute.xlu0 %1524
  %v1527 = vadd.f32 %v1517, %v1525
  %v1528 = vtanh.pop %v1527
  %1530 = vrot.lane.b32.xlu0 %v1528, 64
  %v1531 = vpop.permute.xlu0 %1530
  %v1533 = vmul.f32 %v1515, %v1531
  %v1534 = vld [vmem:[%s521] sm:$0xff]
  %v1535 = vld [vmem:[%s519] sm:$0xff]
  %1537 = vset.pattern.permute.xlu0 0
  %1538 = vperm.xlu0 %1537, %v1534
  %v1539 = vpop.permute.xlu0 %1538
  %v1541 = vmul.f32 %v1496, %v1539
  %v1542 = vmul.f32 %v1490, %v1539
  %1544 = vset.pattern.permute.xlu0 0
  %1545 = vperm.xlu0 %1544, %v1535
  %v1546 = vpop.permute.xlu0 %1545
  %v1548 = vmul.f32 %v1533, %v1546
  %v1549 = vmul.f32 %v1527, %v1546
  %1551 = vrot.lane.b32.xlu0 %v1541, 32
  %v1552 = vpop.permute.xlu0 %1551
  %1555 = vrot.lane.b32.xlu0 %v1548, 64
  %v1556 = vpop.permute.xlu0 %1555
  %v1558 = vsel %vm63, %v1552, %v1556
  %1559 = vst.msk [vmem:[#allocation3] sm:$0xff] %vm150, %v1558
  %1561 = vrot.lane.b32.xlu0 %v1542, 96
  %v1562 = vpop.permute.xlu0 %1561
  %v1564 = vsel %vm63, %v1562, %v1549
  %1565 = vst.msk [vmem:[#allocation4] sm:$0xff] %vm150, %v1564
  %s1566 = scalar_lea.vmem [#allocation5], 48
  %1567 = vst.msk [vmem:[%s1566] sm:$0xff] %vm63, %v1552
  %1568 = vrot.lane.b32.xlu0 %v1548, 32
  %v1569 = vpop.permute.xlu0 %1568
  %s1571 = scalar_lea.vmem [#allocation6], 8
  %1572 = vst.msk [vmem:[%s1571] sm:$0xff] %vm63, %v1569
  %v1573 = vld [vmem:[#allocation3] sm:$0xff]
  %v1574 = vpack.c.bf16 %v1573, %v1573
  %v1575 = vld [vmem:[%s3] sm:$0xff]
  %v1576 = vld [vmem:[%s3 + $0x8] sm:$0xff]
  %v1577 = vld [vmem:[%s3 + $0x10] sm:$0xff]
  %v1578 = vld [vmem:[%s3 + $0x18] sm:$0xff]
  %v1579 = vld [vmem:[%s3 + $0x20] sm:$0xff]
  %v1580 = vld [vmem:[%s3 + $0x28] sm:$0xff]
  %v1581 = vld [vmem:[%s3 + $0x30] sm:$0xff]
  %v1582 = vld [vmem:[%s3 + $0x38] sm:$0xff]
  %v1591 = vunpack.c.l.b16 %v1575
  %v1592 = vunpack.c.h.b16 %v1575
  %v1593 = vunpack.c.l.b16 %v1576
  %v1594 = vunpack.c.h.b16 %v1576
  %v1595 = vunpack.c.l.b16 %v1577
  %v1596 = vunpack.c.h.b16 %v1577
  %v1597 = vunpack.c.l.b16 %v1578
  %v1598 = vunpack.c.h.b16 %v1578
  %v1599 = vunpack.c.l.b16 %v1579
  %v1600 = vunpack.c.h.b16 %v1579
  %v1601 = vunpack.c.l.b16 %v1580
  %v1602 = vunpack.c.h.b16 %v1580
  %v1603 = vunpack.c.l.b16 %v1581
  %v1604 = vunpack.c.h.b16 %v1581
  %v1605 = vunpack.c.l.b16 %v1582
  %v1606 = vunpack.c.h.b16 %v1582
  %v1607 = vpack.c.b16 %v1593, %v1591
  %v1608 = vpack.c.b16 %v1594, %v1592
  %v1609 = vpack.c.b16 %v1597, %v1595
  %v1610 = vpack.c.b16 %v1598, %v1596
  %v1611 = vpack.c.b16 %v1601, %v1599
  %v1612 = vpack.c.b16 %v1602, %v1600
  %v1613 = vpack.c.b16 %v1605, %v1603
  %v1614 = vpack.c.b16 %v1606, %v1604
  %v1624 = vsel %vm150, %v1574, 0
  %1626 = vmatpush.bf16.msra.mxu0 0
  %1627 = vmatpush.bf16.msra.mxu0 0
  %1628 = vmatpush.bf16.msra.mxu0 0
  %1629 = vmatpush.bf16.msra.mxu0 0
  %1630 = vmatpush.bf16.msra.mxu0 %v1613
  %1631 = vmatpush.bf16.msra.mxu0 %v1611
  %1632 = vmatpush.bf16.msra.mxu0 %v1609
  %1633 = vmatpush.bf16.msra.mxu0 %v1607
  %1634 = vmatmul.bf16.gmra.mxu0 %v1624
  %v1635 = vpop.f32.mrf.mxu0
  %v1636 = vadd.f32 0.0, %v1635
  %v1637 = vpop.f32.mrf.mxu0
  %1638 = vdwg.mxu0
  %1639 = vmatpush.bf16.msra.mxu0 0
  %1640 = vmatpush.bf16.msra.mxu0 0
  %1641 = vmatpush.bf16.msra.mxu0 0
  %1642 = vmatpush.bf16.msra.mxu0 0
  %1643 = vmatpush.bf16.msra.mxu0 %v1614
  %1644 = vmatpush.bf16.msra.mxu0 %v1612
  %1645 = vmatpush.bf16.msra.mxu0 %v1610
  %1646 = vmatpush.bf16.msra.mxu0 %v1608
  %1647 = vmatmul.bf16.gmra.mxu0 %v1624
  %v1648 = vpop.f32.mrf.mxu0
  %v1649 = vadd.f32 0.0, %v1648
  %v1650 = vpop.f32.mrf.mxu0
  %1651 = vdwg.mxu0
  %v1652 = vld [vmem:[%s234] sm:$0xff]
  %v1653 = vadd.f32 %v1636, %v1652
  %v1654 = vld [vmem:[#allocation2 + $0x8] sm:$0xff]
  %v1655 = vadd.f32 %v1649, %v1654
  %v1656 = vld [vmem:[#allocation4] sm:$0xff]
  %v1657 = vxor.u32 %v1653, 2147483648
  %v1658 = vmul.f32 %v1657, 1.442695
  %v1659 = vpow.pop %v1658
  %v1660 = vadd.f32 %v1659, 1.0
  %v1661 = vrcp.pop %v1660
  %v1662 = vmul.f32 %v1660, %v1661
  %v1663 = vsub.f32 1.0, %v1662
  %v1664 = vmul.f32 %v1661, %v1663
  %v1665 = vadd.f32 %v1661, %v1664
  %vm1666 = vweird.f32 %v1660
  %vm1667 = vweird.f32 %v1661
  %vm1668 = vmor %vm1666, %vm1667
  %v1669 = vsel %vm1668, %v1661, %v1665
  %v1670 = vand.u32 2147483647, %v1660
  %vm1671 = vcmp.eq.f32.partialorder %v1670, 8.507059e+37
  %v1672 = vand.u32 %v1660, 2147483648
  %v1673 = vor.u32 1.1754944e-38, %v1672
  %v1674 = vsel %vm1671, %v1673, %v1669
  %v1675 = vmul.f32 1.0, %v1674
  %v1676 = vtanh.pop %v1653
  %1678 = vrot.lane.b32.xlu0 %v1656, 32
  %v1679 = vpop.permute.xlu0 %1678
  %v1681 = vmul.f32 %v1675, %v1679
  %1683 = vrot.lane.b32.xlu0 %v1676, 64
  %v1684 = vpop.permute.xlu0 %1683
  %v1686 = vmul.f32 %v1675, %v1684
  %1688 = vrot.lane.b32.xlu0 %v1686, 32
  %v1689 = vpop.permute.xlu0 %1688
  %v1691 = vadd.f32 %v1681, %v1689
  %v1692 = vtanh.pop %v1691
  %1694 = vrot.lane.b32.xlu0 %v1692, 64
  %v1695 = vpop.permute.xlu0 %1694
  %v1697 = vmul.f32 %v1675, %v1695
  %v1698 = vxor.u32 %v1655, 2147483648
  %v1699 = vmul.f32 %v1698, 1.442695
  %v1700 = vpow.pop %v1699
  %v1701 = vadd.f32 %v1700, 1.0
  %v1702 = vrcp.pop %v1701
  %v1703 = vmul.f32 %v1701, %v1702
  %v1704 = vsub.f32 1.0, %v1703
  %v1705 = vmul.f32 %v1702, %v1704
  %v1706 = vadd.f32 %v1702, %v1705
  %vm1707 = vweird.f32 %v1701
  %vm1708 = vweird.f32 %v1702
  %vm1709 = vmor %vm1707, %vm1708
  %v1710 = vsel %vm1709, %v1702, %v1706
  %v1711 = vand.u32 2147483647, %v1701
  %vm1712 = vcmp.eq.f32.partialorder %v1711, 8.507059e+37
  %v1713 = vand.u32 %v1701, 2147483648
  %v1714 = vor.u32 1.1754944e-38, %v1713
  %v1715 = vsel %vm1712, %v1714, %v1710
  %v1716 = vmul.f32 1.0, %v1715
  %v1717 = vtanh.pop %v1655
  %v1718 = vmul.f32 %v1716, %v1656
  %1720 = vrot.lane.b32.xlu0 %v1717, 64
  %v1721 = vpop.permute.xlu0 %1720
  %v1723 = vmul.f32 %v1716, %v1721
  %1725 = vrot.lane.b32.xlu0 %v1723, 32
  %v1726 = vpop.permute.xlu0 %1725
  %v1728 = vadd.f32 %v1718, %v1726
  %v1729 = vtanh.pop %v1728
  %1731 = vrot.lane.b32.xlu0 %v1729, 64
  %v1732 = vpop.permute.xlu0 %1731
  %v1734 = vmul.f32 %v1716, %v1732
  %v1735 = vld [vmem:[%s317] sm:$0xff]
  %v1736 = vld [vmem:[%s1] sm:$0xff]
  %1738 = vset.pattern.permute.xlu0 0
  %1739 = vperm.xlu0 %1738, %v1735
  %v1740 = vpop.permute.xlu0 %1739
  %v1742 = vmul.f32 %v1697, %v1740
  %v1743 = vmul.f32 %v1691, %v1740
  %1745 = vset.pattern.permute.xlu0 0
  %1746 = vperm.xlu0 %1745, %v1736
  %v1747 = vpop.permute.xlu0 %1746
  %v1749 = vmul.f32 %v1734, %v1747
  %v1750 = vmul.f32 %v1728, %v1747
  %1752 = vrot.lane.b32.xlu0 %v1742, 32
  %v1753 = vpop.permute.xlu0 %1752
  %1756 = vrot.lane.b32.xlu0 %v1749, 64
  %v1757 = vpop.permute.xlu0 %1756
  %v1759 = vsel %vm63, %v1753, %v1757
  %1760 = vst.msk [vmem:[#allocation3] sm:$0xff] %vm150, %v1759
  %1762 = vrot.lane.b32.xlu0 %v1743, 96
  %v1763 = vpop.permute.xlu0 %1762
  %v1765 = vsel %vm63, %v1763, %v1750
  %1766 = vst.msk [vmem:[#allocation4] sm:$0xff] %vm150, %v1765
  %s1767 = scalar_lea.vmem [#allocation5], 56
  %1768 = vst.msk [vmem:[%s1767] sm:$0xff] %vm63, %v1753
  %1769 = vrot.lane.b32.xlu0 %v1749, 32
  %v1770 = vpop.permute.xlu0 %1769
  %1772 = vst.msk [vmem:[#allocation6] sm:$0xff] %vm63, %v1770
  %v1773 = vld [vmem:[#allocation5] sm:$0xff]
  %v1774 = vld [vmem:[#allocation5 + $0x8] sm:$0xff]
  %v1775 = vld [vmem:[#allocation5 + $0x10] sm:$0xff]
  %v1776 = vld [vmem:[#allocation5 + $0x18] sm:$0xff]
  %v1777 = vld [vmem:[#allocation5 + $0x20] sm:$0xff]
  %v1778 = vld [vmem:[#allocation5 + $0x28] sm:$0xff]
  %v1779 = vld [vmem:[#allocation5 + $0x30] sm:$0xff]
  %v1780 = vld [vmem:[#allocation5 + $0x38] sm:$0xff]
  %v1781 = vld [vmem:[#allocation6] sm:$0xff]
  %v1782 = vld [vmem:[#allocation6 + $0x8] sm:$0xff]
  %v1783 = vld [vmem:[#allocation6 + $0x10] sm:$0xff]
  %v1784 = vld [vmem:[#allocation6 + $0x18] sm:$0xff]
  %v1785 = vld [vmem:[#allocation6 + $0x20] sm:$0xff]
  %v1786 = vld [vmem:[#allocation6 + $0x28] sm:$0xff]
  %v1787 = vld [vmem:[#allocation6 + $0x30] sm:$0xff]
  %v1788 = vld [vmem:[#allocation6 + $0x38] sm:$0xff]
  %1797 = vrot.lane.b32.xlu0 %v1781, 32
  %v1798 = vpop.permute.xlu0 %1797
  %1799 = vrot.lane.b32.xlu0 %v1782, 32
  %v1800 = vpop.permute.xlu0 %1799
  %1801 = vrot.lane.b32.xlu0 %v1783, 32
  %v1802 = vpop.permute.xlu0 %1801
  %1803 = vrot.lane.b32.xlu0 %v1784, 32
  %v1804 = vpop.permute.xlu0 %1803
  %1805 = vrot.lane.b32.xlu0 %v1785, 32
  %v1806 = vpop.permute.xlu0 %1805
  %1807 = vrot.lane.b32.xlu0 %v1786, 32
  %v1808 = vpop.permute.xlu0 %1807
  %1809 = vrot.lane.b32.xlu0 %v1787, 32
  %v1810 = vpop.permute.xlu0 %1809
  %1811 = vrot.lane.b32.xlu0 %v1788, 32
  %v1812 = vpop.permute.xlu0 %1811
  %v1821 = vsel %vm63, %v1773, %v1798
  %v1822 = vsel %vm63, %v1774, %v1800
  %v1823 = vsel %vm63, %v1775, %v1802
  %v1824 = vsel %vm63, %v1776, %v1804
  %v1825 = vsel %vm63, %v1777, %v1806
  %v1826 = vsel %vm63, %v1778, %v1808
  %v1827 = vsel %vm63, %v1779, %v1810
  %v1828 = vsel %vm63, %v1780, %v1812
  %1829 = vst.msk [vmem:[%s5] sm:$0xff] %vm150, %v1821
  %1830 = vst.msk [vmem:[%s5 + $0x8] sm:$0xff] %vm150, %v1822
  %1831 = vst.msk [vmem:[%s5 + $0x10] sm:$0xff] %vm150, %v1823
  %1832 = vst.msk [vmem:[%s5 + $0x18] sm:$0xff] %vm150, %v1824
  %1833 = vst.msk [vmem:[%s5 + $0x20] sm:$0xff] %vm150, %v1825
  %1834 = vst.msk [vmem:[%s5 + $0x28] sm:$0xff] %vm150, %v1826
  %1835 = vst.msk [vmem:[%s5 + $0x30] sm:$0xff] %vm150, %v1827
  %1836 = vst.msk [vmem:[%s5 + $0x38] sm:$0xff] %vm150, %v1828
  // Predicated region
  $region22: #{segmenter_forward.3} parent=0 // pred_check
    _
  $region23: #{segmenter_forward.3} parent=0 // pred_check_branch
    %1838 = sbr.rel (0) target = $region25
  $region24: #{segmenter_forward.3} parent=0 // pred_region
    _
  $region25: #{segmenter_forward.3} parent=0 // pred_fallthru
    _
  // Predicated region
  $region26: #{segmenter_forward.3} parent=0 // pred_check
    _
  $region27: #{segmenter_forward.3} parent=0 // pred_check_branch
    %1840 = sbr.rel (0) target = $region29
  $region28: #{segmenter_forward.3} parent=0 // pred_region
    _
  $region29: #{segmenter_forward.3} parent=0 // pred_fallthru
    _

</llo_original>
